<compile_context>
chip_gen: v5e
topology: v5e:2x2
jax: 0.10.0
libtpu: 0.0.40
codegen_flags: <defaults>
</compile_context>

<pallas_src>
import jax
import jax.numpy as jnp
from jax.experimental import pallas as pl
from jax.experimental.pallas import tpu as pltpu

_BN_EPS = 1e-5
_PREC = jax.lax.Precision.HIGHEST


def _round_up(x, m):
    return (x + m - 1) // m * m


# ----------------------------- Pallas kernels ------------------------------ #

def _make_conv1_kernel(offsets, tm):
    """3x3x3 conv as 27 statically-shifted windows + one GEMM per tile, with
    fused masked sum / sum-of-squares for the BatchNorm statistics."""

    def kernel(w_ref, xm1_ref, x0_ref, xp1_ref, mask_ref, y_ref, stats_ref):
        # halo'd slab covering flat positions [q0 - TM, q0 + 2*TM)
        big = jnp.concatenate([xm1_ref[...], x0_ref[...], xp1_ref[...]], axis=1)
        # per-tile "im2col" lives only in VMEM, never in HBM
        cols = jnp.concatenate(
            [big[:, tm + o: 2 * tm + o] for o in offsets], axis=0)      # (27*CP, TM)
        acc = jnp.dot(w_ref[...], cols, precision=_PREC,
                      preferred_element_type=jnp.float32)               # (CP, TM)
        y_ref[...] = acc
        m = mask_ref[...]                                               # (1, TM)
        s = jnp.sum(acc * m, axis=1, keepdims=True)                     # (CP, 1)
        ss = jnp.sum(acc * acc * m, axis=1, keepdims=True)              # (CP, 1)
        stats_ref[...] = jnp.concatenate([s, ss], axis=1)[None]         # (1, CP, 2)

    return kernel


def _make_conv2_kernel(offsets, tm):
    """Second conv, with BN1 + ReLU + padding-mask fused onto its input path
    (inputs are the *raw* conv1 outputs; h never round-trips through HBM)."""

    def kernel(w_ref, scale_ref, shift_ref,
               ym1_ref, y0_ref, yp1_ref,
               mm1_ref, m0_ref, mp1_ref,
               y_ref, stats_ref):
        scale = scale_ref[...]                                          # (CP, 1)
        shift = shift_ref[...]                                          # (CP, 1)

        def norm(yblk, mblk):  # bn1 -> relu -> re-zero spatial padding
            return jnp.maximum(yblk * scale + shift, 0.0) * mblk

        big = jnp.concatenate([norm(ym1_ref[...], mm1_ref[...]),
                               norm(y0_ref[...], m0_ref[...]),
                               norm(yp1_ref[...], mp1_ref[...])], axis=1)
        cols = jnp.concatenate(
            [big[:, tm + o: 2 * tm + o] for o in offsets], axis=0)      # (27*CP, TM)
        acc = jnp.dot(w_ref[...], cols, precision=_PREC,
                      preferred_element_type=jnp.float32)               # (CP, TM)
        y_ref[...] = acc
        m = m0_ref[...]
        s = jnp.sum(acc * m, axis=1, keepdims=True)
        ss = jnp.sum(acc * acc * m, axis=1, keepdims=True)
        stats_ref[...] = jnp.concatenate([s, ss], axis=1)[None]         # (1, CP, 2)

    return kernel


def _bn_add_relu_kernel(scale_ref, shift_ref, y_ref, res_ref, o_ref):
    o_ref[...] = jnp.maximum(
        y_ref[...] * scale_ref[...] + shift_ref[...] + res_ref[...], 0.0)


# ------------------------------ pallas wrappers ----------------------------- #

def _conv1_pass(x_ext, w_mat, mask_body, *, cp, t, tm, offsets):
    flops = 2 * (27 * cp) * cp * (t * tm)
    bytes_accessed = 4 * (3 * cp * t * tm + w_mat.size + mask_body.size
                          + cp * t * tm + t * cp * 2)
    return pl.pallas_call(
        _make_conv1_kernel(offsets, tm),
        out_shape=(jax.ShapeDtypeStruct((cp, t * tm), jnp.float32),     # conv output
                   jax.ShapeDtypeStruct((t, cp, 2), jnp.float32)),      # per-tile stats
        grid=(t,),
        in_specs=[
            pl.BlockSpec((cp, 27 * cp), lambda i: (0, 0)),   # weights (whole, small)
            pl.BlockSpec((cp, tm), lambda i: (0, i)),        # prev tile (halo)
            pl.BlockSpec((cp, tm), lambda i: (0, i + 1)),    # current tile
            pl.BlockSpec((cp, tm), lambda i: (0, i + 2)),    # next tile (halo)
            pl.BlockSpec((1, tm), lambda i: (0, i)),         # interior-voxel mask
        ],
        out_specs=(
            pl.BlockSpec((cp, tm), lambda i: (0, i)),
            pl.BlockSpec((1, cp, 2), lambda i: (i, 0, 0)),
        ),
        compiler_params=pltpu.CompilerParams(dimension_semantics=("parallel",)),
        cost_estimate=pl.CostEstimate(flops=int(flops), transcendentals=0,
                                      bytes_accessed=int(bytes_accessed)),
    )(w_mat, x_ext, x_ext, x_ext, mask_body)


def _conv2_pass(y1_ext, w_mat, scale1, shift1, mask_ext, *, cp, t, tm, offsets):
    flops = 2 * (27 * cp) * cp * (t * tm) + 6 * cp * 3 * (t * tm)
    bytes_accessed = 4 * (3 * cp * t * tm + 3 * t * tm + w_mat.size
                          + cp * t * tm + t * cp * 2)
    return pl.pallas_call(
        _make_conv2_kernel(offsets, tm),
        out_shape=(jax.ShapeDtypeStruct((cp, t * tm), jnp.float32),
                   jax.ShapeDtypeStruct((t, cp, 2), jnp.float32)),
        grid=(t,),
        in_specs=[
            pl.BlockSpec((cp, 27 * cp), lambda i: (0, 0)),   # weights
            pl.BlockSpec((cp, 1), lambda i: (0, 0)),         # bn1 scale
            pl.BlockSpec((cp, 1), lambda i: (0, 0)),         # bn1 shift
            pl.BlockSpec((cp, tm), lambda i: (0, i)),        # y1 prev (halo)
            pl.BlockSpec((cp, tm), lambda i: (0, i + 1)),    # y1 current
            pl.BlockSpec((cp, tm), lambda i: (0, i + 2)),    # y1 next (halo)
            pl.BlockSpec((1, tm), lambda i: (0, i)),         # mask prev
            pl.BlockSpec((1, tm), lambda i: (0, i + 1)),     # mask current
            pl.BlockSpec((1, tm), lambda i: (0, i + 2)),     # mask next
        ],
        out_specs=(
            pl.BlockSpec((cp, tm), lambda i: (0, i)),
            pl.BlockSpec((1, cp, 2), lambda i: (i, 0, 0)),
        ),
        compiler_params=pltpu.CompilerParams(dimension_semantics=("parallel",)),
        cost_estimate=pl.CostEstimate(flops=int(flops), transcendentals=0,
                                      bytes_accessed=int(bytes_accessed)),
    )(w_mat, scale1, shift1, y1_ext, y1_ext, y1_ext, mask_ext, mask_ext, mask_ext)


def _bn_add_relu_pass(y, scale, shift, res, *, cp, t, tm):
    return pl.pallas_call(
        _bn_add_relu_kernel,
        out_shape=jax.ShapeDtypeStruct((cp, t * tm), jnp.float32),
        grid=(t,),
        in_specs=[
            pl.BlockSpec((cp, 1), lambda i: (0, 0)),
            pl.BlockSpec((cp, 1), lambda i: (0, 0)),
            pl.BlockSpec((cp, tm), lambda i: (0, i)),
            pl.BlockSpec((cp, tm), lambda i: (0, i)),
        ],
        out_specs=pl.BlockSpec((cp, tm), lambda i: (0, i)),
        compiler_params=pltpu.CompilerParams(dimension_semantics=("parallel",)),
    )(scale, shift, y, res)


def _bn_scale_shift(stats, gamma_p, beta_p, count):
    """Combine per-tile (sum, sumsq) -> per-channel scale/shift (done once)."""
    s = jnp.sum(stats[:, :, 0], axis=0)
    ss = jnp.sum(stats[:, :, 1], axis=0)
    mean = s / count
    # TODO(synk): switch to per-tile Welford combine if activations can be huge
    var = jnp.maximum(ss / count - mean * mean, 0.0)
    scale = gamma_p * jax.lax.rsqrt(var + _BN_EPS)
    shift = beta_p - mean * scale
    return scale.reshape(-1, 1), shift.reshape(-1, 1)


# --------------------------------- forward ---------------------------------- #

@jax.jit
def simple_rb_forward(x_ncdhw, params):
    """SimpleRB.forward.  x: (N, C, D, H, W) float32, returns same shape."""
    N, C, D, H, W = x_ncdhw.shape
    CP = _round_up(max(C, 8), 8)                     # sublane-aligned channel count
    Dp, Hp, Wp = D + 2, H + 2, W + 2
    Mp = N * Dp * Hp * Wp
    halo = Hp * Wp + Wp + 1                          # max |flat tap offset|
    TM = max(512, _round_up(halo, 128))              # lane-tile width (sweepable)
    T = -(-Mp // TM)
    body_len = T * TM
    count = float(N * D * H * W)                     # BN population per channel

    offsets = [(kd - 1) * Hp * Wp + (kh - 1) * Wp + (kw - 1)
               for kd in range(3) for kh in range(3) for kw in range(3)]

    x = x_ncdhw.astype(jnp.float32)
    # channels-first, channel-padded to CP, spatially zero-padded, flattened
    x_pf = jnp.pad(jnp.transpose(x, (1, 0, 2, 3, 4)),
                   ((0, CP - C), (0, 0), (1, 1), (1, 1), (1, 1))).reshape(CP, Mp)
    x_body = jnp.pad(x_pf, ((0, 0), (0, body_len - Mp)))
    x_ext = jnp.pad(x_body, ((0, 0), (TM, TM)))      # halo tiles at both ends

    # 1 at real voxels, 0 at padding / tail (used for stats + re-zeroing)
    mask = jnp.pad(jnp.ones((N, D, H, W), jnp.float32),
                   ((0, 0), (1, 1), (1, 1), (1, 1))).reshape(1, Mp)
    mask_body = jnp.pad(mask, ((0, 0), (0, body_len - Mp)))
    mask_ext = jnp.pad(mask_body, ((0, 0), (TM, TM)))

    def w_to_mat(w):
        # (Cout, Cin, 3, 3, 3) -> zero-pad channels to CP -> (CP, 27*CP), tap-major
        w_p = jnp.pad(w.astype(jnp.float32),
                      ((0, CP - C), (0, CP - C), (0, 0), (0, 0), (0, 0)))
        return jnp.transpose(w_p, (0, 2, 3, 4, 1)).reshape(CP, 27 * CP)

    def pad_vec(v):
        return jnp.pad(v.astype(jnp.float32), (0, CP - C))   # padded channels -> 0

    g1, b1 = pad_vec(params["g1"]), pad_vec(params["b1"])
    g2, b2 = pad_vec(params["g2"]), pad_vec(params["b2"])

    # ---- stage 1: conv1 with fused BN statistics ----
    y1, st1 = _conv1_pass(x_ext, w_to_mat(params["w1"]), mask_body,
                          cp=CP, t=T, tm=TM, offsets=offsets)
    sc1, sh1 = _bn_scale_shift(st1, g1, b1, count)

    # ---- stage 2: conv2 with bn1+relu fused on its input path + BN2 stats ----
    y1_ext = jnp.pad(y1, ((0, 0), (TM, TM)))
    y2, st2 = _conv2_pass(y1_ext, w_to_mat(params["w2"]), sc1, sh1, mask_ext,
                          cp=CP, t=T, tm=TM, offsets=offsets)
    sc2, sh2 = _bn_scale_shift(st2, g2, b2, count)

    # ---- stage 3: bn2 + residual + relu (lane-dense elementwise) ----
    out_body = _bn_add_relu_pass(y2, sc2, sh2, x_body, cp=CP, t=T, tm=TM)

    out = out_body[:C, :Mp].reshape(C, N, Dp, Hp, Wp)[:, :, 1:-1, 1:-1, 1:-1]
    return jnp.transpose(out, (1, 0, 2, 3, 4))       # -> (N, C, D, H, W)


# ------------------------- pure-JAX reference check ------------------------ #

def _conv3d_ref(x_ndhwc, w):
    w_dhwio = jnp.transpose(w, (2, 3, 4, 1, 0))
    return jax.lax.conv_general_dilated(
        x_ndhwc, w_dhwio, window_strides=(1, 1, 1),
        padding=((1, 1), (1, 1), (1, 1)),
        dimension_numbers=("NDHWC", "DHWIO", "NDHWC"),
        precision=jax.lax.Precision.HIGHEST)


def _bn_ref(x, gamma, beta):
    mean = jnp.mean(x, axis=(0, 1, 2, 3), keepdims=True)
    var = jnp.mean((x - mean) ** 2, axis=(0, 1, 2, 3), keepdims=True)
    return (x - mean) * jax.lax.rsqrt(var + _BN_EPS) * gamma + beta


def simple_rb_reference(x_ncdhw, params):
    x = jnp.transpose(x_ncdhw, (0, 2, 3, 4, 1)).astype(jnp.float32)
    h = jax.nn.relu(_bn_ref(_conv3d_ref(x, params["w1"]), params["g1"], params["b1"]))
    y = _bn_ref(_conv3d_ref(h, params["w2"]), params["g2"], params["b2"])
    out = jax.nn.relu(y + x)
    return jnp.transpose(out, (0, 4, 1, 2, 3))


# ---------------------------------- main ----------------------------------- #

if __name__ == "__main__":
    N, C, D, H, W = 2, 4, 8, 8, 8
    key = jax.random.PRNGKey(0)
    kx, k1, k2, k3, k4, k5, k6 = jax.random.split(key, 7)

    x = jax.random.normal(kx, (N, C, D, H, W), jnp.float32)
    params = {
        # Conv3d weights: (C_out, C_in, 3, 3, 3), bias=False
        "w1": 0.1 * jax.random.normal(k1, (C, C, 3, 3, 3), jnp.float32),
        "w2": 0.1 * jax.random.normal(k4, (C, C, 3, 3, 3), jnp.float32),
        # BatchNorm3d affine params (gamma, beta)
        "g1": 1.0 + 0.1 * jax.random.normal(k2, (C,), jnp.float32),
        "b1": 0.1 * jax.random.normal(k3, (C,), jnp.float32),
        "g2": 1.0 + 0.1 * jax.random.normal(k5, (C,), jnp.float32),
        "b2": 0.1 * jax.random.normal(k6, (C,), jnp.float32),
    }

    out = jax.block_until_ready(simple_rb_forward(x, params))
    ref = jax.block_until_ready(simple_rb_reference(x, params))

    assert out.shape == x.shape, (out.shape, x.shape)
    max_err = float(jnp.max(jnp.abs(out - ref)))
    if max_err < 2e-2:
        print("KERNEL_OK")
    else:
        print(f"MISMATCH max_abs_err={max_err}")
</pallas_src>

<mosaic_0001>
module attributes {stable_mosaic.version = 11 : i64} {
  func.func @kernel(%arg0: i32, %arg1: memref<8x216xf32, #tpu.memory_space<vmem>>, %arg2: memref<8x512xf32, #tpu.memory_space<vmem>>, %arg3: memref<8x512xf32, #tpu.memory_space<vmem>>, %arg4: memref<8x512xf32, #tpu.memory_space<vmem>>, %arg5: memref<1x512xf32, #tpu.memory_space<vmem>>, %arg6: memref<8x512xf32, #tpu.memory_space<vmem>>, %arg7: memref<1x8x2xf32, #tpu.memory_space<vmem>>) attributes {dimension_semantics = [#tpu.dimension_semantics<parallel>], iteration_bounds = array<i64: 4>, scalar_prefetch = 0 : i64, scratch_operands = 0 : i64, tpu.core_type = #tpu.core_type<tc>, window_params = [{pipeline_mode = #tpu.pipeline_mode<synchronous>, transform_indices = @transform_0, window_bounds = array<i64: 8, 216>}, {transform_indices = @transform_1, window_bounds = array<i64: 8, 512>}, {transform_indices = @transform_2, window_bounds = array<i64: 8, 512>}, {transform_indices = @transform_3, window_bounds = array<i64: 8, 512>}, {transform_indices = @transform_4, window_bounds = array<i64: 1, 512>}, {transform_indices = @transform_5, window_bounds = array<i64: 8, 512>}, {transform_indices = @transform_6, window_bounds = array<i64: 1, 8, 2>}]} {
    %c0 = arith.constant 0 : index
    %c0_0 = arith.constant 0 : index
    %0 = vector.load %arg2[%c0, %c0_0] : memref<8x512xf32, #tpu.memory_space<vmem>>, vector<8x512xf32>
    %c0_1 = arith.constant 0 : index
    %c0_2 = arith.constant 0 : index
    %1 = vector.load %arg3[%c0_1, %c0_2] : memref<8x512xf32, #tpu.memory_space<vmem>>, vector<8x512xf32>
    %c0_3 = arith.constant 0 : index
    %c0_4 = arith.constant 0 : index
    %2 = vector.load %arg4[%c0_3, %c0_4] : memref<8x512xf32, #tpu.memory_space<vmem>>, vector<8x512xf32>
    %3 = tpu.concatenate %0, %1, %2 in 1 : vector<8x512xf32>, vector<8x512xf32>, vector<8x512xf32> -> vector<8x1536xf32>
    %4 = vector.extract_strided_slice %3 {offsets = [0, 401], sizes = [8, 512], strides = [1, 1]} : vector<8x1536xf32> to vector<8x512xf32>
    %5 = vector.extract_strided_slice %3 {offsets = [0, 402], sizes = [8, 512], strides = [1, 1]} : vector<8x1536xf32> to vector<8x512xf32>
    %6 = vector.extract_strided_slice %3 {offsets = [0, 403], sizes = [8, 512], strides = [1, 1]} : vector<8x1536xf32> to vector<8x512xf32>
    %7 = vector.extract_strided_slice %3 {offsets = [0, 411], sizes = [8, 512], strides = [1, 1]} : vector<8x1536xf32> to vector<8x512xf32>
    %8 = vector.extract_strided_slice %3 {offsets = [0, 412], sizes = [8, 512], strides = [1, 1]} : vector<8x1536xf32> to vector<8x512xf32>
    %9 = vector.extract_strided_slice %3 {offsets = [0, 413], sizes = [8, 512], strides = [1, 1]} : vector<8x1536xf32> to vector<8x512xf32>
    %10 = vector.extract_strided_slice %3 {offsets = [0, 421], sizes = [8, 512], strides = [1, 1]} : vector<8x1536xf32> to vector<8x512xf32>
    %11 = vector.extract_strided_slice %3 {offsets = [0, 422], sizes = [8, 512], strides = [1, 1]} : vector<8x1536xf32> to vector<8x512xf32>
    %12 = vector.extract_strided_slice %3 {offsets = [0, 423], sizes = [8, 512], strides = [1, 1]} : vector<8x1536xf32> to vector<8x512xf32>
    %13 = vector.extract_strided_slice %3 {offsets = [0, 501], sizes = [8, 512], strides = [1, 1]} : vector<8x1536xf32> to vector<8x512xf32>
    %14 = vector.extract_strided_slice %3 {offsets = [0, 502], sizes = [8, 512], strides = [1, 1]} : vector<8x1536xf32> to vector<8x512xf32>
    %15 = vector.extract_strided_slice %3 {offsets = [0, 503], sizes = [8, 512], strides = [1, 1]} : vector<8x1536xf32> to vector<8x512xf32>
    %16 = vector.extract_strided_slice %3 {offsets = [0, 511], sizes = [8, 512], strides = [1, 1]} : vector<8x1536xf32> to vector<8x512xf32>
    %17 = vector.extract_strided_slice %3 {offsets = [0, 512], sizes = [8, 512], strides = [1, 1]} : vector<8x1536xf32> to vector<8x512xf32>
    %18 = vector.extract_strided_slice %3 {offsets = [0, 513], sizes = [8, 512], strides = [1, 1]} : vector<8x1536xf32> to vector<8x512xf32>
    %19 = vector.extract_strided_slice %3 {offsets = [0, 521], sizes = [8, 512], strides = [1, 1]} : vector<8x1536xf32> to vector<8x512xf32>
    %20 = vector.extract_strided_slice %3 {offsets = [0, 522], sizes = [8, 512], strides = [1, 1]} : vector<8x1536xf32> to vector<8x512xf32>
    %21 = vector.extract_strided_slice %3 {offsets = [0, 523], sizes = [8, 512], strides = [1, 1]} : vector<8x1536xf32> to vector<8x512xf32>
    %22 = vector.extract_strided_slice %3 {offsets = [0, 601], sizes = [8, 512], strides = [1, 1]} : vector<8x1536xf32> to vector<8x512xf32>
    %23 = vector.extract_strided_slice %3 {offsets = [0, 602], sizes = [8, 512], strides = [1, 1]} : vector<8x1536xf32> to vector<8x512xf32>
    %24 = vector.extract_strided_slice %3 {offsets = [0, 603], sizes = [8, 512], strides = [1, 1]} : vector<8x1536xf32> to vector<8x512xf32>
    %25 = vector.extract_strided_slice %3 {offsets = [0, 611], sizes = [8, 512], strides = [1, 1]} : vector<8x1536xf32> to vector<8x512xf32>
    %26 = vector.extract_strided_slice %3 {offsets = [0, 612], sizes = [8, 512], strides = [1, 1]} : vector<8x1536xf32> to vector<8x512xf32>
    %27 = vector.extract_strided_slice %3 {offsets = [0, 613], sizes = [8, 512], strides = [1, 1]} : vector<8x1536xf32> to vector<8x512xf32>
    %28 = vector.extract_strided_slice %3 {offsets = [0, 621], sizes = [8, 512], strides = [1, 1]} : vector<8x1536xf32> to vector<8x512xf32>
    %29 = vector.extract_strided_slice %3 {offsets = [0, 622], sizes = [8, 512], strides = [1, 1]} : vector<8x1536xf32> to vector<8x512xf32>
    %30 = vector.extract_strided_slice %3 {offsets = [0, 623], sizes = [8, 512], strides = [1, 1]} : vector<8x1536xf32> to vector<8x512xf32>
    %31 = tpu.concatenate %4, %5, %6, %7, %8, %9, %10, %11, %12, %13, %14, %15, %16, %17, %18, %19 in 0 : vector<8x512xf32>, vector<8x512xf32>, vector<8x512xf32>, vector<8x512xf32>, vector<8x512xf32>, vector<8x512xf32>, vector<8x512xf32>, vector<8x512xf32>, vector<8x512xf32>, vector<8x512xf32>, vector<8x512xf32>, vector<8x512xf32>, vector<8x512xf32>, vector<8x512xf32>, vector<8x512xf32>, vector<8x512xf32> -> vector<128x512xf32>
    %32 = tpu.concatenate %20, %21, %22, %23, %24, %25, %26, %27, %28, %29, %30 in 0 : vector<8x512xf32>, vector<8x512xf32>, vector<8x512xf32>, vector<8x512xf32>, vector<8x512xf32>, vector<8x512xf32>, vector<8x512xf32>, vector<8x512xf32>, vector<8x512xf32>, vector<8x512xf32>, vector<8x512xf32> -> vector<88x512xf32>
    %33 = tpu.concatenate %31, %32 in 0 : vector<128x512xf32>, vector<88x512xf32> -> vector<216x512xf32>
    %c0_5 = arith.constant 0 : index
    %c0_6 = arith.constant 0 : index
    %34 = vector.load %arg1[%c0_5, %c0_6] : memref<8x216xf32, #tpu.memory_space<vmem>>, vector<8x216xf32>
    %cst = arith.constant dense<0.000000e+00> : vector<8x512xf32>
    %35 = tpu.matmul %34, %33, %cst {dimension_numbers = #tpu.dot_dimension_numbers<[1], [0], [0], [1], [0, 0, 1, 1], [], []>, precision = #tpu.contract_precision<fp32>} : vector<8x216xf32>, vector<216x512xf32>, vector<8x512xf32> -> vector<8x512xf32>
    %c0_7 = arith.constant 0 : index
    %c0_8 = arith.constant 0 : index
    %36 = vector.load %arg6[%c0_7, %c0_8] : memref<8x512xf32, #tpu.memory_space<vmem>>, vector<8x512xf32>
    tpu.vector_store %arg6[%c0_7, %c0_8], %35 {strides = array<i32>} : memref<8x512xf32, #tpu.memory_space<vmem>>, vector<8x512xf32>,
    %c0_9 = arith.constant 0 : index
    %c0_10 = arith.constant 0 : index
    %37 = vector.load %arg5[%c0_9, %c0_10] : memref<1x512xf32, #tpu.memory_space<vmem>>, vector<1x512xf32>
    %38 = vector.broadcast %37 : vector<1x512xf32> to vector<8x512xf32>
    %39 = arith.mulf %35, %38 : vector<8x512xf32>
    %cst_11 = arith.constant dense<0.000000e+00> : vector<8xf32>
    %40 = vector.multi_reduction <add>, %39, %cst_11 [1] : vector<8x512xf32> to vector<8xf32>
    %41 = vector.shape_cast %40 : vector<8xf32> to vector<8x1xf32>
    %42 = arith.mulf %35, %35 : vector<8x512xf32>
    %43 = vector.broadcast %37 : vector<1x512xf32> to vector<8x512xf32>
    %44 = arith.mulf %42, %43 : vector<8x512xf32>
    %cst_12 = arith.constant dense<0.000000e+00> : vector<8xf32>
    %45 = vector.multi_reduction <add>, %44, %cst_12 [1] : vector<8x512xf32> to vector<8xf32>
    %46 = vector.shape_cast %45 : vector<8xf32> to vector<8x1xf32>
    %47 = tpu.concatenate %41, %46 in 1 : vector<8x1xf32>, vector<8x1xf32> -> vector<8x2xf32>
    %48 = vector.shape_cast %47 : vector<8x2xf32> to vector<1x8x2xf32>
    %c0_13 = arith.constant 0 : index
    %c0_14 = arith.constant 0 : index
    %c0_15 = arith.constant 0 : index
    %49 = vector.load %arg7[%c0_13, %c0_14, %c0_15] : memref<1x8x2xf32, #tpu.memory_space<vmem>>, vector<1x8x2xf32>
    tpu.vector_store %arg7[%c0_13, %c0_14, %c0_15], %48 {strides = array<i32>} : memref<1x8x2xf32, #tpu.memory_space<vmem>>, vector<1x8x2xf32>,
    return
  }
  func.func @transform_0(%arg0: i32) -> (i32, i32) {
    %c0_i32 = arith.constant 0 : i32
    %c0_i32_0 = arith.constant 0 : i32
    %c0_i32_1 = arith.constant 0 : i32
    return %c0_i32, %c0_i32_0 : i32, i32
  }
  func.func @transform_1(%arg0: i32) -> (i32, i32) {
    %c0_i32 = arith.constant 0 : i32
    %c0_i32_0 = arith.constant 0 : i32
    return %c0_i32, %arg0 : i32, i32
  }
  func.func @transform_2(%arg0: i32) -> (i32, i32) {
    %c1_i32 = arith.constant 1 : i32
    %0 = arith.addi %arg0, %c1_i32 : i32
    %c0_i32 = arith.constant 0 : i32
    %c0_i32_0 = arith.constant 0 : i32
    return %c0_i32, %0 : i32, i32
  }
  func.func @transform_3(%arg0: i32) -> (i32, i32) {
    %c2_i32 = arith.constant 2 : i32
    %0 = arith.addi %arg0, %c2_i32 : i32
    %c0_i32 = arith.constant 0 : i32
    %c0_i32_0 = arith.constant 0 : i32
    return %c0_i32, %0 : i32, i32
  }
  func.func @transform_4(%arg0: i32) -> (i32, i32) {
    %c0_i32 = arith.constant 0 : i32
    %c0_i32_0 = arith.constant 0 : i32
    return %c0_i32, %arg0 : i32, i32
  }
  func.func @transform_5(%arg0: i32) -> (i32, i32) {
    %c0_i32 = arith.constant 0 : i32
    %c0_i32_0 = arith.constant 0 : i32
    return %c0_i32, %arg0 : i32, i32
  }
  func.func @transform_6(%arg0: i32) -> (i32, i32, i32) {
    %c0_i32 = arith.constant 0 : i32
    %c0_i32_0 = arith.constant 0 : i32
    %c0_i32_1 = arith.constant 0 : i32
    return %arg0, %c0_i32, %c0_i32_0 : i32, i32, i32
  }
}

module attributes {stable_mosaic.version = 11 : i64} {
  func.func @kernel(%arg0: i32, %arg1: memref<8x216xf32, #tpu.memory_space<vmem>>, %arg2: memref<8x1xf32, #tpu.memory_space<vmem>>, %arg3: memref<8x1xf32, #tpu.memory_space<vmem>>, %arg4: memref<8x512xf32, #tpu.memory_space<vmem>>, %arg5: memref<8x512xf32, #tpu.memory_space<vmem>>, %arg6: memref<8x512xf32, #tpu.memory_space<vmem>>, %arg7: memref<1x512xf32, #tpu.memory_space<vmem>>, %arg8: memref<1x512xf32, #tpu.memory_space<vmem>>, %arg9: memref<1x512xf32, #tpu.memory_space<vmem>>, %arg10: memref<8x512xf32, #tpu.memory_space<vmem>>, %arg11: memref<1x8x2xf32, #tpu.memory_space<vmem>>) attributes {dimension_semantics = [#tpu.dimension_semantics<parallel>], iteration_bounds = array<i64: 4>, scalar_prefetch = 0 : i64, scratch_operands = 0 : i64, tpu.core_type = #tpu.core_type<tc>, window_params = [{pipeline_mode = #tpu.pipeline_mode<synchronous>, transform_indices = @transform_0, window_bounds = array<i64: 8, 216>}, {pipeline_mode = #tpu.pipeline_mode<synchronous>, transform_indices = @transform_1, window_bounds = array<i64: 8, 1>}, {pipeline_mode = #tpu.pipeline_mode<synchronous>, transform_indices = @transform_2, window_bounds = array<i64: 8, 1>}, {transform_indices = @transform_3, window_bounds = array<i64: 8, 512>}, {transform_indices = @transform_4, window_bounds = array<i64: 8, 512>}, {transform_indices = @transform_5, window_bounds = array<i64: 8, 512>}, {transform_indices = @transform_6, window_bounds = array<i64: 1, 512>}, {transform_indices = @transform_7, window_bounds = array<i64: 1, 512>}, {transform_indices = @transform_8, window_bounds = array<i64: 1, 512>}, {transform_indices = @transform_9, window_bounds = array<i64: 8, 512>}, {transform_indices = @transform_10, window_bounds = array<i64: 1, 8, 2>}]} {
    %c0 = arith.constant 0 : index
    %c0_0 = arith.constant 0 : index
    %0 = vector.load %arg2[%c0, %c0_0] : memref<8x1xf32, #tpu.memory_space<vmem>>, vector<8x1xf32>
    %c0_1 = arith.constant 0 : index
    %c0_2 = arith.constant 0 : index
    %1 = vector.load %arg3[%c0_1, %c0_2] : memref<8x1xf32, #tpu.memory_space<vmem>>, vector<8x1xf32>
    %c0_3 = arith.constant 0 : index
    %c0_4 = arith.constant 0 : index
    %2 = vector.load %arg4[%c0_3, %c0_4] : memref<8x512xf32, #tpu.memory_space<vmem>>, vector<8x512xf32>
    %c0_5 = arith.constant 0 : index
    %c0_6 = arith.constant 0 : index
    %3 = vector.load %arg7[%c0_5, %c0_6] : memref<1x512xf32, #tpu.memory_space<vmem>>, vector<1x512xf32>
    %4 = vector.broadcast %0 : vector<8x1xf32> to vector<8x512xf32>
    %5 = arith.mulf %2, %4 : vector<8x512xf32>
    %6 = vector.broadcast %1 : vector<8x1xf32> to vector<8x512xf32>
    %7 = arith.addf %5, %6 : vector<8x512xf32>
    %cst = arith.constant 0.000000e+00 : f32
    %8 = vector.broadcast %cst : f32 to vector<8x512xf32>
    %9 = arith.maximumf %7, %8 : vector<8x512xf32>
    %10 = vector.broadcast %3 : vector<1x512xf32> to vector<8x512xf32>
    %11 = arith.mulf %9, %10 : vector<8x512xf32>
    %c0_7 = arith.constant 0 : index
    %c0_8 = arith.constant 0 : index
    %12 = vector.load %arg5[%c0_7, %c0_8] : memref<8x512xf32, #tpu.memory_space<vmem>>, vector<8x512xf32>
    %c0_9 = arith.constant 0 : index
    %c0_10 = arith.constant 0 : index
    %13 = vector.load %arg8[%c0_9, %c0_10] : memref<1x512xf32, #tpu.memory_space<vmem>>, vector<1x512xf32>
    %14 = vector.broadcast %0 : vector<8x1xf32> to vector<8x512xf32>
    %15 = arith.mulf %12, %14 : vector<8x512xf32>
    %16 = vector.broadcast %1 : vector<8x1xf32> to vector<8x512xf32>
    %17 = arith.addf %15, %16 : vector<8x512xf32>
    %cst_11 = arith.constant 0.000000e+00 : f32
    %18 = vector.broadcast %cst_11 : f32 to vector<8x512xf32>
    %19 = arith.maximumf %17, %18 : vector<8x512xf32>
    %20 = vector.broadcast %13 : vector<1x512xf32> to vector<8x512xf32>
    %21 = arith.mulf %19, %20 : vector<8x512xf32>
    %c0_12 = arith.constant 0 : index
    %c0_13 = arith.constant 0 : index
    %22 = vector.load %arg6[%c0_12, %c0_13] : memref<8x512xf32, #tpu.memory_space<vmem>>, vector<8x512xf32>
    %c0_14 = arith.constant 0 : index
    %c0_15 = arith.constant 0 : index
    %23 = vector.load %arg9[%c0_14, %c0_15] : memref<1x512xf32, #tpu.memory_space<vmem>>, vector<1x512xf32>
    %24 = vector.broadcast %0 : vector<8x1xf32> to vector<8x512xf32>
    %25 = arith.mulf %22, %24 : vector<8x512xf32>
    %26 = vector.broadcast %1 : vector<8x1xf32> to vector<8x512xf32>
    %27 = arith.addf %25, %26 : vector<8x512xf32>
    %cst_16 = arith.constant 0.000000e+00 : f32
    %28 = vector.broadcast %cst_16 : f32 to vector<8x512xf32>
    %29 = arith.maximumf %27, %28 : vector<8x512xf32>
    %30 = vector.broadcast %23 : vector<1x512xf32> to vector<8x512xf32>
    %31 = arith.mulf %29, %30 : vector<8x512xf32>
    %32 = tpu.concatenate %11, %21, %31 in 1 : vector<8x512xf32>, vector<8x512xf32>, vector<8x512xf32> -> vector<8x1536xf32>
    %33 = vector.extract_strided_slice %32 {offsets = [0, 401], sizes = [8, 512], strides = [1, 1]} : vector<8x1536xf32> to vector<8x512xf32>
    %34 = vector.extract_strided_slice %32 {offsets = [0, 402], sizes = [8, 512], strides = [1, 1]} : vector<8x1536xf32> to vector<8x512xf32>
    %35 = vector.extract_strided_slice %32 {offsets = [0, 403], sizes = [8, 512], strides = [1, 1]} : vector<8x1536xf32> to vector<8x512xf32>
    %36 = vector.extract_strided_slice %32 {offsets = [0, 411], sizes = [8, 512], strides = [1, 1]} : vector<8x1536xf32> to vector<8x512xf32>
    %37 = vector.extract_strided_slice %32 {offsets = [0, 412], sizes = [8, 512], strides = [1, 1]} : vector<8x1536xf32> to vector<8x512xf32>
    %38 = vector.extract_strided_slice %32 {offsets = [0, 413], sizes = [8, 512], strides = [1, 1]} : vector<8x1536xf32> to vector<8x512xf32>
    %39 = vector.extract_strided_slice %32 {offsets = [0, 421], sizes = [8, 512], strides = [1, 1]} : vector<8x1536xf32> to vector<8x512xf32>
    %40 = vector.extract_strided_slice %32 {offsets = [0, 422], sizes = [8, 512], strides = [1, 1]} : vector<8x1536xf32> to vector<8x512xf32>
    %41 = vector.extract_strided_slice %32 {offsets = [0, 423], sizes = [8, 512], strides = [1, 1]} : vector<8x1536xf32> to vector<8x512xf32>
    %42 = vector.extract_strided_slice %32 {offsets = [0, 501], sizes = [8, 512], strides = [1, 1]} : vector<8x1536xf32> to vector<8x512xf32>
    %43 = vector.extract_strided_slice %32 {offsets = [0, 502], sizes = [8, 512], strides = [1, 1]} : vector<8x1536xf32> to vector<8x512xf32>
    %44 = vector.extract_strided_slice %32 {offsets = [0, 503], sizes = [8, 512], strides = [1, 1]} : vector<8x1536xf32> to vector<8x512xf32>
    %45 = vector.extract_strided_slice %32 {offsets = [0, 511], sizes = [8, 512], strides = [1, 1]} : vector<8x1536xf32> to vector<8x512xf32>
    %46 = vector.extract_strided_slice %32 {offsets = [0, 512], sizes = [8, 512], strides = [1, 1]} : vector<8x1536xf32> to vector<8x512xf32>
    %47 = vector.extract_strided_slice %32 {offsets = [0, 513], sizes = [8, 512], strides = [1, 1]} : vector<8x1536xf32> to vector<8x512xf32>
    %48 = vector.extract_strided_slice %32 {offsets = [0, 521], sizes = [8, 512], strides = [1, 1]} : vector<8x1536xf32> to vector<8x512xf32>
    %49 = vector.extract_strided_slice %32 {offsets = [0, 522], sizes = [8, 512], strides = [1, 1]} : vector<8x1536xf32> to vector<8x512xf32>
    %50 = vector.extract_strided_slice %32 {offsets = [0, 523], sizes = [8, 512], strides = [1, 1]} : vector<8x1536xf32> to vector<8x512xf32>
    %51 = vector.extract_strided_slice %32 {offsets = [0, 601], sizes = [8, 512], strides = [1, 1]} : vector<8x1536xf32> to vector<8x512xf32>
    %52 = vector.extract_strided_slice %32 {offsets = [0, 602], sizes = [8, 512], strides = [1, 1]} : vector<8x1536xf32> to vector<8x512xf32>
    %53 = vector.extract_strided_slice %32 {offsets = [0, 603], sizes = [8, 512], strides = [1, 1]} : vector<8x1536xf32> to vector<8x512xf32>
    %54 = vector.extract_strided_slice %32 {offsets = [0, 611], sizes = [8, 512], strides = [1, 1]} : vector<8x1536xf32> to vector<8x512xf32>
    %55 = vector.extract_strided_slice %32 {offsets = [0, 612], sizes = [8, 512], strides = [1, 1]} : vector<8x1536xf32> to vector<8x512xf32>
    %56 = vector.extract_strided_slice %32 {offsets = [0, 613], sizes = [8, 512], strides = [1, 1]} : vector<8x1536xf32> to vector<8x512xf32>
    %57 = vector.extract_strided_slice %32 {offsets = [0, 621], sizes = [8, 512], strides = [1, 1]} : vector<8x1536xf32> to vector<8x512xf32>
    %58 = vector.extract_strided_slice %32 {offsets = [0, 622], sizes = [8, 512], strides = [1, 1]} : vector<8x1536xf32> to vector<8x512xf32>
    %59 = vector.extract_strided_slice %32 {offsets = [0, 623], sizes = [8, 512], strides = [1, 1]} : vector<8x1536xf32> to vector<8x512xf32>
    %60 = tpu.concatenate %33, %34, %35, %36, %37, %38, %39, %40, %41, %42, %43, %44, %45, %46, %47, %48 in 0 : vector<8x512xf32>, vector<8x512xf32>, vector<8x512xf32>, vector<8x512xf32>, vector<8x512xf32>, vector<8x512xf32>, vector<8x512xf32>, vector<8x512xf32>, vector<8x512xf32>, vector<8x512xf32>, vector<8x512xf32>, vector<8x512xf32>, vector<8x512xf32>, vector<8x512xf32>, vector<8x512xf32>, vector<8x512xf32> -> vector<128x512xf32>
    %61 = tpu.concatenate %49, %50, %51, %52, %53, %54, %55, %56, %57, %58, %59 in 0 : vector<8x512xf32>, vector<8x512xf32>, vector<8x512xf32>, vector<8x512xf32>, vector<8x512xf32>, vector<8x512xf32>, vector<8x512xf32>, vector<8x512xf32>, vector<8x512xf32>, vector<8x512xf32>, vector<8x512xf32> -> vector<88x512xf32>
    %62 = tpu.concatenate %60, %61 in 0 : vector<128x512xf32>, vector<88x512xf32> -> vector<216x512xf32>
    %c0_17 = arith.constant 0 : index
    %c0_18 = arith.constant 0 : index
    %63 = vector.load %arg1[%c0_17, %c0_18] : memref<8x216xf32, #tpu.memory_space<vmem>>, vector<8x216xf32>
    %cst_19 = arith.constant dense<0.000000e+00> : vector<8x512xf32>
    %64 = tpu.matmul %63, %62, %cst_19 {dimension_numbers = #tpu.dot_dimension_numbers<[1], [0], [0], [1], [0, 0, 1, 1], [], []>, precision = #tpu.contract_precision<fp32>} : vector<8x216xf32>, vector<216x512xf32>, vector<8x512xf32> -> vector<8x512xf32>
    %c0_20 = arith.constant 0 : index
    %c0_21 = arith.constant 0 : index
    %65 = vector.load %arg10[%c0_20, %c0_21] : memref<8x512xf32, #tpu.memory_space<vmem>>, vector<8x512xf32>
    tpu.vector_store %arg10[%c0_20, %c0_21], %64 {strides = array<i32>} : memref<8x512xf32, #tpu.memory_space<vmem>>, vector<8x512xf32>,
    %c0_22 = arith.constant 0 : index
    %c0_23 = arith.constant 0 : index
    %66 = vector.load %arg8[%c0_22, %c0_23] : memref<1x512xf32, #tpu.memory_space<vmem>>, vector<1x512xf32>
    %67 = vector.broadcast %66 : vector<1x512xf32> to vector<8x512xf32>
    %68 = arith.mulf %64, %67 : vector<8x512xf32>
    %cst_24 = arith.constant dense<0.000000e+00> : vector<8xf32>
    %69 = vector.multi_reduction <add>, %68, %cst_24 [1] : vector<8x512xf32> to vector<8xf32>
    %70 = vector.shape_cast %69 : vector<8xf32> to vector<8x1xf32>
    %71 = arith.mulf %64, %64 : vector<8x512xf32>
    %72 = vector.broadcast %66 : vector<1x512xf32> to vector<8x512xf32>
    %73 = arith.mulf %71, %72 : vector<8x512xf32>
    %cst_25 = arith.constant dense<0.000000e+00> : vector<8xf32>
    %74 = vector.multi_reduction <add>, %73, %cst_25 [1] : vector<8x512xf32> to vector<8xf32>
    %75 = vector.shape_cast %74 : vector<8xf32> to vector<8x1xf32>
    %76 = tpu.concatenate %70, %75 in 1 : vector<8x1xf32>, vector<8x1xf32> -> vector<8x2xf32>
    %77 = vector.shape_cast %76 : vector<8x2xf32> to vector<1x8x2xf32>
    %c0_26 = arith.constant 0 : index
    %c0_27 = arith.constant 0 : index
    %c0_28 = arith.constant 0 : index
    %78 = vector.load %arg11[%c0_26, %c0_27, %c0_28] : memref<1x8x2xf32, #tpu.memory_space<vmem>>, vector<1x8x2xf32>
    tpu.vector_store %arg11[%c0_26, %c0_27, %c0_28], %77 {strides = array<i32>} : memref<1x8x2xf32, #tpu.memory_space<vmem>>, vector<1x8x2xf32>,
    return
  }
  func.func @transform_0(%arg0: i32) -> (i32, i32) {
    %c0_i32 = arith.constant 0 : i32
    %c0_i32_0 = arith.constant 0 : i32
    %c0_i32_1 = arith.constant 0 : i32
    return %c0_i32, %c0_i32_0 : i32, i32
  }
  func.func @transform_1(%arg0: i32) -> (i32, i32) {
    %c0_i32 = arith.constant 0 : i32
    %c0_i32_0 = arith.constant 0 : i32
    %c0_i32_1 = arith.constant 0 : i32
    return %c0_i32, %c0_i32_0 : i32, i32
  }
  func.func @transform_2(%arg0: i32) -> (i32, i32) {
    %c0_i32 = arith.constant 0 : i32
    %c0_i32_0 = arith.constant 0 : i32
    %c0_i32_1 = arith.constant 0 : i32
    return %c0_i32, %c0_i32_0 : i32, i32
  }
  func.func @transform_3(%arg0: i32) -> (i32, i32) {
    %c0_i32 = arith.constant 0 : i32
    %c0_i32_0 = arith.constant 0 : i32
    return %c0_i32, %arg0 : i32, i32
  }
  func.func @transform_4(%arg0: i32) -> (i32, i32) {
    %c1_i32 = arith.constant 1 : i32
    %0 = arith.addi %arg0, %c1_i32 : i32
    %c0_i32 = arith.constant 0 : i32
    %c0_i32_0 = arith.constant 0 : i32
    return %c0_i32, %0 : i32, i32
  }
  func.func @transform_5(%arg0: i32) -> (i32, i32) {
    %c2_i32 = arith.constant 2 : i32
    %0 = arith.addi %arg0, %c2_i32 : i32
    %c0_i32 = arith.constant 0 : i32
    %c0_i32_0 = arith.constant 0 : i32
    return %c0_i32, %0 : i32, i32
  }
  func.func @transform_6(%arg0: i32) -> (i32, i32) {
    %c0_i32 = arith.constant 0 : i32
    %c0_i32_0 = arith.constant 0 : i32
    return %c0_i32, %arg0 : i32, i32
  }
  func.func @transform_7(%arg0: i32) -> (i32, i32) {
    %c1_i32 = arith.constant 1 : i32
    %0 = arith.addi %arg0, %c1_i32 : i32
    %c0_i32 = arith.constant 0 : i32
    %c0_i32_0 = arith.constant 0 : i32
    return %c0_i32, %0 : i32, i32
  }
  func.func @transform_8(%arg0: i32) -> (i32, i32) {
    %c2_i32 = arith.constant 2 : i32
    %0 = arith.addi %arg0, %c2_i32 : i32
    %c0_i32 = arith.constant 0 : i32
    %c0_i32_0 = arith.constant 0 : i32
    return %c0_i32, %0 : i32, i32
  }
  func.func @transform_9(%arg0: i32) -> (i32, i32) {
    %c0_i32 = arith.constant 0 : i32
    %c0_i32_0 = arith.constant 0 : i32
    return %c0_i32, %arg0 : i32, i32
  }
  func.func @transform_10(%arg0: i32) -> (i32, i32, i32) {
    %c0_i32 = arith.constant 0 : i32
    %c0_i32_0 = arith.constant 0 : i32
    %c0_i32_1 = arith.constant 0 : i32
    return %arg0, %c0_i32, %c0_i32_0 : i32, i32, i32
  }
}

module attributes {stable_mosaic.version = 11 : i64} {
  func.func @_bn_add_relu_kernel(%arg0: i32, %arg1: memref<8x1xf32, #tpu.memory_space<vmem>>, %arg2: memref<8x1xf32, #tpu.memory_space<vmem>>, %arg3: memref<8x512xf32, #tpu.memory_space<vmem>>, %arg4: memref<8x512xf32, #tpu.memory_space<vmem>>, %arg5: memref<8x512xf32, #tpu.memory_space<vmem>>) attributes {dimension_semantics = [#tpu.dimension_semantics<parallel>], iteration_bounds = array<i64: 4>, scalar_prefetch = 0 : i64, scratch_operands = 0 : i64, tpu.core_type = #tpu.core_type<tc>, window_params = [{pipeline_mode = #tpu.pipeline_mode<synchronous>, transform_indices = @transform_0, window_bounds = array<i64: 8, 1>}, {pipeline_mode = #tpu.pipeline_mode<synchronous>, transform_indices = @transform_1, window_bounds = array<i64: 8, 1>}, {transform_indices = @transform_2, window_bounds = array<i64: 8, 512>}, {transform_indices = @transform_3, window_bounds = array<i64: 8, 512>}, {transform_indices = @transform_4, window_bounds = array<i64: 8, 512>}]} {
    %c0 = arith.constant 0 : index
    %c0_0 = arith.constant 0 : index
    %0 = vector.load %arg3[%c0, %c0_0] : memref<8x512xf32, #tpu.memory_space<vmem>>, vector<8x512xf32>
    %c0_1 = arith.constant 0 : index
    %c0_2 = arith.constant 0 : index
    %1 = vector.load %arg1[%c0_1, %c0_2] : memref<8x1xf32, #tpu.memory_space<vmem>>, vector<8x1xf32>
    %2 = vector.broadcast %1 : vector<8x1xf32> to vector<8x512xf32>
    %3 = arith.mulf %0, %2 : vector<8x512xf32>
    %c0_3 = arith.constant 0 : index
    %c0_4 = arith.constant 0 : index
    %4 = vector.load %arg2[%c0_3, %c0_4] : memref<8x1xf32, #tpu.memory_space<vmem>>, vector<8x1xf32>
    %5 = vector.broadcast %4 : vector<8x1xf32> to vector<8x512xf32>
    %6 = arith.addf %3, %5 : vector<8x512xf32>
    %c0_5 = arith.constant 0 : index
    %c0_6 = arith.constant 0 : index
    %7 = vector.load %arg4[%c0_5, %c0_6] : memref<8x512xf32, #tpu.memory_space<vmem>>, vector<8x512xf32>
    %8 = arith.addf %6, %7 : vector<8x512xf32>
    %cst = arith.constant 0.000000e+00 : f32
    %9 = vector.broadcast %cst : f32 to vector<8x512xf32>
    %10 = arith.maximumf %8, %9 : vector<8x512xf32>
    %c0_7 = arith.constant 0 : index
    %c0_8 = arith.constant 0 : index
    %11 = vector.load %arg5[%c0_7, %c0_8] : memref<8x512xf32, #tpu.memory_space<vmem>>, vector<8x512xf32>
    tpu.vector_store %arg5[%c0_7, %c0_8], %10 {strides = array<i32>} : memref<8x512xf32, #tpu.memory_space<vmem>>, vector<8x512xf32>,
    return
  }
  func.func @transform_0(%arg0: i32) -> (i32, i32) {
    %c0_i32 = arith.constant 0 : i32
    %c0_i32_0 = arith.constant 0 : i32
    %c0_i32_1 = arith.constant 0 : i32
    return %c0_i32, %c0_i32_0 : i32, i32
  }
  func.func @transform_1(%arg0: i32) -> (i32, i32) {
    %c0_i32 = arith.constant 0 : i32
    %c0_i32_0 = arith.constant 0 : i32
    %c0_i32_1 = arith.constant 0 : i32
    return %c0_i32, %c0_i32_0 : i32, i32
  }
  func.func @transform_2(%arg0: i32) -> (i32, i32) {
    %c0_i32 = arith.constant 0 : i32
    %c0_i32_0 = arith.constant 0 : i32
    return %c0_i32, %arg0 : i32, i32
  }
  func.func @transform_3(%arg0: i32) -> (i32, i32) {
    %c0_i32 = arith.constant 0 : i32
    %c0_i32_0 = arith.constant 0 : i32
    return %c0_i32, %arg0 : i32, i32
  }
  func.func @transform_4(%arg0: i32) -> (i32, i32) {
    %c0_i32 = arith.constant 0 : i32
    %c0_i32_0 = arith.constant 0 : i32
    return %c0_i32, %arg0 : i32, i32
  }
}

</mosaic_0001>

<llo_original>
// kernel: simple_rb_forward.5
$region0: #{simple_rb_forward.5}
  #allocation0 [shape = 'u32[]', space=smem, size = 0x4, offset = 0x4, fixed_abs, tag = 'smem constant byte address 0x4 - core index']
  #allocation1 [shape = 'u32[72,128]{1,0:T(1,128)}', space=vmem, size = 0x9000, scoped, tag = 'internal scratch']
  %s0 = inlined_call_operand.vmem [shape: f32[8,1], index: 0, kind: input, shape index: {}]
  %s1 = inlined_call_operand.vmem [shape: f32[8,1], index: 1, kind: input, shape index: {}]
  %s2 = inlined_call_operand.vmem [shape: f32[8,2048], index: 2, kind: input, shape index: {}]
  %s3 = inlined_call_operand.vmem [shape: f32[8,2048], index: 3, kind: input, shape index: {}]
  %s4 = inlined_call_operand.vmem [shape: f32[8,2048], index: 4, kind: output, shape index: {}]
  %s5 = sld [smem:[#allocation0]]
  $region49: #{simple_rb_forward.5} parent=0
    _
  %s7 = ssub.s32 1, %s5
  %s8 = scalar_select 0, %s7, %s5
  loop: start=0, step=1, limit=6
  $region2: #{simple_rb_forward.5} parent=0 // loop_pre_header
    _
  $region3: #{simple_rb_forward.5} parent=0 // loop_header
    %s10 = sphi 0, %s14
    %p11 = scmp.ge.s32.totalorder %s10, 6
    %s18 = sphi 0, %s18
    %s20 = sphi 0, %s18
    %s21 = sphi 0, %s20
    %s35 = sphi 0, %s21
    %s39 = sphi 0, %s39
    %s41 = sphi 0, %s39
    %s42 = sphi 0, %s41
    %s56 = sphi 0, %s42
    %s62 = sphi 0, %s64
    %s65 = sphi 0, %s62
    %s66 = sphi 0, %s65
    %s82 = sphi 0, %s66
    %s88 = sphi 0, %s90
    %s91 = sphi 0, %s88
    %s92 = sphi 0, %s91
    %s108 = sphi 0, %s92
    %s114 = sphi 0, %s116
    %s117 = sphi 0, %s114
    %s118 = sphi 0, %s117
    %s134 = sphi 0, %s118
  $region4: #{simple_rb_forward.5} parent=0 // loop_header_branch
    %13 = sbr.rel (%p11) target = $region8
  $region5: #{simple_rb_forward.5} parent=0 // loop_body
    %s15 = ssub.s32 %s10, 1
    %s16 = ssub.s32 %s10, 2
    %s17 = sadd.s32 %s10, 1
    %s19 = sadd.s32 %s18, 1
    %p22 = scmp.eq.s32.totalorder %s10, 3
    %p23 = scmp.ne.s32.totalorder %s18, %s20
    %p24 = scmp.eq.s32.totalorder %s10, 0
    %p25 = por %p23, %p24
    %p26 = scmp.ne.s32.totalorder %s18, %s20
    %p27 = scmp.eq.s32.totalorder %s15, 3
    %p28 = por %p26, %p27
    %p29 = scmp.ne.s32.totalorder %s20, %s21
    %p30 = scmp.eq.s32.totalorder %s15, 0
    %p31 = por %p29, %p30
    %p32 = scmp.ne.s32.totalorder %s20, %s21
    %p33 = scmp.eq.s32.totalorder %s16, 3
    %p34 = por %p32, %p33
    %p36 = scmp.ne.s32.totalorder %s21, %s35
    %p37 = scmp.eq.s32.totalorder %s16, 0
    %p38 = por %p36, %p37
    %s40 = sadd.s32 %s39, 1
    %p43 = scmp.eq.s32.totalorder %s10, 3
    %p44 = scmp.ne.s32.totalorder %s39, %s41
    %p45 = scmp.eq.s32.totalorder %s10, 0
    %p46 = por %p44, %p45
    %p47 = scmp.ne.s32.totalorder %s39, %s41
    %p48 = scmp.eq.s32.totalorder %s15, 3
    %p49 = por %p47, %p48
    %p50 = scmp.ne.s32.totalorder %s41, %s42
    %p51 = scmp.eq.s32.totalorder %s15, 0
    %p52 = por %p50, %p51
    %p53 = scmp.ne.s32.totalorder %s41, %s42
    %p54 = scmp.eq.s32.totalorder %s16, 3
    %p55 = por %p53, %p54
    %p57 = scmp.ne.s32.totalorder %s42, %s56
    %p58 = scmp.eq.s32.totalorder %s16, 0
    %p59 = por %p57, %p58
    %s60 = ssub.s32 %s10, %s17
    %p61 = scmp.eq.s32.totalorder %s60, 0
    %s63 = sadd.s32 %s62, 1
    %s64 = scalar_select %p61, %s62, %s63
    %p67 = pneg %p61
    %p68 = scmp.eq.s32.totalorder %s10, 3
    %p69 = por %p67, %p68
    %p70 = scmp.ne.s32.totalorder %s62, %s65
    %p71 = scmp.eq.s32.totalorder %s10, 0
    %p72 = por %p70, %p71
    %p73 = scmp.ne.s32.totalorder %s62, %s65
    %p74 = scmp.eq.s32.totalorder %s15, 3
    %p75 = por %p73, %p74
    %p76 = scmp.ne.s32.totalorder %s65, %s66
    %p77 = scmp.eq.s32.totalorder %s15, 0
    %p78 = por %p76, %p77
    %p79 = scmp.ne.s32.totalorder %s65, %s66
    %p80 = scmp.eq.s32.totalorder %s16, 3
    %p81 = por %p79, %p80
    %p83 = scmp.ne.s32.totalorder %s66, %s82
    %p84 = scmp.eq.s32.totalorder %s16, 0
    %p85 = por %p83, %p84
    %s86 = ssub.s32 %s10, %s17
    %p87 = scmp.eq.s32.totalorder %s86, 0
    %s89 = sadd.s32 %s88, 1
    %s90 = scalar_select %p87, %s88, %s89
    %p93 = pneg %p87
    %p94 = scmp.eq.s32.totalorder %s10, 3
    %p95 = por %p93, %p94
    %p96 = scmp.ne.s32.totalorder %s88, %s91
    %p97 = scmp.eq.s32.totalorder %s10, 0
    %p98 = por %p96, %p97
    %p99 = scmp.ne.s32.totalorder %s88, %s91
    %p100 = scmp.eq.s32.totalorder %s15, 3
    %p101 = por %p99, %p100
    %p102 = scmp.ne.s32.totalorder %s91, %s92
    %p103 = scmp.eq.s32.totalorder %s15, 0
    %p104 = por %p102, %p103
    %p105 = scmp.ne.s32.totalorder %s91, %s92
    %p106 = scmp.eq.s32.totalorder %s16, 3
    %p107 = por %p105, %p106
    %p109 = scmp.ne.s32.totalorder %s92, %s108
    %p110 = scmp.eq.s32.totalorder %s16, 0
    %p111 = por %p109, %p110
    %s112 = ssub.s32 %s10, %s17
    %p113 = scmp.eq.s32.totalorder %s112, 0
    %s115 = sadd.s32 %s114, 1
    %s116 = scalar_select %p113, %s114, %s115
    %p119 = pneg %p113
    %p120 = scmp.eq.s32.totalorder %s10, 3
    %p121 = por %p119, %p120
    %p122 = scmp.ne.s32.totalorder %s114, %s117
    %p123 = scmp.eq.s32.totalorder %s10, 0
    %p124 = por %p122, %p123
    %p125 = scmp.ne.s32.totalorder %s114, %s117
    %p126 = scmp.eq.s32.totalorder %s15, 3
    %p127 = por %p125, %p126
    %p128 = scmp.ne.s32.totalorder %s117, %s118
    %p129 = scmp.eq.s32.totalorder %s15, 0
    %p130 = por %p128, %p129
    %p131 = scmp.ne.s32.totalorder %s117, %s118
    %p132 = scmp.eq.s32.totalorder %s16, 3
    %p133 = por %p131, %p132
    %p135 = scmp.ne.s32.totalorder %s118, %s134
    %p136 = scmp.eq.s32.totalorder %s16, 0
    %p137 = por %p135, %p136
    %p138 = scmp.le.s32.totalorder 1, %s10
    %p139 = scmp.lt.s32.totalorder %s10, 5
    %p140 = pnand %p138, %p139
    %p141 = pneg %p140
    // Predicated region
    $region9: #{simple_rb_forward.5} parent=5 // pred_check
      _
    $region10: #{simple_rb_forward.5} parent=5 // pred_check_branch
      %143 = sbr.rel (%p140) target = $region12
    $region11: #{simple_rb_forward.5} parent=5 // pred_region
      %s144 = ssub.s32 %s10, 1
      // Predicated region
      $region13: #{simple_rb_forward.5} parent=11 // pred_check
        %p145 = pneg %p31
      $region14: #{simple_rb_forward.5} parent=11 // pred_check_branch
        %147 = sbr.rel (%p145) target = $region16
      $region15: #{simple_rb_forward.5} parent=11 // pred_region
        _
      $region16: #{simple_rb_forward.5} parent=11 // pred_fallthru
        _
      // Predicated region
      $region17: #{simple_rb_forward.5} parent=11 // pred_check
        %p148 = pneg %p52
      $region18: #{simple_rb_forward.5} parent=11 // pred_check_branch
        %150 = sbr.rel (%p148) target = $region20
      $region19: #{simple_rb_forward.5} parent=11 // pred_region
        _
      $region20: #{simple_rb_forward.5} parent=11 // pred_fallthru
        _
    $region12: #{simple_rb_forward.5} parent=5 // pred_fallthru
      _
    %p151 = scmp.lt.s32.totalorder %s10, 4
    // Predicated region
    $region21: #{simple_rb_forward.5} parent=5 // pred_check
      %p152 = pneg %p151
    $region22: #{simple_rb_forward.5} parent=5 // pred_check_branch
      %154 = sbr.rel (%p152) target = $region24
    $region23: #{simple_rb_forward.5} parent=5 // pred_region
      // Predicated region
      $region25: #{simple_rb_forward.5} parent=23 // pred_check
        %p155 = pneg %p72
      $region26: #{simple_rb_forward.5} parent=23 // pred_check_branch
        %157 = sbr.rel (%p155) target = $region28
      $region27: #{simple_rb_forward.5} parent=23 // pred_region
        %s158 = smul.u32 4, %s10
        %p159 = scmp.lt.s32.totalorder %s158, 15
        %s160 = scalar_select %p159, %s158, 15
        %s161 = smul.addr %s160, 8
        %s162 = scalar_lea.vmem %s2, %s161
        %s163 = smul.u32 4, %s10
      $region28: #{simple_rb_forward.5} parent=23 // pred_fallthru
        _
      // Predicated region
      $region29: #{simple_rb_forward.5} parent=23 // pred_check
        %p164 = pneg %p98
      $region30: #{simple_rb_forward.5} parent=23 // pred_check_branch
        %166 = sbr.rel (%p164) target = $region32
      $region31: #{simple_rb_forward.5} parent=23 // pred_region
        %s167 = smul.u32 4, %s10
        %p168 = scmp.lt.s32.totalorder %s167, 15
        %s169 = scalar_select %p168, %s167, 15
        %s170 = smul.addr %s169, 8
        %s171 = scalar_lea.vmem %s3, %s170
        %s172 = smul.u32 4, %s10
      $region32: #{simple_rb_forward.5} parent=23 // pred_fallthru
        _
    $region24: #{simple_rb_forward.5} parent=5 // pred_fallthru
      _
    %p173 = scmp.le.s32.totalorder 1, %s10
    %p174 = scmp.lt.s32.totalorder %s10, 5
    %p175 = pnand %p173, %p174
    %p176 = pneg %p175
    // Predicated region
    $region33: #{simple_rb_forward.5} parent=5 // pred_check
      _
    $region34: #{simple_rb_forward.5} parent=5 // pred_check_branch
      %178 = sbr.rel (%p175) target = $region36
    $region35: #{simple_rb_forward.5} parent=5 // pred_region
      %s179 = ssub.s32 %s10, 1
      %p180 = pneg %p31
      %p181 = pneg %p28
      %p182 = pneg %p52
      %p183 = pneg %p49
      %s184 = smul.u32 4, %s15
      %p185 = scmp.lt.s32.totalorder %s184, 15
      %s186 = scalar_select %p185, %s184, 15
      %s187 = smul.addr %s186, 8
      %s188 = scalar_lea.vmem %s2, %s187
      %p189 = pneg %p78
      %p190 = pneg %p75
      %s191 = smul.u32 4, %s15
      %p192 = scmp.lt.s32.totalorder %s191, 15
      %s193 = scalar_select %p192, %s191, 15
      %s194 = smul.addr %s193, 8
      %s195 = scalar_lea.vmem %s3, %s194
      %p196 = pneg %p104
      %p197 = pneg %p101
      %p198 = pneg %p130
      %p199 = pneg %p127
      %s200 = smul.u32 4, %s15
      %p201 = scmp.lt.s32.totalorder %s200, 15
      %s202 = scalar_select %p201, %s200, 15
      %s203 = smul.addr %s202, 8
      %s204 = scalar_lea.vmem %s4, %s203
      %s205 = smul.u32 4, %s15
      %p206 = scmp.lt.s32.totalorder %s205, 15
      %s207 = scalar_select %p206, %s205, 15
      %s208 = smul.addr %s207, 8
      %s209 = scalar_lea.vmem %s2, %s208
      %s210 = smul.u32 4, %s15
      %s211 = smul.u32 4, %s15
      %p212 = scmp.lt.s32.totalorder %s211, 15
      %s213 = scalar_select %p212, %s211, 15
      %s214 = smul.addr %s213, 8
      %s215 = scalar_lea.vmem %s3, %s214
      %s216 = smul.u32 4, %s15
      %s217 = smul.u32 4, %s15
      %p218 = scmp.lt.s32.totalorder %s217, 15
      %s219 = scalar_select %p218, %s217, 15
      %s220 = smul.addr %s219, 8
      %s221 = scalar_lea.vmem %s4, %s220
      %s222 = smul.u32 4, %s15
      %v223 = vld [vmem:[%s209] sm:$0xff]
      %v224 = vld [vmem:[%s209 + $0x8] sm:$0xff]
      %v225 = vld [vmem:[%s209 + $0x10] sm:$0xff]
      %v226 = vld [vmem:[%s209 + $0x18] sm:$0xff]
      %v227 = vld [vmem:[%s0] sm:$0xff]
      %229 = vset.pattern.permute.xlu0 0
      %230 = vperm.xlu0 %229, %v227
      %v231 = vpop.permute.xlu0 %230
      %v233 = vmul.f32 %v223, %v231
      %v234 = vmul.f32 %v224, %v231
      %v235 = vmul.f32 %v225, %v231
      %v236 = vmul.f32 %v226, %v231
      %v237 = vld [vmem:[%s1] sm:$0xff]
      %239 = vset.pattern.permute.xlu0 0
      %240 = vperm.xlu0 %239, %v237
      %v241 = vpop.permute.xlu0 %240
      %v243 = vadd.f32 %v233, %v241
      %v244 = vadd.f32 %v234, %v241
      %v245 = vadd.f32 %v235, %v241
      %v246 = vadd.f32 %v236, %v241
      %v247 = vld [vmem:[%s215] sm:$0xff]
      %v248 = vld [vmem:[%s215 + $0x8] sm:$0xff]
      %v249 = vld [vmem:[%s215 + $0x10] sm:$0xff]
      %v250 = vld [vmem:[%s215 + $0x18] sm:$0xff]
      %v251 = vadd.f32 %v243, %v247
      %v252 = vadd.f32 %v244, %v248
      %v253 = vadd.f32 %v245, %v249
      %v254 = vadd.f32 %v246, %v250
      %v255 = vmax.f32 %v251, 0.0
      %v256 = vmax.f32 %v252, 0.0
      %v257 = vmax.f32 %v253, 0.0
      %v258 = vmax.f32 %v254, 0.0
      %259 = vst [vmem:[%s221] sm:$0xff] %v255
      %260 = vst [vmem:[%s221 + $0x8] sm:$0xff] %v256
      %261 = vst [vmem:[%s221 + $0x10] sm:$0xff] %v257
      %262 = vst [vmem:[%s221 + $0x18] sm:$0xff] %v258
      %s263 = smul.u32 4, %s15
      %p264 = scmp.lt.s32.totalorder %s263, 15
      %s265 = scalar_select %p264, %s263, 15
      %s266 = smul.addr %s265, 8
      %s267 = scalar_lea.vmem %s4, %s266
      // Predicated region
      $region37: #{simple_rb_forward.5} parent=35 // pred_check
        %p268 = pneg %p127
      $region38: #{simple_rb_forward.5} parent=35 // pred_check_branch
        %270 = sbr.rel (%p268) target = $region40
      $region39: #{simple_rb_forward.5} parent=35 // pred_region
        %s271 = smul.u32 4, %s15
      $region40: #{simple_rb_forward.5} parent=35 // pred_fallthru
        _
    $region36: #{simple_rb_forward.5} parent=5 // pred_fallthru
      _
    %p272 = scmp.le.s32.totalorder 2, %s10
    // Predicated region
    $region41: #{simple_rb_forward.5} parent=5 // pred_check
      %p273 = pneg %p272
    $region42: #{simple_rb_forward.5} parent=5 // pred_check_branch
      %275 = sbr.rel (%p273) target = $region44
    $region43: #{simple_rb_forward.5} parent=5 // pred_region
      %s276 = ssub.s32 %s10, 2
      // Predicated region
      $region45: #{simple_rb_forward.5} parent=43 // pred_check
        %p277 = pneg %p133
      $region46: #{simple_rb_forward.5} parent=43 // pred_check_branch
        %279 = sbr.rel (%p277) target = $region48
      $region47: #{simple_rb_forward.5} parent=43 // pred_region
        %s280 = smul.u32 4, %s16
        %p281 = scmp.lt.s32.totalorder %s280, 15
        %s282 = scalar_select %p281, %s280, 15
        %s283 = smul.addr %s282, 8
        %s284 = scalar_lea.vmem %s4, %s283
      $region48: #{simple_rb_forward.5} parent=43 // pred_fallthru
        _
    $region44: #{simple_rb_forward.5} parent=5 // pred_fallthru
      _
  $region6: #{simple_rb_forward.5} parent=0 // loop_footer
    %s14 = sadd.s32 1, %s10
  $region7: #{simple_rb_forward.5} parent=0 // loop_footer_branch
    %9 = sbr.rel target = $region3
  $region8: #{simple_rb_forward.5} parent=0 // loop_exit
    _

// kernel: simple_rb_forward.3
$region0: #{simple_rb_forward.3}
  #allocation0 [shape = 'u32[]', space=smem, size = 0x4, offset = 0x4, fixed_abs, tag = 'smem constant byte address 0x4 - core index']
  #allocation1 [shape = 'u32[72,128]{1,0:T(1,128)}', space=vmem, size = 0x9000, scoped, tag = 'internal scratch']
  %s0 = inlined_call_operand.vmem [shape: f32[8,216], index: 0, kind: input, shape index: {}]
  %s1 = inlined_call_operand.vmem [shape: f32[8,3072], index: 1, kind: input, shape index: {}, may-alias: {1,2,3}]
  %s2 = inlined_call_operand.vmem [shape: f32[8,3072], index: 2, kind: input, shape index: {}, may-alias: {1,2,3}]
  %s3 = inlined_call_operand.vmem [shape: f32[8,3072], index: 3, kind: input, shape index: {}, may-alias: {1,2,3}]
  %s4 = inlined_call_operand.vmem [shape: f32[1,2048], index: 4, kind: input, shape index: {}]
  %s5 = inlined_call_operand.vmem [shape: f32[8,2048], index: 5, kind: output, shape index: {0}]
  %s6 = inlined_call_operand.vmem [shape: f32[4,8,2], index: 6, kind: output, shape index: {1}]
  %7 = xla_tuple %s5, %s6
  %s8 = sld [smem:[#allocation0]]
  $region61: #{simple_rb_forward.3} parent=0
    _
  %s10 = ssub.s32 1, %s8
  %s11 = scalar_select 0, %s10, %s8
  loop: start=0, step=1, limit=6
  $region2: #{simple_rb_forward.3} parent=0 // loop_pre_header
    _
  $region3: #{simple_rb_forward.3} parent=0 // loop_header
    %s13 = sphi 0, %s17
    %p14 = scmp.ge.s32.totalorder %s13, 6
    %s21 = sphi 0, %s21
    %s23 = sphi 0, %s21
    %s24 = sphi 0, %s23
    %s38 = sphi 0, %s24
    %s44 = sphi 0, %s46
    %s47 = sphi 0, %s44
    %s48 = sphi 0, %s47
    %s64 = sphi 0, %s48
    %s72 = sphi 0, %s74
    %s75 = sphi 0, %s72
    %s76 = sphi 0, %s75
    %s92 = sphi 0, %s76
    %s100 = sphi 0, %s102
    %s103 = sphi 0, %s100
    %s104 = sphi 0, %s103
    %s120 = sphi 0, %s104
    %s126 = sphi 0, %s128
    %s129 = sphi 0, %s126
    %s130 = sphi 0, %s129
    %s146 = sphi 0, %s130
    %s152 = sphi 0, %s154
    %s155 = sphi 0, %s152
    %s156 = sphi 0, %s155
    %s172 = sphi 0, %s156
    %s178 = sphi 0, %s180
    %s181 = sphi 0, %s178
    %s182 = sphi 0, %s181
    %s198 = sphi 0, %s182
  $region4: #{simple_rb_forward.3} parent=0 // loop_header_branch
    %16 = sbr.rel (%p14) target = $region8
  $region5: #{simple_rb_forward.3} parent=0 // loop_body
    %s18 = ssub.s32 %s13, 1
    %s19 = ssub.s32 %s13, 2
    %s20 = sadd.s32 %s13, 1
    %s22 = sadd.s32 %s21, 1
    %p25 = scmp.eq.s32.totalorder %s13, 3
    %p26 = scmp.ne.s32.totalorder %s21, %s23
    %p27 = scmp.eq.s32.totalorder %s13, 0
    %p28 = por %p26, %p27
    %p29 = scmp.ne.s32.totalorder %s21, %s23
    %p30 = scmp.eq.s32.totalorder %s18, 3
    %p31 = por %p29, %p30
    %p32 = scmp.ne.s32.totalorder %s23, %s24
    %p33 = scmp.eq.s32.totalorder %s18, 0
    %p34 = por %p32, %p33
    %p35 = scmp.ne.s32.totalorder %s23, %s24
    %p36 = scmp.eq.s32.totalorder %s19, 3
    %p37 = por %p35, %p36
    %p39 = scmp.ne.s32.totalorder %s24, %s38
    %p40 = scmp.eq.s32.totalorder %s19, 0
    %p41 = por %p39, %p40
    %s42 = ssub.s32 %s13, %s20
    %p43 = scmp.eq.s32.totalorder %s42, 0
    %s45 = sadd.s32 %s44, 1
    %s46 = scalar_select %p43, %s44, %s45
    %p49 = pneg %p43
    %p50 = scmp.eq.s32.totalorder %s13, 3
    %p51 = por %p49, %p50
    %p52 = scmp.ne.s32.totalorder %s44, %s47
    %p53 = scmp.eq.s32.totalorder %s13, 0
    %p54 = por %p52, %p53
    %p55 = scmp.ne.s32.totalorder %s44, %s47
    %p56 = scmp.eq.s32.totalorder %s18, 3
    %p57 = por %p55, %p56
    %p58 = scmp.ne.s32.totalorder %s47, %s48
    %p59 = scmp.eq.s32.totalorder %s18, 0
    %p60 = por %p58, %p59
    %p61 = scmp.ne.s32.totalorder %s47, %s48
    %p62 = scmp.eq.s32.totalorder %s19, 3
    %p63 = por %p61, %p62
    %p65 = scmp.ne.s32.totalorder %s48, %s64
    %p66 = scmp.eq.s32.totalorder %s19, 0
    %p67 = por %p65, %p66
    %s68 = sadd.s32 %s13, 1
    %s69 = sadd.s32 %s20, 1
    %s70 = ssub.s32 %s68, %s69
    %p71 = scmp.eq.s32.totalorder %s70, 0
    %s73 = sadd.s32 %s72, 1
    %s74 = scalar_select %p71, %s72, %s73
    %p77 = pneg %p71
    %p78 = scmp.eq.s32.totalorder %s13, 3
    %p79 = por %p77, %p78
    %p80 = scmp.ne.s32.totalorder %s72, %s75
    %p81 = scmp.eq.s32.totalorder %s13, 0
    %p82 = por %p80, %p81
    %p83 = scmp.ne.s32.totalorder %s72, %s75
    %p84 = scmp.eq.s32.totalorder %s18, 3
    %p85 = por %p83, %p84
    %p86 = scmp.ne.s32.totalorder %s75, %s76
    %p87 = scmp.eq.s32.totalorder %s18, 0
    %p88 = por %p86, %p87
    %p89 = scmp.ne.s32.totalorder %s75, %s76
    %p90 = scmp.eq.s32.totalorder %s19, 3
    %p91 = por %p89, %p90
    %p93 = scmp.ne.s32.totalorder %s76, %s92
    %p94 = scmp.eq.s32.totalorder %s19, 0
    %p95 = por %p93, %p94
    %s96 = sadd.s32 %s13, 2
    %s97 = sadd.s32 %s20, 2
    %s98 = ssub.s32 %s96, %s97
    %p99 = scmp.eq.s32.totalorder %s98, 0
    %s101 = sadd.s32 %s100, 1
    %s102 = scalar_select %p99, %s100, %s101
    %p105 = pneg %p99
    %p106 = scmp.eq.s32.totalorder %s13, 3
    %p107 = por %p105, %p106
    %p108 = scmp.ne.s32.totalorder %s100, %s103
    %p109 = scmp.eq.s32.totalorder %s13, 0
    %p110 = por %p108, %p109
    %p111 = scmp.ne.s32.totalorder %s100, %s103
    %p112 = scmp.eq.s32.totalorder %s18, 3
    %p113 = por %p111, %p112
    %p114 = scmp.ne.s32.totalorder %s103, %s104
    %p115 = scmp.eq.s32.totalorder %s18, 0
    %p116 = por %p114, %p115
    %p117 = scmp.ne.s32.totalorder %s103, %s104
    %p118 = scmp.eq.s32.totalorder %s19, 3
    %p119 = por %p117, %p118
    %p121 = scmp.ne.s32.totalorder %s104, %s120
    %p122 = scmp.eq.s32.totalorder %s19, 0
    %p123 = por %p121, %p122
    %s124 = ssub.s32 %s13, %s20
    %p125 = scmp.eq.s32.totalorder %s124, 0
    %s127 = sadd.s32 %s126, 1
    %s128 = scalar_select %p125, %s126, %s127
    %p131 = pneg %p125
    %p132 = scmp.eq.s32.totalorder %s13, 3
    %p133 = por %p131, %p132
    %p134 = scmp.ne.s32.totalorder %s126, %s129
    %p135 = scmp.eq.s32.totalorder %s13, 0
    %p136 = por %p134, %p135
    %p137 = scmp.ne.s32.totalorder %s126, %s129
    %p138 = scmp.eq.s32.totalorder %s18, 3
    %p139 = por %p137, %p138
    %p140 = scmp.ne.s32.totalorder %s129, %s130
    %p141 = scmp.eq.s32.totalorder %s18, 0
    %p142 = por %p140, %p141
    %p143 = scmp.ne.s32.totalorder %s129, %s130
    %p144 = scmp.eq.s32.totalorder %s19, 3
    %p145 = por %p143, %p144
    %p147 = scmp.ne.s32.totalorder %s130, %s146
    %p148 = scmp.eq.s32.totalorder %s19, 0
    %p149 = por %p147, %p148
    %s150 = ssub.s32 %s13, %s20
    %p151 = scmp.eq.s32.totalorder %s150, 0
    %s153 = sadd.s32 %s152, 1
    %s154 = scalar_select %p151, %s152, %s153
    %p157 = pneg %p151
    %p158 = scmp.eq.s32.totalorder %s13, 3
    %p159 = por %p157, %p158
    %p160 = scmp.ne.s32.totalorder %s152, %s155
    %p161 = scmp.eq.s32.totalorder %s13, 0
    %p162 = por %p160, %p161
    %p163 = scmp.ne.s32.totalorder %s152, %s155
    %p164 = scmp.eq.s32.totalorder %s18, 3
    %p165 = por %p163, %p164
    %p166 = scmp.ne.s32.totalorder %s155, %s156
    %p167 = scmp.eq.s32.totalorder %s18, 0
    %p168 = por %p166, %p167
    %p169 = scmp.ne.s32.totalorder %s155, %s156
    %p170 = scmp.eq.s32.totalorder %s19, 3
    %p171 = por %p169, %p170
    %p173 = scmp.ne.s32.totalorder %s156, %s172
    %p174 = scmp.eq.s32.totalorder %s19, 0
    %p175 = por %p173, %p174
    %s176 = ssub.s32 %s13, %s20
    %p177 = scmp.eq.s32.totalorder %s176, 0
    %s179 = sadd.s32 %s178, 1
    %s180 = scalar_select %p177, %s178, %s179
    %p183 = pneg %p177
    %p184 = scmp.eq.s32.totalorder %s13, 3
    %p185 = por %p183, %p184
    %p186 = scmp.ne.s32.totalorder %s178, %s181
    %p187 = scmp.eq.s32.totalorder %s13, 0
    %p188 = por %p186, %p187
    %p189 = scmp.ne.s32.totalorder %s178, %s181
    %p190 = scmp.eq.s32.totalorder %s18, 3
    %p191 = por %p189, %p190
    %p192 = scmp.ne.s32.totalorder %s181, %s182
    %p193 = scmp.eq.s32.totalorder %s18, 0
    %p194 = por %p192, %p193
    %p195 = scmp.ne.s32.totalorder %s181, %s182
    %p196 = scmp.eq.s32.totalorder %s19, 3
    %p197 = por %p195, %p196
    %p199 = scmp.ne.s32.totalorder %s182, %s198
    %p200 = scmp.eq.s32.totalorder %s19, 0
    %p201 = por %p199, %p200
    %p202 = scmp.le.s32.totalorder 1, %s13
    %p203 = scmp.lt.s32.totalorder %s13, 5
    %p204 = pnand %p202, %p203
    %p205 = pneg %p204
    // Predicated region
    $region9: #{simple_rb_forward.3} parent=5 // pred_check
      _
    $region10: #{simple_rb_forward.3} parent=5 // pred_check_branch
      %207 = sbr.rel (%p204) target = $region12
    $region11: #{simple_rb_forward.3} parent=5 // pred_region
      %s208 = ssub.s32 %s13, 1
      // Predicated region
      $region13: #{simple_rb_forward.3} parent=11 // pred_check
        %p209 = pneg %p34
      $region14: #{simple_rb_forward.3} parent=11 // pred_check_branch
        %211 = sbr.rel (%p209) target = $region16
      $region15: #{simple_rb_forward.3} parent=11 // pred_region
        _
      $region16: #{simple_rb_forward.3} parent=11 // pred_fallthru
        _
    $region12: #{simple_rb_forward.3} parent=5 // pred_fallthru
      _
    %p212 = scmp.lt.s32.totalorder %s13, 4
    // Predicated region
    $region17: #{simple_rb_forward.3} parent=5 // pred_check
      %p213 = pneg %p212
    $region18: #{simple_rb_forward.3} parent=5 // pred_check_branch
      %215 = sbr.rel (%p213) target = $region20
    $region19: #{simple_rb_forward.3} parent=5 // pred_region
      // Predicated region
      $region21: #{simple_rb_forward.3} parent=19 // pred_check
        %p216 = pneg %p54
      $region22: #{simple_rb_forward.3} parent=19 // pred_check_branch
        %218 = sbr.rel (%p216) target = $region24
      $region23: #{simple_rb_forward.3} parent=19 // pred_region
        %s219 = smul.u32 4, %s13
        %p220 = scmp.lt.s32.totalorder %s219, 23
        %s221 = scalar_select %p220, %s219, 23
        %s222 = smul.addr %s221, 8
        %s223 = scalar_lea.vmem %s1, %s222
        %s224 = smul.u32 4, %s13
      $region24: #{simple_rb_forward.3} parent=19 // pred_fallthru
        _
      // Predicated region
      $region25: #{simple_rb_forward.3} parent=19 // pred_check
        %p225 = pneg %p82
      $region26: #{simple_rb_forward.3} parent=19 // pred_check_branch
        %227 = sbr.rel (%p225) target = $region28
      $region27: #{simple_rb_forward.3} parent=19 // pred_region
        %s228 = sadd.s32 %s13, 1
        %s229 = smul.u32 4, %s228
        %p230 = scmp.lt.s32.totalorder %s229, 23
        %s231 = scalar_select %p230, %s229, 23
        %s232 = smul.addr %s231, 8
        %s233 = scalar_lea.vmem %s2, %s232
        %s234 = sadd.s32 %s13, 1
        %s235 = smul.u32 4, %s234
      $region28: #{simple_rb_forward.3} parent=19 // pred_fallthru
        _
      // Predicated region
      $region29: #{simple_rb_forward.3} parent=19 // pred_check
        %p236 = pneg %p110
      $region30: #{simple_rb_forward.3} parent=19 // pred_check_branch
        %238 = sbr.rel (%p236) target = $region32
      $region31: #{simple_rb_forward.3} parent=19 // pred_region
        %s239 = sadd.s32 %s13, 2
        %s240 = smul.u32 4, %s239
        %p241 = scmp.lt.s32.totalorder %s240, 23
        %s242 = scalar_select %p241, %s240, 23
        %s243 = smul.addr %s242, 8
        %s244 = scalar_lea.vmem %s3, %s243
        %s245 = sadd.s32 %s13, 2
        %s246 = smul.u32 4, %s245
      $region32: #{simple_rb_forward.3} parent=19 // pred_fallthru
        _
      // Predicated region
      $region33: #{simple_rb_forward.3} parent=19 // pred_check
        %p247 = pneg %p136
      $region34: #{simple_rb_forward.3} parent=19 // pred_check_branch
        %249 = sbr.rel (%p247) target = $region36
      $region35: #{simple_rb_forward.3} parent=19 // pred_region
        %s250 = smul.u32 4, %s13
        %p251 = scmp.lt.s32.totalorder %s250, 15
        %s252 = scalar_select %p251, %s250, 15
        %s253 = scalar_lea.vmem %s4, %s252
        %s254 = smul.u32 4, %s13
      $region36: #{simple_rb_forward.3} parent=19 // pred_fallthru
        _
    $region20: #{simple_rb_forward.3} parent=5 // pred_fallthru
      _
    %p255 = scmp.le.s32.totalorder 1, %s13
    %p256 = scmp.lt.s32.totalorder %s13, 5
    %p257 = pnand %p255, %p256
    %p258 = pneg %p257
    // Predicated region
    $region37: #{simple_rb_forward.3} parent=5 // pred_check
      _
    $region38: #{simple_rb_forward.3} parent=5 // pred_check_branch
      %260 = sbr.rel (%p257) target = $region40
    $region39: #{simple_rb_forward.3} parent=5 // pred_region
      %s261 = ssub.s32 %s13, 1
      %p262 = pneg %p34
      %p263 = pneg %p31
      %s264 = smul.u32 4, %s18
      %p265 = scmp.lt.s32.totalorder %s264, 23
      %s266 = scalar_select %p265, %s264, 23
      %s267 = smul.addr %s266, 8
      %s268 = scalar_lea.vmem %s1, %s267
      %p269 = pneg %p60
      %p270 = pneg %p57
      %s271 = sadd.s32 %s18, 1
      %s272 = smul.u32 4, %s271
      %p273 = scmp.lt.s32.totalorder %s272, 23
      %s274 = scalar_select %p273, %s272, 23
      %s275 = smul.addr %s274, 8
      %s276 = scalar_lea.vmem %s2, %s275
      %p277 = pneg %p88
      %p278 = pneg %p85
      %s279 = sadd.s32 %s18, 2
      %s280 = smul.u32 4, %s279
      %p281 = scmp.lt.s32.totalorder %s280, 23
      %s282 = scalar_select %p281, %s280, 23
      %s283 = smul.addr %s282, 8
      %s284 = scalar_lea.vmem %s3, %s283
      %p285 = pneg %p116
      %p286 = pneg %p113
      %s287 = smul.u32 4, %s18
      %p288 = scmp.lt.s32.totalorder %s287, 15
      %s289 = scalar_select %p288, %s287, 15
      %s290 = scalar_lea.vmem %s4, %s289
      %p291 = pneg %p142
      %p292 = pneg %p139
      %p293 = pneg %p168
      %p294 = pneg %p165
      %s295 = smul.u32 4, %s18
      %p296 = scmp.lt.s32.totalorder %s295, 15
      %s297 = scalar_select %p296, %s295, 15
      %s298 = smul.addr %s297, 8
      %s299 = scalar_lea.vmem %s5, %s298
      %p300 = pneg %p194
      %p301 = pneg %p191
      %p302 = scmp.lt.s32.totalorder %s18, 3
      %s303 = scalar_select %p302, %s18, 3
      %s304 = smul.addr %s303, 8
      %s305 = scalar_lea.vmem %s6, %s304
      %s306 = smul.u32 4, %s18
      %p307 = scmp.lt.s32.totalorder %s306, 23
      %s308 = scalar_select %p307, %s306, 23
      %s309 = smul.addr %s308, 8
      %s310 = scalar_lea.vmem %s1, %s309
      %s311 = smul.u32 4, %s18
      %s312 = sadd.s32 %s18, 1
      %s313 = smul.u32 4, %s312
      %p314 = scmp.lt.s32.totalorder %s313, 23
      %s315 = scalar_select %p314, %s313, 23
      %s316 = smul.addr %s315, 8
      %s317 = scalar_lea.vmem %s2, %s316
      %s318 = sadd.s32 %s18, 1
      %s319 = smul.u32 4, %s318
      %s320 = sadd.s32 %s18, 2
      %s321 = smul.u32 4, %s320
      %p322 = scmp.lt.s32.totalorder %s321, 23
      %s323 = scalar_select %p322, %s321, 23
      %s324 = smul.addr %s323, 8
      %s325 = scalar_lea.vmem %s3, %s324
      %s326 = sadd.s32 %s18, 2
      %s327 = smul.u32 4, %s326
      %s328 = smul.u32 4, %s18
      %p329 = scmp.lt.s32.totalorder %s328, 15
      %s330 = scalar_select %p329, %s328, 15
      %s331 = scalar_lea.vmem %s4, %s330
      %s332 = smul.u32 4, %s18
      %s333 = smul.u32 4, %s18
      %p334 = scmp.lt.s32.totalorder %s333, 15
      %s335 = scalar_select %p334, %s333, 15
      %s336 = smul.addr %s335, 8
      %s337 = scalar_lea.vmem %s5, %s336
      %s338 = smul.u32 4, %s18
      %p339 = scmp.lt.s32.totalorder %s18, 3
      %s340 = scalar_select %p339, %s18, 3
      %s341 = smul.addr %s340, 8
      %s342 = scalar_lea.vmem %s6, %s341
      %v343 = vld [vmem:[%s310 + $0x18] sm:$0xff]
      %v344 = vld [vmem:[%s317] sm:$0xff]
      %v345 = vld [vmem:[%s317 + $0x8] sm:$0xff]
      %v346 = vld [vmem:[%s317 + $0x10] sm:$0xff]
      %v347 = vld [vmem:[%s317 + $0x18] sm:$0xff]
      %v348 = vld [vmem:[%s325] sm:$0xff]
      %354 = vrot.lane.b32.xlu0 %v343, 127
      %v355 = vpop.permute.xlu0 %354
      %356 = vrot.lane.b32.xlu0 %v344, 127
      %v357 = vpop.permute.xlu0 %356
      %358 = vrot.lane.b32.xlu0 %v345, 127
      %v359 = vpop.permute.xlu0 %358
      %360 = vrot.lane.b32.xlu0 %v346, 127
      %v361 = vpop.permute.xlu0 %360
      %362 = vrot.lane.b32.xlu0 %v347, 127
      %v363 = vpop.permute.xlu0 %362
      %vm364 = vcmask 1039360
      %v365 = vsel %vm364, %v355, %v357
      %v366 = vsel %vm364, %v357, %v359
      %v367 = vsel %vm364, %v359, %v361
      %v368 = vsel %vm364, %v361, %v363
      %369 = vrot.lane.b32.xlu0 %v343, 126
      %v370 = vpop.permute.xlu0 %369
      %371 = vrot.lane.b32.xlu0 %v344, 126
      %v372 = vpop.permute.xlu0 %371
      %373 = vrot.lane.b32.xlu0 %v345, 126
      %v374 = vpop.permute.xlu0 %373
      %375 = vrot.lane.b32.xlu0 %v346, 126
      %v376 = vpop.permute.xlu0 %375
      %377 = vrot.lane.b32.xlu0 %v347, 126
      %v378 = vpop.permute.xlu0 %377
      %vm379 = vcmask 1031168
      %v380 = vsel %vm379, %v370, %v372
      %v381 = vsel %vm379, %v372, %v374
      %v382 = vsel %vm379, %v374, %v376
      %v383 = vsel %vm379, %v376, %v378
      %384 = vrot.lane.b32.xlu0 %v343, 118
      %v385 = vpop.permute.xlu0 %384
      %386 = vrot.lane.b32.xlu0 %v344, 118
      %v387 = vpop.permute.xlu0 %386
      %388 = vrot.lane.b32.xlu0 %v345, 118
      %v389 = vpop.permute.xlu0 %388
      %390 = vrot.lane.b32.xlu0 %v346, 118
      %v391 = vpop.permute.xlu0 %390
      %392 = vrot.lane.b32.xlu0 %v347, 118
      %v393 = vpop.permute.xlu0 %392
      %vm394 = vcmask 965632
      %v395 = vsel %vm394, %v385, %v387
      %v396 = vsel %vm394, %v387, %v389
      %v397 = vsel %vm394, %v389, %v391
      %v398 = vsel %vm394, %v391, %v393
      %399 = vrot.lane.b32.xlu0 %v343, 117
      %v400 = vpop.permute.xlu0 %399
      %401 = vrot.lane.b32.xlu0 %v344, 117
      %v402 = vpop.permute.xlu0 %401
      %403 = vrot.lane.b32.xlu0 %v345, 117
      %v404 = vpop.permute.xlu0 %403
      %405 = vrot.lane.b32.xlu0 %v346, 117
      %v406 = vpop.permute.xlu0 %405
      %407 = vrot.lane.b32.xlu0 %v347, 117
      %v408 = vpop.permute.xlu0 %407
      %vm409 = vcmask 957440
      %v410 = vsel %vm409, %v400, %v402
      %v411 = vsel %vm409, %v402, %v404
      %v412 = vsel %vm409, %v404, %v406
      %v413 = vsel %vm409, %v406, %v408
      %414 = vrot.lane.b32.xlu0 %v343, 116
      %v415 = vpop.permute.xlu0 %414
      %416 = vrot.lane.b32.xlu0 %v344, 116
      %v417 = vpop.permute.xlu0 %416
      %418 = vrot.lane.b32.xlu0 %v345, 116
      %v419 = vpop.permute.xlu0 %418
      %420 = vrot.lane.b32.xlu0 %v346, 116
      %v421 = vpop.permute.xlu0 %420
      %422 = vrot.lane.b32.xlu0 %v347, 116
      %v423 = vpop.permute.xlu0 %422
      %vm424 = vcmask 949248
      %v425 = vsel %vm424, %v415, %v417
      %v426 = vsel %vm424, %v417, %v419
      %v427 = vsel %vm424, %v419, %v421
      %v428 = vsel %vm424, %v421, %v423
      %429 = vrot.lane.b32.xlu0 %v343, 108
      %v430 = vpop.permute.xlu0 %429
      %431 = vrot.lane.b32.xlu0 %v344, 108
      %v432 = vpop.permute.xlu0 %431
      %433 = vrot.lane.b32.xlu0 %v345, 108
      %v434 = vpop.permute.xlu0 %433
      %435 = vrot.lane.b32.xlu0 %v346, 108
      %v436 = vpop.permute.xlu0 %435
      %437 = vrot.lane.b32.xlu0 %v347, 108
      %v438 = vpop.permute.xlu0 %437
      %vm439 = vcmask 883712
      %v440 = vsel %vm439, %v430, %v432
      %v441 = vsel %vm439, %v432, %v434
      %v442 = vsel %vm439, %v434, %v436
      %v443 = vsel %vm439, %v436, %v438
      %444 = vrot.lane.b32.xlu0 %v343, 107
      %v445 = vpop.permute.xlu0 %444
      %446 = vrot.lane.b32.xlu0 %v344, 107
      %v447 = vpop.permute.xlu0 %446
      %448 = vrot.lane.b32.xlu0 %v345, 107
      %v449 = vpop.permute.xlu0 %448
      %450 = vrot.lane.b32.xlu0 %v346, 107
      %v451 = vpop.permute.xlu0 %450
      %452 = vrot.lane.b32.xlu0 %v347, 107
      %v453 = vpop.permute.xlu0 %452
      %vm454 = vcmask 875520
      %v455 = vsel %vm454, %v445, %v447
      %v456 = vsel %vm454, %v447, %v449
      %v457 = vsel %vm454, %v449, %v451
      %v458 = vsel %vm454, %v451, %v453
      %459 = vrot.lane.b32.xlu0 %v343, 106
      %v460 = vpop.permute.xlu0 %459
      %461 = vrot.lane.b32.xlu0 %v344, 106
      %v462 = vpop.permute.xlu0 %461
      %463 = vrot.lane.b32.xlu0 %v345, 106
      %v464 = vpop.permute.xlu0 %463
      %465 = vrot.lane.b32.xlu0 %v346, 106
      %v466 = vpop.permute.xlu0 %465
      %467 = vrot.lane.b32.xlu0 %v347, 106
      %v468 = vpop.permute.xlu0 %467
      %vm469 = vcmask 867328
      %v470 = vsel %vm469, %v460, %v462
      %v471 = vsel %vm469, %v462, %v464
      %v472 = vsel %vm469, %v464, %v466
      %v473 = vsel %vm469, %v466, %v468
      %474 = vrot.lane.b32.xlu0 %v343, 28
      %v475 = vpop.permute.xlu0 %474
      %476 = vrot.lane.b32.xlu0 %v344, 28
      %v477 = vpop.permute.xlu0 %476
      %478 = vrot.lane.b32.xlu0 %v345, 28
      %v479 = vpop.permute.xlu0 %478
      %480 = vrot.lane.b32.xlu0 %v346, 28
      %v481 = vpop.permute.xlu0 %480
      %482 = vrot.lane.b32.xlu0 %v347, 28
      %v483 = vpop.permute.xlu0 %482
      %vm484 = vcmask 228352
      %v485 = vsel %vm484, %v475, %v477
      %v486 = vsel %vm484, %v477, %v479
      %v487 = vsel %vm484, %v479, %v481
      %v488 = vsel %vm484, %v481, %v483
      %489 = vrot.lane.b32.xlu0 %v343, 27
      %v490 = vpop.permute.xlu0 %489
      %491 = vrot.lane.b32.xlu0 %v344, 27
      %v492 = vpop.permute.xlu0 %491
      %493 = vrot.lane.b32.xlu0 %v345, 27
      %v494 = vpop.permute.xlu0 %493
      %495 = vrot.lane.b32.xlu0 %v346, 27
      %v496 = vpop.permute.xlu0 %495
      %497 = vrot.lane.b32.xlu0 %v347, 27
      %v498 = vpop.permute.xlu0 %497
      %vm499 = vcmask 220160
      %v500 = vsel %vm499, %v490, %v492
      %v501 = vsel %vm499, %v492, %v494
      %v502 = vsel %vm499, %v494, %v496
      %v503 = vsel %vm499, %v496, %v498
      %504 = vrot.lane.b32.xlu0 %v343, 26
      %v505 = vpop.permute.xlu0 %504
      %506 = vrot.lane.b32.xlu0 %v344, 26
      %v507 = vpop.permute.xlu0 %506
      %508 = vrot.lane.b32.xlu0 %v345, 26
      %v509 = vpop.permute.xlu0 %508
      %510 = vrot.lane.b32.xlu0 %v346, 26
      %v511 = vpop.permute.xlu0 %510
      %512 = vrot.lane.b32.xlu0 %v347, 26
      %v513 = vpop.permute.xlu0 %512
      %vm514 = vcmask 211968
      %v515 = vsel %vm514, %v505, %v507
      %v516 = vsel %vm514, %v507, %v509
      %v517 = vsel %vm514, %v509, %v511
      %v518 = vsel %vm514, %v511, %v513
      %519 = vrot.lane.b32.xlu0 %v343, 18
      %v520 = vpop.permute.xlu0 %519
      %521 = vrot.lane.b32.xlu0 %v344, 18
      %v522 = vpop.permute.xlu0 %521
      %523 = vrot.lane.b32.xlu0 %v345, 18
      %v524 = vpop.permute.xlu0 %523
      %525 = vrot.lane.b32.xlu0 %v346, 18
      %v526 = vpop.permute.xlu0 %525
      %527 = vrot.lane.b32.xlu0 %v347, 18
      %v528 = vpop.permute.xlu0 %527
      %vm529 = vcmask 146432
      %v530 = vsel %vm529, %v520, %v522
      %v531 = vsel %vm529, %v522, %v524
      %v532 = vsel %vm529, %v524, %v526
      %v533 = vsel %vm529, %v526, %v528
      %534 = vrot.lane.b32.xlu0 %v344, 17
      %v535 = vpop.permute.xlu0 %534
      %536 = vrot.lane.b32.xlu0 %v345, 17
      %v537 = vpop.permute.xlu0 %536
      %538 = vrot.lane.b32.xlu0 %v346, 17
      %v539 = vpop.permute.xlu0 %538
      %540 = vrot.lane.b32.xlu0 %v347, 17
      %v541 = vpop.permute.xlu0 %540
      %vm542 = vcmask 138240
      %v543 = vsel %vm542, %v535, %v537
      %v544 = vsel %vm542, %v537, %v539
      %v545 = vsel %vm542, %v539, %v541
      %547 = vrot.lane.b32.xlu0 %v344, 16
      %v548 = vpop.permute.xlu0 %547
      %549 = vrot.lane.b32.xlu0 %v345, 16
      %v550 = vpop.permute.xlu0 %549
      %551 = vrot.lane.b32.xlu0 %v346, 16
      %v552 = vpop.permute.xlu0 %551
      %553 = vrot.lane.b32.xlu0 %v347, 16
      %v554 = vpop.permute.xlu0 %553
      %555 = vrot.lane.b32.xlu0 %v348, 16
      %v556 = vpop.permute.xlu0 %555
      %vm557 = vcmask 130048
      %v558 = vsel %vm557, %v548, %v550
      %v559 = vsel %vm557, %v550, %v552
      %v560 = vsel %vm557, %v552, %v554
      %v561 = vsel %vm557, %v554, %v556
      %562 = vrot.lane.b32.xlu0 %v344, 8
      %v563 = vpop.permute.xlu0 %562
      %564 = vrot.lane.b32.xlu0 %v345, 8
      %v565 = vpop.permute.xlu0 %564
      %566 = vrot.lane.b32.xlu0 %v346, 8
      %v567 = vpop.permute.xlu0 %566
      %568 = vrot.lane.b32.xlu0 %v347, 8
      %v569 = vpop.permute.xlu0 %568
      %570 = vrot.lane.b32.xlu0 %v348, 8
      %v571 = vpop.permute.xlu0 %570
      %vm572 = vcmask 64512
      %v573 = vsel %vm572, %v563, %v565
      %v574 = vsel %vm572, %v565, %v567
      %v575 = vsel %vm572, %v567, %v569
      %v576 = vsel %vm572, %v569, %v571
      %577 = vrot.lane.b32.xlu0 %v348, 127
      %v578 = vpop.permute.xlu0 %577
      %v579 = vsel %vm364, %v363, %v578
      %580 = vrot.lane.b32.xlu0 %v344, 49
      %v581 = vpop.permute.xlu0 %580
      %582 = vrot.lane.b32.xlu0 %v345, 49
      %v583 = vpop.permute.xlu0 %582
      %584 = vrot.lane.b32.xlu0 %v346, 49
      %v585 = vpop.permute.xlu0 %584
      %586 = vrot.lane.b32.xlu0 %v347, 49
      %v587 = vpop.permute.xlu0 %586
      %588 = vrot.lane.b32.xlu0 %v348, 49
      %v589 = vpop.permute.xlu0 %588
      %vm590 = vcmask 400384
      %v591 = vsel %vm590, %v581, %v583
      %v592 = vsel %vm590, %v583, %v585
      %v593 = vsel %vm590, %v585, %v587
      %v594 = vsel %vm590, %v587, %v589
      %595 = vrot.lane.b32.xlu0 %v344, 48
      %v596 = vpop.permute.xlu0 %595
      %597 = vrot.lane.b32.xlu0 %v345, 48
      %v598 = vpop.permute.xlu0 %597
      %599 = vrot.lane.b32.xlu0 %v346, 48
      %v600 = vpop.permute.xlu0 %599
      %601 = vrot.lane.b32.xlu0 %v347, 48
      %v602 = vpop.permute.xlu0 %601
      %603 = vrot.lane.b32.xlu0 %v348, 48
      %v604 = vpop.permute.xlu0 %603
      %vm605 = vcmask 392192
      %v606 = vsel %vm605, %v596, %v598
      %v607 = vsel %vm605, %v598, %v600
      %v608 = vsel %vm605, %v600, %v602
      %v609 = vsel %vm605, %v602, %v604
      %610 = vrot.lane.b32.xlu0 %v344, 47
      %v611 = vpop.permute.xlu0 %610
      %612 = vrot.lane.b32.xlu0 %v345, 47
      %v613 = vpop.permute.xlu0 %612
      %614 = vrot.lane.b32.xlu0 %v346, 47
      %v615 = vpop.permute.xlu0 %614
      %616 = vrot.lane.b32.xlu0 %v347, 47
      %v617 = vpop.permute.xlu0 %616
      %618 = vrot.lane.b32.xlu0 %v348, 47
      %v619 = vpop.permute.xlu0 %618
      %vm620 = vcmask 384000
      %v621 = vsel %vm620, %v611, %v613
      %v622 = vsel %vm620, %v613, %v615
      %v623 = vsel %vm620, %v615, %v617
      %v624 = vsel %vm620, %v617, %v619
      %625 = vrot.lane.b32.xlu0 %v344, 39
      %v626 = vpop.permute.xlu0 %625
      %627 = vrot.lane.b32.xlu0 %v345, 39
      %v628 = vpop.permute.xlu0 %627
      %629 = vrot.lane.b32.xlu0 %v346, 39
      %v630 = vpop.permute.xlu0 %629
      %631 = vrot.lane.b32.xlu0 %v347, 39
      %v632 = vpop.permute.xlu0 %631
      %633 = vrot.lane.b32.xlu0 %v348, 39
      %v634 = vpop.permute.xlu0 %633
      %vm635 = vcmask 318464
      %v636 = vsel %vm635, %v626, %v628
      %v637 = vsel %vm635, %v628, %v630
      %v638 = vsel %vm635, %v630, %v632
      %v639 = vsel %vm635, %v632, %v634
      %640 = vrot.lane.b32.xlu0 %v344, 38
      %v641 = vpop.permute.xlu0 %640
      %642 = vrot.lane.b32.xlu0 %v345, 38
      %v643 = vpop.permute.xlu0 %642
      %644 = vrot.lane.b32.xlu0 %v346, 38
      %v645 = vpop.permute.xlu0 %644
      %646 = vrot.lane.b32.xlu0 %v347, 38
      %v647 = vpop.permute.xlu0 %646
      %648 = vrot.lane.b32.xlu0 %v348, 38
      %v649 = vpop.permute.xlu0 %648
      %vm650 = vcmask 310272
      %v651 = vsel %vm650, %v641, %v643
      %v652 = vsel %vm650, %v643, %v645
      %v653 = vsel %vm650, %v645, %v647
      %v654 = vsel %vm650, %v647, %v649
      %655 = vrot.lane.b32.xlu0 %v344, 37
      %v656 = vpop.permute.xlu0 %655
      %657 = vrot.lane.b32.xlu0 %v345, 37
      %v658 = vpop.permute.xlu0 %657
      %659 = vrot.lane.b32.xlu0 %v346, 37
      %v660 = vpop.permute.xlu0 %659
      %661 = vrot.lane.b32.xlu0 %v347, 37
      %v662 = vpop.permute.xlu0 %661
      %663 = vrot.lane.b32.xlu0 %v348, 37
      %v664 = vpop.permute.xlu0 %663
      %vm665 = vcmask 302080
      %v666 = vsel %vm665, %v656, %v658
      %v667 = vsel %vm665, %v658, %v660
      %v668 = vsel %vm665, %v660, %v662
      %v669 = vsel %vm665, %v662, %v664
      %670 = vrot.lane.b32.xlu0 %v344, 29
      %v671 = vpop.permute.xlu0 %670
      %672 = vrot.lane.b32.xlu0 %v345, 29
      %v673 = vpop.permute.xlu0 %672
      %674 = vrot.lane.b32.xlu0 %v346, 29
      %v675 = vpop.permute.xlu0 %674
      %676 = vrot.lane.b32.xlu0 %v347, 29
      %v677 = vpop.permute.xlu0 %676
      %678 = vrot.lane.b32.xlu0 %v348, 29
      %v679 = vpop.permute.xlu0 %678
      %vm680 = vcmask 236544
      %v681 = vsel %vm680, %v671, %v673
      %v682 = vsel %vm680, %v673, %v675
      %v683 = vsel %vm680, %v675, %v677
      %v684 = vsel %vm680, %v677, %v679
      %685 = vrot.lane.b32.xlu0 %v348, 28
      %v686 = vpop.permute.xlu0 %685
      %v687 = vsel %vm484, %v483, %v686
      %688 = vrot.lane.b32.xlu0 %v348, 27
      %v689 = vpop.permute.xlu0 %688
      %v690 = vsel %vm499, %v498, %v689
      %691 = vrot.lane.b32.xlu0 %v344, 7
      %v692 = vpop.permute.xlu0 %691
      %693 = vrot.lane.b32.xlu0 %v345, 7
      %v694 = vpop.permute.xlu0 %693
      %695 = vrot.lane.b32.xlu0 %v346, 7
      %v696 = vpop.permute.xlu0 %695
      %697 = vrot.lane.b32.xlu0 %v347, 7
      %v698 = vpop.permute.xlu0 %697
      %699 = vrot.lane.b32.xlu0 %v348, 7
      %v700 = vpop.permute.xlu0 %699
      %701 = vrot.lane.b32.xlu0 %v366, 7
      %v702 = vpop.permute.xlu0 %701
      %703 = vrot.lane.b32.xlu0 %v367, 7
      %v704 = vpop.permute.xlu0 %703
      %705 = vrot.lane.b32.xlu0 %v368, 7
      %v706 = vpop.permute.xlu0 %705
      %707 = vrot.lane.b32.xlu0 %v579, 7
      %v708 = vpop.permute.xlu0 %707
      %709 = vrot.lane.b32.xlu0 %v578, 7
      %v710 = vpop.permute.xlu0 %709
      %711 = vrot.lane.b32.xlu0 %v591, 7
      %v712 = vpop.permute.xlu0 %711
      %713 = vrot.lane.b32.xlu0 %v592, 7
      %v714 = vpop.permute.xlu0 %713
      %715 = vrot.lane.b32.xlu0 %v593, 7
      %v716 = vpop.permute.xlu0 %715
      %717 = vrot.lane.b32.xlu0 %v594, 7
      %v718 = vpop.permute.xlu0 %717
      %719 = vrot.lane.b32.xlu0 %v589, 7
      %v720 = vpop.permute.xlu0 %719
      %721 = vrot.lane.b32.xlu0 %v606, 7
      %v722 = vpop.permute.xlu0 %721
      %723 = vrot.lane.b32.xlu0 %v607, 7
      %v724 = vpop.permute.xlu0 %723
      %725 = vrot.lane.b32.xlu0 %v608, 7
      %v726 = vpop.permute.xlu0 %725
      %727 = vrot.lane.b32.xlu0 %v609, 7
      %v728 = vpop.permute.xlu0 %727
      %729 = vrot.lane.b32.xlu0 %v604, 7
      %v730 = vpop.permute.xlu0 %729
      %731 = vrot.lane.b32.xlu0 %v621, 7
      %v732 = vpop.permute.xlu0 %731
      %733 = vrot.lane.b32.xlu0 %v622, 7
      %v734 = vpop.permute.xlu0 %733
      %735 = vrot.lane.b32.xlu0 %v623, 7
      %v736 = vpop.permute.xlu0 %735
      %737 = vrot.lane.b32.xlu0 %v624, 7
      %v738 = vpop.permute.xlu0 %737
      %739 = vrot.lane.b32.xlu0 %v619, 7
      %v740 = vpop.permute.xlu0 %739
      %741 = vrot.lane.b32.xlu0 %v636, 7
      %v742 = vpop.permute.xlu0 %741
      %743 = vrot.lane.b32.xlu0 %v637, 7
      %v744 = vpop.permute.xlu0 %743
      %745 = vrot.lane.b32.xlu0 %v638, 7
      %v746 = vpop.permute.xlu0 %745
      %747 = vrot.lane.b32.xlu0 %v639, 7
      %v748 = vpop.permute.xlu0 %747
      %749 = vrot.lane.b32.xlu0 %v634, 7
      %v750 = vpop.permute.xlu0 %749
      %751 = vrot.lane.b32.xlu0 %v651, 7
      %v752 = vpop.permute.xlu0 %751
      %753 = vrot.lane.b32.xlu0 %v652, 7
      %v754 = vpop.permute.xlu0 %753
      %755 = vrot.lane.b32.xlu0 %v653, 7
      %v756 = vpop.permute.xlu0 %755
      %757 = vrot.lane.b32.xlu0 %v654, 7
      %v758 = vpop.permute.xlu0 %757
      %759 = vrot.lane.b32.xlu0 %v649, 7
      %v760 = vpop.permute.xlu0 %759
      %761 = vrot.lane.b32.xlu0 %v666, 7
      %v762 = vpop.permute.xlu0 %761
      %763 = vrot.lane.b32.xlu0 %v667, 7
      %v764 = vpop.permute.xlu0 %763
      %765 = vrot.lane.b32.xlu0 %v668, 7
      %v766 = vpop.permute.xlu0 %765
      %767 = vrot.lane.b32.xlu0 %v669, 7
      %v768 = vpop.permute.xlu0 %767
      %769 = vrot.lane.b32.xlu0 %v664, 7
      %v770 = vpop.permute.xlu0 %769
      %771 = vrot.lane.b32.xlu0 %v681, 7
      %v772 = vpop.permute.xlu0 %771
      %773 = vrot.lane.b32.xlu0 %v682, 7
      %v774 = vpop.permute.xlu0 %773
      %775 = vrot.lane.b32.xlu0 %v683, 7
      %v776 = vpop.permute.xlu0 %775
      %777 = vrot.lane.b32.xlu0 %v684, 7
      %v778 = vpop.permute.xlu0 %777
      %779 = vrot.lane.b32.xlu0 %v679, 7
      %v780 = vpop.permute.xlu0 %779
      %781 = vrot.lane.b32.xlu0 %v486, 7
      %v782 = vpop.permute.xlu0 %781
      %783 = vrot.lane.b32.xlu0 %v487, 7
      %v784 = vpop.permute.xlu0 %783
      %785 = vrot.lane.b32.xlu0 %v488, 7
      %v786 = vpop.permute.xlu0 %785
      %787 = vrot.lane.b32.xlu0 %v687, 7
      %v788 = vpop.permute.xlu0 %787
      %789 = vrot.lane.b32.xlu0 %v686, 7
      %v790 = vpop.permute.xlu0 %789
      %791 = vrot.lane.b32.xlu0 %v501, 7
      %v792 = vpop.permute.xlu0 %791
      %793 = vrot.lane.b32.xlu0 %v502, 7
      %v794 = vpop.permute.xlu0 %793
      %795 = vrot.lane.b32.xlu0 %v503, 7
      %v796 = vpop.permute.xlu0 %795
      %797 = vrot.lane.b32.xlu0 %v690, 7
      %v798 = vpop.permute.xlu0 %797
      %799 = vrot.lane.b32.xlu0 %v689, 7
      %v800 = vpop.permute.xlu0 %799
      %vm801 = vcmask 56320
      %v802 = vsel %vm801, %v692, %v694
      %v803 = vsel %vm801, %v694, %v696
      %v804 = vsel %vm801, %v696, %v698
      %v805 = vsel %vm801, %v698, %v700
      %v806 = vsel %vm801, %v702, %v704
      %v807 = vsel %vm801, %v704, %v706
      %v808 = vsel %vm801, %v706, %v708
      %v809 = vsel %vm801, %v708, %v710
      %v810 = vsel %vm801, %v712, %v714
      %v811 = vsel %vm801, %v714, %v716
      %v812 = vsel %vm801, %v716, %v718
      %v813 = vsel %vm801, %v718, %v720
      %v814 = vsel %vm801, %v722, %v724
      %v815 = vsel %vm801, %v724, %v726
      %v816 = vsel %vm801, %v726, %v728
      %v817 = vsel %vm801, %v728, %v730
      %v818 = vsel %vm801, %v732, %v734
      %v819 = vsel %vm801, %v734, %v736
      %v820 = vsel %vm801, %v736, %v738
      %v821 = vsel %vm801, %v738, %v740
      %v822 = vsel %vm801, %v742, %v744
      %v823 = vsel %vm801, %v744, %v746
      %v824 = vsel %vm801, %v746, %v748
      %v825 = vsel %vm801, %v748, %v750
      %v826 = vsel %vm801, %v752, %v754
      %v827 = vsel %vm801, %v754, %v756
      %v828 = vsel %vm801, %v756, %v758
      %v829 = vsel %vm801, %v758, %v760
      %v830 = vsel %vm801, %v762, %v764
      %v831 = vsel %vm801, %v764, %v766
      %v832 = vsel %vm801, %v766, %v768
      %v833 = vsel %vm801, %v768, %v770
      %v834 = vsel %vm801, %v772, %v774
      %v835 = vsel %vm801, %v774, %v776
      %v836 = vsel %vm801, %v776, %v778
      %v837 = vsel %vm801, %v778, %v780
      %v838 = vsel %vm801, %v782, %v784
      %v839 = vsel %vm801, %v784, %v786
      %v840 = vsel %vm801, %v786, %v788
      %v841 = vsel %vm801, %v788, %v790
      %v842 = vsel %vm801, %v792, %v794
      %v843 = vsel %vm801, %v794, %v796
      %v844 = vsel %vm801, %v796, %v798
      %v845 = vsel %vm801, %v798, %v800
      %v846 = vld [vmem:[%s0] sm:$0xff]
      %v847 = vld [vmem:[%s0 + $0x8] sm:$0xff]
      %848 = vrot.lane.b32.xlu0 %v343, 111
      %v849 = vpop.permute.xlu0 %848
      %850 = vrot.lane.b32.xlu0 %v344, 111
      %v851 = vpop.permute.xlu0 %850
      %852 = vrot.lane.b32.xlu0 %v345, 111
      %v853 = vpop.permute.xlu0 %852
      %854 = vrot.lane.b32.xlu0 %v346, 111
      %v855 = vpop.permute.xlu0 %854
      %856 = vrot.lane.b32.xlu0 %v347, 111
      %v857 = vpop.permute.xlu0 %856
      %858 = vrot.lane.b32.xlu0 %v365, 111
      %v859 = vpop.permute.xlu0 %858
      %860 = vrot.lane.b32.xlu0 %v366, 111
      %v861 = vpop.permute.xlu0 %860
      %862 = vrot.lane.b32.xlu0 %v367, 111
      %v863 = vpop.permute.xlu0 %862
      %864 = vrot.lane.b32.xlu0 %v368, 111
      %v865 = vpop.permute.xlu0 %864
      %866 = vrot.lane.b32.xlu0 %v363, 111
      %v867 = vpop.permute.xlu0 %866
      %868 = vrot.lane.b32.xlu0 %v380, 111
      %v869 = vpop.permute.xlu0 %868
      %870 = vrot.lane.b32.xlu0 %v381, 111
      %v871 = vpop.permute.xlu0 %870
      %872 = vrot.lane.b32.xlu0 %v382, 111
      %v873 = vpop.permute.xlu0 %872
      %874 = vrot.lane.b32.xlu0 %v383, 111
      %v875 = vpop.permute.xlu0 %874
      %876 = vrot.lane.b32.xlu0 %v378, 111
      %v877 = vpop.permute.xlu0 %876
      %878 = vrot.lane.b32.xlu0 %v395, 111
      %v879 = vpop.permute.xlu0 %878
      %880 = vrot.lane.b32.xlu0 %v396, 111
      %v881 = vpop.permute.xlu0 %880
      %882 = vrot.lane.b32.xlu0 %v397, 111
      %v883 = vpop.permute.xlu0 %882
      %884 = vrot.lane.b32.xlu0 %v398, 111
      %v885 = vpop.permute.xlu0 %884
      %886 = vrot.lane.b32.xlu0 %v393, 111
      %v887 = vpop.permute.xlu0 %886
      %888 = vrot.lane.b32.xlu0 %v410, 111
      %v889 = vpop.permute.xlu0 %888
      %890 = vrot.lane.b32.xlu0 %v411, 111
      %v891 = vpop.permute.xlu0 %890
      %892 = vrot.lane.b32.xlu0 %v412, 111
      %v893 = vpop.permute.xlu0 %892
      %894 = vrot.lane.b32.xlu0 %v413, 111
      %v895 = vpop.permute.xlu0 %894
      %896 = vrot.lane.b32.xlu0 %v408, 111
      %v897 = vpop.permute.xlu0 %896
      %898 = vrot.lane.b32.xlu0 %v425, 111
      %v899 = vpop.permute.xlu0 %898
      %900 = vrot.lane.b32.xlu0 %v426, 111
      %v901 = vpop.permute.xlu0 %900
      %902 = vrot.lane.b32.xlu0 %v427, 111
      %v903 = vpop.permute.xlu0 %902
      %904 = vrot.lane.b32.xlu0 %v428, 111
      %v905 = vpop.permute.xlu0 %904
      %906 = vrot.lane.b32.xlu0 %v423, 111
      %v907 = vpop.permute.xlu0 %906
      %908 = vrot.lane.b32.xlu0 %v440, 111
      %v909 = vpop.permute.xlu0 %908
      %910 = vrot.lane.b32.xlu0 %v441, 111
      %v911 = vpop.permute.xlu0 %910
      %912 = vrot.lane.b32.xlu0 %v442, 111
      %v913 = vpop.permute.xlu0 %912
      %914 = vrot.lane.b32.xlu0 %v443, 111
      %v915 = vpop.permute.xlu0 %914
      %916 = vrot.lane.b32.xlu0 %v438, 111
      %v917 = vpop.permute.xlu0 %916
      %918 = vrot.lane.b32.xlu0 %v455, 111
      %v919 = vpop.permute.xlu0 %918
      %920 = vrot.lane.b32.xlu0 %v456, 111
      %v921 = vpop.permute.xlu0 %920
      %922 = vrot.lane.b32.xlu0 %v457, 111
      %v923 = vpop.permute.xlu0 %922
      %924 = vrot.lane.b32.xlu0 %v458, 111
      %v925 = vpop.permute.xlu0 %924
      %926 = vrot.lane.b32.xlu0 %v453, 111
      %v927 = vpop.permute.xlu0 %926
      %928 = vrot.lane.b32.xlu0 %v470, 111
      %v929 = vpop.permute.xlu0 %928
      %930 = vrot.lane.b32.xlu0 %v471, 111
      %v931 = vpop.permute.xlu0 %930
      %932 = vrot.lane.b32.xlu0 %v472, 111
      %v933 = vpop.permute.xlu0 %932
      %934 = vrot.lane.b32.xlu0 %v473, 111
      %v935 = vpop.permute.xlu0 %934
      %936 = vrot.lane.b32.xlu0 %v468, 111
      %v937 = vpop.permute.xlu0 %936
      %938 = vrot.lane.b32.xlu0 %v485, 111
      %v939 = vpop.permute.xlu0 %938
      %940 = vrot.lane.b32.xlu0 %v486, 111
      %v941 = vpop.permute.xlu0 %940
      %942 = vrot.lane.b32.xlu0 %v487, 111
      %v943 = vpop.permute.xlu0 %942
      %944 = vrot.lane.b32.xlu0 %v488, 111
      %v945 = vpop.permute.xlu0 %944
      %946 = vrot.lane.b32.xlu0 %v483, 111
      %v947 = vpop.permute.xlu0 %946
      %948 = vrot.lane.b32.xlu0 %v500, 111
      %v949 = vpop.permute.xlu0 %948
      %950 = vrot.lane.b32.xlu0 %v501, 111
      %v951 = vpop.permute.xlu0 %950
      %952 = vrot.lane.b32.xlu0 %v502, 111
      %v953 = vpop.permute.xlu0 %952
      %954 = vrot.lane.b32.xlu0 %v503, 111
      %v955 = vpop.permute.xlu0 %954
      %956 = vrot.lane.b32.xlu0 %v498, 111
      %v957 = vpop.permute.xlu0 %956
      %958 = vrot.lane.b32.xlu0 %v515, 111
      %v959 = vpop.permute.xlu0 %958
      %960 = vrot.lane.b32.xlu0 %v516, 111
      %v961 = vpop.permute.xlu0 %960
      %962 = vrot.lane.b32.xlu0 %v517, 111
      %v963 = vpop.permute.xlu0 %962
      %964 = vrot.lane.b32.xlu0 %v518, 111
      %v965 = vpop.permute.xlu0 %964
      %966 = vrot.lane.b32.xlu0 %v513, 111
      %v967 = vpop.permute.xlu0 %966
      %968 = vrot.lane.b32.xlu0 %v530, 111
      %v969 = vpop.permute.xlu0 %968
      %970 = vrot.lane.b32.xlu0 %v531, 111
      %v971 = vpop.permute.xlu0 %970
      %972 = vrot.lane.b32.xlu0 %v532, 111
      %v973 = vpop.permute.xlu0 %972
      %974 = vrot.lane.b32.xlu0 %v533, 111
      %v975 = vpop.permute.xlu0 %974
      %976 = vrot.lane.b32.xlu0 %v528, 111
      %v977 = vpop.permute.xlu0 %976
      %978 = vrot.lane.b32.xlu0 %v535, 111
      %v979 = vpop.permute.xlu0 %978
      %980 = vrot.lane.b32.xlu0 %v543, 111
      %v981 = vpop.permute.xlu0 %980
      %982 = vrot.lane.b32.xlu0 %v544, 111
      %v983 = vpop.permute.xlu0 %982
      %984 = vrot.lane.b32.xlu0 %v545, 111
      %v985 = vpop.permute.xlu0 %984
      %986 = vrot.lane.b32.xlu0 %v541, 111
      %v987 = vpop.permute.xlu0 %986
      %988 = vrot.lane.b32.xlu0 %v548, 111
      %v989 = vpop.permute.xlu0 %988
      %990 = vrot.lane.b32.xlu0 %v558, 111
      %v991 = vpop.permute.xlu0 %990
      %992 = vrot.lane.b32.xlu0 %v559, 111
      %v993 = vpop.permute.xlu0 %992
      %994 = vrot.lane.b32.xlu0 %v560, 111
      %v995 = vpop.permute.xlu0 %994
      %996 = vrot.lane.b32.xlu0 %v561, 111
      %v997 = vpop.permute.xlu0 %996
      %998 = vrot.lane.b32.xlu0 %v563, 111
      %v999 = vpop.permute.xlu0 %998
      %1000 = vrot.lane.b32.xlu0 %v573, 111
      %v1001 = vpop.permute.xlu0 %1000
      %1002 = vrot.lane.b32.xlu0 %v574, 111
      %v1003 = vpop.permute.xlu0 %1002
      %1004 = vrot.lane.b32.xlu0 %v575, 111
      %v1005 = vpop.permute.xlu0 %1004
      %1006 = vrot.lane.b32.xlu0 %v576, 111
      %v1007 = vpop.permute.xlu0 %1006
      %1008 = vrot.lane.b32.xlu0 %v692, 111
      %v1009 = vpop.permute.xlu0 %1008
      %1010 = vrot.lane.b32.xlu0 %v802, 111
      %v1011 = vpop.permute.xlu0 %1010
      %1012 = vrot.lane.b32.xlu0 %v803, 111
      %v1013 = vpop.permute.xlu0 %1012
      %1014 = vrot.lane.b32.xlu0 %v804, 111
      %v1015 = vpop.permute.xlu0 %1014
      %1016 = vrot.lane.b32.xlu0 %v805, 111
      %v1017 = vpop.permute.xlu0 %1016
      %1018 = vrot.lane.b32.xlu0 %v702, 111
      %v1019 = vpop.permute.xlu0 %1018
      %1020 = vrot.lane.b32.xlu0 %v806, 111
      %v1021 = vpop.permute.xlu0 %1020
      %1022 = vrot.lane.b32.xlu0 %v807, 111
      %v1023 = vpop.permute.xlu0 %1022
      %1024 = vrot.lane.b32.xlu0 %v808, 111
      %v1025 = vpop.permute.xlu0 %1024
      %1026 = vrot.lane.b32.xlu0 %v809, 111
      %v1027 = vpop.permute.xlu0 %1026
      %1028 = vrot.lane.b32.xlu0 %v712, 111
      %v1029 = vpop.permute.xlu0 %1028
      %1030 = vrot.lane.b32.xlu0 %v810, 111
      %v1031 = vpop.permute.xlu0 %1030
      %1032 = vrot.lane.b32.xlu0 %v811, 111
      %v1033 = vpop.permute.xlu0 %1032
      %1034 = vrot.lane.b32.xlu0 %v812, 111
      %v1035 = vpop.permute.xlu0 %1034
      %1036 = vrot.lane.b32.xlu0 %v813, 111
      %v1037 = vpop.permute.xlu0 %1036
      %1038 = vrot.lane.b32.xlu0 %v722, 111
      %v1039 = vpop.permute.xlu0 %1038
      %1040 = vrot.lane.b32.xlu0 %v814, 111
      %v1041 = vpop.permute.xlu0 %1040
      %1042 = vrot.lane.b32.xlu0 %v815, 111
      %v1043 = vpop.permute.xlu0 %1042
      %1044 = vrot.lane.b32.xlu0 %v816, 111
      %v1045 = vpop.permute.xlu0 %1044
      %1046 = vrot.lane.b32.xlu0 %v817, 111
      %v1047 = vpop.permute.xlu0 %1046
      %1048 = vrot.lane.b32.xlu0 %v732, 111
      %v1049 = vpop.permute.xlu0 %1048
      %1050 = vrot.lane.b32.xlu0 %v818, 111
      %v1051 = vpop.permute.xlu0 %1050
      %1052 = vrot.lane.b32.xlu0 %v819, 111
      %v1053 = vpop.permute.xlu0 %1052
      %1054 = vrot.lane.b32.xlu0 %v820, 111
      %v1055 = vpop.permute.xlu0 %1054
      %1056 = vrot.lane.b32.xlu0 %v821, 111
      %v1057 = vpop.permute.xlu0 %1056
      %1058 = vrot.lane.b32.xlu0 %v742, 111
      %v1059 = vpop.permute.xlu0 %1058
      %1060 = vrot.lane.b32.xlu0 %v822, 111
      %v1061 = vpop.permute.xlu0 %1060
      %1062 = vrot.lane.b32.xlu0 %v823, 111
      %v1063 = vpop.permute.xlu0 %1062
      %1064 = vrot.lane.b32.xlu0 %v824, 111
      %v1065 = vpop.permute.xlu0 %1064
      %1066 = vrot.lane.b32.xlu0 %v825, 111
      %v1067 = vpop.permute.xlu0 %1066
      %1068 = vrot.lane.b32.xlu0 %v752, 111
      %v1069 = vpop.permute.xlu0 %1068
      %1070 = vrot.lane.b32.xlu0 %v826, 111
      %v1071 = vpop.permute.xlu0 %1070
      %1072 = vrot.lane.b32.xlu0 %v827, 111
      %v1073 = vpop.permute.xlu0 %1072
      %1074 = vrot.lane.b32.xlu0 %v828, 111
      %v1075 = vpop.permute.xlu0 %1074
      %1076 = vrot.lane.b32.xlu0 %v829, 111
      %v1077 = vpop.permute.xlu0 %1076
      %1078 = vrot.lane.b32.xlu0 %v762, 111
      %v1079 = vpop.permute.xlu0 %1078
      %1080 = vrot.lane.b32.xlu0 %v830, 111
      %v1081 = vpop.permute.xlu0 %1080
      %1082 = vrot.lane.b32.xlu0 %v831, 111
      %v1083 = vpop.permute.xlu0 %1082
      %1084 = vrot.lane.b32.xlu0 %v832, 111
      %v1085 = vpop.permute.xlu0 %1084
      %1086 = vrot.lane.b32.xlu0 %v833, 111
      %v1087 = vpop.permute.xlu0 %1086
      %1088 = vrot.lane.b32.xlu0 %v772, 111
      %v1089 = vpop.permute.xlu0 %1088
      %1090 = vrot.lane.b32.xlu0 %v834, 111
      %v1091 = vpop.permute.xlu0 %1090
      %1092 = vrot.lane.b32.xlu0 %v835, 111
      %v1093 = vpop.permute.xlu0 %1092
      %1094 = vrot.lane.b32.xlu0 %v836, 111
      %v1095 = vpop.permute.xlu0 %1094
      %1096 = vrot.lane.b32.xlu0 %v837, 111
      %v1097 = vpop.permute.xlu0 %1096
      %1098 = vrot.lane.b32.xlu0 %v782, 111
      %v1099 = vpop.permute.xlu0 %1098
      %1100 = vrot.lane.b32.xlu0 %v838, 111
      %v1101 = vpop.permute.xlu0 %1100
      %1102 = vrot.lane.b32.xlu0 %v839, 111
      %v1103 = vpop.permute.xlu0 %1102
      %1104 = vrot.lane.b32.xlu0 %v840, 111
      %v1105 = vpop.permute.xlu0 %1104
      %1106 = vrot.lane.b32.xlu0 %v841, 111
      %v1107 = vpop.permute.xlu0 %1106
      %1108 = vrot.lane.b32.xlu0 %v792, 111
      %v1109 = vpop.permute.xlu0 %1108
      %1110 = vrot.lane.b32.xlu0 %v842, 111
      %v1111 = vpop.permute.xlu0 %1110
      %1112 = vrot.lane.b32.xlu0 %v843, 111
      %v1113 = vpop.permute.xlu0 %1112
      %1114 = vrot.lane.b32.xlu0 %v844, 111
      %v1115 = vpop.permute.xlu0 %1114
      %1116 = vrot.lane.b32.xlu0 %v845, 111
      %v1117 = vpop.permute.xlu0 %1116
      %vm1118 = vcmask 908288
      %v1119 = vsel %vm1118, %v849, %v851
      %v1120 = vsel %vm1118, %v851, %v853
      %v1121 = vsel %vm1118, %v853, %v855
      %v1122 = vsel %vm1118, %v855, %v857
      %v1123 = vsel %vm1118, %v859, %v861
      %v1124 = vsel %vm1118, %v861, %v863
      %v1125 = vsel %vm1118, %v863, %v865
      %v1126 = vsel %vm1118, %v865, %v867
      %v1127 = vsel %vm1118, %v869, %v871
      %v1128 = vsel %vm1118, %v871, %v873
      %v1129 = vsel %vm1118, %v873, %v875
      %v1130 = vsel %vm1118, %v875, %v877
      %v1131 = vsel %vm1118, %v879, %v881
      %v1132 = vsel %vm1118, %v881, %v883
      %v1133 = vsel %vm1118, %v883, %v885
      %v1134 = vsel %vm1118, %v885, %v887
      %v1135 = vsel %vm1118, %v889, %v891
      %v1136 = vsel %vm1118, %v891, %v893
      %v1137 = vsel %vm1118, %v893, %v895
      %v1138 = vsel %vm1118, %v895, %v897
      %v1139 = vsel %vm1118, %v899, %v901
      %v1140 = vsel %vm1118, %v901, %v903
      %v1141 = vsel %vm1118, %v903, %v905
      %v1142 = vsel %vm1118, %v905, %v907
      %v1143 = vsel %vm1118, %v909, %v911
      %v1144 = vsel %vm1118, %v911, %v913
      %v1145 = vsel %vm1118, %v913, %v915
      %v1146 = vsel %vm1118, %v915, %v917
      %v1147 = vsel %vm1118, %v919, %v921
      %v1148 = vsel %vm1118, %v921, %v923
      %v1149 = vsel %vm1118, %v923, %v925
      %v1150 = vsel %vm1118, %v925, %v927
      %v1151 = vsel %vm1118, %v929, %v931
      %v1152 = vsel %vm1118, %v931, %v933
      %v1153 = vsel %vm1118, %v933, %v935
      %v1154 = vsel %vm1118, %v935, %v937
      %v1155 = vsel %vm1118, %v939, %v941
      %v1156 = vsel %vm1118, %v941, %v943
      %v1157 = vsel %vm1118, %v943, %v945
      %v1158 = vsel %vm1118, %v945, %v947
      %v1159 = vsel %vm1118, %v949, %v951
      %v1160 = vsel %vm1118, %v951, %v953
      %v1161 = vsel %vm1118, %v953, %v955
      %v1162 = vsel %vm1118, %v955, %v957
      %v1163 = vsel %vm1118, %v959, %v961
      %v1164 = vsel %vm1118, %v961, %v963
      %v1165 = vsel %vm1118, %v963, %v965
      %v1166 = vsel %vm1118, %v965, %v967
      %v1167 = vsel %vm1118, %v969, %v971
      %v1168 = vsel %vm1118, %v971, %v973
      %v1169 = vsel %vm1118, %v973, %v975
      %v1170 = vsel %vm1118, %v975, %v977
      %v1171 = vsel %vm1118, %v979, %v981
      %v1172 = vsel %vm1118, %v981, %v983
      %v1173 = vsel %vm1118, %v983, %v985
      %v1174 = vsel %vm1118, %v985, %v987
      %v1175 = vsel %vm1118, %v989, %v991
      %v1176 = vsel %vm1118, %v991, %v993
      %v1177 = vsel %vm1118, %v993, %v995
      %v1178 = vsel %vm1118, %v995, %v997
      %v1179 = vsel %vm1118, %v999, %v1001
      %v1180 = vsel %vm1118, %v1001, %v1003
      %v1181 = vsel %vm1118, %v1003, %v1005
      %v1182 = vsel %vm1118, %v1005, %v1007
      %v1183 = vsel %vm1118, %v1009, %v1011
      %v1184 = vsel %vm1118, %v1011, %v1013
      %v1185 = vsel %vm1118, %v1013, %v1015
      %v1186 = vsel %vm1118, %v1015, %v1017
      %v1187 = vsel %vm1118, %v1019, %v1021
      %v1188 = vsel %vm1118, %v1021, %v1023
      %v1189 = vsel %vm1118, %v1023, %v1025
      %v1190 = vsel %vm1118, %v1025, %v1027
      %v1191 = vsel %vm1118, %v1029, %v1031
      %v1192 = vsel %vm1118, %v1031, %v1033
      %v1193 = vsel %vm1118, %v1033, %v1035
      %v1194 = vsel %vm1118, %v1035, %v1037
      %v1195 = vsel %vm1118, %v1039, %v1041
      %v1196 = vsel %vm1118, %v1041, %v1043
      %v1197 = vsel %vm1118, %v1043, %v1045
      %v1198 = vsel %vm1118, %v1045, %v1047
      %v1199 = vsel %vm1118, %v1049, %v1051
      %v1200 = vsel %vm1118, %v1051, %v1053
      %v1201 = vsel %vm1118, %v1053, %v1055
      %v1202 = vsel %vm1118, %v1055, %v1057
      %v1203 = vsel %vm1118, %v1059, %v1061
      %v1204 = vsel %vm1118, %v1061, %v1063
      %v1205 = vsel %vm1118, %v1063, %v1065
      %v1206 = vsel %vm1118, %v1065, %v1067
      %v1207 = vsel %vm1118, %v1069, %v1071
      %v1208 = vsel %vm1118, %v1071, %v1073
      %v1209 = vsel %vm1118, %v1073, %v1075
      %v1210 = vsel %vm1118, %v1075, %v1077
      %v1211 = vsel %vm1118, %v1079, %v1081
      %v1212 = vsel %vm1118, %v1081, %v1083
      %v1213 = vsel %vm1118, %v1083, %v1085
      %v1214 = vsel %vm1118, %v1085, %v1087
      %v1215 = vsel %vm1118, %v1089, %v1091
      %v1216 = vsel %vm1118, %v1091, %v1093
      %v1217 = vsel %vm1118, %v1093, %v1095
      %v1218 = vsel %vm1118, %v1095, %v1097
      %v1219 = vsel %vm1118, %v1099, %v1101
      %v1220 = vsel %vm1118, %v1101, %v1103
      %v1221 = vsel %vm1118, %v1103, %v1105
      %v1222 = vsel %vm1118, %v1105, %v1107
      %v1223 = vsel %vm1118, %v1109, %v1111
      %v1224 = vsel %vm1118, %v1111, %v1113
      %v1225 = vsel %vm1118, %v1113, %v1115
      %v1226 = vsel %vm1118, %v1115, %v1117
      %vm1335 = vcmask 719872
      %v1337 = vsel %vm1335, %v847, 0
      %v1339 = vand.u32 %v1179, 4294901760
      %1340 = vmatpush.msra.mxu0 %v1339
      %v1341 = vand.u32 %v1175, 4294901760
      %1342 = vmatpush.msra.mxu0 %v1341
      %v1343 = vand.u32 %v1171, 4294901760
      %1344 = vmatpush.msra.mxu0 %v1343
      %v1345 = vand.u32 %v1167, 4294901760
      %1346 = vmatpush.msra.mxu0 %v1345
      %v1347 = vand.u32 %v1163, 4294901760
      %1348 = vmatpush.msra.mxu0 %v1347
      %v1349 = vand.u32 %v1159, 4294901760
      %1350 = vmatpush.msra.mxu0 %v1349
      %v1351 = vand.u32 %v1155, 4294901760
      %1352 = vmatpush.msra.mxu0 %v1351
      %v1353 = vand.u32 %v1151, 4294901760
      %1354 = vmatpush.msra.mxu0 %v1353
      %v1355 = vand.u32 %v1147, 4294901760
      %1356 = vmatpush.msra.mxu0 %v1355
      %v1357 = vand.u32 %v1143, 4294901760
      %1358 = vmatpush.msra.mxu0 %v1357
      %v1359 = vand.u32 %v1139, 4294901760
      %1360 = vmatpush.msra.mxu0 %v1359
      %v1361 = vand.u32 %v1135, 4294901760
      %1362 = vmatpush.msra.mxu0 %v1361
      %v1363 = vand.u32 %v1131, 4294901760
      %1364 = vmatpush.msra.mxu0 %v1363
      %v1365 = vand.u32 %v1127, 4294901760
      %1366 = vmatpush.msra.mxu0 %v1365
      %v1367 = vand.u32 %v1123, 4294901760
      %1368 = vmatpush.msra.mxu0 %v1367
      %v1369 = vand.u32 %v1119, 4294901760
      %1370 = vmatpush.msra.mxu0 %v1369
      %v1371 = vand.u32 %v846, 4294901760
      %v1372 = vsub.f32 %v846, %v1371
      %v1373 = vand.u32 %v1372, 4294901760
      %v1374 = vsub.f32 %v1372, %v1373
      %v1375 = vand.u32 %v1374, 4294901760
      %1376 = vmatmul.f32.gmra.mxu0 %v1375
      %v1377 = vpop.f32.mrf.mxu0
      %v1378 = vadd.f32 0.0, %v1377
      %1379 = vdwg.mxu0
      %v1380 = vand.u32 %v1179, 4294901760
      %v1381 = vsub.f32 %v1179, %v1380
      %v1382 = vand.u32 %v1381, 4294901760
      %v1383 = vsub.f32 %v1381, %v1382
      %v1384 = vand.u32 %v1383, 4294901760
      %1385 = vmatpush.msra.mxu0 %v1384
      %v1386 = vand.u32 %v1175, 4294901760
      %v1387 = vsub.f32 %v1175, %v1386
      %v1388 = vand.u32 %v1387, 4294901760
      %v1389 = vsub.f32 %v1387, %v1388
      %v1390 = vand.u32 %v1389, 4294901760
      %1391 = vmatpush.msra.mxu0 %v1390
      %v1392 = vand.u32 %v1171, 4294901760
      %v1393 = vsub.f32 %v1171, %v1392
      %v1394 = vand.u32 %v1393, 4294901760
      %v1395 = vsub.f32 %v1393, %v1394
      %v1396 = vand.u32 %v1395, 4294901760
      %1397 = vmatpush.msra.mxu0 %v1396
      %v1398 = vand.u32 %v1167, 4294901760
      %v1399 = vsub.f32 %v1167, %v1398
      %v1400 = vand.u32 %v1399, 4294901760
      %v1401 = vsub.f32 %v1399, %v1400
      %v1402 = vand.u32 %v1401, 4294901760
      %1403 = vmatpush.msra.mxu0 %v1402
      %v1404 = vand.u32 %v1163, 4294901760
      %v1405 = vsub.f32 %v1163, %v1404
      %v1406 = vand.u32 %v1405, 4294901760
      %v1407 = vsub.f32 %v1405, %v1406
      %v1408 = vand.u32 %v1407, 4294901760
      %1409 = vmatpush.msra.mxu0 %v1408
      %v1410 = vand.u32 %v1159, 4294901760
      %v1411 = vsub.f32 %v1159, %v1410
      %v1412 = vand.u32 %v1411, 4294901760
      %v1413 = vsub.f32 %v1411, %v1412
      %v1414 = vand.u32 %v1413, 4294901760
      %1415 = vmatpush.msra.mxu0 %v1414
      %v1416 = vand.u32 %v1155, 4294901760
      %v1417 = vsub.f32 %v1155, %v1416
      %v1418 = vand.u32 %v1417, 4294901760
      %v1419 = vsub.f32 %v1417, %v1418
      %v1420 = vand.u32 %v1419, 4294901760
      %1421 = vmatpush.msra.mxu0 %v1420
      %v1422 = vand.u32 %v1151, 4294901760
      %v1423 = vsub.f32 %v1151, %v1422
      %v1424 = vand.u32 %v1423, 4294901760
      %v1425 = vsub.f32 %v1423, %v1424
      %v1426 = vand.u32 %v1425, 4294901760
      %1427 = vmatpush.msra.mxu0 %v1426
      %v1428 = vand.u32 %v1147, 4294901760
      %v1429 = vsub.f32 %v1147, %v1428
      %v1430 = vand.u32 %v1429, 4294901760
      %v1431 = vsub.f32 %v1429, %v1430
      %v1432 = vand.u32 %v1431, 4294901760
      %1433 = vmatpush.msra.mxu0 %v1432
      %v1434 = vand.u32 %v1143, 4294901760
      %v1435 = vsub.f32 %v1143, %v1434
      %v1436 = vand.u32 %v1435, 4294901760
      %v1437 = vsub.f32 %v1435, %v1436
      %v1438 = vand.u32 %v1437, 4294901760
      %1439 = vmatpush.msra.mxu0 %v1438
      %v1440 = vand.u32 %v1139, 4294901760
      %v1441 = vsub.f32 %v1139, %v1440
      %v1442 = vand.u32 %v1441, 4294901760
      %v1443 = vsub.f32 %v1441, %v1442
      %v1444 = vand.u32 %v1443, 4294901760
      %1445 = vmatpush.msra.mxu0 %v1444
      %v1446 = vand.u32 %v1135, 4294901760
      %v1447 = vsub.f32 %v1135, %v1446
      %v1448 = vand.u32 %v1447, 4294901760
      %v1449 = vsub.f32 %v1447, %v1448
      %v1450 = vand.u32 %v1449, 4294901760
      %1451 = vmatpush.msra.mxu0 %v1450
      %v1452 = vand.u32 %v1131, 4294901760
      %v1453 = vsub.f32 %v1131, %v1452
      %v1454 = vand.u32 %v1453, 4294901760
      %v1455 = vsub.f32 %v1453, %v1454
      %v1456 = vand.u32 %v1455, 4294901760
      %1457 = vmatpush.msra.mxu0 %v1456
      %v1458 = vand.u32 %v1127, 4294901760
      %v1459 = vsub.f32 %v1127, %v1458
      %v1460 = vand.u32 %v1459, 4294901760
      %v1461 = vsub.f32 %v1459, %v1460
      %v1462 = vand.u32 %v1461, 4294901760
      %1463 = vmatpush.msra.mxu0 %v1462
      %v1464 = vand.u32 %v1123, 4294901760
      %v1465 = vsub.f32 %v1123, %v1464
      %v1466 = vand.u32 %v1465, 4294901760
      %v1467 = vsub.f32 %v1465, %v1466
      %v1468 = vand.u32 %v1467, 4294901760
      %1469 = vmatpush.msra.mxu0 %v1468
      %v1470 = vand.u32 %v1119, 4294901760
      %v1471 = vsub.f32 %v1119, %v1470
      %v1472 = vand.u32 %v1471, 4294901760
      %v1473 = vsub.f32 %v1471, %v1472
      %v1474 = vand.u32 %v1473, 4294901760
      %1475 = vmatpush.msra.mxu0 %v1474
      %v1476 = vand.u32 %v846, 4294901760
      %1477 = vmatmul.f32.gmra.mxu0 %v1476
      %v1478 = vpop.f32.mrf.mxu0
      %v1479 = vadd.f32 %v1378, %v1478
      %1480 = vdwg.mxu0
      %v1481 = vand.u32 %v1179, 4294901760
      %v1482 = vsub.f32 %v1179, %v1481
      %1483 = vmatpush.msra.mxu0 %v1482
      %v1484 = vand.u32 %v1175, 4294901760
      %v1485 = vsub.f32 %v1175, %v1484
      %1486 = vmatpush.msra.mxu0 %v1485
      %v1487 = vand.u32 %v1171, 4294901760
      %v1488 = vsub.f32 %v1171, %v1487
      %1489 = vmatpush.msra.mxu0 %v1488
      %v1490 = vand.u32 %v1167, 4294901760
      %v1491 = vsub.f32 %v1167, %v1490
      %1492 = vmatpush.msra.mxu0 %v1491
      %v1493 = vand.u32 %v1163, 4294901760
      %v1494 = vsub.f32 %v1163, %v1493
      %1495 = vmatpush.msra.mxu0 %v1494
      %v1496 = vand.u32 %v1159, 4294901760
      %v1497 = vsub.f32 %v1159, %v1496
      %1498 = vmatpush.msra.mxu0 %v1497
      %v1499 = vand.u32 %v1155, 4294901760
      %v1500 = vsub.f32 %v1155, %v1499
      %1501 = vmatpush.msra.mxu0 %v1500
      %v1502 = vand.u32 %v1151, 4294901760
      %v1503 = vsub.f32 %v1151, %v1502
      %1504 = vmatpush.msra.mxu0 %v1503
      %v1505 = vand.u32 %v1147, 4294901760
      %v1506 = vsub.f32 %v1147, %v1505
      %1507 = vmatpush.msra.mxu0 %v1506
      %v1508 = vand.u32 %v1143, 4294901760
      %v1509 = vsub.f32 %v1143, %v1508
      %1510 = vmatpush.msra.mxu0 %v1509
      %v1511 = vand.u32 %v1139, 4294901760
      %v1512 = vsub.f32 %v1139, %v1511
      %1513 = vmatpush.msra.mxu0 %v1512
      %v1514 = vand.u32 %v1135, 4294901760
      %v1515 = vsub.f32 %v1135, %v1514
      %1516 = vmatpush.msra.mxu0 %v1515
      %v1517 = vand.u32 %v1131, 4294901760
      %v1518 = vsub.f32 %v1131, %v1517
      %1519 = vmatpush.msra.mxu0 %v1518
      %v1520 = vand.u32 %v1127, 4294901760
      %v1521 = vsub.f32 %v1127, %v1520
      %1522 = vmatpush.msra.mxu0 %v1521
      %v1523 = vand.u32 %v1123, 4294901760
      %v1524 = vsub.f32 %v1123, %v1523
      %1525 = vmatpush.msra.mxu0 %v1524
      %v1526 = vand.u32 %v1119, 4294901760
      %v1527 = vsub.f32 %v1119, %v1526
      %1528 = vmatpush.msra.mxu0 %v1527
      %v1529 = vand.u32 %v846, 4294901760
      %v1530 = vsub.f32 %v846, %v1529
      %1531 = vmatmul.f32.gmra.mxu0 %v1530
      %v1532 = vpop.f32.mrf.mxu0
      %v1533 = vadd.f32 %v1479, %v1532
      %1534 = vdwg.mxu0
      %v1535 = vand.u32 %v1179, 4294901760
      %1536 = vmatpush.msra.mxu0 %v1535
      %v1537 = vand.u32 %v1175, 4294901760
      %1538 = vmatpush.msra.mxu0 %v1537
      %v1539 = vand.u32 %v1171, 4294901760
      %1540 = vmatpush.msra.mxu0 %v1539
      %v1541 = vand.u32 %v1167, 4294901760
      %1542 = vmatpush.msra.mxu0 %v1541
      %v1543 = vand.u32 %v1163, 4294901760
      %1544 = vmatpush.msra.mxu0 %v1543
      %v1545 = vand.u32 %v1159, 4294901760
      %1546 = vmatpush.msra.mxu0 %v1545
      %v1547 = vand.u32 %v1155, 4294901760
      %1548 = vmatpush.msra.mxu0 %v1547
      %v1549 = vand.u32 %v1151, 4294901760
      %1550 = vmatpush.msra.mxu0 %v1549
      %v1551 = vand.u32 %v1147, 4294901760
      %1552 = vmatpush.msra.mxu0 %v1551
      %v1553 = vand.u32 %v1143, 4294901760
      %1554 = vmatpush.msra.mxu0 %v1553
      %v1555 = vand.u32 %v1139, 4294901760
      %1556 = vmatpush.msra.mxu0 %v1555
      %v1557 = vand.u32 %v1135, 4294901760
      %1558 = vmatpush.msra.mxu0 %v1557
      %v1559 = vand.u32 %v1131, 4294901760
      %1560 = vmatpush.msra.mxu0 %v1559
      %v1561 = vand.u32 %v1127, 4294901760
      %1562 = vmatpush.msra.mxu0 %v1561
      %v1563 = vand.u32 %v1123, 4294901760
      %1564 = vmatpush.msra.mxu0 %v1563
      %v1565 = vand.u32 %v1119, 4294901760
      %1566 = vmatpush.msra.mxu0 %v1565
      %v1567 = vand.u32 %v846, 4294901760
      %v1568 = vsub.f32 %v846, %v1567
      %v1569 = vand.u32 %v1568, 4294901760
      %1570 = vmatmul.f32.gmra.mxu0 %v1569
      %v1571 = vpop.f32.mrf.mxu0
      %v1572 = vadd.f32 %v1533, %v1571
      %1573 = vdwg.mxu0
      %v1574 = vand.u32 %v1179, 4294901760
      %v1575 = vsub.f32 %v1179, %v1574
      %v1576 = vand.u32 %v1575, 4294901760
      %1577 = vmatpush.msra.mxu0 %v1576
      %v1578 = vand.u32 %v1175, 4294901760
      %v1579 = vsub.f32 %v1175, %v1578
      %v1580 = vand.u32 %v1579, 4294901760
      %1581 = vmatpush.msra.mxu0 %v1580
      %v1582 = vand.u32 %v1171, 4294901760
      %v1583 = vsub.f32 %v1171, %v1582
      %v1584 = vand.u32 %v1583, 4294901760
      %1585 = vmatpush.msra.mxu0 %v1584
      %v1586 = vand.u32 %v1167, 4294901760
      %v1587 = vsub.f32 %v1167, %v1586
      %v1588 = vand.u32 %v1587, 4294901760
      %1589 = vmatpush.msra.mxu0 %v1588
      %v1590 = vand.u32 %v1163, 4294901760
      %v1591 = vsub.f32 %v1163, %v1590
      %v1592 = vand.u32 %v1591, 4294901760
      %1593 = vmatpush.msra.mxu0 %v1592
      %v1594 = vand.u32 %v1159, 4294901760
      %v1595 = vsub.f32 %v1159, %v1594
      %v1596 = vand.u32 %v1595, 4294901760
      %1597 = vmatpush.msra.mxu0 %v1596
      %v1598 = vand.u32 %v1155, 4294901760
      %v1599 = vsub.f32 %v1155, %v1598
      %v1600 = vand.u32 %v1599, 4294901760
      %1601 = vmatpush.msra.mxu0 %v1600
      %v1602 = vand.u32 %v1151, 4294901760
      %v1603 = vsub.f32 %v1151, %v1602
      %v1604 = vand.u32 %v1603, 4294901760
      %1605 = vmatpush.msra.mxu0 %v1604
      %v1606 = vand.u32 %v1147, 4294901760
      %v1607 = vsub.f32 %v1147, %v1606
      %v1608 = vand.u32 %v1607, 4294901760
      %1609 = vmatpush.msra.mxu0 %v1608
      %v1610 = vand.u32 %v1143, 4294901760
      %v1611 = vsub.f32 %v1143, %v1610
      %v1612 = vand.u32 %v1611, 4294901760
      %1613 = vmatpush.msra.mxu0 %v1612
      %v1614 = vand.u32 %v1139, 4294901760
      %v1615 = vsub.f32 %v1139, %v1614
      %v1616 = vand.u32 %v1615, 4294901760
      %1617 = vmatpush.msra.mxu0 %v1616
      %v1618 = vand.u32 %v1135, 4294901760
      %v1619 = vsub.f32 %v1135, %v1618
      %v1620 = vand.u32 %v1619, 4294901760
      %1621 = vmatpush.msra.mxu0 %v1620
      %v1622 = vand.u32 %v1131, 4294901760
      %v1623 = vsub.f32 %v1131, %v1622
      %v1624 = vand.u32 %v1623, 4294901760
      %1625 = vmatpush.msra.mxu0 %v1624
      %v1626 = vand.u32 %v1127, 4294901760
      %v1627 = vsub.f32 %v1127, %v1626
      %v1628 = vand.u32 %v1627, 4294901760
      %1629 = vmatpush.msra.mxu0 %v1628
      %v1630 = vand.u32 %v1123, 4294901760
      %v1631 = vsub.f32 %v1123, %v1630
      %v1632 = vand.u32 %v1631, 4294901760
      %1633 = vmatpush.msra.mxu0 %v1632
      %v1634 = vand.u32 %v1119, 4294901760
      %v1635 = vsub.f32 %v1119, %v1634
      %v1636 = vand.u32 %v1635, 4294901760
      %1637 = vmatpush.msra.mxu0 %v1636
      %v1638 = vand.u32 %v846, 4294901760
      %1639 = vmatmul.f32.gmra.mxu0 %v1638
      %v1640 = vpop.f32.mrf.mxu0
      %v1641 = vadd.f32 %v1572, %v1640
      %1642 = vdwg.mxu0
      %v1643 = vand.u32 %v1179, 4294901760
      %1644 = vmatpush.msra.mxu0 %v1643
      %v1645 = vand.u32 %v1175, 4294901760
      %1646 = vmatpush.msra.mxu0 %v1645
      %v1647 = vand.u32 %v1171, 4294901760
      %1648 = vmatpush.msra.mxu0 %v1647
      %v1649 = vand.u32 %v1167, 4294901760
      %1650 = vmatpush.msra.mxu0 %v1649
      %v1651 = vand.u32 %v1163, 4294901760
      %1652 = vmatpush.msra.mxu0 %v1651
      %v1653 = vand.u32 %v1159, 4294901760
      %1654 = vmatpush.msra.mxu0 %v1653
      %v1655 = vand.u32 %v1155, 4294901760
      %1656 = vmatpush.msra.mxu0 %v1655
      %v1657 = vand.u32 %v1151, 4294901760
      %1658 = vmatpush.msra.mxu0 %v1657
      %v1659 = vand.u32 %v1147, 4294901760
      %1660 = vmatpush.msra.mxu0 %v1659
      %v1661 = vand.u32 %v1143, 4294901760
      %1662 = vmatpush.msra.mxu0 %v1661
      %v1663 = vand.u32 %v1139, 4294901760
      %1664 = vmatpush.msra.mxu0 %v1663
      %v1665 = vand.u32 %v1135, 4294901760
      %1666 = vmatpush.msra.mxu0 %v1665
      %v1667 = vand.u32 %v1131, 4294901760
      %1668 = vmatpush.msra.mxu0 %v1667
      %v1669 = vand.u32 %v1127, 4294901760
      %1670 = vmatpush.msra.mxu0 %v1669
      %v1671 = vand.u32 %v1123, 4294901760
      %1672 = vmatpush.msra.mxu0 %v1671
      %v1673 = vand.u32 %v1119, 4294901760
      %1674 = vmatpush.msra.mxu0 %v1673
      %v1675 = vand.u32 %v846, 4294901760
      %1676 = vmatmul.f32.gmra.mxu0 %v1675
      %v1677 = vpop.f32.mrf.mxu0
      %v1678 = vadd.f32 %v1641, %v1677
      %1679 = vdwg.mxu0
      %1680 = vmatpush.msra.mxu0 0.0
      %1681 = vmatpush.msra.mxu0 0.0
      %1682 = vmatpush.msra.mxu0 0.0
      %1683 = vmatpush.msra.mxu0 0.0
      %1684 = vmatpush.msra.mxu0 0.0
      %v1685 = vand.u32 %v1223, 4294901760
      %1686 = vmatpush.msra.mxu0 %v1685
      %v1687 = vand.u32 %v1219, 4294901760
      %1688 = vmatpush.msra.mxu0 %v1687
      %v1689 = vand.u32 %v1215, 4294901760
      %1690 = vmatpush.msra.mxu0 %v1689
      %v1691 = vand.u32 %v1211, 4294901760
      %1692 = vmatpush.msra.mxu0 %v1691
      %v1693 = vand.u32 %v1207, 4294901760
      %1694 = vmatpush.msra.mxu0 %v1693
      %v1695 = vand.u32 %v1203, 4294901760
      %1696 = vmatpush.msra.mxu0 %v1695
      %v1697 = vand.u32 %v1199, 4294901760
      %1698 = vmatpush.msra.mxu0 %v1697
      %v1699 = vand.u32 %v1195, 4294901760
      %1700 = vmatpush.msra.mxu0 %v1699
      %v1701 = vand.u32 %v1191, 4294901760
      %1702 = vmatpush.msra.mxu0 %v1701
      %v1703 = vand.u32 %v1187, 4294901760
      %1704 = vmatpush.msra.mxu0 %v1703
      %v1705 = vand.u32 %v1183, 4294901760
      %1706 = vmatpush.msra.mxu0 %v1705
      %v1707 = vand.u32 %v1337, 4294901760
      %v1708 = vsub.f32 %v1337, %v1707
      %v1709 = vand.u32 %v1708, 4294901760
      %v1710 = vsub.f32 %v1708, %v1709
      %v1711 = vand.u32 %v1710, 4294901760
      %1712 = vmatmul.f32.gmra.mxu0 %v1711
      %v1713 = vpop.f32.mrf.mxu0
      %v1714 = vadd.f32 %v1678, %v1713
      %1715 = vdwg.mxu0
      %1716 = vmatpush.msra.mxu0 0.0
      %1717 = vmatpush.msra.mxu0 0.0
      %1718 = vmatpush.msra.mxu0 0.0
      %1719 = vmatpush.msra.mxu0 0.0
      %1720 = vmatpush.msra.mxu0 0.0
      %v1721 = vand.u32 %v1223, 4294901760
      %v1722 = vsub.f32 %v1223, %v1721
      %v1723 = vand.u32 %v1722, 4294901760
      %v1724 = vsub.f32 %v1722, %v1723
      %v1725 = vand.u32 %v1724, 4294901760
      %1726 = vmatpush.msra.mxu0 %v1725
      %v1727 = vand.u32 %v1219, 4294901760
      %v1728 = vsub.f32 %v1219, %v1727
      %v1729 = vand.u32 %v1728, 4294901760
      %v1730 = vsub.f32 %v1728, %v1729
      %v1731 = vand.u32 %v1730, 4294901760
      %1732 = vmatpush.msra.mxu0 %v1731
      %v1733 = vand.u32 %v1215, 4294901760
      %v1734 = vsub.f32 %v1215, %v1733
      %v1735 = vand.u32 %v1734, 4294901760
      %v1736 = vsub.f32 %v1734, %v1735
      %v1737 = vand.u32 %v1736, 4294901760
      %1738 = vmatpush.msra.mxu0 %v1737
      %v1739 = vand.u32 %v1211, 4294901760
      %v1740 = vsub.f32 %v1211, %v1739
      %v1741 = vand.u32 %v1740, 4294901760
      %v1742 = vsub.f32 %v1740, %v1741
      %v1743 = vand.u32 %v1742, 4294901760
      %1744 = vmatpush.msra.mxu0 %v1743
      %v1745 = vand.u32 %v1207, 4294901760
      %v1746 = vsub.f32 %v1207, %v1745
      %v1747 = vand.u32 %v1746, 4294901760
      %v1748 = vsub.f32 %v1746, %v1747
      %v1749 = vand.u32 %v1748, 4294901760
      %1750 = vmatpush.msra.mxu0 %v1749
      %v1751 = vand.u32 %v1203, 4294901760
      %v1752 = vsub.f32 %v1203, %v1751
      %v1753 = vand.u32 %v1752, 4294901760
      %v1754 = vsub.f32 %v1752, %v1753
      %v1755 = vand.u32 %v1754, 4294901760
      %1756 = vmatpush.msra.mxu0 %v1755
      %v1757 = vand.u32 %v1199, 4294901760
      %v1758 = vsub.f32 %v1199, %v1757
      %v1759 = vand.u32 %v1758, 4294901760
      %v1760 = vsub.f32 %v1758, %v1759
      %v1761 = vand.u32 %v1760, 4294901760
      %1762 = vmatpush.msra.mxu0 %v1761
      %v1763 = vand.u32 %v1195, 4294901760
      %v1764 = vsub.f32 %v1195, %v1763
      %v1765 = vand.u32 %v1764, 4294901760
      %v1766 = vsub.f32 %v1764, %v1765
      %v1767 = vand.u32 %v1766, 4294901760
      %1768 = vmatpush.msra.mxu0 %v1767
      %v1769 = vand.u32 %v1191, 4294901760
      %v1770 = vsub.f32 %v1191, %v1769
      %v1771 = vand.u32 %v1770, 4294901760
      %v1772 = vsub.f32 %v1770, %v1771
      %v1773 = vand.u32 %v1772, 4294901760
      %1774 = vmatpush.msra.mxu0 %v1773
      %v1775 = vand.u32 %v1187, 4294901760
      %v1776 = vsub.f32 %v1187, %v1775
      %v1777 = vand.u32 %v1776, 4294901760
      %v1778 = vsub.f32 %v1776, %v1777
      %v1779 = vand.u32 %v1778, 4294901760
      %1780 = vmatpush.msra.mxu0 %v1779
      %v1781 = vand.u32 %v1183, 4294901760
      %v1782 = vsub.f32 %v1183, %v1781
      %v1783 = vand.u32 %v1782, 4294901760
      %v1784 = vsub.f32 %v1782, %v1783
      %v1785 = vand.u32 %v1784, 4294901760
      %1786 = vmatpush.msra.mxu0 %v1785
      %v1787 = vand.u32 %v1337, 4294901760
      %1788 = vmatmul.f32.gmra.mxu0 %v1787
      %v1789 = vpop.f32.mrf.mxu0
      %v1790 = vadd.f32 %v1714, %v1789
      %1791 = vdwg.mxu0
      %1792 = vmatpush.msra.mxu0 0.0
      %1793 = vmatpush.msra.mxu0 0.0
      %1794 = vmatpush.msra.mxu0 0.0
      %1795 = vmatpush.msra.mxu0 0.0
      %1796 = vmatpush.msra.mxu0 0.0
      %v1797 = vand.u32 %v1223, 4294901760
      %v1798 = vsub.f32 %v1223, %v1797
      %1799 = vmatpush.msra.mxu0 %v1798
      %v1800 = vand.u32 %v1219, 4294901760
      %v1801 = vsub.f32 %v1219, %v1800
      %1802 = vmatpush.msra.mxu0 %v1801
      %v1803 = vand.u32 %v1215, 4294901760
      %v1804 = vsub.f32 %v1215, %v1803
      %1805 = vmatpush.msra.mxu0 %v1804
      %v1806 = vand.u32 %v1211, 4294901760
      %v1807 = vsub.f32 %v1211, %v1806
      %1808 = vmatpush.msra.mxu0 %v1807
      %v1809 = vand.u32 %v1207, 4294901760
      %v1810 = vsub.f32 %v1207, %v1809
      %1811 = vmatpush.msra.mxu0 %v1810
      %v1812 = vand.u32 %v1203, 4294901760
      %v1813 = vsub.f32 %v1203, %v1812
      %1814 = vmatpush.msra.mxu0 %v1813
      %v1815 = vand.u32 %v1199, 4294901760
      %v1816 = vsub.f32 %v1199, %v1815
      %1817 = vmatpush.msra.mxu0 %v1816
      %v1818 = vand.u32 %v1195, 4294901760
      %v1819 = vsub.f32 %v1195, %v1818
      %1820 = vmatpush.msra.mxu0 %v1819
      %v1821 = vand.u32 %v1191, 4294901760
      %v1822 = vsub.f32 %v1191, %v1821
      %1823 = vmatpush.msra.mxu0 %v1822
      %v1824 = vand.u32 %v1187, 4294901760
      %v1825 = vsub.f32 %v1187, %v1824
      %1826 = vmatpush.msra.mxu0 %v1825
      %v1827 = vand.u32 %v1183, 4294901760
      %v1828 = vsub.f32 %v1183, %v1827
      %1829 = vmatpush.msra.mxu0 %v1828
      %v1830 = vand.u32 %v1337, 4294901760
      %v1831 = vsub.f32 %v1337, %v1830
      %1832 = vmatmul.f32.gmra.mxu0 %v1831
      %v1833 = vpop.f32.mrf.mxu0
      %v1834 = vadd.f32 %v1790, %v1833
      %1835 = vdwg.mxu0
      %1836 = vmatpush.msra.mxu0 0.0
      %1837 = vmatpush.msra.mxu0 0.0
      %1838 = vmatpush.msra.mxu0 0.0
      %1839 = vmatpush.msra.mxu0 0.0
      %1840 = vmatpush.msra.mxu0 0.0
      %v1841 = vand.u32 %v1223, 4294901760
      %1842 = vmatpush.msra.mxu0 %v1841
      %v1843 = vand.u32 %v1219, 4294901760
      %1844 = vmatpush.msra.mxu0 %v1843
      %v1845 = vand.u32 %v1215, 4294901760
      %1846 = vmatpush.msra.mxu0 %v1845
      %v1847 = vand.u32 %v1211, 4294901760
      %1848 = vmatpush.msra.mxu0 %v1847
      %v1849 = vand.u32 %v1207, 4294901760
      %1850 = vmatpush.msra.mxu0 %v1849
      %v1851 = vand.u32 %v1203, 4294901760
      %1852 = vmatpush.msra.mxu0 %v1851
      %v1853 = vand.u32 %v1199, 4294901760
      %1854 = vmatpush.msra.mxu0 %v1853
      %v1855 = vand.u32 %v1195, 4294901760
      %1856 = vmatpush.msra.mxu0 %v1855
      %v1857 = vand.u32 %v1191, 4294901760
      %1858 = vmatpush.msra.mxu0 %v1857
      %v1859 = vand.u32 %v1187, 4294901760
      %1860 = vmatpush.msra.mxu0 %v1859
      %v1861 = vand.u32 %v1183, 4294901760
      %1862 = vmatpush.msra.mxu0 %v1861
      %v1863 = vand.u32 %v1337, 4294901760
      %v1864 = vsub.f32 %v1337, %v1863
      %v1865 = vand.u32 %v1864, 4294901760
      %1866 = vmatmul.f32.gmra.mxu0 %v1865
      %v1867 = vpop.f32.mrf.mxu0
      %v1868 = vadd.f32 %v1834, %v1867
      %1869 = vdwg.mxu0
      %1870 = vmatpush.msra.mxu0 0.0
      %1871 = vmatpush.msra.mxu0 0.0
      %1872 = vmatpush.msra.mxu0 0.0
      %1873 = vmatpush.msra.mxu0 0.0
      %1874 = vmatpush.msra.mxu0 0.0
      %v1875 = vand.u32 %v1223, 4294901760
      %v1876 = vsub.f32 %v1223, %v1875
      %v1877 = vand.u32 %v1876, 4294901760
      %1878 = vmatpush.msra.mxu0 %v1877
      %v1879 = vand.u32 %v1219, 4294901760
      %v1880 = vsub.f32 %v1219, %v1879
      %v1881 = vand.u32 %v1880, 4294901760
      %1882 = vmatpush.msra.mxu0 %v1881
      %v1883 = vand.u32 %v1215, 4294901760
      %v1884 = vsub.f32 %v1215, %v1883
      %v1885 = vand.u32 %v1884, 4294901760
      %1886 = vmatpush.msra.mxu0 %v1885
      %v1887 = vand.u32 %v1211, 4294901760
      %v1888 = vsub.f32 %v1211, %v1887
      %v1889 = vand.u32 %v1888, 4294901760
      %1890 = vmatpush.msra.mxu0 %v1889
      %v1891 = vand.u32 %v1207, 4294901760
      %v1892 = vsub.f32 %v1207, %v1891
      %v1893 = vand.u32 %v1892, 4294901760
      %1894 = vmatpush.msra.mxu0 %v1893
      %v1895 = vand.u32 %v1203, 4294901760
      %v1896 = vsub.f32 %v1203, %v1895
      %v1897 = vand.u32 %v1896, 4294901760
      %1898 = vmatpush.msra.mxu0 %v1897
      %v1899 = vand.u32 %v1199, 4294901760
      %v1900 = vsub.f32 %v1199, %v1899
      %v1901 = vand.u32 %v1900, 4294901760
      %1902 = vmatpush.msra.mxu0 %v1901
      %v1903 = vand.u32 %v1195, 4294901760
      %v1904 = vsub.f32 %v1195, %v1903
      %v1905 = vand.u32 %v1904, 4294901760
      %1906 = vmatpush.msra.mxu0 %v1905
      %v1907 = vand.u32 %v1191, 4294901760
      %v1908 = vsub.f32 %v1191, %v1907
      %v1909 = vand.u32 %v1908, 4294901760
      %1910 = vmatpush.msra.mxu0 %v1909
      %v1911 = vand.u32 %v1187, 4294901760
      %v1912 = vsub.f32 %v1187, %v1911
      %v1913 = vand.u32 %v1912, 4294901760
      %1914 = vmatpush.msra.mxu0 %v1913
      %v1915 = vand.u32 %v1183, 4294901760
      %v1916 = vsub.f32 %v1183, %v1915
      %v1917 = vand.u32 %v1916, 4294901760
      %1918 = vmatpush.msra.mxu0 %v1917
      %v1919 = vand.u32 %v1337, 4294901760
      %1920 = vmatmul.f32.gmra.mxu0 %v1919
      %v1921 = vpop.f32.mrf.mxu0
      %v1922 = vadd.f32 %v1868, %v1921
      %1923 = vdwg.mxu0
      %1924 = vmatpush.msra.mxu0 0.0
      %1925 = vmatpush.msra.mxu0 0.0
      %1926 = vmatpush.msra.mxu0 0.0
      %1927 = vmatpush.msra.mxu0 0.0
      %1928 = vmatpush.msra.mxu0 0.0
      %v1929 = vand.u32 %v1223, 4294901760
      %1930 = vmatpush.msra.mxu0 %v1929
      %v1931 = vand.u32 %v1219, 4294901760
      %1932 = vmatpush.msra.mxu0 %v1931
      %v1933 = vand.u32 %v1215, 4294901760
      %1934 = vmatpush.msra.mxu0 %v1933
      %v1935 = vand.u32 %v1211, 4294901760
      %1936 = vmatpush.msra.mxu0 %v1935
      %v1937 = vand.u32 %v1207, 4294901760
      %1938 = vmatpush.msra.mxu0 %v1937
      %v1939 = vand.u32 %v1203, 4294901760
      %1940 = vmatpush.msra.mxu0 %v1939
      %v1941 = vand.u32 %v1199, 4294901760
      %1942 = vmatpush.msra.mxu0 %v1941
      %v1943 = vand.u32 %v1195, 4294901760
      %1944 = vmatpush.msra.mxu0 %v1943
      %v1945 = vand.u32 %v1191, 4294901760
      %1946 = vmatpush.msra.mxu0 %v1945
      %v1947 = vand.u32 %v1187, 4294901760
      %1948 = vmatpush.msra.mxu0 %v1947
      %v1949 = vand.u32 %v1183, 4294901760
      %1950 = vmatpush.msra.mxu0 %v1949
      %v1951 = vand.u32 %v1337, 4294901760
      %1952 = vmatmul.f32.gmra.mxu0 %v1951
      %v1953 = vpop.f32.mrf.mxu0
      %v1954 = vadd.f32 %v1922, %v1953
      %1955 = vdwg.mxu0
      %v1956 = vand.u32 %v1180, 4294901760
      %1957 = vmatpush.msra.mxu0 %v1956
      %v1958 = vand.u32 %v1176, 4294901760
      %1959 = vmatpush.msra.mxu0 %v1958
      %v1960 = vand.u32 %v1172, 4294901760
      %1961 = vmatpush.msra.mxu0 %v1960
      %v1962 = vand.u32 %v1168, 4294901760
      %1963 = vmatpush.msra.mxu0 %v1962
      %v1964 = vand.u32 %v1164, 4294901760
      %1965 = vmatpush.msra.mxu0 %v1964
      %v1966 = vand.u32 %v1160, 4294901760
      %1967 = vmatpush.msra.mxu0 %v1966
      %v1968 = vand.u32 %v1156, 4294901760
      %1969 = vmatpush.msra.mxu0 %v1968
      %v1970 = vand.u32 %v1152, 4294901760
      %1971 = vmatpush.msra.mxu0 %v1970
      %v1972 = vand.u32 %v1148, 4294901760
      %1973 = vmatpush.msra.mxu0 %v1972
      %v1974 = vand.u32 %v1144, 4294901760
      %1975 = vmatpush.msra.mxu0 %v1974
      %v1976 = vand.u32 %v1140, 4294901760
      %1977 = vmatpush.msra.mxu0 %v1976
      %v1978 = vand.u32 %v1136, 4294901760
      %1979 = vmatpush.msra.mxu0 %v1978
      %v1980 = vand.u32 %v1132, 4294901760
      %1981 = vmatpush.msra.mxu0 %v1980
      %v1982 = vand.u32 %v1128, 4294901760
      %1983 = vmatpush.msra.mxu0 %v1982
      %v1984 = vand.u32 %v1124, 4294901760
      %1985 = vmatpush.msra.mxu0 %v1984
      %v1986 = vand.u32 %v1120, 4294901760
      %1987 = vmatpush.msra.mxu0 %v1986
      %v1988 = vand.u32 %v846, 4294901760
      %v1989 = vsub.f32 %v846, %v1988
      %v1990 = vand.u32 %v1989, 4294901760
      %v1991 = vsub.f32 %v1989, %v1990
      %v1992 = vand.u32 %v1991, 4294901760
      %1993 = vmatmul.f32.gmra.mxu0 %v1992
      %v1994 = vpop.f32.mrf.mxu0
      %v1995 = vadd.f32 0.0, %v1994
      %1996 = vdwg.mxu0
      %v1997 = vand.u32 %v1180, 4294901760
      %v1998 = vsub.f32 %v1180, %v1997
      %v1999 = vand.u32 %v1998, 4294901760
      %v2000 = vsub.f32 %v1998, %v1999
      %v2001 = vand.u32 %v2000, 4294901760
      %2002 = vmatpush.msra.mxu0 %v2001
      %v2003 = vand.u32 %v1176, 4294901760
      %v2004 = vsub.f32 %v1176, %v2003
      %v2005 = vand.u32 %v2004, 4294901760
      %v2006 = vsub.f32 %v2004, %v2005
      %v2007 = vand.u32 %v2006, 4294901760
      %2008 = vmatpush.msra.mxu0 %v2007
      %v2009 = vand.u32 %v1172, 4294901760
      %v2010 = vsub.f32 %v1172, %v2009
      %v2011 = vand.u32 %v2010, 4294901760
      %v2012 = vsub.f32 %v2010, %v2011
      %v2013 = vand.u32 %v2012, 4294901760
      %2014 = vmatpush.msra.mxu0 %v2013
      %v2015 = vand.u32 %v1168, 4294901760
      %v2016 = vsub.f32 %v1168, %v2015
      %v2017 = vand.u32 %v2016, 4294901760
      %v2018 = vsub.f32 %v2016, %v2017
      %v2019 = vand.u32 %v2018, 4294901760
      %2020 = vmatpush.msra.mxu0 %v2019
      %v2021 = vand.u32 %v1164, 4294901760
      %v2022 = vsub.f32 %v1164, %v2021
      %v2023 = vand.u32 %v2022, 4294901760
      %v2024 = vsub.f32 %v2022, %v2023
      %v2025 = vand.u32 %v2024, 4294901760
      %2026 = vmatpush.msra.mxu0 %v2025
      %v2027 = vand.u32 %v1160, 4294901760
      %v2028 = vsub.f32 %v1160, %v2027
      %v2029 = vand.u32 %v2028, 4294901760
      %v2030 = vsub.f32 %v2028, %v2029
      %v2031 = vand.u32 %v2030, 4294901760
      %2032 = vmatpush.msra.mxu0 %v2031
      %v2033 = vand.u32 %v1156, 4294901760
      %v2034 = vsub.f32 %v1156, %v2033
      %v2035 = vand.u32 %v2034, 4294901760
      %v2036 = vsub.f32 %v2034, %v2035
      %v2037 = vand.u32 %v2036, 4294901760
      %2038 = vmatpush.msra.mxu0 %v2037
      %v2039 = vand.u32 %v1152, 4294901760
      %v2040 = vsub.f32 %v1152, %v2039
      %v2041 = vand.u32 %v2040, 4294901760
      %v2042 = vsub.f32 %v2040, %v2041
      %v2043 = vand.u32 %v2042, 4294901760
      %2044 = vmatpush.msra.mxu0 %v2043
      %v2045 = vand.u32 %v1148, 4294901760
      %v2046 = vsub.f32 %v1148, %v2045
      %v2047 = vand.u32 %v2046, 4294901760
      %v2048 = vsub.f32 %v2046, %v2047
      %v2049 = vand.u32 %v2048, 4294901760
      %2050 = vmatpush.msra.mxu0 %v2049
      %v2051 = vand.u32 %v1144, 4294901760
      %v2052 = vsub.f32 %v1144, %v2051
      %v2053 = vand.u32 %v2052, 4294901760
      %v2054 = vsub.f32 %v2052, %v2053
      %v2055 = vand.u32 %v2054, 4294901760
      %2056 = vmatpush.msra.mxu0 %v2055
      %v2057 = vand.u32 %v1140, 4294901760
      %v2058 = vsub.f32 %v1140, %v2057
      %v2059 = vand.u32 %v2058, 4294901760
      %v2060 = vsub.f32 %v2058, %v2059
      %v2061 = vand.u32 %v2060, 4294901760
      %2062 = vmatpush.msra.mxu0 %v2061
      %v2063 = vand.u32 %v1136, 4294901760
      %v2064 = vsub.f32 %v1136, %v2063
      %v2065 = vand.u32 %v2064, 4294901760
      %v2066 = vsub.f32 %v2064, %v2065
      %v2067 = vand.u32 %v2066, 4294901760
      %2068 = vmatpush.msra.mxu0 %v2067
      %v2069 = vand.u32 %v1132, 4294901760
      %v2070 = vsub.f32 %v1132, %v2069
      %v2071 = vand.u32 %v2070, 4294901760
      %v2072 = vsub.f32 %v2070, %v2071
      %v2073 = vand.u32 %v2072, 4294901760
      %2074 = vmatpush.msra.mxu0 %v2073
      %v2075 = vand.u32 %v1128, 4294901760
      %v2076 = vsub.f32 %v1128, %v2075
      %v2077 = vand.u32 %v2076, 4294901760
      %v2078 = vsub.f32 %v2076, %v2077
      %v2079 = vand.u32 %v2078, 4294901760
      %2080 = vmatpush.msra.mxu0 %v2079
      %v2081 = vand.u32 %v1124, 4294901760
      %v2082 = vsub.f32 %v1124, %v2081
      %v2083 = vand.u32 %v2082, 4294901760
      %v2084 = vsub.f32 %v2082, %v2083
      %v2085 = vand.u32 %v2084, 4294901760
      %2086 = vmatpush.msra.mxu0 %v2085
      %v2087 = vand.u32 %v1120, 4294901760
      %v2088 = vsub.f32 %v1120, %v2087
      %v2089 = vand.u32 %v2088, 4294901760
      %v2090 = vsub.f32 %v2088, %v2089
      %v2091 = vand.u32 %v2090, 4294901760
      %2092 = vmatpush.msra.mxu0 %v2091
      %v2093 = vand.u32 %v846, 4294901760
      %2094 = vmatmul.f32.gmra.mxu0 %v2093
      %v2095 = vpop.f32.mrf.mxu0
      %v2096 = vadd.f32 %v1995, %v2095
      %2097 = vdwg.mxu0
      %v2098 = vand.u32 %v1180, 4294901760
      %v2099 = vsub.f32 %v1180, %v2098
      %2100 = vmatpush.msra.mxu0 %v2099
      %v2101 = vand.u32 %v1176, 4294901760
      %v2102 = vsub.f32 %v1176, %v2101
      %2103 = vmatpush.msra.mxu0 %v2102
      %v2104 = vand.u32 %v1172, 4294901760
      %v2105 = vsub.f32 %v1172, %v2104
      %2106 = vmatpush.msra.mxu0 %v2105
      %v2107 = vand.u32 %v1168, 4294901760
      %v2108 = vsub.f32 %v1168, %v2107
      %2109 = vmatpush.msra.mxu0 %v2108
      %v2110 = vand.u32 %v1164, 4294901760
      %v2111 = vsub.f32 %v1164, %v2110
      %2112 = vmatpush.msra.mxu0 %v2111
      %v2113 = vand.u32 %v1160, 4294901760
      %v2114 = vsub.f32 %v1160, %v2113
      %2115 = vmatpush.msra.mxu0 %v2114
      %v2116 = vand.u32 %v1156, 4294901760
      %v2117 = vsub.f32 %v1156, %v2116
      %2118 = vmatpush.msra.mxu0 %v2117
      %v2119 = vand.u32 %v1152, 4294901760
      %v2120 = vsub.f32 %v1152, %v2119
      %2121 = vmatpush.msra.mxu0 %v2120
      %v2122 = vand.u32 %v1148, 4294901760
      %v2123 = vsub.f32 %v1148, %v2122
      %2124 = vmatpush.msra.mxu0 %v2123
      %v2125 = vand.u32 %v1144, 4294901760
      %v2126 = vsub.f32 %v1144, %v2125
      %2127 = vmatpush.msra.mxu0 %v2126
      %v2128 = vand.u32 %v1140, 4294901760
      %v2129 = vsub.f32 %v1140, %v2128
      %2130 = vmatpush.msra.mxu0 %v2129
      %v2131 = vand.u32 %v1136, 4294901760
      %v2132 = vsub.f32 %v1136, %v2131
      %2133 = vmatpush.msra.mxu0 %v2132
      %v2134 = vand.u32 %v1132, 4294901760
      %v2135 = vsub.f32 %v1132, %v2134
      %2136 = vmatpush.msra.mxu0 %v2135
      %v2137 = vand.u32 %v1128, 4294901760
      %v2138 = vsub.f32 %v1128, %v2137
      %2139 = vmatpush.msra.mxu0 %v2138
      %v2140 = vand.u32 %v1124, 4294901760
      %v2141 = vsub.f32 %v1124, %v2140
      %2142 = vmatpush.msra.mxu0 %v2141
      %v2143 = vand.u32 %v1120, 4294901760
      %v2144 = vsub.f32 %v1120, %v2143
      %2145 = vmatpush.msra.mxu0 %v2144
      %v2146 = vand.u32 %v846, 4294901760
      %v2147 = vsub.f32 %v846, %v2146
      %2148 = vmatmul.f32.gmra.mxu0 %v2147
      %v2149 = vpop.f32.mrf.mxu0
      %v2150 = vadd.f32 %v2096, %v2149
      %2151 = vdwg.mxu0
      %v2152 = vand.u32 %v1180, 4294901760
      %2153 = vmatpush.msra.mxu0 %v2152
      %v2154 = vand.u32 %v1176, 4294901760
      %2155 = vmatpush.msra.mxu0 %v2154
      %v2156 = vand.u32 %v1172, 4294901760
      %2157 = vmatpush.msra.mxu0 %v2156
      %v2158 = vand.u32 %v1168, 4294901760
      %2159 = vmatpush.msra.mxu0 %v2158
      %v2160 = vand.u32 %v1164, 4294901760
      %2161 = vmatpush.msra.mxu0 %v2160
      %v2162 = vand.u32 %v1160, 4294901760
      %2163 = vmatpush.msra.mxu0 %v2162
      %v2164 = vand.u32 %v1156, 4294901760
      %2165 = vmatpush.msra.mxu0 %v2164
      %v2166 = vand.u32 %v1152, 4294901760
      %2167 = vmatpush.msra.mxu0 %v2166
      %v2168 = vand.u32 %v1148, 4294901760
      %2169 = vmatpush.msra.mxu0 %v2168
      %v2170 = vand.u32 %v1144, 4294901760
      %2171 = vmatpush.msra.mxu0 %v2170
      %v2172 = vand.u32 %v1140, 4294901760
      %2173 = vmatpush.msra.mxu0 %v2172
      %v2174 = vand.u32 %v1136, 4294901760
      %2175 = vmatpush.msra.mxu0 %v2174
      %v2176 = vand.u32 %v1132, 4294901760
      %2177 = vmatpush.msra.mxu0 %v2176
      %v2178 = vand.u32 %v1128, 4294901760
      %2179 = vmatpush.msra.mxu0 %v2178
      %v2180 = vand.u32 %v1124, 4294901760
      %2181 = vmatpush.msra.mxu0 %v2180
      %v2182 = vand.u32 %v1120, 4294901760
      %2183 = vmatpush.msra.mxu0 %v2182
      %v2184 = vand.u32 %v846, 4294901760
      %v2185 = vsub.f32 %v846, %v2184
      %v2186 = vand.u32 %v2185, 4294901760
      %2187 = vmatmul.f32.gmra.mxu0 %v2186
      %v2188 = vpop.f32.mrf.mxu0
      %v2189 = vadd.f32 %v2150, %v2188
      %2190 = vdwg.mxu0
      %v2191 = vand.u32 %v1180, 4294901760
      %v2192 = vsub.f32 %v1180, %v2191
      %v2193 = vand.u32 %v2192, 4294901760
      %2194 = vmatpush.msra.mxu0 %v2193
      %v2195 = vand.u32 %v1176, 4294901760
      %v2196 = vsub.f32 %v1176, %v2195
      %v2197 = vand.u32 %v2196, 4294901760
      %2198 = vmatpush.msra.mxu0 %v2197
      %v2199 = vand.u32 %v1172, 4294901760
      %v2200 = vsub.f32 %v1172, %v2199
      %v2201 = vand.u32 %v2200, 4294901760
      %2202 = vmatpush.msra.mxu0 %v2201
      %v2203 = vand.u32 %v1168, 4294901760
      %v2204 = vsub.f32 %v1168, %v2203
      %v2205 = vand.u32 %v2204, 4294901760
      %2206 = vmatpush.msra.mxu0 %v2205
      %v2207 = vand.u32 %v1164, 4294901760
      %v2208 = vsub.f32 %v1164, %v2207
      %v2209 = vand.u32 %v2208, 4294901760
      %2210 = vmatpush.msra.mxu0 %v2209
      %v2211 = vand.u32 %v1160, 4294901760
      %v2212 = vsub.f32 %v1160, %v2211
      %v2213 = vand.u32 %v2212, 4294901760
      %2214 = vmatpush.msra.mxu0 %v2213
      %v2215 = vand.u32 %v1156, 4294901760
      %v2216 = vsub.f32 %v1156, %v2215
      %v2217 = vand.u32 %v2216, 4294901760
      %2218 = vmatpush.msra.mxu0 %v2217
      %v2219 = vand.u32 %v1152, 4294901760
      %v2220 = vsub.f32 %v1152, %v2219
      %v2221 = vand.u32 %v2220, 4294901760
      %2222 = vmatpush.msra.mxu0 %v2221
      %v2223 = vand.u32 %v1148, 4294901760
      %v2224 = vsub.f32 %v1148, %v2223
      %v2225 = vand.u32 %v2224, 4294901760
      %2226 = vmatpush.msra.mxu0 %v2225
      %v2227 = vand.u32 %v1144, 4294901760
      %v2228 = vsub.f32 %v1144, %v2227
      %v2229 = vand.u32 %v2228, 4294901760
      %2230 = vmatpush.msra.mxu0 %v2229
      %v2231 = vand.u32 %v1140, 4294901760
      %v2232 = vsub.f32 %v1140, %v2231
      %v2233 = vand.u32 %v2232, 4294901760
      %2234 = vmatpush.msra.mxu0 %v2233
      %v2235 = vand.u32 %v1136, 4294901760
      %v2236 = vsub.f32 %v1136, %v2235
      %v2237 = vand.u32 %v2236, 4294901760
      %2238 = vmatpush.msra.mxu0 %v2237
      %v2239 = vand.u32 %v1132, 4294901760
      %v2240 = vsub.f32 %v1132, %v2239
      %v2241 = vand.u32 %v2240, 4294901760
      %2242 = vmatpush.msra.mxu0 %v2241
      %v2243 = vand.u32 %v1128, 4294901760
      %v2244 = vsub.f32 %v1128, %v2243
      %v2245 = vand.u32 %v2244, 4294901760
      %2246 = vmatpush.msra.mxu0 %v2245
      %v2247 = vand.u32 %v1124, 4294901760
      %v2248 = vsub.f32 %v1124, %v2247
      %v2249 = vand.u32 %v2248, 4294901760
      %2250 = vmatpush.msra.mxu0 %v2249
      %v2251 = vand.u32 %v1120, 4294901760
      %v2252 = vsub.f32 %v1120, %v2251
      %v2253 = vand.u32 %v2252, 4294901760
      %2254 = vmatpush.msra.mxu0 %v2253
      %v2255 = vand.u32 %v846, 4294901760
      %2256 = vmatmul.f32.gmra.mxu0 %v2255
      %v2257 = vpop.f32.mrf.mxu0
      %v2258 = vadd.f32 %v2189, %v2257
      %2259 = vdwg.mxu0
      %v2260 = vand.u32 %v1180, 4294901760
      %2261 = vmatpush.msra.mxu0 %v2260
      %v2262 = vand.u32 %v1176, 4294901760
      %2263 = vmatpush.msra.mxu0 %v2262
      %v2264 = vand.u32 %v1172, 4294901760
      %2265 = vmatpush.msra.mxu0 %v2264
      %v2266 = vand.u32 %v1168, 4294901760
      %2267 = vmatpush.msra.mxu0 %v2266
      %v2268 = vand.u32 %v1164, 4294901760
      %2269 = vmatpush.msra.mxu0 %v2268
      %v2270 = vand.u32 %v1160, 4294901760
      %2271 = vmatpush.msra.mxu0 %v2270
      %v2272 = vand.u32 %v1156, 4294901760
      %2273 = vmatpush.msra.mxu0 %v2272
      %v2274 = vand.u32 %v1152, 4294901760
      %2275 = vmatpush.msra.mxu0 %v2274
      %v2276 = vand.u32 %v1148, 4294901760
      %2277 = vmatpush.msra.mxu0 %v2276
      %v2278 = vand.u32 %v1144, 4294901760
      %2279 = vmatpush.msra.mxu0 %v2278
      %v2280 = vand.u32 %v1140, 4294901760
      %2281 = vmatpush.msra.mxu0 %v2280
      %v2282 = vand.u32 %v1136, 4294901760
      %2283 = vmatpush.msra.mxu0 %v2282
      %v2284 = vand.u32 %v1132, 4294901760
      %2285 = vmatpush.msra.mxu0 %v2284
      %v2286 = vand.u32 %v1128, 4294901760
      %2287 = vmatpush.msra.mxu0 %v2286
      %v2288 = vand.u32 %v1124, 4294901760
      %2289 = vmatpush.msra.mxu0 %v2288
      %v2290 = vand.u32 %v1120, 4294901760
      %2291 = vmatpush.msra.mxu0 %v2290
      %v2292 = vand.u32 %v846, 4294901760
      %2293 = vmatmul.f32.gmra.mxu0 %v2292
      %v2294 = vpop.f32.mrf.mxu0
      %v2295 = vadd.f32 %v2258, %v2294
      %2296 = vdwg.mxu0
      %2297 = vmatpush.msra.mxu0 0.0
      %2298 = vmatpush.msra.mxu0 0.0
      %2299 = vmatpush.msra.mxu0 0.0
      %2300 = vmatpush.msra.mxu0 0.0
      %2301 = vmatpush.msra.mxu0 0.0
      %v2302 = vand.u32 %v1224, 4294901760
      %2303 = vmatpush.msra.mxu0 %v2302
      %v2304 = vand.u32 %v1220, 4294901760
      %2305 = vmatpush.msra.mxu0 %v2304
      %v2306 = vand.u32 %v1216, 4294901760
      %2307 = vmatpush.msra.mxu0 %v2306
      %v2308 = vand.u32 %v1212, 4294901760
      %2309 = vmatpush.msra.mxu0 %v2308
      %v2310 = vand.u32 %v1208, 4294901760
      %2311 = vmatpush.msra.mxu0 %v2310
      %v2312 = vand.u32 %v1204, 4294901760
      %2313 = vmatpush.msra.mxu0 %v2312
      %v2314 = vand.u32 %v1200, 4294901760
      %2315 = vmatpush.msra.mxu0 %v2314
      %v2316 = vand.u32 %v1196, 4294901760
      %2317 = vmatpush.msra.mxu0 %v2316
      %v2318 = vand.u32 %v1192, 4294901760
      %2319 = vmatpush.msra.mxu0 %v2318
      %v2320 = vand.u32 %v1188, 4294901760
      %2321 = vmatpush.msra.mxu0 %v2320
      %v2322 = vand.u32 %v1184, 4294901760
      %2323 = vmatpush.msra.mxu0 %v2322
      %v2324 = vand.u32 %v1337, 4294901760
      %v2325 = vsub.f32 %v1337, %v2324
      %v2326 = vand.u32 %v2325, 4294901760
      %v2327 = vsub.f32 %v2325, %v2326
      %v2328 = vand.u32 %v2327, 4294901760
      %2329 = vmatmul.f32.gmra.mxu0 %v2328
      %v2330 = vpop.f32.mrf.mxu0
      %v2331 = vadd.f32 %v2295, %v2330
      %2332 = vdwg.mxu0
      %2333 = vmatpush.msra.mxu0 0.0
      %2334 = vmatpush.msra.mxu0 0.0
      %2335 = vmatpush.msra.mxu0 0.0
      %2336 = vmatpush.msra.mxu0 0.0
      %2337 = vmatpush.msra.mxu0 0.0
      %v2338 = vand.u32 %v1224, 4294901760
      %v2339 = vsub.f32 %v1224, %v2338
      %v2340 = vand.u32 %v2339, 4294901760
      %v2341 = vsub.f32 %v2339, %v2340
      %v2342 = vand.u32 %v2341, 4294901760
      %2343 = vmatpush.msra.mxu0 %v2342
      %v2344 = vand.u32 %v1220, 4294901760
      %v2345 = vsub.f32 %v1220, %v2344
      %v2346 = vand.u32 %v2345, 4294901760
      %v2347 = vsub.f32 %v2345, %v2346
      %v2348 = vand.u32 %v2347, 4294901760
      %2349 = vmatpush.msra.mxu0 %v2348
      %v2350 = vand.u32 %v1216, 4294901760
      %v2351 = vsub.f32 %v1216, %v2350
      %v2352 = vand.u32 %v2351, 4294901760
      %v2353 = vsub.f32 %v2351, %v2352
      %v2354 = vand.u32 %v2353, 4294901760
      %2355 = vmatpush.msra.mxu0 %v2354
      %v2356 = vand.u32 %v1212, 4294901760
      %v2357 = vsub.f32 %v1212, %v2356
      %v2358 = vand.u32 %v2357, 4294901760
      %v2359 = vsub.f32 %v2357, %v2358
      %v2360 = vand.u32 %v2359, 4294901760
      %2361 = vmatpush.msra.mxu0 %v2360
      %v2362 = vand.u32 %v1208, 4294901760
      %v2363 = vsub.f32 %v1208, %v2362
      %v2364 = vand.u32 %v2363, 4294901760
      %v2365 = vsub.f32 %v2363, %v2364
      %v2366 = vand.u32 %v2365, 4294901760
      %2367 = vmatpush.msra.mxu0 %v2366
      %v2368 = vand.u32 %v1204, 4294901760
      %v2369 = vsub.f32 %v1204, %v2368
      %v2370 = vand.u32 %v2369, 4294901760
      %v2371 = vsub.f32 %v2369, %v2370
      %v2372 = vand.u32 %v2371, 4294901760
      %2373 = vmatpush.msra.mxu0 %v2372
      %v2374 = vand.u32 %v1200, 4294901760
      %v2375 = vsub.f32 %v1200, %v2374
      %v2376 = vand.u32 %v2375, 4294901760
      %v2377 = vsub.f32 %v2375, %v2376
      %v2378 = vand.u32 %v2377, 4294901760
      %2379 = vmatpush.msra.mxu0 %v2378
      %v2380 = vand.u32 %v1196, 4294901760
      %v2381 = vsub.f32 %v1196, %v2380
      %v2382 = vand.u32 %v2381, 4294901760
      %v2383 = vsub.f32 %v2381, %v2382
      %v2384 = vand.u32 %v2383, 4294901760
      %2385 = vmatpush.msra.mxu0 %v2384
      %v2386 = vand.u32 %v1192, 4294901760
      %v2387 = vsub.f32 %v1192, %v2386
      %v2388 = vand.u32 %v2387, 4294901760
      %v2389 = vsub.f32 %v2387, %v2388
      %v2390 = vand.u32 %v2389, 4294901760
      %2391 = vmatpush.msra.mxu0 %v2390
      %v2392 = vand.u32 %v1188, 4294901760
      %v2393 = vsub.f32 %v1188, %v2392
      %v2394 = vand.u32 %v2393, 4294901760
      %v2395 = vsub.f32 %v2393, %v2394
      %v2396 = vand.u32 %v2395, 4294901760
      %2397 = vmatpush.msra.mxu0 %v2396
      %v2398 = vand.u32 %v1184, 4294901760
      %v2399 = vsub.f32 %v1184, %v2398
      %v2400 = vand.u32 %v2399, 4294901760
      %v2401 = vsub.f32 %v2399, %v2400
      %v2402 = vand.u32 %v2401, 4294901760
      %2403 = vmatpush.msra.mxu0 %v2402
      %v2404 = vand.u32 %v1337, 4294901760
      %2405 = vmatmul.f32.gmra.mxu0 %v2404
      %v2406 = vpop.f32.mrf.mxu0
      %v2407 = vadd.f32 %v2331, %v2406
      %2408 = vdwg.mxu0
      %2409 = vmatpush.msra.mxu0 0.0
      %2410 = vmatpush.msra.mxu0 0.0
      %2411 = vmatpush.msra.mxu0 0.0
      %2412 = vmatpush.msra.mxu0 0.0
      %2413 = vmatpush.msra.mxu0 0.0
      %v2414 = vand.u32 %v1224, 4294901760
      %v2415 = vsub.f32 %v1224, %v2414
      %2416 = vmatpush.msra.mxu0 %v2415
      %v2417 = vand.u32 %v1220, 4294901760
      %v2418 = vsub.f32 %v1220, %v2417
      %2419 = vmatpush.msra.mxu0 %v2418
      %v2420 = vand.u32 %v1216, 4294901760
      %v2421 = vsub.f32 %v1216, %v2420
      %2422 = vmatpush.msra.mxu0 %v2421
      %v2423 = vand.u32 %v1212, 4294901760
      %v2424 = vsub.f32 %v1212, %v2423
      %2425 = vmatpush.msra.mxu0 %v2424
      %v2426 = vand.u32 %v1208, 4294901760
      %v2427 = vsub.f32 %v1208, %v2426
      %2428 = vmatpush.msra.mxu0 %v2427
      %v2429 = vand.u32 %v1204, 4294901760
      %v2430 = vsub.f32 %v1204, %v2429
      %2431 = vmatpush.msra.mxu0 %v2430
      %v2432 = vand.u32 %v1200, 4294901760
      %v2433 = vsub.f32 %v1200, %v2432
      %2434 = vmatpush.msra.mxu0 %v2433
      %v2435 = vand.u32 %v1196, 4294901760
      %v2436 = vsub.f32 %v1196, %v2435
      %2437 = vmatpush.msra.mxu0 %v2436
      %v2438 = vand.u32 %v1192, 4294901760
      %v2439 = vsub.f32 %v1192, %v2438
      %2440 = vmatpush.msra.mxu0 %v2439
      %v2441 = vand.u32 %v1188, 4294901760
      %v2442 = vsub.f32 %v1188, %v2441
      %2443 = vmatpush.msra.mxu0 %v2442
      %v2444 = vand.u32 %v1184, 4294901760
      %v2445 = vsub.f32 %v1184, %v2444
      %2446 = vmatpush.msra.mxu0 %v2445
      %v2447 = vand.u32 %v1337, 4294901760
      %v2448 = vsub.f32 %v1337, %v2447
      %2449 = vmatmul.f32.gmra.mxu0 %v2448
      %v2450 = vpop.f32.mrf.mxu0
      %v2451 = vadd.f32 %v2407, %v2450
      %2452 = vdwg.mxu0
      %2453 = vmatpush.msra.mxu0 0.0
      %2454 = vmatpush.msra.mxu0 0.0
      %2455 = vmatpush.msra.mxu0 0.0
      %2456 = vmatpush.msra.mxu0 0.0
      %2457 = vmatpush.msra.mxu0 0.0
      %v2458 = vand.u32 %v1224, 4294901760
      %2459 = vmatpush.msra.mxu0 %v2458
      %v2460 = vand.u32 %v1220, 4294901760
      %2461 = vmatpush.msra.mxu0 %v2460
      %v2462 = vand.u32 %v1216, 4294901760
      %2463 = vmatpush.msra.mxu0 %v2462
      %v2464 = vand.u32 %v1212, 4294901760
      %2465 = vmatpush.msra.mxu0 %v2464
      %v2466 = vand.u32 %v1208, 4294901760
      %2467 = vmatpush.msra.mxu0 %v2466
      %v2468 = vand.u32 %v1204, 4294901760
      %2469 = vmatpush.msra.mxu0 %v2468
      %v2470 = vand.u32 %v1200, 4294901760
      %2471 = vmatpush.msra.mxu0 %v2470
      %v2472 = vand.u32 %v1196, 4294901760
      %2473 = vmatpush.msra.mxu0 %v2472
      %v2474 = vand.u32 %v1192, 4294901760
      %2475 = vmatpush.msra.mxu0 %v2474
      %v2476 = vand.u32 %v1188, 4294901760
      %2477 = vmatpush.msra.mxu0 %v2476
      %v2478 = vand.u32 %v1184, 4294901760
      %2479 = vmatpush.msra.mxu0 %v2478
      %v2480 = vand.u32 %v1337, 4294901760
      %v2481 = vsub.f32 %v1337, %v2480
      %v2482 = vand.u32 %v2481, 4294901760
      %2483 = vmatmul.f32.gmra.mxu0 %v2482
      %v2484 = vpop.f32.mrf.mxu0
      %v2485 = vadd.f32 %v2451, %v2484
      %2486 = vdwg.mxu0
      %2487 = vmatpush.msra.mxu0 0.0
      %2488 = vmatpush.msra.mxu0 0.0
      %2489 = vmatpush.msra.mxu0 0.0
      %2490 = vmatpush.msra.mxu0 0.0
      %2491 = vmatpush.msra.mxu0 0.0
      %v2492 = vand.u32 %v1224, 4294901760
      %v2493 = vsub.f32 %v1224, %v2492
      %v2494 = vand.u32 %v2493, 4294901760
      %2495 = vmatpush.msra.mxu0 %v2494
      %v2496 = vand.u32 %v1220, 4294901760
      %v2497 = vsub.f32 %v1220, %v2496
      %v2498 = vand.u32 %v2497, 4294901760
      %2499 = vmatpush.msra.mxu0 %v2498
      %v2500 = vand.u32 %v1216, 4294901760
      %v2501 = vsub.f32 %v1216, %v2500
      %v2502 = vand.u32 %v2501, 4294901760
      %2503 = vmatpush.msra.mxu0 %v2502
      %v2504 = vand.u32 %v1212, 4294901760
      %v2505 = vsub.f32 %v1212, %v2504
      %v2506 = vand.u32 %v2505, 4294901760
      %2507 = vmatpush.msra.mxu0 %v2506
      %v2508 = vand.u32 %v1208, 4294901760
      %v2509 = vsub.f32 %v1208, %v2508
      %v2510 = vand.u32 %v2509, 4294901760
      %2511 = vmatpush.msra.mxu0 %v2510
      %v2512 = vand.u32 %v1204, 4294901760
      %v2513 = vsub.f32 %v1204, %v2512
      %v2514 = vand.u32 %v2513, 4294901760
      %2515 = vmatpush.msra.mxu0 %v2514
      %v2516 = vand.u32 %v1200, 4294901760
      %v2517 = vsub.f32 %v1200, %v2516
      %v2518 = vand.u32 %v2517, 4294901760
      %2519 = vmatpush.msra.mxu0 %v2518
      %v2520 = vand.u32 %v1196, 4294901760
      %v2521 = vsub.f32 %v1196, %v2520
      %v2522 = vand.u32 %v2521, 4294901760
      %2523 = vmatpush.msra.mxu0 %v2522
      %v2524 = vand.u32 %v1192, 4294901760
      %v2525 = vsub.f32 %v1192, %v2524
      %v2526 = vand.u32 %v2525, 4294901760
      %2527 = vmatpush.msra.mxu0 %v2526
      %v2528 = vand.u32 %v1188, 4294901760
      %v2529 = vsub.f32 %v1188, %v2528
      %v2530 = vand.u32 %v2529, 4294901760
      %2531 = vmatpush.msra.mxu0 %v2530
      %v2532 = vand.u32 %v1184, 4294901760
      %v2533 = vsub.f32 %v1184, %v2532
      %v2534 = vand.u32 %v2533, 4294901760
      %2535 = vmatpush.msra.mxu0 %v2534
      %v2536 = vand.u32 %v1337, 4294901760
      %2537 = vmatmul.f32.gmra.mxu0 %v2536
      %v2538 = vpop.f32.mrf.mxu0
      %v2539 = vadd.f32 %v2485, %v2538
      %2540 = vdwg.mxu0
      %2541 = vmatpush.msra.mxu0 0.0
      %2542 = vmatpush.msra.mxu0 0.0
      %2543 = vmatpush.msra.mxu0 0.0
      %2544 = vmatpush.msra.mxu0 0.0
      %2545 = vmatpush.msra.mxu0 0.0
      %v2546 = vand.u32 %v1224, 4294901760
      %2547 = vmatpush.msra.mxu0 %v2546
      %v2548 = vand.u32 %v1220, 4294901760
      %2549 = vmatpush.msra.mxu0 %v2548
      %v2550 = vand.u32 %v1216, 4294901760
      %2551 = vmatpush.msra.mxu0 %v2550
      %v2552 = vand.u32 %v1212, 4294901760
      %2553 = vmatpush.msra.mxu0 %v2552
      %v2554 = vand.u32 %v1208, 4294901760
      %2555 = vmatpush.msra.mxu0 %v2554
      %v2556 = vand.u32 %v1204, 4294901760
      %2557 = vmatpush.msra.mxu0 %v2556
      %v2558 = vand.u32 %v1200, 4294901760
      %2559 = vmatpush.msra.mxu0 %v2558
      %v2560 = vand.u32 %v1196, 4294901760
      %2561 = vmatpush.msra.mxu0 %v2560
      %v2562 = vand.u32 %v1192, 4294901760
      %2563 = vmatpush.msra.mxu0 %v2562
      %v2564 = vand.u32 %v1188, 4294901760
      %2565 = vmatpush.msra.mxu0 %v2564
      %v2566 = vand.u32 %v1184, 4294901760
      %2567 = vmatpush.msra.mxu0 %v2566
      %v2568 = vand.u32 %v1337, 4294901760
      %2569 = vmatmul.f32.gmra.mxu0 %v2568
      %v2570 = vpop.f32.mrf.mxu0
      %v2571 = vadd.f32 %v2539, %v2570
      %2572 = vdwg.mxu0
      %v2573 = vand.u32 %v1181, 4294901760
      %2574 = vmatpush.msra.mxu0 %v2573
      %v2575 = vand.u32 %v1177, 4294901760
      %2576 = vmatpush.msra.mxu0 %v2575
      %v2577 = vand.u32 %v1173, 4294901760
      %2578 = vmatpush.msra.mxu0 %v2577
      %v2579 = vand.u32 %v1169, 4294901760
      %2580 = vmatpush.msra.mxu0 %v2579
      %v2581 = vand.u32 %v1165, 4294901760
      %2582 = vmatpush.msra.mxu0 %v2581
      %v2583 = vand.u32 %v1161, 4294901760
      %2584 = vmatpush.msra.mxu0 %v2583
      %v2585 = vand.u32 %v1157, 4294901760
      %2586 = vmatpush.msra.mxu0 %v2585
      %v2587 = vand.u32 %v1153, 4294901760
      %2588 = vmatpush.msra.mxu0 %v2587
      %v2589 = vand.u32 %v1149, 4294901760
      %2590 = vmatpush.msra.mxu0 %v2589
      %v2591 = vand.u32 %v1145, 4294901760
      %2592 = vmatpush.msra.mxu0 %v2591
      %v2593 = vand.u32 %v1141, 4294901760
      %2594 = vmatpush.msra.mxu0 %v2593
      %v2595 = vand.u32 %v1137, 4294901760
      %2596 = vmatpush.msra.mxu0 %v2595
      %v2597 = vand.u32 %v1133, 4294901760
      %2598 = vmatpush.msra.mxu0 %v2597
      %v2599 = vand.u32 %v1129, 4294901760
      %2600 = vmatpush.msra.mxu0 %v2599
      %v2601 = vand.u32 %v1125, 4294901760
      %2602 = vmatpush.msra.mxu0 %v2601
      %v2603 = vand.u32 %v1121, 4294901760
      %2604 = vmatpush.msra.mxu0 %v2603
      %v2605 = vand.u32 %v846, 4294901760
      %v2606 = vsub.f32 %v846, %v2605
      %v2607 = vand.u32 %v2606, 4294901760
      %v2608 = vsub.f32 %v2606, %v2607
      %v2609 = vand.u32 %v2608, 4294901760
      %2610 = vmatmul.f32.gmra.mxu0 %v2609
      %v2611 = vpop.f32.mrf.mxu0
      %v2612 = vadd.f32 0.0, %v2611
      %2613 = vdwg.mxu0
      %v2614 = vand.u32 %v1181, 4294901760
      %v2615 = vsub.f32 %v1181, %v2614
      %v2616 = vand.u32 %v2615, 4294901760
      %v2617 = vsub.f32 %v2615, %v2616
      %v2618 = vand.u32 %v2617, 4294901760
      %2619 = vmatpush.msra.mxu0 %v2618
      %v2620 = vand.u32 %v1177, 4294901760
      %v2621 = vsub.f32 %v1177, %v2620
      %v2622 = vand.u32 %v2621, 4294901760
      %v2623 = vsub.f32 %v2621, %v2622
      %v2624 = vand.u32 %v2623, 4294901760
      %2625 = vmatpush.msra.mxu0 %v2624
      %v2626 = vand.u32 %v1173, 4294901760
      %v2627 = vsub.f32 %v1173, %v2626
      %v2628 = vand.u32 %v2627, 4294901760
      %v2629 = vsub.f32 %v2627, %v2628
      %v2630 = vand.u32 %v2629, 4294901760
      %2631 = vmatpush.msra.mxu0 %v2630
      %v2632 = vand.u32 %v1169, 4294901760
      %v2633 = vsub.f32 %v1169, %v2632
      %v2634 = vand.u32 %v2633, 4294901760
      %v2635 = vsub.f32 %v2633, %v2634
      %v2636 = vand.u32 %v2635, 4294901760
      %2637 = vmatpush.msra.mxu0 %v2636
      %v2638 = vand.u32 %v1165, 4294901760
      %v2639 = vsub.f32 %v1165, %v2638
      %v2640 = vand.u32 %v2639, 4294901760
      %v2641 = vsub.f32 %v2639, %v2640
      %v2642 = vand.u32 %v2641, 4294901760
      %2643 = vmatpush.msra.mxu0 %v2642
      %v2644 = vand.u32 %v1161, 4294901760
      %v2645 = vsub.f32 %v1161, %v2644
      %v2646 = vand.u32 %v2645, 4294901760
      %v2647 = vsub.f32 %v2645, %v2646
      %v2648 = vand.u32 %v2647, 4294901760
      %2649 = vmatpush.msra.mxu0 %v2648
      %v2650 = vand.u32 %v1157, 4294901760
      %v2651 = vsub.f32 %v1157, %v2650
      %v2652 = vand.u32 %v2651, 4294901760
      %v2653 = vsub.f32 %v2651, %v2652
      %v2654 = vand.u32 %v2653, 4294901760
      %2655 = vmatpush.msra.mxu0 %v2654
      %v2656 = vand.u32 %v1153, 4294901760
      %v2657 = vsub.f32 %v1153, %v2656
      %v2658 = vand.u32 %v2657, 4294901760
      %v2659 = vsub.f32 %v2657, %v2658
      %v2660 = vand.u32 %v2659, 4294901760
      %2661 = vmatpush.msra.mxu0 %v2660
      %v2662 = vand.u32 %v1149, 4294901760
      %v2663 = vsub.f32 %v1149, %v2662
      %v2664 = vand.u32 %v2663, 4294901760
      %v2665 = vsub.f32 %v2663, %v2664
      %v2666 = vand.u32 %v2665, 4294901760
      %2667 = vmatpush.msra.mxu0 %v2666
      %v2668 = vand.u32 %v1145, 4294901760
      %v2669 = vsub.f32 %v1145, %v2668
      %v2670 = vand.u32 %v2669, 4294901760
      %v2671 = vsub.f32 %v2669, %v2670
      %v2672 = vand.u32 %v2671, 4294901760
      %2673 = vmatpush.msra.mxu0 %v2672
      %v2674 = vand.u32 %v1141, 4294901760
      %v2675 = vsub.f32 %v1141, %v2674
      %v2676 = vand.u32 %v2675, 4294901760
      %v2677 = vsub.f32 %v2675, %v2676
      %v2678 = vand.u32 %v2677, 4294901760
      %2679 = vmatpush.msra.mxu0 %v2678
      %v2680 = vand.u32 %v1137, 4294901760
      %v2681 = vsub.f32 %v1137, %v2680
      %v2682 = vand.u32 %v2681, 4294901760
      %v2683 = vsub.f32 %v2681, %v2682
      %v2684 = vand.u32 %v2683, 4294901760
      %2685 = vmatpush.msra.mxu0 %v2684
      %v2686 = vand.u32 %v1133, 4294901760
      %v2687 = vsub.f32 %v1133, %v2686
      %v2688 = vand.u32 %v2687, 4294901760
      %v2689 = vsub.f32 %v2687, %v2688
      %v2690 = vand.u32 %v2689, 4294901760
      %2691 = vmatpush.msra.mxu0 %v2690
      %v2692 = vand.u32 %v1129, 4294901760
      %v2693 = vsub.f32 %v1129, %v2692
      %v2694 = vand.u32 %v2693, 4294901760
      %v2695 = vsub.f32 %v2693, %v2694
      %v2696 = vand.u32 %v2695, 4294901760
      %2697 = vmatpush.msra.mxu0 %v2696
      %v2698 = vand.u32 %v1125, 4294901760
      %v2699 = vsub.f32 %v1125, %v2698
      %v2700 = vand.u32 %v2699, 4294901760
      %v2701 = vsub.f32 %v2699, %v2700
      %v2702 = vand.u32 %v2701, 4294901760
      %2703 = vmatpush.msra.mxu0 %v2702
      %v2704 = vand.u32 %v1121, 4294901760
      %v2705 = vsub.f32 %v1121, %v2704
      %v2706 = vand.u32 %v2705, 4294901760
      %v2707 = vsub.f32 %v2705, %v2706
      %v2708 = vand.u32 %v2707, 4294901760
      %2709 = vmatpush.msra.mxu0 %v2708
      %v2710 = vand.u32 %v846, 4294901760
      %2711 = vmatmul.f32.gmra.mxu0 %v2710
      %v2712 = vpop.f32.mrf.mxu0
      %v2713 = vadd.f32 %v2612, %v2712
      %2714 = vdwg.mxu0
      %v2715 = vand.u32 %v1181, 4294901760
      %v2716 = vsub.f32 %v1181, %v2715
      %2717 = vmatpush.msra.mxu0 %v2716
      %v2718 = vand.u32 %v1177, 4294901760
      %v2719 = vsub.f32 %v1177, %v2718
      %2720 = vmatpush.msra.mxu0 %v2719
      %v2721 = vand.u32 %v1173, 4294901760
      %v2722 = vsub.f32 %v1173, %v2721
      %2723 = vmatpush.msra.mxu0 %v2722
      %v2724 = vand.u32 %v1169, 4294901760
      %v2725 = vsub.f32 %v1169, %v2724
      %2726 = vmatpush.msra.mxu0 %v2725
      %v2727 = vand.u32 %v1165, 4294901760
      %v2728 = vsub.f32 %v1165, %v2727
      %2729 = vmatpush.msra.mxu0 %v2728
      %v2730 = vand.u32 %v1161, 4294901760
      %v2731 = vsub.f32 %v1161, %v2730
      %2732 = vmatpush.msra.mxu0 %v2731
      %v2733 = vand.u32 %v1157, 4294901760
      %v2734 = vsub.f32 %v1157, %v2733
      %2735 = vmatpush.msra.mxu0 %v2734
      %v2736 = vand.u32 %v1153, 4294901760
      %v2737 = vsub.f32 %v1153, %v2736
      %2738 = vmatpush.msra.mxu0 %v2737
      %v2739 = vand.u32 %v1149, 4294901760
      %v2740 = vsub.f32 %v1149, %v2739
      %2741 = vmatpush.msra.mxu0 %v2740
      %v2742 = vand.u32 %v1145, 4294901760
      %v2743 = vsub.f32 %v1145, %v2742
      %2744 = vmatpush.msra.mxu0 %v2743
      %v2745 = vand.u32 %v1141, 4294901760
      %v2746 = vsub.f32 %v1141, %v2745
      %2747 = vmatpush.msra.mxu0 %v2746
      %v2748 = vand.u32 %v1137, 4294901760
      %v2749 = vsub.f32 %v1137, %v2748
      %2750 = vmatpush.msra.mxu0 %v2749
      %v2751 = vand.u32 %v1133, 4294901760
      %v2752 = vsub.f32 %v1133, %v2751
      %2753 = vmatpush.msra.mxu0 %v2752
      %v2754 = vand.u32 %v1129, 4294901760
      %v2755 = vsub.f32 %v1129, %v2754
      %2756 = vmatpush.msra.mxu0 %v2755
      %v2757 = vand.u32 %v1125, 4294901760
      %v2758 = vsub.f32 %v1125, %v2757
      %2759 = vmatpush.msra.mxu0 %v2758
      %v2760 = vand.u32 %v1121, 4294901760
      %v2761 = vsub.f32 %v1121, %v2760
      %2762 = vmatpush.msra.mxu0 %v2761
      %v2763 = vand.u32 %v846, 4294901760
      %v2764 = vsub.f32 %v846, %v2763
      %2765 = vmatmul.f32.gmra.mxu0 %v2764
      %v2766 = vpop.f32.mrf.mxu0
      %v2767 = vadd.f32 %v2713, %v2766
      %2768 = vdwg.mxu0
      %v2769 = vand.u32 %v1181, 4294901760
      %2770 = vmatpush.msra.mxu0 %v2769
      %v2771 = vand.u32 %v1177, 4294901760
      %2772 = vmatpush.msra.mxu0 %v2771
      %v2773 = vand.u32 %v1173, 4294901760
      %2774 = vmatpush.msra.mxu0 %v2773
      %v2775 = vand.u32 %v1169, 4294901760
      %2776 = vmatpush.msra.mxu0 %v2775
      %v2777 = vand.u32 %v1165, 4294901760
      %2778 = vmatpush.msra.mxu0 %v2777
      %v2779 = vand.u32 %v1161, 4294901760
      %2780 = vmatpush.msra.mxu0 %v2779
      %v2781 = vand.u32 %v1157, 4294901760
      %2782 = vmatpush.msra.mxu0 %v2781
      %v2783 = vand.u32 %v1153, 4294901760
      %2784 = vmatpush.msra.mxu0 %v2783
      %v2785 = vand.u32 %v1149, 4294901760
      %2786 = vmatpush.msra.mxu0 %v2785
      %v2787 = vand.u32 %v1145, 4294901760
      %2788 = vmatpush.msra.mxu0 %v2787
      %v2789 = vand.u32 %v1141, 4294901760
      %2790 = vmatpush.msra.mxu0 %v2789
      %v2791 = vand.u32 %v1137, 4294901760
      %2792 = vmatpush.msra.mxu0 %v2791
      %v2793 = vand.u32 %v1133, 4294901760
      %2794 = vmatpush.msra.mxu0 %v2793
      %v2795 = vand.u32 %v1129, 4294901760
      %2796 = vmatpush.msra.mxu0 %v2795
      %v2797 = vand.u32 %v1125, 4294901760
      %2798 = vmatpush.msra.mxu0 %v2797
      %v2799 = vand.u32 %v1121, 4294901760
      %2800 = vmatpush.msra.mxu0 %v2799
      %v2801 = vand.u32 %v846, 4294901760
      %v2802 = vsub.f32 %v846, %v2801
      %v2803 = vand.u32 %v2802, 4294901760
      %2804 = vmatmul.f32.gmra.mxu0 %v2803
      %v2805 = vpop.f32.mrf.mxu0
      %v2806 = vadd.f32 %v2767, %v2805
      %2807 = vdwg.mxu0
      %v2808 = vand.u32 %v1181, 4294901760
      %v2809 = vsub.f32 %v1181, %v2808
      %v2810 = vand.u32 %v2809, 4294901760
      %2811 = vmatpush.msra.mxu0 %v2810
      %v2812 = vand.u32 %v1177, 4294901760
      %v2813 = vsub.f32 %v1177, %v2812
      %v2814 = vand.u32 %v2813, 4294901760
      %2815 = vmatpush.msra.mxu0 %v2814
      %v2816 = vand.u32 %v1173, 4294901760
      %v2817 = vsub.f32 %v1173, %v2816
      %v2818 = vand.u32 %v2817, 4294901760
      %2819 = vmatpush.msra.mxu0 %v2818
      %v2820 = vand.u32 %v1169, 4294901760
      %v2821 = vsub.f32 %v1169, %v2820
      %v2822 = vand.u32 %v2821, 4294901760
      %2823 = vmatpush.msra.mxu0 %v2822
      %v2824 = vand.u32 %v1165, 4294901760
      %v2825 = vsub.f32 %v1165, %v2824
      %v2826 = vand.u32 %v2825, 4294901760
      %2827 = vmatpush.msra.mxu0 %v2826
      %v2828 = vand.u32 %v1161, 4294901760
      %v2829 = vsub.f32 %v1161, %v2828
      %v2830 = vand.u32 %v2829, 4294901760
      %2831 = vmatpush.msra.mxu0 %v2830
      %v2832 = vand.u32 %v1157, 4294901760
      %v2833 = vsub.f32 %v1157, %v2832
      %v2834 = vand.u32 %v2833, 4294901760
      %2835 = vmatpush.msra.mxu0 %v2834
      %v2836 = vand.u32 %v1153, 4294901760
      %v2837 = vsub.f32 %v1153, %v2836
      %v2838 = vand.u32 %v2837, 4294901760
      %2839 = vmatpush.msra.mxu0 %v2838
      %v2840 = vand.u32 %v1149, 4294901760
      %v2841 = vsub.f32 %v1149, %v2840
      %v2842 = vand.u32 %v2841, 4294901760
      %2843 = vmatpush.msra.mxu0 %v2842
      %v2844 = vand.u32 %v1145, 4294901760
      %v2845 = vsub.f32 %v1145, %v2844
      %v2846 = vand.u32 %v2845, 4294901760
      %2847 = vmatpush.msra.mxu0 %v2846
      %v2848 = vand.u32 %v1141, 4294901760
      %v2849 = vsub.f32 %v1141, %v2848
      %v2850 = vand.u32 %v2849, 4294901760
      %2851 = vmatpush.msra.mxu0 %v2850
      %v2852 = vand.u32 %v1137, 4294901760
      %v2853 = vsub.f32 %v1137, %v2852
      %v2854 = vand.u32 %v2853, 4294901760
      %2855 = vmatpush.msra.mxu0 %v2854
      %v2856 = vand.u32 %v1133, 4294901760
      %v2857 = vsub.f32 %v1133, %v2856
      %v2858 = vand.u32 %v2857, 4294901760
      %2859 = vmatpush.msra.mxu0 %v2858
      %v2860 = vand.u32 %v1129, 4294901760
      %v2861 = vsub.f32 %v1129, %v2860
      %v2862 = vand.u32 %v2861, 4294901760
      %2863 = vmatpush.msra.mxu0 %v2862
      %v2864 = vand.u32 %v1125, 4294901760
      %v2865 = vsub.f32 %v1125, %v2864
      %v2866 = vand.u32 %v2865, 4294901760
      %2867 = vmatpush.msra.mxu0 %v2866
      %v2868 = vand.u32 %v1121, 4294901760
      %v2869 = vsub.f32 %v1121, %v2868
      %v2870 = vand.u32 %v2869, 4294901760
      %2871 = vmatpush.msra.mxu0 %v2870
      %v2872 = vand.u32 %v846, 4294901760
      %2873 = vmatmul.f32.gmra.mxu0 %v2872
      %v2874 = vpop.f32.mrf.mxu0
      %v2875 = vadd.f32 %v2806, %v2874
      %2876 = vdwg.mxu0
      %v2877 = vand.u32 %v1181, 4294901760
      %2878 = vmatpush.msra.mxu0 %v2877
      %v2879 = vand.u32 %v1177, 4294901760
      %2880 = vmatpush.msra.mxu0 %v2879
      %v2881 = vand.u32 %v1173, 4294901760
      %2882 = vmatpush.msra.mxu0 %v2881
      %v2883 = vand.u32 %v1169, 4294901760
      %2884 = vmatpush.msra.mxu0 %v2883
      %v2885 = vand.u32 %v1165, 4294901760
      %2886 = vmatpush.msra.mxu0 %v2885
      %v2887 = vand.u32 %v1161, 4294901760
      %2888 = vmatpush.msra.mxu0 %v2887
      %v2889 = vand.u32 %v1157, 4294901760
      %2890 = vmatpush.msra.mxu0 %v2889
      %v2891 = vand.u32 %v1153, 4294901760
      %2892 = vmatpush.msra.mxu0 %v2891
      %v2893 = vand.u32 %v1149, 4294901760
      %2894 = vmatpush.msra.mxu0 %v2893
      %v2895 = vand.u32 %v1145, 4294901760
      %2896 = vmatpush.msra.mxu0 %v2895
      %v2897 = vand.u32 %v1141, 4294901760
      %2898 = vmatpush.msra.mxu0 %v2897
      %v2899 = vand.u32 %v1137, 4294901760
      %2900 = vmatpush.msra.mxu0 %v2899
      %v2901 = vand.u32 %v1133, 4294901760
      %2902 = vmatpush.msra.mxu0 %v2901
      %v2903 = vand.u32 %v1129, 4294901760
      %2904 = vmatpush.msra.mxu0 %v2903
      %v2905 = vand.u32 %v1125, 4294901760
      %2906 = vmatpush.msra.mxu0 %v2905
      %v2907 = vand.u32 %v1121, 4294901760
      %2908 = vmatpush.msra.mxu0 %v2907
      %v2909 = vand.u32 %v846, 4294901760
      %2910 = vmatmul.f32.gmra.mxu0 %v2909
      %v2911 = vpop.f32.mrf.mxu0
      %v2912 = vadd.f32 %v2875, %v2911
      %2913 = vdwg.mxu0
      %2914 = vmatpush.msra.mxu0 0.0
      %2915 = vmatpush.msra.mxu0 0.0
      %2916 = vmatpush.msra.mxu0 0.0
      %2917 = vmatpush.msra.mxu0 0.0
      %2918 = vmatpush.msra.mxu0 0.0
      %v2919 = vand.u32 %v1225, 4294901760
      %2920 = vmatpush.msra.mxu0 %v2919
      %v2921 = vand.u32 %v1221, 4294901760
      %2922 = vmatpush.msra.mxu0 %v2921
      %v2923 = vand.u32 %v1217, 4294901760
      %2924 = vmatpush.msra.mxu0 %v2923
      %v2925 = vand.u32 %v1213, 4294901760
      %2926 = vmatpush.msra.mxu0 %v2925
      %v2927 = vand.u32 %v1209, 4294901760
      %2928 = vmatpush.msra.mxu0 %v2927
      %v2929 = vand.u32 %v1205, 4294901760
      %2930 = vmatpush.msra.mxu0 %v2929
      %v2931 = vand.u32 %v1201, 4294901760
      %2932 = vmatpush.msra.mxu0 %v2931
      %v2933 = vand.u32 %v1197, 4294901760
      %2934 = vmatpush.msra.mxu0 %v2933
      %v2935 = vand.u32 %v1193, 4294901760
      %2936 = vmatpush.msra.mxu0 %v2935
      %v2937 = vand.u32 %v1189, 4294901760
      %2938 = vmatpush.msra.mxu0 %v2937
      %v2939 = vand.u32 %v1185, 4294901760
      %2940 = vmatpush.msra.mxu0 %v2939
      %v2941 = vand.u32 %v1337, 4294901760
      %v2942 = vsub.f32 %v1337, %v2941
      %v2943 = vand.u32 %v2942, 4294901760
      %v2944 = vsub.f32 %v2942, %v2943
      %v2945 = vand.u32 %v2944, 4294901760
      %2946 = vmatmul.f32.gmra.mxu0 %v2945
      %v2947 = vpop.f32.mrf.mxu0
      %v2948 = vadd.f32 %v2912, %v2947
      %2949 = vdwg.mxu0
      %2950 = vmatpush.msra.mxu0 0.0
      %2951 = vmatpush.msra.mxu0 0.0
      %2952 = vmatpush.msra.mxu0 0.0
      %2953 = vmatpush.msra.mxu0 0.0
      %2954 = vmatpush.msra.mxu0 0.0
      %v2955 = vand.u32 %v1225, 4294901760
      %v2956 = vsub.f32 %v1225, %v2955
      %v2957 = vand.u32 %v2956, 4294901760
      %v2958 = vsub.f32 %v2956, %v2957
      %v2959 = vand.u32 %v2958, 4294901760
      %2960 = vmatpush.msra.mxu0 %v2959
      %v2961 = vand.u32 %v1221, 4294901760
      %v2962 = vsub.f32 %v1221, %v2961
      %v2963 = vand.u32 %v2962, 4294901760
      %v2964 = vsub.f32 %v2962, %v2963
      %v2965 = vand.u32 %v2964, 4294901760
      %2966 = vmatpush.msra.mxu0 %v2965
      %v2967 = vand.u32 %v1217, 4294901760
      %v2968 = vsub.f32 %v1217, %v2967
      %v2969 = vand.u32 %v2968, 4294901760
      %v2970 = vsub.f32 %v2968, %v2969
      %v2971 = vand.u32 %v2970, 4294901760
      %2972 = vmatpush.msra.mxu0 %v2971
      %v2973 = vand.u32 %v1213, 4294901760
      %v2974 = vsub.f32 %v1213, %v2973
      %v2975 = vand.u32 %v2974, 4294901760
      %v2976 = vsub.f32 %v2974, %v2975
      %v2977 = vand.u32 %v2976, 4294901760
      %2978 = vmatpush.msra.mxu0 %v2977
      %v2979 = vand.u32 %v1209, 4294901760
      %v2980 = vsub.f32 %v1209, %v2979
      %v2981 = vand.u32 %v2980, 4294901760
      %v2982 = vsub.f32 %v2980, %v2981
      %v2983 = vand.u32 %v2982, 4294901760
      %2984 = vmatpush.msra.mxu0 %v2983
      %v2985 = vand.u32 %v1205, 4294901760
      %v2986 = vsub.f32 %v1205, %v2985
      %v2987 = vand.u32 %v2986, 4294901760
      %v2988 = vsub.f32 %v2986, %v2987
      %v2989 = vand.u32 %v2988, 4294901760
      %2990 = vmatpush.msra.mxu0 %v2989
      %v2991 = vand.u32 %v1201, 4294901760
      %v2992 = vsub.f32 %v1201, %v2991
      %v2993 = vand.u32 %v2992, 4294901760
      %v2994 = vsub.f32 %v2992, %v2993
      %v2995 = vand.u32 %v2994, 4294901760
      %2996 = vmatpush.msra.mxu0 %v2995
      %v2997 = vand.u32 %v1197, 4294901760
      %v2998 = vsub.f32 %v1197, %v2997
      %v2999 = vand.u32 %v2998, 4294901760
      %v3000 = vsub.f32 %v2998, %v2999
      %v3001 = vand.u32 %v3000, 4294901760
      %3002 = vmatpush.msra.mxu0 %v3001
      %v3003 = vand.u32 %v1193, 4294901760
      %v3004 = vsub.f32 %v1193, %v3003
      %v3005 = vand.u32 %v3004, 4294901760
      %v3006 = vsub.f32 %v3004, %v3005
      %v3007 = vand.u32 %v3006, 4294901760
      %3008 = vmatpush.msra.mxu0 %v3007
      %v3009 = vand.u32 %v1189, 4294901760
      %v3010 = vsub.f32 %v1189, %v3009
      %v3011 = vand.u32 %v3010, 4294901760
      %v3012 = vsub.f32 %v3010, %v3011
      %v3013 = vand.u32 %v3012, 4294901760
      %3014 = vmatpush.msra.mxu0 %v3013
      %v3015 = vand.u32 %v1185, 4294901760
      %v3016 = vsub.f32 %v1185, %v3015
      %v3017 = vand.u32 %v3016, 4294901760
      %v3018 = vsub.f32 %v3016, %v3017
      %v3019 = vand.u32 %v3018, 4294901760
      %3020 = vmatpush.msra.mxu0 %v3019
      %v3021 = vand.u32 %v1337, 4294901760
      %3022 = vmatmul.f32.gmra.mxu0 %v3021
      %v3023 = vpop.f32.mrf.mxu0
      %v3024 = vadd.f32 %v2948, %v3023
      %3025 = vdwg.mxu0
      %3026 = vmatpush.msra.mxu0 0.0
      %3027 = vmatpush.msra.mxu0 0.0
      %3028 = vmatpush.msra.mxu0 0.0
      %3029 = vmatpush.msra.mxu0 0.0
      %3030 = vmatpush.msra.mxu0 0.0
      %v3031 = vand.u32 %v1225, 4294901760
      %v3032 = vsub.f32 %v1225, %v3031
      %3033 = vmatpush.msra.mxu0 %v3032
      %v3034 = vand.u32 %v1221, 4294901760
      %v3035 = vsub.f32 %v1221, %v3034
      %3036 = vmatpush.msra.mxu0 %v3035
      %v3037 = vand.u32 %v1217, 4294901760
      %v3038 = vsub.f32 %v1217, %v3037
      %3039 = vmatpush.msra.mxu0 %v3038
      %v3040 = vand.u32 %v1213, 4294901760
      %v3041 = vsub.f32 %v1213, %v3040
      %3042 = vmatpush.msra.mxu0 %v3041
      %v3043 = vand.u32 %v1209, 4294901760
      %v3044 = vsub.f32 %v1209, %v3043
      %3045 = vmatpush.msra.mxu0 %v3044
      %v3046 = vand.u32 %v1205, 4294901760
      %v3047 = vsub.f32 %v1205, %v3046
      %3048 = vmatpush.msra.mxu0 %v3047
      %v3049 = vand.u32 %v1201, 4294901760
      %v3050 = vsub.f32 %v1201, %v3049
      %3051 = vmatpush.msra.mxu0 %v3050
      %v3052 = vand.u32 %v1197, 4294901760
      %v3053 = vsub.f32 %v1197, %v3052
      %3054 = vmatpush.msra.mxu0 %v3053
      %v3055 = vand.u32 %v1193, 4294901760
      %v3056 = vsub.f32 %v1193, %v3055
      %3057 = vmatpush.msra.mxu0 %v3056
      %v3058 = vand.u32 %v1189, 4294901760
      %v3059 = vsub.f32 %v1189, %v3058
      %3060 = vmatpush.msra.mxu0 %v3059
      %v3061 = vand.u32 %v1185, 4294901760
      %v3062 = vsub.f32 %v1185, %v3061
      %3063 = vmatpush.msra.mxu0 %v3062
      %v3064 = vand.u32 %v1337, 4294901760
      %v3065 = vsub.f32 %v1337, %v3064
      %3066 = vmatmul.f32.gmra.mxu0 %v3065
      %v3067 = vpop.f32.mrf.mxu0
      %v3068 = vadd.f32 %v3024, %v3067
      %3069 = vdwg.mxu0
      %3070 = vmatpush.msra.mxu0 0.0
      %3071 = vmatpush.msra.mxu0 0.0
      %3072 = vmatpush.msra.mxu0 0.0
      %3073 = vmatpush.msra.mxu0 0.0
      %3074 = vmatpush.msra.mxu0 0.0
      %v3075 = vand.u32 %v1225, 4294901760
      %3076 = vmatpush.msra.mxu0 %v3075
      %v3077 = vand.u32 %v1221, 4294901760
      %3078 = vmatpush.msra.mxu0 %v3077
      %v3079 = vand.u32 %v1217, 4294901760
      %3080 = vmatpush.msra.mxu0 %v3079
      %v3081 = vand.u32 %v1213, 4294901760
      %3082 = vmatpush.msra.mxu0 %v3081
      %v3083 = vand.u32 %v1209, 4294901760
      %3084 = vmatpush.msra.mxu0 %v3083
      %v3085 = vand.u32 %v1205, 4294901760
      %3086 = vmatpush.msra.mxu0 %v3085
      %v3087 = vand.u32 %v1201, 4294901760
      %3088 = vmatpush.msra.mxu0 %v3087
      %v3089 = vand.u32 %v1197, 4294901760
      %3090 = vmatpush.msra.mxu0 %v3089
      %v3091 = vand.u32 %v1193, 4294901760
      %3092 = vmatpush.msra.mxu0 %v3091
      %v3093 = vand.u32 %v1189, 4294901760
      %3094 = vmatpush.msra.mxu0 %v3093
      %v3095 = vand.u32 %v1185, 4294901760
      %3096 = vmatpush.msra.mxu0 %v3095
      %v3097 = vand.u32 %v1337, 4294901760
      %v3098 = vsub.f32 %v1337, %v3097
      %v3099 = vand.u32 %v3098, 4294901760
      %3100 = vmatmul.f32.gmra.mxu0 %v3099
      %v3101 = vpop.f32.mrf.mxu0
      %v3102 = vadd.f32 %v3068, %v3101
      %3103 = vdwg.mxu0
      %3104 = vmatpush.msra.mxu0 0.0
      %3105 = vmatpush.msra.mxu0 0.0
      %3106 = vmatpush.msra.mxu0 0.0
      %3107 = vmatpush.msra.mxu0 0.0
      %3108 = vmatpush.msra.mxu0 0.0
      %v3109 = vand.u32 %v1225, 4294901760
      %v3110 = vsub.f32 %v1225, %v3109
      %v3111 = vand.u32 %v3110, 4294901760
      %3112 = vmatpush.msra.mxu0 %v3111
      %v3113 = vand.u32 %v1221, 4294901760
      %v3114 = vsub.f32 %v1221, %v3113
      %v3115 = vand.u32 %v3114, 4294901760
      %3116 = vmatpush.msra.mxu0 %v3115
      %v3117 = vand.u32 %v1217, 4294901760
      %v3118 = vsub.f32 %v1217, %v3117
      %v3119 = vand.u32 %v3118, 4294901760
      %3120 = vmatpush.msra.mxu0 %v3119
      %v3121 = vand.u32 %v1213, 4294901760
      %v3122 = vsub.f32 %v1213, %v3121
      %v3123 = vand.u32 %v3122, 4294901760
      %3124 = vmatpush.msra.mxu0 %v3123
      %v3125 = vand.u32 %v1209, 4294901760
      %v3126 = vsub.f32 %v1209, %v3125
      %v3127 = vand.u32 %v3126, 4294901760
      %3128 = vmatpush.msra.mxu0 %v3127
      %v3129 = vand.u32 %v1205, 4294901760
      %v3130 = vsub.f32 %v1205, %v3129
      %v3131 = vand.u32 %v3130, 4294901760
      %3132 = vmatpush.msra.mxu0 %v3131
      %v3133 = vand.u32 %v1201, 4294901760
      %v3134 = vsub.f32 %v1201, %v3133
      %v3135 = vand.u32 %v3134, 4294901760
      %3136 = vmatpush.msra.mxu0 %v3135
      %v3137 = vand.u32 %v1197, 4294901760
      %v3138 = vsub.f32 %v1197, %v3137
      %v3139 = vand.u32 %v3138, 4294901760
      %3140 = vmatpush.msra.mxu0 %v3139
      %v3141 = vand.u32 %v1193, 4294901760
      %v3142 = vsub.f32 %v1193, %v3141
      %v3143 = vand.u32 %v3142, 4294901760
      %3144 = vmatpush.msra.mxu0 %v3143
      %v3145 = vand.u32 %v1189, 4294901760
      %v3146 = vsub.f32 %v1189, %v3145
      %v3147 = vand.u32 %v3146, 4294901760
      %3148 = vmatpush.msra.mxu0 %v3147
      %v3149 = vand.u32 %v1185, 4294901760
      %v3150 = vsub.f32 %v1185, %v3149
      %v3151 = vand.u32 %v3150, 4294901760
      %3152 = vmatpush.msra.mxu0 %v3151
      %v3153 = vand.u32 %v1337, 4294901760
      %3154 = vmatmul.f32.gmra.mxu0 %v3153
      %v3155 = vpop.f32.mrf.mxu0
      %v3156 = vadd.f32 %v3102, %v3155
      %3157 = vdwg.mxu0
      %3158 = vmatpush.msra.mxu0 0.0
      %3159 = vmatpush.msra.mxu0 0.0
      %3160 = vmatpush.msra.mxu0 0.0
      %3161 = vmatpush.msra.mxu0 0.0
      %3162 = vmatpush.msra.mxu0 0.0
      %v3163 = vand.u32 %v1225, 4294901760
      %3164 = vmatpush.msra.mxu0 %v3163
      %v3165 = vand.u32 %v1221, 4294901760
      %3166 = vmatpush.msra.mxu0 %v3165
      %v3167 = vand.u32 %v1217, 4294901760
      %3168 = vmatpush.msra.mxu0 %v3167
      %v3169 = vand.u32 %v1213, 4294901760
      %3170 = vmatpush.msra.mxu0 %v3169
      %v3171 = vand.u32 %v1209, 4294901760
      %3172 = vmatpush.msra.mxu0 %v3171
      %v3173 = vand.u32 %v1205, 4294901760
      %3174 = vmatpush.msra.mxu0 %v3173
      %v3175 = vand.u32 %v1201, 4294901760
      %3176 = vmatpush.msra.mxu0 %v3175
      %v3177 = vand.u32 %v1197, 4294901760
      %3178 = vmatpush.msra.mxu0 %v3177
      %v3179 = vand.u32 %v1193, 4294901760
      %3180 = vmatpush.msra.mxu0 %v3179
      %v3181 = vand.u32 %v1189, 4294901760
      %3182 = vmatpush.msra.mxu0 %v3181
      %v3183 = vand.u32 %v1185, 4294901760
      %3184 = vmatpush.msra.mxu0 %v3183
      %v3185 = vand.u32 %v1337, 4294901760
      %3186 = vmatmul.f32.gmra.mxu0 %v3185
      %v3187 = vpop.f32.mrf.mxu0
      %v3188 = vadd.f32 %v3156, %v3187
      %3189 = vdwg.mxu0
      %v3190 = vand.u32 %v1182, 4294901760
      %3191 = vmatpush.msra.mxu0 %v3190
      %v3192 = vand.u32 %v1178, 4294901760
      %3193 = vmatpush.msra.mxu0 %v3192
      %v3194 = vand.u32 %v1174, 4294901760
      %3195 = vmatpush.msra.mxu0 %v3194
      %v3196 = vand.u32 %v1170, 4294901760
      %3197 = vmatpush.msra.mxu0 %v3196
      %v3198 = vand.u32 %v1166, 4294901760
      %3199 = vmatpush.msra.mxu0 %v3198
      %v3200 = vand.u32 %v1162, 4294901760
      %3201 = vmatpush.msra.mxu0 %v3200
      %v3202 = vand.u32 %v1158, 4294901760
      %3203 = vmatpush.msra.mxu0 %v3202
      %v3204 = vand.u32 %v1154, 4294901760
      %3205 = vmatpush.msra.mxu0 %v3204
      %v3206 = vand.u32 %v1150, 4294901760
      %3207 = vmatpush.msra.mxu0 %v3206
      %v3208 = vand.u32 %v1146, 4294901760
      %3209 = vmatpush.msra.mxu0 %v3208
      %v3210 = vand.u32 %v1142, 4294901760
      %3211 = vmatpush.msra.mxu0 %v3210
      %v3212 = vand.u32 %v1138, 4294901760
      %3213 = vmatpush.msra.mxu0 %v3212
      %v3214 = vand.u32 %v1134, 4294901760
      %3215 = vmatpush.msra.mxu0 %v3214
      %v3216 = vand.u32 %v1130, 4294901760
      %3217 = vmatpush.msra.mxu0 %v3216
      %v3218 = vand.u32 %v1126, 4294901760
      %3219 = vmatpush.msra.mxu0 %v3218
      %v3220 = vand.u32 %v1122, 4294901760
      %3221 = vmatpush.msra.mxu0 %v3220
      %v3222 = vand.u32 %v846, 4294901760
      %v3223 = vsub.f32 %v846, %v3222
      %v3224 = vand.u32 %v3223, 4294901760
      %v3225 = vsub.f32 %v3223, %v3224
      %v3226 = vand.u32 %v3225, 4294901760
      %3227 = vmatmul.f32.gmra.mxu0 %v3226
      %v3228 = vpop.f32.mrf.mxu0
      %v3229 = vadd.f32 0.0, %v3228
      %3230 = vdwg.mxu0
      %v3231 = vand.u32 %v1182, 4294901760
      %v3232 = vsub.f32 %v1182, %v3231
      %v3233 = vand.u32 %v3232, 4294901760
      %v3234 = vsub.f32 %v3232, %v3233
      %v3235 = vand.u32 %v3234, 4294901760
      %3236 = vmatpush.msra.mxu0 %v3235
      %v3237 = vand.u32 %v1178, 4294901760
      %v3238 = vsub.f32 %v1178, %v3237
      %v3239 = vand.u32 %v3238, 4294901760
      %v3240 = vsub.f32 %v3238, %v3239
      %v3241 = vand.u32 %v3240, 4294901760
      %3242 = vmatpush.msra.mxu0 %v3241
      %v3243 = vand.u32 %v1174, 4294901760
      %v3244 = vsub.f32 %v1174, %v3243
      %v3245 = vand.u32 %v3244, 4294901760
      %v3246 = vsub.f32 %v3244, %v3245
      %v3247 = vand.u32 %v3246, 4294901760
      %3248 = vmatpush.msra.mxu0 %v3247
      %v3249 = vand.u32 %v1170, 4294901760
      %v3250 = vsub.f32 %v1170, %v3249
      %v3251 = vand.u32 %v3250, 4294901760
      %v3252 = vsub.f32 %v3250, %v3251
      %v3253 = vand.u32 %v3252, 4294901760
      %3254 = vmatpush.msra.mxu0 %v3253
      %v3255 = vand.u32 %v1166, 4294901760
      %v3256 = vsub.f32 %v1166, %v3255
      %v3257 = vand.u32 %v3256, 4294901760
      %v3258 = vsub.f32 %v3256, %v3257
      %v3259 = vand.u32 %v3258, 4294901760
      %3260 = vmatpush.msra.mxu0 %v3259
      %v3261 = vand.u32 %v1162, 4294901760
      %v3262 = vsub.f32 %v1162, %v3261
      %v3263 = vand.u32 %v3262, 4294901760
      %v3264 = vsub.f32 %v3262, %v3263
      %v3265 = vand.u32 %v3264, 4294901760
      %3266 = vmatpush.msra.mxu0 %v3265
      %v3267 = vand.u32 %v1158, 4294901760
      %v3268 = vsub.f32 %v1158, %v3267
      %v3269 = vand.u32 %v3268, 4294901760
      %v3270 = vsub.f32 %v3268, %v3269
      %v3271 = vand.u32 %v3270, 4294901760
      %3272 = vmatpush.msra.mxu0 %v3271
      %v3273 = vand.u32 %v1154, 4294901760
      %v3274 = vsub.f32 %v1154, %v3273
      %v3275 = vand.u32 %v3274, 4294901760
      %v3276 = vsub.f32 %v3274, %v3275
      %v3277 = vand.u32 %v3276, 4294901760
      %3278 = vmatpush.msra.mxu0 %v3277
      %v3279 = vand.u32 %v1150, 4294901760
      %v3280 = vsub.f32 %v1150, %v3279
      %v3281 = vand.u32 %v3280, 4294901760
      %v3282 = vsub.f32 %v3280, %v3281
      %v3283 = vand.u32 %v3282, 4294901760
      %3284 = vmatpush.msra.mxu0 %v3283
      %v3285 = vand.u32 %v1146, 4294901760
      %v3286 = vsub.f32 %v1146, %v3285
      %v3287 = vand.u32 %v3286, 4294901760
      %v3288 = vsub.f32 %v3286, %v3287
      %v3289 = vand.u32 %v3288, 4294901760
      %3290 = vmatpush.msra.mxu0 %v3289
      %v3291 = vand.u32 %v1142, 4294901760
      %v3292 = vsub.f32 %v1142, %v3291
      %v3293 = vand.u32 %v3292, 4294901760
      %v3294 = vsub.f32 %v3292, %v3293
      %v3295 = vand.u32 %v3294, 4294901760
      %3296 = vmatpush.msra.mxu0 %v3295
      %v3297 = vand.u32 %v1138, 4294901760
      %v3298 = vsub.f32 %v1138, %v3297
      %v3299 = vand.u32 %v3298, 4294901760
      %v3300 = vsub.f32 %v3298, %v3299
      %v3301 = vand.u32 %v3300, 4294901760
      %3302 = vmatpush.msra.mxu0 %v3301
      %v3303 = vand.u32 %v1134, 4294901760
      %v3304 = vsub.f32 %v1134, %v3303
      %v3305 = vand.u32 %v3304, 4294901760
      %v3306 = vsub.f32 %v3304, %v3305
      %v3307 = vand.u32 %v3306, 4294901760
      %3308 = vmatpush.msra.mxu0 %v3307
      %v3309 = vand.u32 %v1130, 4294901760
      %v3310 = vsub.f32 %v1130, %v3309
      %v3311 = vand.u32 %v3310, 4294901760
      %v3312 = vsub.f32 %v3310, %v3311
      %v3313 = vand.u32 %v3312, 4294901760
      %3314 = vmatpush.msra.mxu0 %v3313
      %v3315 = vand.u32 %v1126, 4294901760
      %v3316 = vsub.f32 %v1126, %v3315
      %v3317 = vand.u32 %v3316, 4294901760
      %v3318 = vsub.f32 %v3316, %v3317
      %v3319 = vand.u32 %v3318, 4294901760
      %3320 = vmatpush.msra.mxu0 %v3319
      %v3321 = vand.u32 %v1122, 4294901760
      %v3322 = vsub.f32 %v1122, %v3321
      %v3323 = vand.u32 %v3322, 4294901760
      %v3324 = vsub.f32 %v3322, %v3323
      %v3325 = vand.u32 %v3324, 4294901760
      %3326 = vmatpush.msra.mxu0 %v3325
      %v3327 = vand.u32 %v846, 4294901760
      %3328 = vmatmul.f32.gmra.mxu0 %v3327
      %v3329 = vpop.f32.mrf.mxu0
      %v3330 = vadd.f32 %v3229, %v3329
      %3331 = vdwg.mxu0
      %v3332 = vand.u32 %v1182, 4294901760
      %v3333 = vsub.f32 %v1182, %v3332
      %3334 = vmatpush.msra.mxu0 %v3333
      %v3335 = vand.u32 %v1178, 4294901760
      %v3336 = vsub.f32 %v1178, %v3335
      %3337 = vmatpush.msra.mxu0 %v3336
      %v3338 = vand.u32 %v1174, 4294901760
      %v3339 = vsub.f32 %v1174, %v3338
      %3340 = vmatpush.msra.mxu0 %v3339
      %v3341 = vand.u32 %v1170, 4294901760
      %v3342 = vsub.f32 %v1170, %v3341
      %3343 = vmatpush.msra.mxu0 %v3342
      %v3344 = vand.u32 %v1166, 4294901760
      %v3345 = vsub.f32 %v1166, %v3344
      %3346 = vmatpush.msra.mxu0 %v3345
      %v3347 = vand.u32 %v1162, 4294901760
      %v3348 = vsub.f32 %v1162, %v3347
      %3349 = vmatpush.msra.mxu0 %v3348
      %v3350 = vand.u32 %v1158, 4294901760
      %v3351 = vsub.f32 %v1158, %v3350
      %3352 = vmatpush.msra.mxu0 %v3351
      %v3353 = vand.u32 %v1154, 4294901760
      %v3354 = vsub.f32 %v1154, %v3353
      %3355 = vmatpush.msra.mxu0 %v3354
      %v3356 = vand.u32 %v1150, 4294901760
      %v3357 = vsub.f32 %v1150, %v3356
      %3358 = vmatpush.msra.mxu0 %v3357
      %v3359 = vand.u32 %v1146, 4294901760
      %v3360 = vsub.f32 %v1146, %v3359
      %3361 = vmatpush.msra.mxu0 %v3360
      %v3362 = vand.u32 %v1142, 4294901760
      %v3363 = vsub.f32 %v1142, %v3362
      %3364 = vmatpush.msra.mxu0 %v3363
      %v3365 = vand.u32 %v1138, 4294901760
      %v3366 = vsub.f32 %v1138, %v3365
      %3367 = vmatpush.msra.mxu0 %v3366
      %v3368 = vand.u32 %v1134, 4294901760
      %v3369 = vsub.f32 %v1134, %v3368
      %3370 = vmatpush.msra.mxu0 %v3369
      %v3371 = vand.u32 %v1130, 4294901760
      %v3372 = vsub.f32 %v1130, %v3371
      %3373 = vmatpush.msra.mxu0 %v3372
      %v3374 = vand.u32 %v1126, 4294901760
      %v3375 = vsub.f32 %v1126, %v3374
      %3376 = vmatpush.msra.mxu0 %v3375
      %v3377 = vand.u32 %v1122, 4294901760
      %v3378 = vsub.f32 %v1122, %v3377
      %3379 = vmatpush.msra.mxu0 %v3378
      %v3380 = vand.u32 %v846, 4294901760
      %v3381 = vsub.f32 %v846, %v3380
      %3382 = vmatmul.f32.gmra.mxu0 %v3381
      %v3383 = vpop.f32.mrf.mxu0
      %v3384 = vadd.f32 %v3330, %v3383
      %3385 = vdwg.mxu0
      %v3386 = vand.u32 %v1182, 4294901760
      %3387 = vmatpush.msra.mxu0 %v3386
      %v3388 = vand.u32 %v1178, 4294901760
      %3389 = vmatpush.msra.mxu0 %v3388
      %v3390 = vand.u32 %v1174, 4294901760
      %3391 = vmatpush.msra.mxu0 %v3390
      %v3392 = vand.u32 %v1170, 4294901760
      %3393 = vmatpush.msra.mxu0 %v3392
      %v3394 = vand.u32 %v1166, 4294901760
      %3395 = vmatpush.msra.mxu0 %v3394
      %v3396 = vand.u32 %v1162, 4294901760
      %3397 = vmatpush.msra.mxu0 %v3396
      %v3398 = vand.u32 %v1158, 4294901760
      %3399 = vmatpush.msra.mxu0 %v3398
      %v3400 = vand.u32 %v1154, 4294901760
      %3401 = vmatpush.msra.mxu0 %v3400
      %v3402 = vand.u32 %v1150, 4294901760
      %3403 = vmatpush.msra.mxu0 %v3402
      %v3404 = vand.u32 %v1146, 4294901760
      %3405 = vmatpush.msra.mxu0 %v3404
      %v3406 = vand.u32 %v1142, 4294901760
      %3407 = vmatpush.msra.mxu0 %v3406
      %v3408 = vand.u32 %v1138, 4294901760
      %3409 = vmatpush.msra.mxu0 %v3408
      %v3410 = vand.u32 %v1134, 4294901760
      %3411 = vmatpush.msra.mxu0 %v3410
      %v3412 = vand.u32 %v1130, 4294901760
      %3413 = vmatpush.msra.mxu0 %v3412
      %v3414 = vand.u32 %v1126, 4294901760
      %3415 = vmatpush.msra.mxu0 %v3414
      %v3416 = vand.u32 %v1122, 4294901760
      %3417 = vmatpush.msra.mxu0 %v3416
      %v3418 = vand.u32 %v846, 4294901760
      %v3419 = vsub.f32 %v846, %v3418
      %v3420 = vand.u32 %v3419, 4294901760
      %3421 = vmatmul.f32.gmra.mxu0 %v3420
      %v3422 = vpop.f32.mrf.mxu0
      %v3423 = vadd.f32 %v3384, %v3422
      %3424 = vdwg.mxu0
      %v3425 = vand.u32 %v1182, 4294901760
      %v3426 = vsub.f32 %v1182, %v3425
      %v3427 = vand.u32 %v3426, 4294901760
      %3428 = vmatpush.msra.mxu0 %v3427
      %v3429 = vand.u32 %v1178, 4294901760
      %v3430 = vsub.f32 %v1178, %v3429
      %v3431 = vand.u32 %v3430, 4294901760
      %3432 = vmatpush.msra.mxu0 %v3431
      %v3433 = vand.u32 %v1174, 4294901760
      %v3434 = vsub.f32 %v1174, %v3433
      %v3435 = vand.u32 %v3434, 4294901760
      %3436 = vmatpush.msra.mxu0 %v3435
      %v3437 = vand.u32 %v1170, 4294901760
      %v3438 = vsub.f32 %v1170, %v3437
      %v3439 = vand.u32 %v3438, 4294901760
      %3440 = vmatpush.msra.mxu0 %v3439
      %v3441 = vand.u32 %v1166, 4294901760
      %v3442 = vsub.f32 %v1166, %v3441
      %v3443 = vand.u32 %v3442, 4294901760
      %3444 = vmatpush.msra.mxu0 %v3443
      %v3445 = vand.u32 %v1162, 4294901760
      %v3446 = vsub.f32 %v1162, %v3445
      %v3447 = vand.u32 %v3446, 4294901760
      %3448 = vmatpush.msra.mxu0 %v3447
      %v3449 = vand.u32 %v1158, 4294901760
      %v3450 = vsub.f32 %v1158, %v3449
      %v3451 = vand.u32 %v3450, 4294901760
      %3452 = vmatpush.msra.mxu0 %v3451
      %v3453 = vand.u32 %v1154, 4294901760
      %v3454 = vsub.f32 %v1154, %v3453
      %v3455 = vand.u32 %v3454, 4294901760
      %3456 = vmatpush.msra.mxu0 %v3455
      %v3457 = vand.u32 %v1150, 4294901760
      %v3458 = vsub.f32 %v1150, %v3457
      %v3459 = vand.u32 %v3458, 4294901760
      %3460 = vmatpush.msra.mxu0 %v3459
      %v3461 = vand.u32 %v1146, 4294901760
      %v3462 = vsub.f32 %v1146, %v3461
      %v3463 = vand.u32 %v3462, 4294901760
      %3464 = vmatpush.msra.mxu0 %v3463
      %v3465 = vand.u32 %v1142, 4294901760
      %v3466 = vsub.f32 %v1142, %v3465
      %v3467 = vand.u32 %v3466, 4294901760
      %3468 = vmatpush.msra.mxu0 %v3467
      %v3469 = vand.u32 %v1138, 4294901760
      %v3470 = vsub.f32 %v1138, %v3469
      %v3471 = vand.u32 %v3470, 4294901760
      %3472 = vmatpush.msra.mxu0 %v3471
      %v3473 = vand.u32 %v1134, 4294901760
      %v3474 = vsub.f32 %v1134, %v3473
      %v3475 = vand.u32 %v3474, 4294901760
      %3476 = vmatpush.msra.mxu0 %v3475
      %v3477 = vand.u32 %v1130, 4294901760
      %v3478 = vsub.f32 %v1130, %v3477
      %v3479 = vand.u32 %v3478, 4294901760
      %3480 = vmatpush.msra.mxu0 %v3479
      %v3481 = vand.u32 %v1126, 4294901760
      %v3482 = vsub.f32 %v1126, %v3481
      %v3483 = vand.u32 %v3482, 4294901760
      %3484 = vmatpush.msra.mxu0 %v3483
      %v3485 = vand.u32 %v1122, 4294901760
      %v3486 = vsub.f32 %v1122, %v3485
      %v3487 = vand.u32 %v3486, 4294901760
      %3488 = vmatpush.msra.mxu0 %v3487
      %v3489 = vand.u32 %v846, 4294901760
      %3490 = vmatmul.f32.gmra.mxu0 %v3489
      %v3491 = vpop.f32.mrf.mxu0
      %v3492 = vadd.f32 %v3423, %v3491
      %3493 = vdwg.mxu0
      %v3494 = vand.u32 %v1182, 4294901760
      %3495 = vmatpush.msra.mxu0 %v3494
      %v3496 = vand.u32 %v1178, 4294901760
      %3497 = vmatpush.msra.mxu0 %v3496
      %v3498 = vand.u32 %v1174, 4294901760
      %3499 = vmatpush.msra.mxu0 %v3498
      %v3500 = vand.u32 %v1170, 4294901760
      %3501 = vmatpush.msra.mxu0 %v3500
      %v3502 = vand.u32 %v1166, 4294901760
      %3503 = vmatpush.msra.mxu0 %v3502
      %v3504 = vand.u32 %v1162, 4294901760
      %3505 = vmatpush.msra.mxu0 %v3504
      %v3506 = vand.u32 %v1158, 4294901760
      %3507 = vmatpush.msra.mxu0 %v3506
      %v3508 = vand.u32 %v1154, 4294901760
      %3509 = vmatpush.msra.mxu0 %v3508
      %v3510 = vand.u32 %v1150, 4294901760
      %3511 = vmatpush.msra.mxu0 %v3510
      %v3512 = vand.u32 %v1146, 4294901760
      %3513 = vmatpush.msra.mxu0 %v3512
      %v3514 = vand.u32 %v1142, 4294901760
      %3515 = vmatpush.msra.mxu0 %v3514
      %v3516 = vand.u32 %v1138, 4294901760
      %3517 = vmatpush.msra.mxu0 %v3516
      %v3518 = vand.u32 %v1134, 4294901760
      %3519 = vmatpush.msra.mxu0 %v3518
      %v3520 = vand.u32 %v1130, 4294901760
      %3521 = vmatpush.msra.mxu0 %v3520
      %v3522 = vand.u32 %v1126, 4294901760
      %3523 = vmatpush.msra.mxu0 %v3522
      %v3524 = vand.u32 %v1122, 4294901760
      %3525 = vmatpush.msra.mxu0 %v3524
      %v3526 = vand.u32 %v846, 4294901760
      %3527 = vmatmul.f32.gmra.mxu0 %v3526
      %v3528 = vpop.f32.mrf.mxu0
      %v3529 = vadd.f32 %v3492, %v3528
      %3530 = vdwg.mxu0
      %3531 = vmatpush.msra.mxu0 0.0
      %3532 = vmatpush.msra.mxu0 0.0
      %3533 = vmatpush.msra.mxu0 0.0
      %3534 = vmatpush.msra.mxu0 0.0
      %3535 = vmatpush.msra.mxu0 0.0
      %v3536 = vand.u32 %v1226, 4294901760
      %3537 = vmatpush.msra.mxu0 %v3536
      %v3538 = vand.u32 %v1222, 4294901760
      %3539 = vmatpush.msra.mxu0 %v3538
      %v3540 = vand.u32 %v1218, 4294901760
      %3541 = vmatpush.msra.mxu0 %v3540
      %v3542 = vand.u32 %v1214, 4294901760
      %3543 = vmatpush.msra.mxu0 %v3542
      %v3544 = vand.u32 %v1210, 4294901760
      %3545 = vmatpush.msra.mxu0 %v3544
      %v3546 = vand.u32 %v1206, 4294901760
      %3547 = vmatpush.msra.mxu0 %v3546
      %v3548 = vand.u32 %v1202, 4294901760
      %3549 = vmatpush.msra.mxu0 %v3548
      %v3550 = vand.u32 %v1198, 4294901760
      %3551 = vmatpush.msra.mxu0 %v3550
      %v3552 = vand.u32 %v1194, 4294901760
      %3553 = vmatpush.msra.mxu0 %v3552
      %v3554 = vand.u32 %v1190, 4294901760
      %3555 = vmatpush.msra.mxu0 %v3554
      %v3556 = vand.u32 %v1186, 4294901760
      %3557 = vmatpush.msra.mxu0 %v3556
      %v3558 = vand.u32 %v1337, 4294901760
      %v3559 = vsub.f32 %v1337, %v3558
      %v3560 = vand.u32 %v3559, 4294901760
      %v3561 = vsub.f32 %v3559, %v3560
      %v3562 = vand.u32 %v3561, 4294901760
      %3563 = vmatmul.f32.gmra.mxu0 %v3562
      %v3564 = vpop.f32.mrf.mxu0
      %v3565 = vadd.f32 %v3529, %v3564
      %3566 = vdwg.mxu0
      %3567 = vmatpush.msra.mxu0 0.0
      %3568 = vmatpush.msra.mxu0 0.0
      %3569 = vmatpush.msra.mxu0 0.0
      %3570 = vmatpush.msra.mxu0 0.0
      %3571 = vmatpush.msra.mxu0 0.0
      %v3572 = vand.u32 %v1226, 4294901760
      %v3573 = vsub.f32 %v1226, %v3572
      %v3574 = vand.u32 %v3573, 4294901760
      %v3575 = vsub.f32 %v3573, %v3574
      %v3576 = vand.u32 %v3575, 4294901760
      %3577 = vmatpush.msra.mxu0 %v3576
      %v3578 = vand.u32 %v1222, 4294901760
      %v3579 = vsub.f32 %v1222, %v3578
      %v3580 = vand.u32 %v3579, 4294901760
      %v3581 = vsub.f32 %v3579, %v3580
      %v3582 = vand.u32 %v3581, 4294901760
      %3583 = vmatpush.msra.mxu0 %v3582
      %v3584 = vand.u32 %v1218, 4294901760
      %v3585 = vsub.f32 %v1218, %v3584
      %v3586 = vand.u32 %v3585, 4294901760
      %v3587 = vsub.f32 %v3585, %v3586
      %v3588 = vand.u32 %v3587, 4294901760
      %3589 = vmatpush.msra.mxu0 %v3588
      %v3590 = vand.u32 %v1214, 4294901760
      %v3591 = vsub.f32 %v1214, %v3590
      %v3592 = vand.u32 %v3591, 4294901760
      %v3593 = vsub.f32 %v3591, %v3592
      %v3594 = vand.u32 %v3593, 4294901760
      %3595 = vmatpush.msra.mxu0 %v3594
      %v3596 = vand.u32 %v1210, 4294901760
      %v3597 = vsub.f32 %v1210, %v3596
      %v3598 = vand.u32 %v3597, 4294901760
      %v3599 = vsub.f32 %v3597, %v3598
      %v3600 = vand.u32 %v3599, 4294901760
      %3601 = vmatpush.msra.mxu0 %v3600
      %v3602 = vand.u32 %v1206, 4294901760
      %v3603 = vsub.f32 %v1206, %v3602
      %v3604 = vand.u32 %v3603, 4294901760
      %v3605 = vsub.f32 %v3603, %v3604
      %v3606 = vand.u32 %v3605, 4294901760
      %3607 = vmatpush.msra.mxu0 %v3606
      %v3608 = vand.u32 %v1202, 4294901760
      %v3609 = vsub.f32 %v1202, %v3608
      %v3610 = vand.u32 %v3609, 4294901760
      %v3611 = vsub.f32 %v3609, %v3610
      %v3612 = vand.u32 %v3611, 4294901760
      %3613 = vmatpush.msra.mxu0 %v3612
      %v3614 = vand.u32 %v1198, 4294901760
      %v3615 = vsub.f32 %v1198, %v3614
      %v3616 = vand.u32 %v3615, 4294901760
      %v3617 = vsub.f32 %v3615, %v3616
      %v3618 = vand.u32 %v3617, 4294901760
      %3619 = vmatpush.msra.mxu0 %v3618
      %v3620 = vand.u32 %v1194, 4294901760
      %v3621 = vsub.f32 %v1194, %v3620
      %v3622 = vand.u32 %v3621, 4294901760
      %v3623 = vsub.f32 %v3621, %v3622
      %v3624 = vand.u32 %v3623, 4294901760
      %3625 = vmatpush.msra.mxu0 %v3624
      %v3626 = vand.u32 %v1190, 4294901760
      %v3627 = vsub.f32 %v1190, %v3626
      %v3628 = vand.u32 %v3627, 4294901760
      %v3629 = vsub.f32 %v3627, %v3628
      %v3630 = vand.u32 %v3629, 4294901760
      %3631 = vmatpush.msra.mxu0 %v3630
      %v3632 = vand.u32 %v1186, 4294901760
      %v3633 = vsub.f32 %v1186, %v3632
      %v3634 = vand.u32 %v3633, 4294901760
      %v3635 = vsub.f32 %v3633, %v3634
      %v3636 = vand.u32 %v3635, 4294901760
      %3637 = vmatpush.msra.mxu0 %v3636
      %v3638 = vand.u32 %v1337, 4294901760
      %3639 = vmatmul.f32.gmra.mxu0 %v3638
      %v3640 = vpop.f32.mrf.mxu0
      %v3641 = vadd.f32 %v3565, %v3640
      %3642 = vdwg.mxu0
      %3643 = vmatpush.msra.mxu0 0.0
      %3644 = vmatpush.msra.mxu0 0.0
      %3645 = vmatpush.msra.mxu0 0.0
      %3646 = vmatpush.msra.mxu0 0.0
      %3647 = vmatpush.msra.mxu0 0.0
      %v3648 = vand.u32 %v1226, 4294901760
      %v3649 = vsub.f32 %v1226, %v3648
      %3650 = vmatpush.msra.mxu0 %v3649
      %v3651 = vand.u32 %v1222, 4294901760
      %v3652 = vsub.f32 %v1222, %v3651
      %3653 = vmatpush.msra.mxu0 %v3652
      %v3654 = vand.u32 %v1218, 4294901760
      %v3655 = vsub.f32 %v1218, %v3654
      %3656 = vmatpush.msra.mxu0 %v3655
      %v3657 = vand.u32 %v1214, 4294901760
      %v3658 = vsub.f32 %v1214, %v3657
      %3659 = vmatpush.msra.mxu0 %v3658
      %v3660 = vand.u32 %v1210, 4294901760
      %v3661 = vsub.f32 %v1210, %v3660
      %3662 = vmatpush.msra.mxu0 %v3661
      %v3663 = vand.u32 %v1206, 4294901760
      %v3664 = vsub.f32 %v1206, %v3663
      %3665 = vmatpush.msra.mxu0 %v3664
      %v3666 = vand.u32 %v1202, 4294901760
      %v3667 = vsub.f32 %v1202, %v3666
      %3668 = vmatpush.msra.mxu0 %v3667
      %v3669 = vand.u32 %v1198, 4294901760
      %v3670 = vsub.f32 %v1198, %v3669
      %3671 = vmatpush.msra.mxu0 %v3670
      %v3672 = vand.u32 %v1194, 4294901760
      %v3673 = vsub.f32 %v1194, %v3672
      %3674 = vmatpush.msra.mxu0 %v3673
      %v3675 = vand.u32 %v1190, 4294901760
      %v3676 = vsub.f32 %v1190, %v3675
      %3677 = vmatpush.msra.mxu0 %v3676
      %v3678 = vand.u32 %v1186, 4294901760
      %v3679 = vsub.f32 %v1186, %v3678
      %3680 = vmatpush.msra.mxu0 %v3679
      %v3681 = vand.u32 %v1337, 4294901760
      %v3682 = vsub.f32 %v1337, %v3681
      %3683 = vmatmul.f32.gmra.mxu0 %v3682
      %v3684 = vpop.f32.mrf.mxu0
      %v3685 = vadd.f32 %v3641, %v3684
      %3686 = vdwg.mxu0
      %3687 = vmatpush.msra.mxu0 0.0
      %3688 = vmatpush.msra.mxu0 0.0
      %3689 = vmatpush.msra.mxu0 0.0
      %3690 = vmatpush.msra.mxu0 0.0
      %3691 = vmatpush.msra.mxu0 0.0
      %v3692 = vand.u32 %v1226, 4294901760
      %3693 = vmatpush.msra.mxu0 %v3692
      %v3694 = vand.u32 %v1222, 4294901760
      %3695 = vmatpush.msra.mxu0 %v3694
      %v3696 = vand.u32 %v1218, 4294901760
      %3697 = vmatpush.msra.mxu0 %v3696
      %v3698 = vand.u32 %v1214, 4294901760
      %3699 = vmatpush.msra.mxu0 %v3698
      %v3700 = vand.u32 %v1210, 4294901760
      %3701 = vmatpush.msra.mxu0 %v3700
      %v3702 = vand.u32 %v1206, 4294901760
      %3703 = vmatpush.msra.mxu0 %v3702
      %v3704 = vand.u32 %v1202, 4294901760
      %3705 = vmatpush.msra.mxu0 %v3704
      %v3706 = vand.u32 %v1198, 4294901760
      %3707 = vmatpush.msra.mxu0 %v3706
      %v3708 = vand.u32 %v1194, 4294901760
      %3709 = vmatpush.msra.mxu0 %v3708
      %v3710 = vand.u32 %v1190, 4294901760
      %3711 = vmatpush.msra.mxu0 %v3710
      %v3712 = vand.u32 %v1186, 4294901760
      %3713 = vmatpush.msra.mxu0 %v3712
      %v3714 = vand.u32 %v1337, 4294901760
      %v3715 = vsub.f32 %v1337, %v3714
      %v3716 = vand.u32 %v3715, 4294901760
      %3717 = vmatmul.f32.gmra.mxu0 %v3716
      %v3718 = vpop.f32.mrf.mxu0
      %v3719 = vadd.f32 %v3685, %v3718
      %3720 = vdwg.mxu0
      %3721 = vmatpush.msra.mxu0 0.0
      %3722 = vmatpush.msra.mxu0 0.0
      %3723 = vmatpush.msra.mxu0 0.0
      %3724 = vmatpush.msra.mxu0 0.0
      %3725 = vmatpush.msra.mxu0 0.0
      %v3726 = vand.u32 %v1226, 4294901760
      %v3727 = vsub.f32 %v1226, %v3726
      %v3728 = vand.u32 %v3727, 4294901760
      %3729 = vmatpush.msra.mxu0 %v3728
      %v3730 = vand.u32 %v1222, 4294901760
      %v3731 = vsub.f32 %v1222, %v3730
      %v3732 = vand.u32 %v3731, 4294901760
      %3733 = vmatpush.msra.mxu0 %v3732
      %v3734 = vand.u32 %v1218, 4294901760
      %v3735 = vsub.f32 %v1218, %v3734
      %v3736 = vand.u32 %v3735, 4294901760
      %3737 = vmatpush.msra.mxu0 %v3736
      %v3738 = vand.u32 %v1214, 4294901760
      %v3739 = vsub.f32 %v1214, %v3738
      %v3740 = vand.u32 %v3739, 4294901760
      %3741 = vmatpush.msra.mxu0 %v3740
      %v3742 = vand.u32 %v1210, 4294901760
      %v3743 = vsub.f32 %v1210, %v3742
      %v3744 = vand.u32 %v3743, 4294901760
      %3745 = vmatpush.msra.mxu0 %v3744
      %v3746 = vand.u32 %v1206, 4294901760
      %v3747 = vsub.f32 %v1206, %v3746
      %v3748 = vand.u32 %v3747, 4294901760
      %3749 = vmatpush.msra.mxu0 %v3748
      %v3750 = vand.u32 %v1202, 4294901760
      %v3751 = vsub.f32 %v1202, %v3750
      %v3752 = vand.u32 %v3751, 4294901760
      %3753 = vmatpush.msra.mxu0 %v3752
      %v3754 = vand.u32 %v1198, 4294901760
      %v3755 = vsub.f32 %v1198, %v3754
      %v3756 = vand.u32 %v3755, 4294901760
      %3757 = vmatpush.msra.mxu0 %v3756
      %v3758 = vand.u32 %v1194, 4294901760
      %v3759 = vsub.f32 %v1194, %v3758
      %v3760 = vand.u32 %v3759, 4294901760
      %3761 = vmatpush.msra.mxu0 %v3760
      %v3762 = vand.u32 %v1190, 4294901760
      %v3763 = vsub.f32 %v1190, %v3762
      %v3764 = vand.u32 %v3763, 4294901760
      %3765 = vmatpush.msra.mxu0 %v3764
      %v3766 = vand.u32 %v1186, 4294901760
      %v3767 = vsub.f32 %v1186, %v3766
      %v3768 = vand.u32 %v3767, 4294901760
      %3769 = vmatpush.msra.mxu0 %v3768
      %v3770 = vand.u32 %v1337, 4294901760
      %3771 = vmatmul.f32.gmra.mxu0 %v3770
      %v3772 = vpop.f32.mrf.mxu0
      %v3773 = vadd.f32 %v3719, %v3772
      %3774 = vdwg.mxu0
      %3775 = vmatpush.msra.mxu0 0.0
      %3776 = vmatpush.msra.mxu0 0.0
      %3777 = vmatpush.msra.mxu0 0.0
      %3778 = vmatpush.msra.mxu0 0.0
      %3779 = vmatpush.msra.mxu0 0.0
      %v3780 = vand.u32 %v1226, 4294901760
      %3781 = vmatpush.msra.mxu0 %v3780
      %v3782 = vand.u32 %v1222, 4294901760
      %3783 = vmatpush.msra.mxu0 %v3782
      %v3784 = vand.u32 %v1218, 4294901760
      %3785 = vmatpush.msra.mxu0 %v3784
      %v3786 = vand.u32 %v1214, 4294901760
      %3787 = vmatpush.msra.mxu0 %v3786
      %v3788 = vand.u32 %v1210, 4294901760
      %3789 = vmatpush.msra.mxu0 %v3788
      %v3790 = vand.u32 %v1206, 4294901760
      %3791 = vmatpush.msra.mxu0 %v3790
      %v3792 = vand.u32 %v1202, 4294901760
      %3793 = vmatpush.msra.mxu0 %v3792
      %v3794 = vand.u32 %v1198, 4294901760
      %3795 = vmatpush.msra.mxu0 %v3794
      %v3796 = vand.u32 %v1194, 4294901760
      %3797 = vmatpush.msra.mxu0 %v3796
      %v3798 = vand.u32 %v1190, 4294901760
      %3799 = vmatpush.msra.mxu0 %v3798
      %v3800 = vand.u32 %v1186, 4294901760
      %3801 = vmatpush.msra.mxu0 %v3800
      %v3802 = vand.u32 %v1337, 4294901760
      %3803 = vmatmul.f32.gmra.mxu0 %v3802
      %v3804 = vpop.f32.mrf.mxu0
      %v3805 = vadd.f32 %v3773, %v3804
      %3806 = vdwg.mxu0
      %3807 = vst [vmem:[%s337] sm:$0xff] %v1954
      %3808 = vst [vmem:[%s337 + $0x8] sm:$0xff] %v2571
      %3809 = vst [vmem:[%s337 + $0x10] sm:$0xff] %v3188
      %3810 = vst [vmem:[%s337 + $0x18] sm:$0xff] %v3805
      %v3811 = vld [vmem:[%s331] sm:$0xf]
      %v3813 = vperm.slane %v3811, 0
      %v3814 = vperm.slane %v3811, 1
      %v3815 = vperm.slane %v3811, 2
      %v3816 = vperm.slane %v3811, 3
      %v3821 = vmul.f32 %v1954, %v3813
      %v3822 = vmul.f32 %v2571, %v3814
      %v3823 = vmul.f32 %v3188, %v3815
      %v3824 = vmul.f32 %v3805, %v3816
      %v3825 = vadd.f32 %v3821, %v3822
      %v3826 = vadd.f32 %v3825, %v3823
      %v3827 = vadd.f32 %v3826, %v3824
      %3828 = vadd.xlane.f32.xlu0 %v3827
      %v3829 = vpop.xlane.xlu0 %3828
      %v3830 = vmul.f32 %v1954, %v1954
      %v3831 = vmul.f32 %v2571, %v2571
      %v3832 = vmul.f32 %v3188, %v3188
      %v3833 = vmul.f32 %v3805, %v3805
      %v3834 = vmul.f32 %v3830, %v3813
      %v3835 = vmul.f32 %v3831, %v3814
      %v3836 = vmul.f32 %v3832, %v3815
      %v3837 = vmul.f32 %v3833, %v3816
      %v3838 = vadd.f32 %v3834, %v3835
      %v3839 = vadd.f32 %v3838, %v3836
      %v3840 = vadd.f32 %v3839, %v3837
      %3841 = vadd.xlane.f32.xlu0 %v3840
      %v3842 = vpop.xlane.xlu0 %3841
      %vm3843 = vcmask 7168
      %v3844 = vsel %vm3843, %v3829, %v3842
      %vm3845 = vcmask 15360
      %3846 = vst.msk [vmem:[%s342] sm:$0xff] %vm3845, %v3844
      %s3847 = smul.u32 4, %s18
      %p3848 = scmp.lt.s32.totalorder %s3847, 15
      %s3849 = scalar_select %p3848, %s3847, 15
      %s3850 = smul.addr %s3849, 8
      %s3851 = scalar_lea.vmem %s5, %s3850
      %p3852 = scmp.lt.s32.totalorder %s18, 3
      %s3853 = scalar_select %p3852, %s18, 3
      %s3854 = smul.addr %s3853, 8
      %s3855 = scalar_lea.vmem %s6, %s3854
      // Predicated region
      $region41: #{simple_rb_forward.3} parent=39 // pred_check
        %p3856 = pneg %p165
      $region42: #{simple_rb_forward.3} parent=39 // pred_check_branch
        %3858 = sbr.rel (%p3856) target = $region44
      $region43: #{simple_rb_forward.3} parent=39 // pred_region
        %s3859 = smul.u32 4, %s18
      $region44: #{simple_rb_forward.3} parent=39 // pred_fallthru
        _
      // Predicated region
      $region45: #{simple_rb_forward.3} parent=39 // pred_check
        %p3860 = pneg %p191
      $region46: #{simple_rb_forward.3} parent=39 // pred_check_branch
        %3862 = sbr.rel (%p3860) target = $region48
      $region47: #{simple_rb_forward.3} parent=39 // pred_region
        _
      $region48: #{simple_rb_forward.3} parent=39 // pred_fallthru
        _
    $region40: #{simple_rb_forward.3} parent=5 // pred_fallthru
      _
    %p3863 = scmp.le.s32.totalorder 2, %s13
    // Predicated region
    $region49: #{simple_rb_forward.3} parent=5 // pred_check
      %p3864 = pneg %p3863
    $region50: #{simple_rb_forward.3} parent=5 // pred_check_branch
      %3866 = sbr.rel (%p3864) target = $region52
    $region51: #{simple_rb_forward.3} parent=5 // pred_region
      %s3867 = ssub.s32 %s13, 2
      // Predicated region
      $region53: #{simple_rb_forward.3} parent=51 // pred_check
        %p3868 = pneg %p171
      $region54: #{simple_rb_forward.3} parent=51 // pred_check_branch
        %3870 = sbr.rel (%p3868) target = $region56
      $region55: #{simple_rb_forward.3} parent=51 // pred_region
        %s3871 = smul.u32 4, %s19
        %p3872 = scmp.lt.s32.totalorder %s3871, 15
        %s3873 = scalar_select %p3872, %s3871, 15
        %s3874 = smul.addr %s3873, 8
        %s3875 = scalar_lea.vmem %s5, %s3874
      $region56: #{simple_rb_forward.3} parent=51 // pred_fallthru
        _
      // Predicated region
      $region57: #{simple_rb_forward.3} parent=51 // pred_check
        %p3876 = pneg %p197
      $region58: #{simple_rb_forward.3} parent=51 // pred_check_branch
        %3878 = sbr.rel (%p3876) target = $region60
      $region59: #{simple_rb_forward.3} parent=51 // pred_region
        %p3879 = scmp.lt.s32.totalorder %s19, 3
        %s3880 = scalar_select %p3879, %s19, 3
        %s3881 = smul.addr %s3880, 8
        %s3882 = scalar_lea.vmem %s6, %s3881
      $region60: #{simple_rb_forward.3} parent=51 // pred_fallthru
        _
    $region52: #{simple_rb_forward.3} parent=5 // pred_fallthru
      _
  $region6: #{simple_rb_forward.3} parent=0 // loop_footer
    %s17 = sadd.s32 1, %s13
  $region7: #{simple_rb_forward.3} parent=0 // loop_footer_branch
    %12 = sbr.rel target = $region3
  $region8: #{simple_rb_forward.3} parent=0 // loop_exit
    _

// kernel: simple_rb_forward.4
$region0: #{simple_rb_forward.4}
  #allocation0 [shape = 'u32[]', space=smem, size = 0x4, offset = 0x4, fixed_abs, tag = 'smem constant byte address 0x4 - core index']
  #allocation1 [shape = 'u32[72,128]{1,0:T(1,128)}', space=vmem, size = 0x9000, scoped, tag = 'internal scratch']
  %s0 = inlined_call_operand.vmem [shape: f32[8,216], index: 0, kind: input, shape index: {}]
  %s1 = inlined_call_operand.vmem [shape: f32[8,1], index: 1, kind: input, shape index: {}]
  %s2 = inlined_call_operand.vmem [shape: f32[8,1], index: 2, kind: input, shape index: {}]
  %s3 = inlined_call_operand.vmem [shape: f32[8,3072], index: 3, kind: input, shape index: {}, may-alias: {3,4,5}]
  %s4 = inlined_call_operand.vmem [shape: f32[8,3072], index: 4, kind: input, shape index: {}, may-alias: {3,4,5}]
  %s5 = inlined_call_operand.vmem [shape: f32[8,3072], index: 5, kind: input, shape index: {}, may-alias: {3,4,5}]
  %s6 = inlined_call_operand.vmem [shape: f32[1,3072], index: 6, kind: input, shape index: {}, may-alias: {6,7,8}]
  %s7 = inlined_call_operand.vmem [shape: f32[1,3072], index: 7, kind: input, shape index: {}, may-alias: {6,7,8}]
  %s8 = inlined_call_operand.vmem [shape: f32[1,3072], index: 8, kind: input, shape index: {}, may-alias: {6,7,8}]
  %s9 = inlined_call_operand.vmem [shape: f32[8,2048], index: 9, kind: output, shape index: {0}]
  %s10 = inlined_call_operand.vmem [shape: f32[4,8,2], index: 10, kind: output, shape index: {1}]
  %11 = xla_tuple %s9, %s10
  %s12 = sld [smem:[#allocation0]]
  $region77: #{simple_rb_forward.4} parent=0
    _
  %s14 = ssub.s32 1, %s12
  %s15 = scalar_select 0, %s14, %s12
  loop: start=0, step=1, limit=6
  $region2: #{simple_rb_forward.4} parent=0 // loop_pre_header
    _
  $region3: #{simple_rb_forward.4} parent=0 // loop_header
    %s17 = sphi 0, %s21
    %p18 = scmp.ge.s32.totalorder %s17, 6
    %s25 = sphi 0, %s25
    %s27 = sphi 0, %s25
    %s28 = sphi 0, %s27
    %s42 = sphi 0, %s28
    %s46 = sphi 0, %s46
    %s48 = sphi 0, %s46
    %s49 = sphi 0, %s48
    %s63 = sphi 0, %s49
    %s67 = sphi 0, %s67
    %s69 = sphi 0, %s67
    %s70 = sphi 0, %s69
    %s84 = sphi 0, %s70
    %s90 = sphi 0, %s92
    %s93 = sphi 0, %s90
    %s94 = sphi 0, %s93
    %s110 = sphi 0, %s94
    %s118 = sphi 0, %s120
    %s121 = sphi 0, %s118
    %s122 = sphi 0, %s121
    %s138 = sphi 0, %s122
    %s146 = sphi 0, %s148
    %s149 = sphi 0, %s146
    %s150 = sphi 0, %s149
    %s166 = sphi 0, %s150
    %s172 = sphi 0, %s174
    %s175 = sphi 0, %s172
    %s176 = sphi 0, %s175
    %s192 = sphi 0, %s176
    %s200 = sphi 0, %s202
    %s203 = sphi 0, %s200
    %s204 = sphi 0, %s203
    %s220 = sphi 0, %s204
    %s228 = sphi 0, %s230
    %s231 = sphi 0, %s228
    %s232 = sphi 0, %s231
    %s248 = sphi 0, %s232
    %s254 = sphi 0, %s256
    %s257 = sphi 0, %s254
    %s258 = sphi 0, %s257
    %s274 = sphi 0, %s258
    %s280 = sphi 0, %s282
    %s283 = sphi 0, %s280
    %s284 = sphi 0, %s283
    %s300 = sphi 0, %s284
  $region4: #{simple_rb_forward.4} parent=0 // loop_header_branch
    %20 = sbr.rel (%p18) target = $region8
  $region5: #{simple_rb_forward.4} parent=0 // loop_body
    %s22 = ssub.s32 %s17, 1
    %s23 = ssub.s32 %s17, 2
    %s24 = sadd.s32 %s17, 1
    %s26 = sadd.s32 %s25, 1
    %p29 = scmp.eq.s32.totalorder %s17, 3
    %p30 = scmp.ne.s32.totalorder %s25, %s27
    %p31 = scmp.eq.s32.totalorder %s17, 0
    %p32 = por %p30, %p31
    %p33 = scmp.ne.s32.totalorder %s25, %s27
    %p34 = scmp.eq.s32.totalorder %s22, 3
    %p35 = por %p33, %p34
    %p36 = scmp.ne.s32.totalorder %s27, %s28
    %p37 = scmp.eq.s32.totalorder %s22, 0
    %p38 = por %p36, %p37
    %p39 = scmp.ne.s32.totalorder %s27, %s28
    %p40 = scmp.eq.s32.totalorder %s23, 3
    %p41 = por %p39, %p40
    %p43 = scmp.ne.s32.totalorder %s28, %s42
    %p44 = scmp.eq.s32.totalorder %s23, 0
    %p45 = por %p43, %p44
    %s47 = sadd.s32 %s46, 1
    %p50 = scmp.eq.s32.totalorder %s17, 3
    %p51 = scmp.ne.s32.totalorder %s46, %s48
    %p52 = scmp.eq.s32.totalorder %s17, 0
    %p53 = por %p51, %p52
    %p54 = scmp.ne.s32.totalorder %s46, %s48
    %p55 = scmp.eq.s32.totalorder %s22, 3
    %p56 = por %p54, %p55
    %p57 = scmp.ne.s32.totalorder %s48, %s49
    %p58 = scmp.eq.s32.totalorder %s22, 0
    %p59 = por %p57, %p58
    %p60 = scmp.ne.s32.totalorder %s48, %s49
    %p61 = scmp.eq.s32.totalorder %s23, 3
    %p62 = por %p60, %p61
    %p64 = scmp.ne.s32.totalorder %s49, %s63
    %p65 = scmp.eq.s32.totalorder %s23, 0
    %p66 = por %p64, %p65
    %s68 = sadd.s32 %s67, 1
    %p71 = scmp.eq.s32.totalorder %s17, 3
    %p72 = scmp.ne.s32.totalorder %s67, %s69
    %p73 = scmp.eq.s32.totalorder %s17, 0
    %p74 = por %p72, %p73
    %p75 = scmp.ne.s32.totalorder %s67, %s69
    %p76 = scmp.eq.s32.totalorder %s22, 3
    %p77 = por %p75, %p76
    %p78 = scmp.ne.s32.totalorder %s69, %s70
    %p79 = scmp.eq.s32.totalorder %s22, 0
    %p80 = por %p78, %p79
    %p81 = scmp.ne.s32.totalorder %s69, %s70
    %p82 = scmp.eq.s32.totalorder %s23, 3
    %p83 = por %p81, %p82
    %p85 = scmp.ne.s32.totalorder %s70, %s84
    %p86 = scmp.eq.s32.totalorder %s23, 0
    %p87 = por %p85, %p86
    %s88 = ssub.s32 %s17, %s24
    %p89 = scmp.eq.s32.totalorder %s88, 0
    %s91 = sadd.s32 %s90, 1
    %s92 = scalar_select %p89, %s90, %s91
    %p95 = pneg %p89
    %p96 = scmp.eq.s32.totalorder %s17, 3
    %p97 = por %p95, %p96
    %p98 = scmp.ne.s32.totalorder %s90, %s93
    %p99 = scmp.eq.s32.totalorder %s17, 0
    %p100 = por %p98, %p99
    %p101 = scmp.ne.s32.totalorder %s90, %s93
    %p102 = scmp.eq.s32.totalorder %s22, 3
    %p103 = por %p101, %p102
    %p104 = scmp.ne.s32.totalorder %s93, %s94
    %p105 = scmp.eq.s32.totalorder %s22, 0
    %p106 = por %p104, %p105
    %p107 = scmp.ne.s32.totalorder %s93, %s94
    %p108 = scmp.eq.s32.totalorder %s23, 3
    %p109 = por %p107, %p108
    %p111 = scmp.ne.s32.totalorder %s94, %s110
    %p112 = scmp.eq.s32.totalorder %s23, 0
    %p113 = por %p111, %p112
    %s114 = sadd.s32 %s17, 1
    %s115 = sadd.s32 %s24, 1
    %s116 = ssub.s32 %s114, %s115
    %p117 = scmp.eq.s32.totalorder %s116, 0
    %s119 = sadd.s32 %s118, 1
    %s120 = scalar_select %p117, %s118, %s119
    %p123 = pneg %p117
    %p124 = scmp.eq.s32.totalorder %s17, 3
    %p125 = por %p123, %p124
    %p126 = scmp.ne.s32.totalorder %s118, %s121
    %p127 = scmp.eq.s32.totalorder %s17, 0
    %p128 = por %p126, %p127
    %p129 = scmp.ne.s32.totalorder %s118, %s121
    %p130 = scmp.eq.s32.totalorder %s22, 3
    %p131 = por %p129, %p130
    %p132 = scmp.ne.s32.totalorder %s121, %s122
    %p133 = scmp.eq.s32.totalorder %s22, 0
    %p134 = por %p132, %p133
    %p135 = scmp.ne.s32.totalorder %s121, %s122
    %p136 = scmp.eq.s32.totalorder %s23, 3
    %p137 = por %p135, %p136
    %p139 = scmp.ne.s32.totalorder %s122, %s138
    %p140 = scmp.eq.s32.totalorder %s23, 0
    %p141 = por %p139, %p140
    %s142 = sadd.s32 %s17, 2
    %s143 = sadd.s32 %s24, 2
    %s144 = ssub.s32 %s142, %s143
    %p145 = scmp.eq.s32.totalorder %s144, 0
    %s147 = sadd.s32 %s146, 1
    %s148 = scalar_select %p145, %s146, %s147
    %p151 = pneg %p145
    %p152 = scmp.eq.s32.totalorder %s17, 3
    %p153 = por %p151, %p152
    %p154 = scmp.ne.s32.totalorder %s146, %s149
    %p155 = scmp.eq.s32.totalorder %s17, 0
    %p156 = por %p154, %p155
    %p157 = scmp.ne.s32.totalorder %s146, %s149
    %p158 = scmp.eq.s32.totalorder %s22, 3
    %p159 = por %p157, %p158
    %p160 = scmp.ne.s32.totalorder %s149, %s150
    %p161 = scmp.eq.s32.totalorder %s22, 0
    %p162 = por %p160, %p161
    %p163 = scmp.ne.s32.totalorder %s149, %s150
    %p164 = scmp.eq.s32.totalorder %s23, 3
    %p165 = por %p163, %p164
    %p167 = scmp.ne.s32.totalorder %s150, %s166
    %p168 = scmp.eq.s32.totalorder %s23, 0
    %p169 = por %p167, %p168
    %s170 = ssub.s32 %s17, %s24
    %p171 = scmp.eq.s32.totalorder %s170, 0
    %s173 = sadd.s32 %s172, 1
    %s174 = scalar_select %p171, %s172, %s173
    %p177 = pneg %p171
    %p178 = scmp.eq.s32.totalorder %s17, 3
    %p179 = por %p177, %p178
    %p180 = scmp.ne.s32.totalorder %s172, %s175
    %p181 = scmp.eq.s32.totalorder %s17, 0
    %p182 = por %p180, %p181
    %p183 = scmp.ne.s32.totalorder %s172, %s175
    %p184 = scmp.eq.s32.totalorder %s22, 3
    %p185 = por %p183, %p184
    %p186 = scmp.ne.s32.totalorder %s175, %s176
    %p187 = scmp.eq.s32.totalorder %s22, 0
    %p188 = por %p186, %p187
    %p189 = scmp.ne.s32.totalorder %s175, %s176
    %p190 = scmp.eq.s32.totalorder %s23, 3
    %p191 = por %p189, %p190
    %p193 = scmp.ne.s32.totalorder %s176, %s192
    %p194 = scmp.eq.s32.totalorder %s23, 0
    %p195 = por %p193, %p194
    %s196 = sadd.s32 %s17, 1
    %s197 = sadd.s32 %s24, 1
    %s198 = ssub.s32 %s196, %s197
    %p199 = scmp.eq.s32.totalorder %s198, 0
    %s201 = sadd.s32 %s200, 1
    %s202 = scalar_select %p199, %s200, %s201
    %p205 = pneg %p199
    %p206 = scmp.eq.s32.totalorder %s17, 3
    %p207 = por %p205, %p206
    %p208 = scmp.ne.s32.totalorder %s200, %s203
    %p209 = scmp.eq.s32.totalorder %s17, 0
    %p210 = por %p208, %p209
    %p211 = scmp.ne.s32.totalorder %s200, %s203
    %p212 = scmp.eq.s32.totalorder %s22, 3
    %p213 = por %p211, %p212
    %p214 = scmp.ne.s32.totalorder %s203, %s204
    %p215 = scmp.eq.s32.totalorder %s22, 0
    %p216 = por %p214, %p215
    %p217 = scmp.ne.s32.totalorder %s203, %s204
    %p218 = scmp.eq.s32.totalorder %s23, 3
    %p219 = por %p217, %p218
    %p221 = scmp.ne.s32.totalorder %s204, %s220
    %p222 = scmp.eq.s32.totalorder %s23, 0
    %p223 = por %p221, %p222
    %s224 = sadd.s32 %s17, 2
    %s225 = sadd.s32 %s24, 2
    %s226 = ssub.s32 %s224, %s225
    %p227 = scmp.eq.s32.totalorder %s226, 0
    %s229 = sadd.s32 %s228, 1
    %s230 = scalar_select %p227, %s228, %s229
    %p233 = pneg %p227
    %p234 = scmp.eq.s32.totalorder %s17, 3
    %p235 = por %p233, %p234
    %p236 = scmp.ne.s32.totalorder %s228, %s231
    %p237 = scmp.eq.s32.totalorder %s17, 0
    %p238 = por %p236, %p237
    %p239 = scmp.ne.s32.totalorder %s228, %s231
    %p240 = scmp.eq.s32.totalorder %s22, 3
    %p241 = por %p239, %p240
    %p242 = scmp.ne.s32.totalorder %s231, %s232
    %p243 = scmp.eq.s32.totalorder %s22, 0
    %p244 = por %p242, %p243
    %p245 = scmp.ne.s32.totalorder %s231, %s232
    %p246 = scmp.eq.s32.totalorder %s23, 3
    %p247 = por %p245, %p246
    %p249 = scmp.ne.s32.totalorder %s232, %s248
    %p250 = scmp.eq.s32.totalorder %s23, 0
    %p251 = por %p249, %p250
    %s252 = ssub.s32 %s17, %s24
    %p253 = scmp.eq.s32.totalorder %s252, 0
    %s255 = sadd.s32 %s254, 1
    %s256 = scalar_select %p253, %s254, %s255
    %p259 = pneg %p253
    %p260 = scmp.eq.s32.totalorder %s17, 3
    %p261 = por %p259, %p260
    %p262 = scmp.ne.s32.totalorder %s254, %s257
    %p263 = scmp.eq.s32.totalorder %s17, 0
    %p264 = por %p262, %p263
    %p265 = scmp.ne.s32.totalorder %s254, %s257
    %p266 = scmp.eq.s32.totalorder %s22, 3
    %p267 = por %p265, %p266
    %p268 = scmp.ne.s32.totalorder %s257, %s258
    %p269 = scmp.eq.s32.totalorder %s22, 0
    %p270 = por %p268, %p269
    %p271 = scmp.ne.s32.totalorder %s257, %s258
    %p272 = scmp.eq.s32.totalorder %s23, 3
    %p273 = por %p271, %p272
    %p275 = scmp.ne.s32.totalorder %s258, %s274
    %p276 = scmp.eq.s32.totalorder %s23, 0
    %p277 = por %p275, %p276
    %s278 = ssub.s32 %s17, %s24
    %p279 = scmp.eq.s32.totalorder %s278, 0
    %s281 = sadd.s32 %s280, 1
    %s282 = scalar_select %p279, %s280, %s281
    %p285 = pneg %p279
    %p286 = scmp.eq.s32.totalorder %s17, 3
    %p287 = por %p285, %p286
    %p288 = scmp.ne.s32.totalorder %s280, %s283
    %p289 = scmp.eq.s32.totalorder %s17, 0
    %p290 = por %p288, %p289
    %p291 = scmp.ne.s32.totalorder %s280, %s283
    %p292 = scmp.eq.s32.totalorder %s22, 3
    %p293 = por %p291, %p292
    %p294 = scmp.ne.s32.totalorder %s283, %s284
    %p295 = scmp.eq.s32.totalorder %s22, 0
    %p296 = por %p294, %p295
    %p297 = scmp.ne.s32.totalorder %s283, %s284
    %p298 = scmp.eq.s32.totalorder %s23, 3
    %p299 = por %p297, %p298
    %p301 = scmp.ne.s32.totalorder %s284, %s300
    %p302 = scmp.eq.s32.totalorder %s23, 0
    %p303 = por %p301, %p302
    %p304 = scmp.le.s32.totalorder 1, %s17
    %p305 = scmp.lt.s32.totalorder %s17, 5
    %p306 = pnand %p304, %p305
    %p307 = pneg %p306
    // Predicated region
    $region9: #{simple_rb_forward.4} parent=5 // pred_check
      _
    $region10: #{simple_rb_forward.4} parent=5 // pred_check_branch
      %309 = sbr.rel (%p306) target = $region12
    $region11: #{simple_rb_forward.4} parent=5 // pred_region
      %s310 = ssub.s32 %s17, 1
      // Predicated region
      $region13: #{simple_rb_forward.4} parent=11 // pred_check
        %p311 = pneg %p38
      $region14: #{simple_rb_forward.4} parent=11 // pred_check_branch
        %313 = sbr.rel (%p311) target = $region16
      $region15: #{simple_rb_forward.4} parent=11 // pred_region
        _
      $region16: #{simple_rb_forward.4} parent=11 // pred_fallthru
        _
      // Predicated region
      $region17: #{simple_rb_forward.4} parent=11 // pred_check
        %p314 = pneg %p59
      $region18: #{simple_rb_forward.4} parent=11 // pred_check_branch
        %316 = sbr.rel (%p314) target = $region20
      $region19: #{simple_rb_forward.4} parent=11 // pred_region
        _
      $region20: #{simple_rb_forward.4} parent=11 // pred_fallthru
        _
      // Predicated region
      $region21: #{simple_rb_forward.4} parent=11 // pred_check
        %p317 = pneg %p80
      $region22: #{simple_rb_forward.4} parent=11 // pred_check_branch
        %319 = sbr.rel (%p317) target = $region24
      $region23: #{simple_rb_forward.4} parent=11 // pred_region
        _
      $region24: #{simple_rb_forward.4} parent=11 // pred_fallthru
        _
    $region12: #{simple_rb_forward.4} parent=5 // pred_fallthru
      _
    %p320 = scmp.lt.s32.totalorder %s17, 4
    // Predicated region
    $region25: #{simple_rb_forward.4} parent=5 // pred_check
      %p321 = pneg %p320
    $region26: #{simple_rb_forward.4} parent=5 // pred_check_branch
      %323 = sbr.rel (%p321) target = $region28
    $region27: #{simple_rb_forward.4} parent=5 // pred_region
      // Predicated region
      $region29: #{simple_rb_forward.4} parent=27 // pred_check
        %p324 = pneg %p100
      $region30: #{simple_rb_forward.4} parent=27 // pred_check_branch
        %326 = sbr.rel (%p324) target = $region32
      $region31: #{simple_rb_forward.4} parent=27 // pred_region
        %s327 = smul.u32 4, %s17
        %p328 = scmp.lt.s32.totalorder %s327, 23
        %s329 = scalar_select %p328, %s327, 23
        %s330 = smul.addr %s329, 8
        %s331 = scalar_lea.vmem %s3, %s330
        %s332 = smul.u32 4, %s17
      $region32: #{simple_rb_forward.4} parent=27 // pred_fallthru
        _
      // Predicated region
      $region33: #{simple_rb_forward.4} parent=27 // pred_check
        %p333 = pneg %p128
      $region34: #{simple_rb_forward.4} parent=27 // pred_check_branch
        %335 = sbr.rel (%p333) target = $region36
      $region35: #{simple_rb_forward.4} parent=27 // pred_region
        %s336 = sadd.s32 %s17, 1
        %s337 = smul.u32 4, %s336
        %p338 = scmp.lt.s32.totalorder %s337, 23
        %s339 = scalar_select %p338, %s337, 23
        %s340 = smul.addr %s339, 8
        %s341 = scalar_lea.vmem %s4, %s340
        %s342 = sadd.s32 %s17, 1
        %s343 = smul.u32 4, %s342
      $region36: #{simple_rb_forward.4} parent=27 // pred_fallthru
        _
      // Predicated region
      $region37: #{simple_rb_forward.4} parent=27 // pred_check
        %p344 = pneg %p156
      $region38: #{simple_rb_forward.4} parent=27 // pred_check_branch
        %346 = sbr.rel (%p344) target = $region40
      $region39: #{simple_rb_forward.4} parent=27 // pred_region
        %s347 = sadd.s32 %s17, 2
        %s348 = smul.u32 4, %s347
        %p349 = scmp.lt.s32.totalorder %s348, 23
        %s350 = scalar_select %p349, %s348, 23
        %s351 = smul.addr %s350, 8
        %s352 = scalar_lea.vmem %s5, %s351
        %s353 = sadd.s32 %s17, 2
        %s354 = smul.u32 4, %s353
      $region40: #{simple_rb_forward.4} parent=27 // pred_fallthru
        _
      // Predicated region
      $region41: #{simple_rb_forward.4} parent=27 // pred_check
        %p355 = pneg %p182
      $region42: #{simple_rb_forward.4} parent=27 // pred_check_branch
        %357 = sbr.rel (%p355) target = $region44
      $region43: #{simple_rb_forward.4} parent=27 // pred_region
        %s358 = smul.u32 4, %s17
        %p359 = scmp.lt.s32.totalorder %s358, 23
        %s360 = scalar_select %p359, %s358, 23
        %s361 = scalar_lea.vmem %s6, %s360
        %s362 = smul.u32 4, %s17
      $region44: #{simple_rb_forward.4} parent=27 // pred_fallthru
        _
      // Predicated region
      $region45: #{simple_rb_forward.4} parent=27 // pred_check
        %p363 = pneg %p210
      $region46: #{simple_rb_forward.4} parent=27 // pred_check_branch
        %365 = sbr.rel (%p363) target = $region48
      $region47: #{simple_rb_forward.4} parent=27 // pred_region
        %s366 = sadd.s32 %s17, 1
        %s367 = smul.u32 4, %s366
        %p368 = scmp.lt.s32.totalorder %s367, 23
        %s369 = scalar_select %p368, %s367, 23
        %s370 = scalar_lea.vmem %s7, %s369
        %s371 = sadd.s32 %s17, 1
        %s372 = smul.u32 4, %s371
      $region48: #{simple_rb_forward.4} parent=27 // pred_fallthru
        _
      // Predicated region
      $region49: #{simple_rb_forward.4} parent=27 // pred_check
        %p373 = pneg %p238
      $region50: #{simple_rb_forward.4} parent=27 // pred_check_branch
        %375 = sbr.rel (%p373) target = $region52
      $region51: #{simple_rb_forward.4} parent=27 // pred_region
        %s376 = sadd.s32 %s17, 2
        %s377 = smul.u32 4, %s376
        %p378 = scmp.lt.s32.totalorder %s377, 23
        %s379 = scalar_select %p378, %s377, 23
        %s380 = scalar_lea.vmem %s8, %s379
        %s381 = sadd.s32 %s17, 2
        %s382 = smul.u32 4, %s381
      $region52: #{simple_rb_forward.4} parent=27 // pred_fallthru
        _
    $region28: #{simple_rb_forward.4} parent=5 // pred_fallthru
      _
    %p383 = scmp.le.s32.totalorder 1, %s17
    %p384 = scmp.lt.s32.totalorder %s17, 5
    %p385 = pnand %p383, %p384
    %p386 = pneg %p385
    // Predicated region
    $region53: #{simple_rb_forward.4} parent=5 // pred_check
      _
    $region54: #{simple_rb_forward.4} parent=5 // pred_check_branch
      %388 = sbr.rel (%p385) target = $region56
    $region55: #{simple_rb_forward.4} parent=5 // pred_region
      %s389 = ssub.s32 %s17, 1
      %p390 = pneg %p38
      %p391 = pneg %p35
      %p392 = pneg %p59
      %p393 = pneg %p56
      %p394 = pneg %p80
      %p395 = pneg %p77
      %s396 = smul.u32 4, %s22
      %p397 = scmp.lt.s32.totalorder %s396, 23
      %s398 = scalar_select %p397, %s396, 23
      %s399 = smul.addr %s398, 8
      %s400 = scalar_lea.vmem %s3, %s399
      %p401 = pneg %p106
      %p402 = pneg %p103
      %s403 = sadd.s32 %s22, 1
      %s404 = smul.u32 4, %s403
      %p405 = scmp.lt.s32.totalorder %s404, 23
      %s406 = scalar_select %p405, %s404, 23
      %s407 = smul.addr %s406, 8
      %s408 = scalar_lea.vmem %s4, %s407
      %p409 = pneg %p134
      %p410 = pneg %p131
      %s411 = sadd.s32 %s22, 2
      %s412 = smul.u32 4, %s411
      %p413 = scmp.lt.s32.totalorder %s412, 23
      %s414 = scalar_select %p413, %s412, 23
      %s415 = smul.addr %s414, 8
      %s416 = scalar_lea.vmem %s5, %s415
      %p417 = pneg %p162
      %p418 = pneg %p159
      %s419 = smul.u32 4, %s22
      %p420 = scmp.lt.s32.totalorder %s419, 23
      %s421 = scalar_select %p420, %s419, 23
      %s422 = scalar_lea.vmem %s6, %s421
      %p423 = pneg %p188
      %p424 = pneg %p185
      %s425 = sadd.s32 %s22, 1
      %s426 = smul.u32 4, %s425
      %p427 = scmp.lt.s32.totalorder %s426, 23
      %s428 = scalar_select %p427, %s426, 23
      %s429 = scalar_lea.vmem %s7, %s428
      %p430 = pneg %p216
      %p431 = pneg %p213
      %s432 = sadd.s32 %s22, 2
      %s433 = smul.u32 4, %s432
      %p434 = scmp.lt.s32.totalorder %s433, 23
      %s435 = scalar_select %p434, %s433, 23
      %s436 = scalar_lea.vmem %s8, %s435
      %p437 = pneg %p244
      %p438 = pneg %p241
      %p439 = pneg %p270
      %p440 = pneg %p267
      %s441 = smul.u32 4, %s22
      %p442 = scmp.lt.s32.totalorder %s441, 15
      %s443 = scalar_select %p442, %s441, 15
      %s444 = smul.addr %s443, 8
      %s445 = scalar_lea.vmem %s9, %s444
      %p446 = pneg %p296
      %p447 = pneg %p293
      %p448 = scmp.lt.s32.totalorder %s22, 3
      %s449 = scalar_select %p448, %s22, 3
      %s450 = smul.addr %s449, 8
      %s451 = scalar_lea.vmem %s10, %s450
      %s452 = smul.u32 4, %s22
      %p453 = scmp.lt.s32.totalorder %s452, 23
      %s454 = scalar_select %p453, %s452, 23
      %s455 = smul.addr %s454, 8
      %s456 = scalar_lea.vmem %s3, %s455
      %s457 = smul.u32 4, %s22
      %s458 = sadd.s32 %s22, 1
      %s459 = smul.u32 4, %s458
      %p460 = scmp.lt.s32.totalorder %s459, 23
      %s461 = scalar_select %p460, %s459, 23
      %s462 = smul.addr %s461, 8
      %s463 = scalar_lea.vmem %s4, %s462
      %s464 = sadd.s32 %s22, 1
      %s465 = smul.u32 4, %s464
      %s466 = sadd.s32 %s22, 2
      %s467 = smul.u32 4, %s466
      %p468 = scmp.lt.s32.totalorder %s467, 23
      %s469 = scalar_select %p468, %s467, 23
      %s470 = smul.addr %s469, 8
      %s471 = scalar_lea.vmem %s5, %s470
      %s472 = sadd.s32 %s22, 2
      %s473 = smul.u32 4, %s472
      %s474 = smul.u32 4, %s22
      %p475 = scmp.lt.s32.totalorder %s474, 23
      %s476 = scalar_select %p475, %s474, 23
      %s477 = scalar_lea.vmem %s6, %s476
      %s478 = smul.u32 4, %s22
      %s479 = sadd.s32 %s22, 1
      %s480 = smul.u32 4, %s479
      %p481 = scmp.lt.s32.totalorder %s480, 23
      %s482 = scalar_select %p481, %s480, 23
      %s483 = scalar_lea.vmem %s7, %s482
      %s484 = sadd.s32 %s22, 1
      %s485 = smul.u32 4, %s484
      %s486 = sadd.s32 %s22, 2
      %s487 = smul.u32 4, %s486
      %p488 = scmp.lt.s32.totalorder %s487, 23
      %s489 = scalar_select %p488, %s487, 23
      %s490 = scalar_lea.vmem %s8, %s489
      %s491 = sadd.s32 %s22, 2
      %s492 = smul.u32 4, %s491
      %s493 = smul.u32 4, %s22
      %p494 = scmp.lt.s32.totalorder %s493, 15
      %s495 = scalar_select %p494, %s493, 15
      %s496 = smul.addr %s495, 8
      %s497 = scalar_lea.vmem %s9, %s496
      %s498 = smul.u32 4, %s22
      %p499 = scmp.lt.s32.totalorder %s22, 3
      %s500 = scalar_select %p499, %s22, 3
      %s501 = smul.addr %s500, 8
      %s502 = scalar_lea.vmem %s10, %s501
      %v503 = vld [vmem:[%s1] sm:$0xff]
      %v504 = vld [vmem:[%s2] sm:$0xff]
      %v505 = vld [vmem:[%s456 + $0x18] sm:$0xff]
      %v506 = vld [vmem:[%s477] sm:$0xf]
      %508 = vset.pattern.permute.xlu0 0
      %509 = vperm.xlu0 %508, %v503
      %v510 = vpop.permute.xlu0 %509
      %v512 = vmul.f32 %v505, %v510
      %514 = vset.pattern.permute.xlu0 0
      %515 = vperm.xlu0 %514, %v504
      %v516 = vpop.permute.xlu0 %515
      %v518 = vadd.f32 %v512, %v516
      %v519 = vmax.f32 %v518, 0.0
      %v521 = vperm.slane %v506, 3
      %v523 = vmul.f32 %v519, %v521
      %v524 = vld [vmem:[%s463] sm:$0xff]
      %v525 = vld [vmem:[%s463 + $0x8] sm:$0xff]
      %v526 = vld [vmem:[%s463 + $0x10] sm:$0xff]
      %v527 = vld [vmem:[%s463 + $0x18] sm:$0xff]
      %v528 = vld [vmem:[%s483] sm:$0xf]
      %v529 = vmul.f32 %v524, %v510
      %v530 = vmul.f32 %v525, %v510
      %v531 = vmul.f32 %v526, %v510
      %v532 = vmul.f32 %v527, %v510
      %v533 = vadd.f32 %v529, %v516
      %v534 = vadd.f32 %v530, %v516
      %v535 = vadd.f32 %v531, %v516
      %v536 = vadd.f32 %v532, %v516
      %v537 = vmax.f32 %v533, 0.0
      %v538 = vmax.f32 %v534, 0.0
      %v539 = vmax.f32 %v535, 0.0
      %v540 = vmax.f32 %v536, 0.0
      %v542 = vperm.slane %v528, 0
      %v543 = vperm.slane %v528, 1
      %v544 = vperm.slane %v528, 2
      %v545 = vperm.slane %v528, 3
      %v550 = vmul.f32 %v537, %v542
      %v551 = vmul.f32 %v538, %v543
      %v552 = vmul.f32 %v539, %v544
      %v553 = vmul.f32 %v540, %v545
      %v554 = vld [vmem:[%s471] sm:$0xff]
      %v555 = vld [vmem:[%s490] sm:$0xf]
      %v556 = vmul.f32 %v554, %v510
      %v557 = vadd.f32 %v556, %v516
      %v558 = vmax.f32 %v557, 0.0
      %v560 = vperm.slane %v555, 0
      %v562 = vmul.f32 %v558, %v560
      %568 = vrot.lane.b32.xlu0 %v523, 127
      %v569 = vpop.permute.xlu0 %568
      %570 = vrot.lane.b32.xlu0 %v550, 127
      %v571 = vpop.permute.xlu0 %570
      %572 = vrot.lane.b32.xlu0 %v551, 127
      %v573 = vpop.permute.xlu0 %572
      %574 = vrot.lane.b32.xlu0 %v552, 127
      %v575 = vpop.permute.xlu0 %574
      %576 = vrot.lane.b32.xlu0 %v553, 127
      %v577 = vpop.permute.xlu0 %576
      %vm578 = vcmask 1039360
      %v579 = vsel %vm578, %v569, %v571
      %v580 = vsel %vm578, %v571, %v573
      %v581 = vsel %vm578, %v573, %v575
      %v582 = vsel %vm578, %v575, %v577
      %583 = vrot.lane.b32.xlu0 %v523, 126
      %v584 = vpop.permute.xlu0 %583
      %585 = vrot.lane.b32.xlu0 %v550, 126
      %v586 = vpop.permute.xlu0 %585
      %587 = vrot.lane.b32.xlu0 %v551, 126
      %v588 = vpop.permute.xlu0 %587
      %589 = vrot.lane.b32.xlu0 %v552, 126
      %v590 = vpop.permute.xlu0 %589
      %591 = vrot.lane.b32.xlu0 %v553, 126
      %v592 = vpop.permute.xlu0 %591
      %vm593 = vcmask 1031168
      %v594 = vsel %vm593, %v584, %v586
      %v595 = vsel %vm593, %v586, %v588
      %v596 = vsel %vm593, %v588, %v590
      %v597 = vsel %vm593, %v590, %v592
      %598 = vrot.lane.b32.xlu0 %v523, 118
      %v599 = vpop.permute.xlu0 %598
      %600 = vrot.lane.b32.xlu0 %v550, 118
      %v601 = vpop.permute.xlu0 %600
      %602 = vrot.lane.b32.xlu0 %v551, 118
      %v603 = vpop.permute.xlu0 %602
      %604 = vrot.lane.b32.xlu0 %v552, 118
      %v605 = vpop.permute.xlu0 %604
      %606 = vrot.lane.b32.xlu0 %v553, 118
      %v607 = vpop.permute.xlu0 %606
      %vm608 = vcmask 965632
      %v609 = vsel %vm608, %v599, %v601
      %v610 = vsel %vm608, %v601, %v603
      %v611 = vsel %vm608, %v603, %v605
      %v612 = vsel %vm608, %v605, %v607
      %613 = vrot.lane.b32.xlu0 %v523, 117
      %v614 = vpop.permute.xlu0 %613
      %615 = vrot.lane.b32.xlu0 %v550, 117
      %v616 = vpop.permute.xlu0 %615
      %617 = vrot.lane.b32.xlu0 %v551, 117
      %v618 = vpop.permute.xlu0 %617
      %619 = vrot.lane.b32.xlu0 %v552, 117
      %v620 = vpop.permute.xlu0 %619
      %621 = vrot.lane.b32.xlu0 %v553, 117
      %v622 = vpop.permute.xlu0 %621
      %vm623 = vcmask 957440
      %v624 = vsel %vm623, %v614, %v616
      %v625 = vsel %vm623, %v616, %v618
      %v626 = vsel %vm623, %v618, %v620
      %v627 = vsel %vm623, %v620, %v622
      %628 = vrot.lane.b32.xlu0 %v523, 116
      %v629 = vpop.permute.xlu0 %628
      %630 = vrot.lane.b32.xlu0 %v550, 116
      %v631 = vpop.permute.xlu0 %630
      %632 = vrot.lane.b32.xlu0 %v551, 116
      %v633 = vpop.permute.xlu0 %632
      %634 = vrot.lane.b32.xlu0 %v552, 116
      %v635 = vpop.permute.xlu0 %634
      %636 = vrot.lane.b32.xlu0 %v553, 116
      %v637 = vpop.permute.xlu0 %636
      %vm638 = vcmask 949248
      %v639 = vsel %vm638, %v629, %v631
      %v640 = vsel %vm638, %v631, %v633
      %v641 = vsel %vm638, %v633, %v635
      %v642 = vsel %vm638, %v635, %v637
      %643 = vrot.lane.b32.xlu0 %v523, 108
      %v644 = vpop.permute.xlu0 %643
      %645 = vrot.lane.b32.xlu0 %v550, 108
      %v646 = vpop.permute.xlu0 %645
      %647 = vrot.lane.b32.xlu0 %v551, 108
      %v648 = vpop.permute.xlu0 %647
      %649 = vrot.lane.b32.xlu0 %v552, 108
      %v650 = vpop.permute.xlu0 %649
      %651 = vrot.lane.b32.xlu0 %v553, 108
      %v652 = vpop.permute.xlu0 %651
      %vm653 = vcmask 883712
      %v654 = vsel %vm653, %v644, %v646
      %v655 = vsel %vm653, %v646, %v648
      %v656 = vsel %vm653, %v648, %v650
      %v657 = vsel %vm653, %v650, %v652
      %658 = vrot.lane.b32.xlu0 %v523, 107
      %v659 = vpop.permute.xlu0 %658
      %660 = vrot.lane.b32.xlu0 %v550, 107
      %v661 = vpop.permute.xlu0 %660
      %662 = vrot.lane.b32.xlu0 %v551, 107
      %v663 = vpop.permute.xlu0 %662
      %664 = vrot.lane.b32.xlu0 %v552, 107
      %v665 = vpop.permute.xlu0 %664
      %666 = vrot.lane.b32.xlu0 %v553, 107
      %v667 = vpop.permute.xlu0 %666
      %vm668 = vcmask 875520
      %v669 = vsel %vm668, %v659, %v661
      %v670 = vsel %vm668, %v661, %v663
      %v671 = vsel %vm668, %v663, %v665
      %v672 = vsel %vm668, %v665, %v667
      %673 = vrot.lane.b32.xlu0 %v523, 106
      %v674 = vpop.permute.xlu0 %673
      %675 = vrot.lane.b32.xlu0 %v550, 106
      %v676 = vpop.permute.xlu0 %675
      %677 = vrot.lane.b32.xlu0 %v551, 106
      %v678 = vpop.permute.xlu0 %677
      %679 = vrot.lane.b32.xlu0 %v552, 106
      %v680 = vpop.permute.xlu0 %679
      %681 = vrot.lane.b32.xlu0 %v553, 106
      %v682 = vpop.permute.xlu0 %681
      %vm683 = vcmask 867328
      %v684 = vsel %vm683, %v674, %v676
      %v685 = vsel %vm683, %v676, %v678
      %v686 = vsel %vm683, %v678, %v680
      %v687 = vsel %vm683, %v680, %v682
      %688 = vrot.lane.b32.xlu0 %v523, 28
      %v689 = vpop.permute.xlu0 %688
      %690 = vrot.lane.b32.xlu0 %v550, 28
      %v691 = vpop.permute.xlu0 %690
      %692 = vrot.lane.b32.xlu0 %v551, 28
      %v693 = vpop.permute.xlu0 %692
      %694 = vrot.lane.b32.xlu0 %v552, 28
      %v695 = vpop.permute.xlu0 %694
      %696 = vrot.lane.b32.xlu0 %v553, 28
      %v697 = vpop.permute.xlu0 %696
      %vm698 = vcmask 228352
      %v699 = vsel %vm698, %v689, %v691
      %v700 = vsel %vm698, %v691, %v693
      %v701 = vsel %vm698, %v693, %v695
      %v702 = vsel %vm698, %v695, %v697
      %703 = vrot.lane.b32.xlu0 %v523, 27
      %v704 = vpop.permute.xlu0 %703
      %705 = vrot.lane.b32.xlu0 %v550, 27
      %v706 = vpop.permute.xlu0 %705
      %707 = vrot.lane.b32.xlu0 %v551, 27
      %v708 = vpop.permute.xlu0 %707
      %709 = vrot.lane.b32.xlu0 %v552, 27
      %v710 = vpop.permute.xlu0 %709
      %711 = vrot.lane.b32.xlu0 %v553, 27
      %v712 = vpop.permute.xlu0 %711
      %vm713 = vcmask 220160
      %v714 = vsel %vm713, %v704, %v706
      %v715 = vsel %vm713, %v706, %v708
      %v716 = vsel %vm713, %v708, %v710
      %v717 = vsel %vm713, %v710, %v712
      %718 = vrot.lane.b32.xlu0 %v523, 26
      %v719 = vpop.permute.xlu0 %718
      %720 = vrot.lane.b32.xlu0 %v550, 26
      %v721 = vpop.permute.xlu0 %720
      %722 = vrot.lane.b32.xlu0 %v551, 26
      %v723 = vpop.permute.xlu0 %722
      %724 = vrot.lane.b32.xlu0 %v552, 26
      %v725 = vpop.permute.xlu0 %724
      %726 = vrot.lane.b32.xlu0 %v553, 26
      %v727 = vpop.permute.xlu0 %726
      %vm728 = vcmask 211968
      %v729 = vsel %vm728, %v719, %v721
      %v730 = vsel %vm728, %v721, %v723
      %v731 = vsel %vm728, %v723, %v725
      %v732 = vsel %vm728, %v725, %v727
      %733 = vrot.lane.b32.xlu0 %v523, 18
      %v734 = vpop.permute.xlu0 %733
      %735 = vrot.lane.b32.xlu0 %v550, 18
      %v736 = vpop.permute.xlu0 %735
      %737 = vrot.lane.b32.xlu0 %v551, 18
      %v738 = vpop.permute.xlu0 %737
      %739 = vrot.lane.b32.xlu0 %v552, 18
      %v740 = vpop.permute.xlu0 %739
      %741 = vrot.lane.b32.xlu0 %v553, 18
      %v742 = vpop.permute.xlu0 %741
      %vm743 = vcmask 146432
      %v744 = vsel %vm743, %v734, %v736
      %v745 = vsel %vm743, %v736, %v738
      %v746 = vsel %vm743, %v738, %v740
      %v747 = vsel %vm743, %v740, %v742
      %748 = vrot.lane.b32.xlu0 %v550, 17
      %v749 = vpop.permute.xlu0 %748
      %750 = vrot.lane.b32.xlu0 %v551, 17
      %v751 = vpop.permute.xlu0 %750
      %752 = vrot.lane.b32.xlu0 %v552, 17
      %v753 = vpop.permute.xlu0 %752
      %754 = vrot.lane.b32.xlu0 %v553, 17
      %v755 = vpop.permute.xlu0 %754
      %vm756 = vcmask 138240
      %v757 = vsel %vm756, %v749, %v751
      %v758 = vsel %vm756, %v751, %v753
      %v759 = vsel %vm756, %v753, %v755
      %761 = vrot.lane.b32.xlu0 %v550, 16
      %v762 = vpop.permute.xlu0 %761
      %763 = vrot.lane.b32.xlu0 %v551, 16
      %v764 = vpop.permute.xlu0 %763
      %765 = vrot.lane.b32.xlu0 %v552, 16
      %v766 = vpop.permute.xlu0 %765
      %767 = vrot.lane.b32.xlu0 %v553, 16
      %v768 = vpop.permute.xlu0 %767
      %769 = vrot.lane.b32.xlu0 %v562, 16
      %v770 = vpop.permute.xlu0 %769
      %vm771 = vcmask 130048
      %v772 = vsel %vm771, %v762, %v764
      %v773 = vsel %vm771, %v764, %v766
      %v774 = vsel %vm771, %v766, %v768
      %v775 = vsel %vm771, %v768, %v770
      %776 = vrot.lane.b32.xlu0 %v550, 8
      %v777 = vpop.permute.xlu0 %776
      %778 = vrot.lane.b32.xlu0 %v551, 8
      %v779 = vpop.permute.xlu0 %778
      %780 = vrot.lane.b32.xlu0 %v552, 8
      %v781 = vpop.permute.xlu0 %780
      %782 = vrot.lane.b32.xlu0 %v553, 8
      %v783 = vpop.permute.xlu0 %782
      %784 = vrot.lane.b32.xlu0 %v562, 8
      %v785 = vpop.permute.xlu0 %784
      %vm786 = vcmask 64512
      %v787 = vsel %vm786, %v777, %v779
      %v788 = vsel %vm786, %v779, %v781
      %v789 = vsel %vm786, %v781, %v783
      %v790 = vsel %vm786, %v783, %v785
      %791 = vrot.lane.b32.xlu0 %v562, 127
      %v792 = vpop.permute.xlu0 %791
      %v793 = vsel %vm578, %v577, %v792
      %794 = vrot.lane.b32.xlu0 %v550, 49
      %v795 = vpop.permute.xlu0 %794
      %796 = vrot.lane.b32.xlu0 %v551, 49
      %v797 = vpop.permute.xlu0 %796
      %798 = vrot.lane.b32.xlu0 %v552, 49
      %v799 = vpop.permute.xlu0 %798
      %800 = vrot.lane.b32.xlu0 %v553, 49
      %v801 = vpop.permute.xlu0 %800
      %802 = vrot.lane.b32.xlu0 %v562, 49
      %v803 = vpop.permute.xlu0 %802
      %vm804 = vcmask 400384
      %v805 = vsel %vm804, %v795, %v797
      %v806 = vsel %vm804, %v797, %v799
      %v807 = vsel %vm804, %v799, %v801
      %v808 = vsel %vm804, %v801, %v803
      %809 = vrot.lane.b32.xlu0 %v550, 48
      %v810 = vpop.permute.xlu0 %809
      %811 = vrot.lane.b32.xlu0 %v551, 48
      %v812 = vpop.permute.xlu0 %811
      %813 = vrot.lane.b32.xlu0 %v552, 48
      %v814 = vpop.permute.xlu0 %813
      %815 = vrot.lane.b32.xlu0 %v553, 48
      %v816 = vpop.permute.xlu0 %815
      %817 = vrot.lane.b32.xlu0 %v562, 48
      %v818 = vpop.permute.xlu0 %817
      %vm819 = vcmask 392192
      %v820 = vsel %vm819, %v810, %v812
      %v821 = vsel %vm819, %v812, %v814
      %v822 = vsel %vm819, %v814, %v816
      %v823 = vsel %vm819, %v816, %v818
      %824 = vrot.lane.b32.xlu0 %v550, 47
      %v825 = vpop.permute.xlu0 %824
      %826 = vrot.lane.b32.xlu0 %v551, 47
      %v827 = vpop.permute.xlu0 %826
      %828 = vrot.lane.b32.xlu0 %v552, 47
      %v829 = vpop.permute.xlu0 %828
      %830 = vrot.lane.b32.xlu0 %v553, 47
      %v831 = vpop.permute.xlu0 %830
      %832 = vrot.lane.b32.xlu0 %v562, 47
      %v833 = vpop.permute.xlu0 %832
      %vm834 = vcmask 384000
      %v835 = vsel %vm834, %v825, %v827
      %v836 = vsel %vm834, %v827, %v829
      %v837 = vsel %vm834, %v829, %v831
      %v838 = vsel %vm834, %v831, %v833
      %839 = vrot.lane.b32.xlu0 %v550, 39
      %v840 = vpop.permute.xlu0 %839
      %841 = vrot.lane.b32.xlu0 %v551, 39
      %v842 = vpop.permute.xlu0 %841
      %843 = vrot.lane.b32.xlu0 %v552, 39
      %v844 = vpop.permute.xlu0 %843
      %845 = vrot.lane.b32.xlu0 %v553, 39
      %v846 = vpop.permute.xlu0 %845
      %847 = vrot.lane.b32.xlu0 %v562, 39
      %v848 = vpop.permute.xlu0 %847
      %vm849 = vcmask 318464
      %v850 = vsel %vm849, %v840, %v842
      %v851 = vsel %vm849, %v842, %v844
      %v852 = vsel %vm849, %v844, %v846
      %v853 = vsel %vm849, %v846, %v848
      %854 = vrot.lane.b32.xlu0 %v550, 38
      %v855 = vpop.permute.xlu0 %854
      %856 = vrot.lane.b32.xlu0 %v551, 38
      %v857 = vpop.permute.xlu0 %856
      %858 = vrot.lane.b32.xlu0 %v552, 38
      %v859 = vpop.permute.xlu0 %858
      %860 = vrot.lane.b32.xlu0 %v553, 38
      %v861 = vpop.permute.xlu0 %860
      %862 = vrot.lane.b32.xlu0 %v562, 38
      %v863 = vpop.permute.xlu0 %862
      %vm864 = vcmask 310272
      %v865 = vsel %vm864, %v855, %v857
      %v866 = vsel %vm864, %v857, %v859
      %v867 = vsel %vm864, %v859, %v861
      %v868 = vsel %vm864, %v861, %v863
      %869 = vrot.lane.b32.xlu0 %v550, 37
      %v870 = vpop.permute.xlu0 %869
      %871 = vrot.lane.b32.xlu0 %v551, 37
      %v872 = vpop.permute.xlu0 %871
      %873 = vrot.lane.b32.xlu0 %v552, 37
      %v874 = vpop.permute.xlu0 %873
      %875 = vrot.lane.b32.xlu0 %v553, 37
      %v876 = vpop.permute.xlu0 %875
      %877 = vrot.lane.b32.xlu0 %v562, 37
      %v878 = vpop.permute.xlu0 %877
      %vm879 = vcmask 302080
      %v880 = vsel %vm879, %v870, %v872
      %v881 = vsel %vm879, %v872, %v874
      %v882 = vsel %vm879, %v874, %v876
      %v883 = vsel %vm879, %v876, %v878
      %884 = vrot.lane.b32.xlu0 %v550, 29
      %v885 = vpop.permute.xlu0 %884
      %886 = vrot.lane.b32.xlu0 %v551, 29
      %v887 = vpop.permute.xlu0 %886
      %888 = vrot.lane.b32.xlu0 %v552, 29
      %v889 = vpop.permute.xlu0 %888
      %890 = vrot.lane.b32.xlu0 %v553, 29
      %v891 = vpop.permute.xlu0 %890
      %892 = vrot.lane.b32.xlu0 %v562, 29
      %v893 = vpop.permute.xlu0 %892
      %vm894 = vcmask 236544
      %v895 = vsel %vm894, %v885, %v887
      %v896 = vsel %vm894, %v887, %v889
      %v897 = vsel %vm894, %v889, %v891
      %v898 = vsel %vm894, %v891, %v893
      %899 = vrot.lane.b32.xlu0 %v562, 28
      %v900 = vpop.permute.xlu0 %899
      %v901 = vsel %vm698, %v697, %v900
      %902 = vrot.lane.b32.xlu0 %v562, 27
      %v903 = vpop.permute.xlu0 %902
      %v904 = vsel %vm713, %v712, %v903
      %905 = vrot.lane.b32.xlu0 %v550, 7
      %v906 = vpop.permute.xlu0 %905
      %907 = vrot.lane.b32.xlu0 %v551, 7
      %v908 = vpop.permute.xlu0 %907
      %909 = vrot.lane.b32.xlu0 %v552, 7
      %v910 = vpop.permute.xlu0 %909
      %911 = vrot.lane.b32.xlu0 %v553, 7
      %v912 = vpop.permute.xlu0 %911
      %913 = vrot.lane.b32.xlu0 %v562, 7
      %v914 = vpop.permute.xlu0 %913
      %915 = vrot.lane.b32.xlu0 %v580, 7
      %v916 = vpop.permute.xlu0 %915
      %917 = vrot.lane.b32.xlu0 %v581, 7
      %v918 = vpop.permute.xlu0 %917
      %919 = vrot.lane.b32.xlu0 %v582, 7
      %v920 = vpop.permute.xlu0 %919
      %921 = vrot.lane.b32.xlu0 %v793, 7
      %v922 = vpop.permute.xlu0 %921
      %923 = vrot.lane.b32.xlu0 %v792, 7
      %v924 = vpop.permute.xlu0 %923
      %925 = vrot.lane.b32.xlu0 %v805, 7
      %v926 = vpop.permute.xlu0 %925
      %927 = vrot.lane.b32.xlu0 %v806, 7
      %v928 = vpop.permute.xlu0 %927
      %929 = vrot.lane.b32.xlu0 %v807, 7
      %v930 = vpop.permute.xlu0 %929
      %931 = vrot.lane.b32.xlu0 %v808, 7
      %v932 = vpop.permute.xlu0 %931
      %933 = vrot.lane.b32.xlu0 %v803, 7
      %v934 = vpop.permute.xlu0 %933
      %935 = vrot.lane.b32.xlu0 %v820, 7
      %v936 = vpop.permute.xlu0 %935
      %937 = vrot.lane.b32.xlu0 %v821, 7
      %v938 = vpop.permute.xlu0 %937
      %939 = vrot.lane.b32.xlu0 %v822, 7
      %v940 = vpop.permute.xlu0 %939
      %941 = vrot.lane.b32.xlu0 %v823, 7
      %v942 = vpop.permute.xlu0 %941
      %943 = vrot.lane.b32.xlu0 %v818, 7
      %v944 = vpop.permute.xlu0 %943
      %945 = vrot.lane.b32.xlu0 %v835, 7
      %v946 = vpop.permute.xlu0 %945
      %947 = vrot.lane.b32.xlu0 %v836, 7
      %v948 = vpop.permute.xlu0 %947
      %949 = vrot.lane.b32.xlu0 %v837, 7
      %v950 = vpop.permute.xlu0 %949
      %951 = vrot.lane.b32.xlu0 %v838, 7
      %v952 = vpop.permute.xlu0 %951
      %953 = vrot.lane.b32.xlu0 %v833, 7
      %v954 = vpop.permute.xlu0 %953
      %955 = vrot.lane.b32.xlu0 %v850, 7
      %v956 = vpop.permute.xlu0 %955
      %957 = vrot.lane.b32.xlu0 %v851, 7
      %v958 = vpop.permute.xlu0 %957
      %959 = vrot.lane.b32.xlu0 %v852, 7
      %v960 = vpop.permute.xlu0 %959
      %961 = vrot.lane.b32.xlu0 %v853, 7
      %v962 = vpop.permute.xlu0 %961
      %963 = vrot.lane.b32.xlu0 %v848, 7
      %v964 = vpop.permute.xlu0 %963
      %965 = vrot.lane.b32.xlu0 %v865, 7
      %v966 = vpop.permute.xlu0 %965
      %967 = vrot.lane.b32.xlu0 %v866, 7
      %v968 = vpop.permute.xlu0 %967
      %969 = vrot.lane.b32.xlu0 %v867, 7
      %v970 = vpop.permute.xlu0 %969
      %971 = vrot.lane.b32.xlu0 %v868, 7
      %v972 = vpop.permute.xlu0 %971
      %973 = vrot.lane.b32.xlu0 %v863, 7
      %v974 = vpop.permute.xlu0 %973
      %975 = vrot.lane.b32.xlu0 %v880, 7
      %v976 = vpop.permute.xlu0 %975
      %977 = vrot.lane.b32.xlu0 %v881, 7
      %v978 = vpop.permute.xlu0 %977
      %979 = vrot.lane.b32.xlu0 %v882, 7
      %v980 = vpop.permute.xlu0 %979
      %981 = vrot.lane.b32.xlu0 %v883, 7
      %v982 = vpop.permute.xlu0 %981
      %983 = vrot.lane.b32.xlu0 %v878, 7
      %v984 = vpop.permute.xlu0 %983
      %985 = vrot.lane.b32.xlu0 %v895, 7
      %v986 = vpop.permute.xlu0 %985
      %987 = vrot.lane.b32.xlu0 %v896, 7
      %v988 = vpop.permute.xlu0 %987
      %989 = vrot.lane.b32.xlu0 %v897, 7
      %v990 = vpop.permute.xlu0 %989
      %991 = vrot.lane.b32.xlu0 %v898, 7
      %v992 = vpop.permute.xlu0 %991
      %993 = vrot.lane.b32.xlu0 %v893, 7
      %v994 = vpop.permute.xlu0 %993
      %995 = vrot.lane.b32.xlu0 %v700, 7
      %v996 = vpop.permute.xlu0 %995
      %997 = vrot.lane.b32.xlu0 %v701, 7
      %v998 = vpop.permute.xlu0 %997
      %999 = vrot.lane.b32.xlu0 %v702, 7
      %v1000 = vpop.permute.xlu0 %999
      %1001 = vrot.lane.b32.xlu0 %v901, 7
      %v1002 = vpop.permute.xlu0 %1001
      %1003 = vrot.lane.b32.xlu0 %v900, 7
      %v1004 = vpop.permute.xlu0 %1003
      %1005 = vrot.lane.b32.xlu0 %v715, 7
      %v1006 = vpop.permute.xlu0 %1005
      %1007 = vrot.lane.b32.xlu0 %v716, 7
      %v1008 = vpop.permute.xlu0 %1007
      %1009 = vrot.lane.b32.xlu0 %v717, 7
      %v1010 = vpop.permute.xlu0 %1009
      %1011 = vrot.lane.b32.xlu0 %v904, 7
      %v1012 = vpop.permute.xlu0 %1011
      %1013 = vrot.lane.b32.xlu0 %v903, 7
      %v1014 = vpop.permute.xlu0 %1013
      %vm1015 = vcmask 56320
      %v1016 = vsel %vm1015, %v906, %v908
      %v1017 = vsel %vm1015, %v908, %v910
      %v1018 = vsel %vm1015, %v910, %v912
      %v1019 = vsel %vm1015, %v912, %v914
      %v1020 = vsel %vm1015, %v916, %v918
      %v1021 = vsel %vm1015, %v918, %v920
      %v1022 = vsel %vm1015, %v920, %v922
      %v1023 = vsel %vm1015, %v922, %v924
      %v1024 = vsel %vm1015, %v926, %v928
      %v1025 = vsel %vm1015, %v928, %v930
      %v1026 = vsel %vm1015, %v930, %v932
      %v1027 = vsel %vm1015, %v932, %v934
      %v1028 = vsel %vm1015, %v936, %v938
      %v1029 = vsel %vm1015, %v938, %v940
      %v1030 = vsel %vm1015, %v940, %v942
      %v1031 = vsel %vm1015, %v942, %v944
      %v1032 = vsel %vm1015, %v946, %v948
      %v1033 = vsel %vm1015, %v948, %v950
      %v1034 = vsel %vm1015, %v950, %v952
      %v1035 = vsel %vm1015, %v952, %v954
      %v1036 = vsel %vm1015, %v956, %v958
      %v1037 = vsel %vm1015, %v958, %v960
      %v1038 = vsel %vm1015, %v960, %v962
      %v1039 = vsel %vm1015, %v962, %v964
      %v1040 = vsel %vm1015, %v966, %v968
      %v1041 = vsel %vm1015, %v968, %v970
      %v1042 = vsel %vm1015, %v970, %v972
      %v1043 = vsel %vm1015, %v972, %v974
      %v1044 = vsel %vm1015, %v976, %v978
      %v1045 = vsel %vm1015, %v978, %v980
      %v1046 = vsel %vm1015, %v980, %v982
      %v1047 = vsel %vm1015, %v982, %v984
      %v1048 = vsel %vm1015, %v986, %v988
      %v1049 = vsel %vm1015, %v988, %v990
      %v1050 = vsel %vm1015, %v990, %v992
      %v1051 = vsel %vm1015, %v992, %v994
      %v1052 = vsel %vm1015, %v996, %v998
      %v1053 = vsel %vm1015, %v998, %v1000
      %v1054 = vsel %vm1015, %v1000, %v1002
      %v1055 = vsel %vm1015, %v1002, %v1004
      %v1056 = vsel %vm1015, %v1006, %v1008
      %v1057 = vsel %vm1015, %v1008, %v1010
      %v1058 = vsel %vm1015, %v1010, %v1012
      %v1059 = vsel %vm1015, %v1012, %v1014
      %v1060 = vld [vmem:[%s0] sm:$0xff]
      %v1061 = vld [vmem:[%s0 + $0x8] sm:$0xff]
      %1062 = vrot.lane.b32.xlu0 %v523, 111
      %v1063 = vpop.permute.xlu0 %1062
      %1064 = vrot.lane.b32.xlu0 %v550, 111
      %v1065 = vpop.permute.xlu0 %1064
      %1066 = vrot.lane.b32.xlu0 %v551, 111
      %v1067 = vpop.permute.xlu0 %1066
      %1068 = vrot.lane.b32.xlu0 %v552, 111
      %v1069 = vpop.permute.xlu0 %1068
      %1070 = vrot.lane.b32.xlu0 %v553, 111
      %v1071 = vpop.permute.xlu0 %1070
      %1072 = vrot.lane.b32.xlu0 %v579, 111
      %v1073 = vpop.permute.xlu0 %1072
      %1074 = vrot.lane.b32.xlu0 %v580, 111
      %v1075 = vpop.permute.xlu0 %1074
      %1076 = vrot.lane.b32.xlu0 %v581, 111
      %v1077 = vpop.permute.xlu0 %1076
      %1078 = vrot.lane.b32.xlu0 %v582, 111
      %v1079 = vpop.permute.xlu0 %1078
      %1080 = vrot.lane.b32.xlu0 %v577, 111
      %v1081 = vpop.permute.xlu0 %1080
      %1082 = vrot.lane.b32.xlu0 %v594, 111
      %v1083 = vpop.permute.xlu0 %1082
      %1084 = vrot.lane.b32.xlu0 %v595, 111
      %v1085 = vpop.permute.xlu0 %1084
      %1086 = vrot.lane.b32.xlu0 %v596, 111
      %v1087 = vpop.permute.xlu0 %1086
      %1088 = vrot.lane.b32.xlu0 %v597, 111
      %v1089 = vpop.permute.xlu0 %1088
      %1090 = vrot.lane.b32.xlu0 %v592, 111
      %v1091 = vpop.permute.xlu0 %1090
      %1092 = vrot.lane.b32.xlu0 %v609, 111
      %v1093 = vpop.permute.xlu0 %1092
      %1094 = vrot.lane.b32.xlu0 %v610, 111
      %v1095 = vpop.permute.xlu0 %1094
      %1096 = vrot.lane.b32.xlu0 %v611, 111
      %v1097 = vpop.permute.xlu0 %1096
      %1098 = vrot.lane.b32.xlu0 %v612, 111
      %v1099 = vpop.permute.xlu0 %1098
      %1100 = vrot.lane.b32.xlu0 %v607, 111
      %v1101 = vpop.permute.xlu0 %1100
      %1102 = vrot.lane.b32.xlu0 %v624, 111
      %v1103 = vpop.permute.xlu0 %1102
      %1104 = vrot.lane.b32.xlu0 %v625, 111
      %v1105 = vpop.permute.xlu0 %1104
      %1106 = vrot.lane.b32.xlu0 %v626, 111
      %v1107 = vpop.permute.xlu0 %1106
      %1108 = vrot.lane.b32.xlu0 %v627, 111
      %v1109 = vpop.permute.xlu0 %1108
      %1110 = vrot.lane.b32.xlu0 %v622, 111
      %v1111 = vpop.permute.xlu0 %1110
      %1112 = vrot.lane.b32.xlu0 %v639, 111
      %v1113 = vpop.permute.xlu0 %1112
      %1114 = vrot.lane.b32.xlu0 %v640, 111
      %v1115 = vpop.permute.xlu0 %1114
      %1116 = vrot.lane.b32.xlu0 %v641, 111
      %v1117 = vpop.permute.xlu0 %1116
      %1118 = vrot.lane.b32.xlu0 %v642, 111
      %v1119 = vpop.permute.xlu0 %1118
      %1120 = vrot.lane.b32.xlu0 %v637, 111
      %v1121 = vpop.permute.xlu0 %1120
      %1122 = vrot.lane.b32.xlu0 %v654, 111
      %v1123 = vpop.permute.xlu0 %1122
      %1124 = vrot.lane.b32.xlu0 %v655, 111
      %v1125 = vpop.permute.xlu0 %1124
      %1126 = vrot.lane.b32.xlu0 %v656, 111
      %v1127 = vpop.permute.xlu0 %1126
      %1128 = vrot.lane.b32.xlu0 %v657, 111
      %v1129 = vpop.permute.xlu0 %1128
      %1130 = vrot.lane.b32.xlu0 %v652, 111
      %v1131 = vpop.permute.xlu0 %1130
      %1132 = vrot.lane.b32.xlu0 %v669, 111
      %v1133 = vpop.permute.xlu0 %1132
      %1134 = vrot.lane.b32.xlu0 %v670, 111
      %v1135 = vpop.permute.xlu0 %1134
      %1136 = vrot.lane.b32.xlu0 %v671, 111
      %v1137 = vpop.permute.xlu0 %1136
      %1138 = vrot.lane.b32.xlu0 %v672, 111
      %v1139 = vpop.permute.xlu0 %1138
      %1140 = vrot.lane.b32.xlu0 %v667, 111
      %v1141 = vpop.permute.xlu0 %1140
      %1142 = vrot.lane.b32.xlu0 %v684, 111
      %v1143 = vpop.permute.xlu0 %1142
      %1144 = vrot.lane.b32.xlu0 %v685, 111
      %v1145 = vpop.permute.xlu0 %1144
      %1146 = vrot.lane.b32.xlu0 %v686, 111
      %v1147 = vpop.permute.xlu0 %1146
      %1148 = vrot.lane.b32.xlu0 %v687, 111
      %v1149 = vpop.permute.xlu0 %1148
      %1150 = vrot.lane.b32.xlu0 %v682, 111
      %v1151 = vpop.permute.xlu0 %1150
      %1152 = vrot.lane.b32.xlu0 %v699, 111
      %v1153 = vpop.permute.xlu0 %1152
      %1154 = vrot.lane.b32.xlu0 %v700, 111
      %v1155 = vpop.permute.xlu0 %1154
      %1156 = vrot.lane.b32.xlu0 %v701, 111
      %v1157 = vpop.permute.xlu0 %1156
      %1158 = vrot.lane.b32.xlu0 %v702, 111
      %v1159 = vpop.permute.xlu0 %1158
      %1160 = vrot.lane.b32.xlu0 %v697, 111
      %v1161 = vpop.permute.xlu0 %1160
      %1162 = vrot.lane.b32.xlu0 %v714, 111
      %v1163 = vpop.permute.xlu0 %1162
      %1164 = vrot.lane.b32.xlu0 %v715, 111
      %v1165 = vpop.permute.xlu0 %1164
      %1166 = vrot.lane.b32.xlu0 %v716, 111
      %v1167 = vpop.permute.xlu0 %1166
      %1168 = vrot.lane.b32.xlu0 %v717, 111
      %v1169 = vpop.permute.xlu0 %1168
      %1170 = vrot.lane.b32.xlu0 %v712, 111
      %v1171 = vpop.permute.xlu0 %1170
      %1172 = vrot.lane.b32.xlu0 %v729, 111
      %v1173 = vpop.permute.xlu0 %1172
      %1174 = vrot.lane.b32.xlu0 %v730, 111
      %v1175 = vpop.permute.xlu0 %1174
      %1176 = vrot.lane.b32.xlu0 %v731, 111
      %v1177 = vpop.permute.xlu0 %1176
      %1178 = vrot.lane.b32.xlu0 %v732, 111
      %v1179 = vpop.permute.xlu0 %1178
      %1180 = vrot.lane.b32.xlu0 %v727, 111
      %v1181 = vpop.permute.xlu0 %1180
      %1182 = vrot.lane.b32.xlu0 %v744, 111
      %v1183 = vpop.permute.xlu0 %1182
      %1184 = vrot.lane.b32.xlu0 %v745, 111
      %v1185 = vpop.permute.xlu0 %1184
      %1186 = vrot.lane.b32.xlu0 %v746, 111
      %v1187 = vpop.permute.xlu0 %1186
      %1188 = vrot.lane.b32.xlu0 %v747, 111
      %v1189 = vpop.permute.xlu0 %1188
      %1190 = vrot.lane.b32.xlu0 %v742, 111
      %v1191 = vpop.permute.xlu0 %1190
      %1192 = vrot.lane.b32.xlu0 %v749, 111
      %v1193 = vpop.permute.xlu0 %1192
      %1194 = vrot.lane.b32.xlu0 %v757, 111
      %v1195 = vpop.permute.xlu0 %1194
      %1196 = vrot.lane.b32.xlu0 %v758, 111
      %v1197 = vpop.permute.xlu0 %1196
      %1198 = vrot.lane.b32.xlu0 %v759, 111
      %v1199 = vpop.permute.xlu0 %1198
      %1200 = vrot.lane.b32.xlu0 %v755, 111
      %v1201 = vpop.permute.xlu0 %1200
      %1202 = vrot.lane.b32.xlu0 %v762, 111
      %v1203 = vpop.permute.xlu0 %1202
      %1204 = vrot.lane.b32.xlu0 %v772, 111
      %v1205 = vpop.permute.xlu0 %1204
      %1206 = vrot.lane.b32.xlu0 %v773, 111
      %v1207 = vpop.permute.xlu0 %1206
      %1208 = vrot.lane.b32.xlu0 %v774, 111
      %v1209 = vpop.permute.xlu0 %1208
      %1210 = vrot.lane.b32.xlu0 %v775, 111
      %v1211 = vpop.permute.xlu0 %1210
      %1212 = vrot.lane.b32.xlu0 %v777, 111
      %v1213 = vpop.permute.xlu0 %1212
      %1214 = vrot.lane.b32.xlu0 %v787, 111
      %v1215 = vpop.permute.xlu0 %1214
      %1216 = vrot.lane.b32.xlu0 %v788, 111
      %v1217 = vpop.permute.xlu0 %1216
      %1218 = vrot.lane.b32.xlu0 %v789, 111
      %v1219 = vpop.permute.xlu0 %1218
      %1220 = vrot.lane.b32.xlu0 %v790, 111
      %v1221 = vpop.permute.xlu0 %1220
      %1222 = vrot.lane.b32.xlu0 %v906, 111
      %v1223 = vpop.permute.xlu0 %1222
      %1224 = vrot.lane.b32.xlu0 %v1016, 111
      %v1225 = vpop.permute.xlu0 %1224
      %1226 = vrot.lane.b32.xlu0 %v1017, 111
      %v1227 = vpop.permute.xlu0 %1226
      %1228 = vrot.lane.b32.xlu0 %v1018, 111
      %v1229 = vpop.permute.xlu0 %1228
      %1230 = vrot.lane.b32.xlu0 %v1019, 111
      %v1231 = vpop.permute.xlu0 %1230
      %1232 = vrot.lane.b32.xlu0 %v916, 111
      %v1233 = vpop.permute.xlu0 %1232
      %1234 = vrot.lane.b32.xlu0 %v1020, 111
      %v1235 = vpop.permute.xlu0 %1234
      %1236 = vrot.lane.b32.xlu0 %v1021, 111
      %v1237 = vpop.permute.xlu0 %1236
      %1238 = vrot.lane.b32.xlu0 %v1022, 111
      %v1239 = vpop.permute.xlu0 %1238
      %1240 = vrot.lane.b32.xlu0 %v1023, 111
      %v1241 = vpop.permute.xlu0 %1240
      %1242 = vrot.lane.b32.xlu0 %v926, 111
      %v1243 = vpop.permute.xlu0 %1242
      %1244 = vrot.lane.b32.xlu0 %v1024, 111
      %v1245 = vpop.permute.xlu0 %1244
      %1246 = vrot.lane.b32.xlu0 %v1025, 111
      %v1247 = vpop.permute.xlu0 %1246
      %1248 = vrot.lane.b32.xlu0 %v1026, 111
      %v1249 = vpop.permute.xlu0 %1248
      %1250 = vrot.lane.b32.xlu0 %v1027, 111
      %v1251 = vpop.permute.xlu0 %1250
      %1252 = vrot.lane.b32.xlu0 %v936, 111
      %v1253 = vpop.permute.xlu0 %1252
      %1254 = vrot.lane.b32.xlu0 %v1028, 111
      %v1255 = vpop.permute.xlu0 %1254
      %1256 = vrot.lane.b32.xlu0 %v1029, 111
      %v1257 = vpop.permute.xlu0 %1256
      %1258 = vrot.lane.b32.xlu0 %v1030, 111
      %v1259 = vpop.permute.xlu0 %1258
      %1260 = vrot.lane.b32.xlu0 %v1031, 111
      %v1261 = vpop.permute.xlu0 %1260
      %1262 = vrot.lane.b32.xlu0 %v946, 111
      %v1263 = vpop.permute.xlu0 %1262
      %1264 = vrot.lane.b32.xlu0 %v1032, 111
      %v1265 = vpop.permute.xlu0 %1264
      %1266 = vrot.lane.b32.xlu0 %v1033, 111
      %v1267 = vpop.permute.xlu0 %1266
      %1268 = vrot.lane.b32.xlu0 %v1034, 111
      %v1269 = vpop.permute.xlu0 %1268
      %1270 = vrot.lane.b32.xlu0 %v1035, 111
      %v1271 = vpop.permute.xlu0 %1270
      %1272 = vrot.lane.b32.xlu0 %v956, 111
      %v1273 = vpop.permute.xlu0 %1272
      %1274 = vrot.lane.b32.xlu0 %v1036, 111
      %v1275 = vpop.permute.xlu0 %1274
      %1276 = vrot.lane.b32.xlu0 %v1037, 111
      %v1277 = vpop.permute.xlu0 %1276
      %1278 = vrot.lane.b32.xlu0 %v1038, 111
      %v1279 = vpop.permute.xlu0 %1278
      %1280 = vrot.lane.b32.xlu0 %v1039, 111
      %v1281 = vpop.permute.xlu0 %1280
      %1282 = vrot.lane.b32.xlu0 %v966, 111
      %v1283 = vpop.permute.xlu0 %1282
      %1284 = vrot.lane.b32.xlu0 %v1040, 111
      %v1285 = vpop.permute.xlu0 %1284
      %1286 = vrot.lane.b32.xlu0 %v1041, 111
      %v1287 = vpop.permute.xlu0 %1286
      %1288 = vrot.lane.b32.xlu0 %v1042, 111
      %v1289 = vpop.permute.xlu0 %1288
      %1290 = vrot.lane.b32.xlu0 %v1043, 111
      %v1291 = vpop.permute.xlu0 %1290
      %1292 = vrot.lane.b32.xlu0 %v976, 111
      %v1293 = vpop.permute.xlu0 %1292
      %1294 = vrot.lane.b32.xlu0 %v1044, 111
      %v1295 = vpop.permute.xlu0 %1294
      %1296 = vrot.lane.b32.xlu0 %v1045, 111
      %v1297 = vpop.permute.xlu0 %1296
      %1298 = vrot.lane.b32.xlu0 %v1046, 111
      %v1299 = vpop.permute.xlu0 %1298
      %1300 = vrot.lane.b32.xlu0 %v1047, 111
      %v1301 = vpop.permute.xlu0 %1300
      %1302 = vrot.lane.b32.xlu0 %v986, 111
      %v1303 = vpop.permute.xlu0 %1302
      %1304 = vrot.lane.b32.xlu0 %v1048, 111
      %v1305 = vpop.permute.xlu0 %1304
      %1306 = vrot.lane.b32.xlu0 %v1049, 111
      %v1307 = vpop.permute.xlu0 %1306
      %1308 = vrot.lane.b32.xlu0 %v1050, 111
      %v1309 = vpop.permute.xlu0 %1308
      %1310 = vrot.lane.b32.xlu0 %v1051, 111
      %v1311 = vpop.permute.xlu0 %1310
      %1312 = vrot.lane.b32.xlu0 %v996, 111
      %v1313 = vpop.permute.xlu0 %1312
      %1314 = vrot.lane.b32.xlu0 %v1052, 111
      %v1315 = vpop.permute.xlu0 %1314
      %1316 = vrot.lane.b32.xlu0 %v1053, 111
      %v1317 = vpop.permute.xlu0 %1316
      %1318 = vrot.lane.b32.xlu0 %v1054, 111
      %v1319 = vpop.permute.xlu0 %1318
      %1320 = vrot.lane.b32.xlu0 %v1055, 111
      %v1321 = vpop.permute.xlu0 %1320
      %1322 = vrot.lane.b32.xlu0 %v1006, 111
      %v1323 = vpop.permute.xlu0 %1322
      %1324 = vrot.lane.b32.xlu0 %v1056, 111
      %v1325 = vpop.permute.xlu0 %1324
      %1326 = vrot.lane.b32.xlu0 %v1057, 111
      %v1327 = vpop.permute.xlu0 %1326
      %1328 = vrot.lane.b32.xlu0 %v1058, 111
      %v1329 = vpop.permute.xlu0 %1328
      %1330 = vrot.lane.b32.xlu0 %v1059, 111
      %v1331 = vpop.permute.xlu0 %1330
      %vm1332 = vcmask 908288
      %v1333 = vsel %vm1332, %v1063, %v1065
      %v1334 = vsel %vm1332, %v1065, %v1067
      %v1335 = vsel %vm1332, %v1067, %v1069
      %v1336 = vsel %vm1332, %v1069, %v1071
      %v1337 = vsel %vm1332, %v1073, %v1075
      %v1338 = vsel %vm1332, %v1075, %v1077
      %v1339 = vsel %vm1332, %v1077, %v1079
      %v1340 = vsel %vm1332, %v1079, %v1081
      %v1341 = vsel %vm1332, %v1083, %v1085
      %v1342 = vsel %vm1332, %v1085, %v1087
      %v1343 = vsel %vm1332, %v1087, %v1089
      %v1344 = vsel %vm1332, %v1089, %v1091
      %v1345 = vsel %vm1332, %v1093, %v1095
      %v1346 = vsel %vm1332, %v1095, %v1097
      %v1347 = vsel %vm1332, %v1097, %v1099
      %v1348 = vsel %vm1332, %v1099, %v1101
      %v1349 = vsel %vm1332, %v1103, %v1105
      %v1350 = vsel %vm1332, %v1105, %v1107
      %v1351 = vsel %vm1332, %v1107, %v1109
      %v1352 = vsel %vm1332, %v1109, %v1111
      %v1353 = vsel %vm1332, %v1113, %v1115
      %v1354 = vsel %vm1332, %v1115, %v1117
      %v1355 = vsel %vm1332, %v1117, %v1119
      %v1356 = vsel %vm1332, %v1119, %v1121
      %v1357 = vsel %vm1332, %v1123, %v1125
      %v1358 = vsel %vm1332, %v1125, %v1127
      %v1359 = vsel %vm1332, %v1127, %v1129
      %v1360 = vsel %vm1332, %v1129, %v1131
      %v1361 = vsel %vm1332, %v1133, %v1135
      %v1362 = vsel %vm1332, %v1135, %v1137
      %v1363 = vsel %vm1332, %v1137, %v1139
      %v1364 = vsel %vm1332, %v1139, %v1141
      %v1365 = vsel %vm1332, %v1143, %v1145
      %v1366 = vsel %vm1332, %v1145, %v1147
      %v1367 = vsel %vm1332, %v1147, %v1149
      %v1368 = vsel %vm1332, %v1149, %v1151
      %v1369 = vsel %vm1332, %v1153, %v1155
      %v1370 = vsel %vm1332, %v1155, %v1157
      %v1371 = vsel %vm1332, %v1157, %v1159
      %v1372 = vsel %vm1332, %v1159, %v1161
      %v1373 = vsel %vm1332, %v1163, %v1165
      %v1374 = vsel %vm1332, %v1165, %v1167
      %v1375 = vsel %vm1332, %v1167, %v1169
      %v1376 = vsel %vm1332, %v1169, %v1171
      %v1377 = vsel %vm1332, %v1173, %v1175
      %v1378 = vsel %vm1332, %v1175, %v1177
      %v1379 = vsel %vm1332, %v1177, %v1179
      %v1380 = vsel %vm1332, %v1179, %v1181
      %v1381 = vsel %vm1332, %v1183, %v1185
      %v1382 = vsel %vm1332, %v1185, %v1187
      %v1383 = vsel %vm1332, %v1187, %v1189
      %v1384 = vsel %vm1332, %v1189, %v1191
      %v1385 = vsel %vm1332, %v1193, %v1195
      %v1386 = vsel %vm1332, %v1195, %v1197
      %v1387 = vsel %vm1332, %v1197, %v1199
      %v1388 = vsel %vm1332, %v1199, %v1201
      %v1389 = vsel %vm1332, %v1203, %v1205
      %v1390 = vsel %vm1332, %v1205, %v1207
      %v1391 = vsel %vm1332, %v1207, %v1209
      %v1392 = vsel %vm1332, %v1209, %v1211
      %v1393 = vsel %vm1332, %v1213, %v1215
      %v1394 = vsel %vm1332, %v1215, %v1217
      %v1395 = vsel %vm1332, %v1217, %v1219
      %v1396 = vsel %vm1332, %v1219, %v1221
      %v1397 = vsel %vm1332, %v1223, %v1225
      %v1398 = vsel %vm1332, %v1225, %v1227
      %v1399 = vsel %vm1332, %v1227, %v1229
      %v1400 = vsel %vm1332, %v1229, %v1231
      %v1401 = vsel %vm1332, %v1233, %v1235
      %v1402 = vsel %vm1332, %v1235, %v1237
      %v1403 = vsel %vm1332, %v1237, %v1239
      %v1404 = vsel %vm1332, %v1239, %v1241
      %v1405 = vsel %vm1332, %v1243, %v1245
      %v1406 = vsel %vm1332, %v1245, %v1247
      %v1407 = vsel %vm1332, %v1247, %v1249
      %v1408 = vsel %vm1332, %v1249, %v1251
      %v1409 = vsel %vm1332, %v1253, %v1255
      %v1410 = vsel %vm1332, %v1255, %v1257
      %v1411 = vsel %vm1332, %v1257, %v1259
      %v1412 = vsel %vm1332, %v1259, %v1261
      %v1413 = vsel %vm1332, %v1263, %v1265
      %v1414 = vsel %vm1332, %v1265, %v1267
      %v1415 = vsel %vm1332, %v1267, %v1269
      %v1416 = vsel %vm1332, %v1269, %v1271
      %v1417 = vsel %vm1332, %v1273, %v1275
      %v1418 = vsel %vm1332, %v1275, %v1277
      %v1419 = vsel %vm1332, %v1277, %v1279
      %v1420 = vsel %vm1332, %v1279, %v1281
      %v1421 = vsel %vm1332, %v1283, %v1285
      %v1422 = vsel %vm1332, %v1285, %v1287
      %v1423 = vsel %vm1332, %v1287, %v1289
      %v1424 = vsel %vm1332, %v1289, %v1291
      %v1425 = vsel %vm1332, %v1293, %v1295
      %v1426 = vsel %vm1332, %v1295, %v1297
      %v1427 = vsel %vm1332, %v1297, %v1299
      %v1428 = vsel %vm1332, %v1299, %v1301
      %v1429 = vsel %vm1332, %v1303, %v1305
      %v1430 = vsel %vm1332, %v1305, %v1307
      %v1431 = vsel %vm1332, %v1307, %v1309
      %v1432 = vsel %vm1332, %v1309, %v1311
      %v1433 = vsel %vm1332, %v1313, %v1315
      %v1434 = vsel %vm1332, %v1315, %v1317
      %v1435 = vsel %vm1332, %v1317, %v1319
      %v1436 = vsel %vm1332, %v1319, %v1321
      %v1437 = vsel %vm1332, %v1323, %v1325
      %v1438 = vsel %vm1332, %v1325, %v1327
      %v1439 = vsel %vm1332, %v1327, %v1329
      %v1440 = vsel %vm1332, %v1329, %v1331
      %vm1549 = vcmask 719872
      %v1551 = vsel %vm1549, %v1061, 0
      %v1553 = vand.u32 %v1393, 4294901760
      %1554 = vmatpush.msra.mxu0 %v1553
      %v1555 = vand.u32 %v1389, 4294901760
      %1556 = vmatpush.msra.mxu0 %v1555
      %v1557 = vand.u32 %v1385, 4294901760
      %1558 = vmatpush.msra.mxu0 %v1557
      %v1559 = vand.u32 %v1381, 4294901760
      %1560 = vmatpush.msra.mxu0 %v1559
      %v1561 = vand.u32 %v1377, 4294901760
      %1562 = vmatpush.msra.mxu0 %v1561
      %v1563 = vand.u32 %v1373, 4294901760
      %1564 = vmatpush.msra.mxu0 %v1563
      %v1565 = vand.u32 %v1369, 4294901760
      %1566 = vmatpush.msra.mxu0 %v1565
      %v1567 = vand.u32 %v1365, 4294901760
      %1568 = vmatpush.msra.mxu0 %v1567
      %v1569 = vand.u32 %v1361, 4294901760
      %1570 = vmatpush.msra.mxu0 %v1569
      %v1571 = vand.u32 %v1357, 4294901760
      %1572 = vmatpush.msra.mxu0 %v1571
      %v1573 = vand.u32 %v1353, 4294901760
      %1574 = vmatpush.msra.mxu0 %v1573
      %v1575 = vand.u32 %v1349, 4294901760
      %1576 = vmatpush.msra.mxu0 %v1575
      %v1577 = vand.u32 %v1345, 4294901760
      %1578 = vmatpush.msra.mxu0 %v1577
      %v1579 = vand.u32 %v1341, 4294901760
      %1580 = vmatpush.msra.mxu0 %v1579
      %v1581 = vand.u32 %v1337, 4294901760
      %1582 = vmatpush.msra.mxu0 %v1581
      %v1583 = vand.u32 %v1333, 4294901760
      %1584 = vmatpush.msra.mxu0 %v1583
      %v1585 = vand.u32 %v1060, 4294901760
      %v1586 = vsub.f32 %v1060, %v1585
      %v1587 = vand.u32 %v1586, 4294901760
      %v1588 = vsub.f32 %v1586, %v1587
      %v1589 = vand.u32 %v1588, 4294901760
      %1590 = vmatmul.f32.gmra.mxu0 %v1589
      %v1591 = vpop.f32.mrf.mxu0
      %v1592 = vadd.f32 0.0, %v1591
      %1593 = vdwg.mxu0
      %v1594 = vand.u32 %v1393, 4294901760
      %v1595 = vsub.f32 %v1393, %v1594
      %v1596 = vand.u32 %v1595, 4294901760
      %v1597 = vsub.f32 %v1595, %v1596
      %v1598 = vand.u32 %v1597, 4294901760
      %1599 = vmatpush.msra.mxu0 %v1598
      %v1600 = vand.u32 %v1389, 4294901760
      %v1601 = vsub.f32 %v1389, %v1600
      %v1602 = vand.u32 %v1601, 4294901760
      %v1603 = vsub.f32 %v1601, %v1602
      %v1604 = vand.u32 %v1603, 4294901760
      %1605 = vmatpush.msra.mxu0 %v1604
      %v1606 = vand.u32 %v1385, 4294901760
      %v1607 = vsub.f32 %v1385, %v1606
      %v1608 = vand.u32 %v1607, 4294901760
      %v1609 = vsub.f32 %v1607, %v1608
      %v1610 = vand.u32 %v1609, 4294901760
      %1611 = vmatpush.msra.mxu0 %v1610
      %v1612 = vand.u32 %v1381, 4294901760
      %v1613 = vsub.f32 %v1381, %v1612
      %v1614 = vand.u32 %v1613, 4294901760
      %v1615 = vsub.f32 %v1613, %v1614
      %v1616 = vand.u32 %v1615, 4294901760
      %1617 = vmatpush.msra.mxu0 %v1616
      %v1618 = vand.u32 %v1377, 4294901760
      %v1619 = vsub.f32 %v1377, %v1618
      %v1620 = vand.u32 %v1619, 4294901760
      %v1621 = vsub.f32 %v1619, %v1620
      %v1622 = vand.u32 %v1621, 4294901760
      %1623 = vmatpush.msra.mxu0 %v1622
      %v1624 = vand.u32 %v1373, 4294901760
      %v1625 = vsub.f32 %v1373, %v1624
      %v1626 = vand.u32 %v1625, 4294901760
      %v1627 = vsub.f32 %v1625, %v1626
      %v1628 = vand.u32 %v1627, 4294901760
      %1629 = vmatpush.msra.mxu0 %v1628
      %v1630 = vand.u32 %v1369, 4294901760
      %v1631 = vsub.f32 %v1369, %v1630
      %v1632 = vand.u32 %v1631, 4294901760
      %v1633 = vsub.f32 %v1631, %v1632
      %v1634 = vand.u32 %v1633, 4294901760
      %1635 = vmatpush.msra.mxu0 %v1634
      %v1636 = vand.u32 %v1365, 4294901760
      %v1637 = vsub.f32 %v1365, %v1636
      %v1638 = vand.u32 %v1637, 4294901760
      %v1639 = vsub.f32 %v1637, %v1638
      %v1640 = vand.u32 %v1639, 4294901760
      %1641 = vmatpush.msra.mxu0 %v1640
      %v1642 = vand.u32 %v1361, 4294901760
      %v1643 = vsub.f32 %v1361, %v1642
      %v1644 = vand.u32 %v1643, 4294901760
      %v1645 = vsub.f32 %v1643, %v1644
      %v1646 = vand.u32 %v1645, 4294901760
      %1647 = vmatpush.msra.mxu0 %v1646
      %v1648 = vand.u32 %v1357, 4294901760
      %v1649 = vsub.f32 %v1357, %v1648
      %v1650 = vand.u32 %v1649, 4294901760
      %v1651 = vsub.f32 %v1649, %v1650
      %v1652 = vand.u32 %v1651, 4294901760
      %1653 = vmatpush.msra.mxu0 %v1652
      %v1654 = vand.u32 %v1353, 4294901760
      %v1655 = vsub.f32 %v1353, %v1654
      %v1656 = vand.u32 %v1655, 4294901760
      %v1657 = vsub.f32 %v1655, %v1656
      %v1658 = vand.u32 %v1657, 4294901760
      %1659 = vmatpush.msra.mxu0 %v1658
      %v1660 = vand.u32 %v1349, 4294901760
      %v1661 = vsub.f32 %v1349, %v1660
      %v1662 = vand.u32 %v1661, 4294901760
      %v1663 = vsub.f32 %v1661, %v1662
      %v1664 = vand.u32 %v1663, 4294901760
      %1665 = vmatpush.msra.mxu0 %v1664
      %v1666 = vand.u32 %v1345, 4294901760
      %v1667 = vsub.f32 %v1345, %v1666
      %v1668 = vand.u32 %v1667, 4294901760
      %v1669 = vsub.f32 %v1667, %v1668
      %v1670 = vand.u32 %v1669, 4294901760
      %1671 = vmatpush.msra.mxu0 %v1670
      %v1672 = vand.u32 %v1341, 4294901760
      %v1673 = vsub.f32 %v1341, %v1672
      %v1674 = vand.u32 %v1673, 4294901760
      %v1675 = vsub.f32 %v1673, %v1674
      %v1676 = vand.u32 %v1675, 4294901760
      %1677 = vmatpush.msra.mxu0 %v1676
      %v1678 = vand.u32 %v1337, 4294901760
      %v1679 = vsub.f32 %v1337, %v1678
      %v1680 = vand.u32 %v1679, 4294901760
      %v1681 = vsub.f32 %v1679, %v1680
      %v1682 = vand.u32 %v1681, 4294901760
      %1683 = vmatpush.msra.mxu0 %v1682
      %v1684 = vand.u32 %v1333, 4294901760
      %v1685 = vsub.f32 %v1333, %v1684
      %v1686 = vand.u32 %v1685, 4294901760
      %v1687 = vsub.f32 %v1685, %v1686
      %v1688 = vand.u32 %v1687, 4294901760
      %1689 = vmatpush.msra.mxu0 %v1688
      %v1690 = vand.u32 %v1060, 4294901760
      %1691 = vmatmul.f32.gmra.mxu0 %v1690
      %v1692 = vpop.f32.mrf.mxu0
      %v1693 = vadd.f32 %v1592, %v1692
      %1694 = vdwg.mxu0
      %v1695 = vand.u32 %v1393, 4294901760
      %v1696 = vsub.f32 %v1393, %v1695
      %1697 = vmatpush.msra.mxu0 %v1696
      %v1698 = vand.u32 %v1389, 4294901760
      %v1699 = vsub.f32 %v1389, %v1698
      %1700 = vmatpush.msra.mxu0 %v1699
      %v1701 = vand.u32 %v1385, 4294901760
      %v1702 = vsub.f32 %v1385, %v1701
      %1703 = vmatpush.msra.mxu0 %v1702
      %v1704 = vand.u32 %v1381, 4294901760
      %v1705 = vsub.f32 %v1381, %v1704
      %1706 = vmatpush.msra.mxu0 %v1705
      %v1707 = vand.u32 %v1377, 4294901760
      %v1708 = vsub.f32 %v1377, %v1707
      %1709 = vmatpush.msra.mxu0 %v1708
      %v1710 = vand.u32 %v1373, 4294901760
      %v1711 = vsub.f32 %v1373, %v1710
      %1712 = vmatpush.msra.mxu0 %v1711
      %v1713 = vand.u32 %v1369, 4294901760
      %v1714 = vsub.f32 %v1369, %v1713
      %1715 = vmatpush.msra.mxu0 %v1714
      %v1716 = vand.u32 %v1365, 4294901760
      %v1717 = vsub.f32 %v1365, %v1716
      %1718 = vmatpush.msra.mxu0 %v1717
      %v1719 = vand.u32 %v1361, 4294901760
      %v1720 = vsub.f32 %v1361, %v1719
      %1721 = vmatpush.msra.mxu0 %v1720
      %v1722 = vand.u32 %v1357, 4294901760
      %v1723 = vsub.f32 %v1357, %v1722
      %1724 = vmatpush.msra.mxu0 %v1723
      %v1725 = vand.u32 %v1353, 4294901760
      %v1726 = vsub.f32 %v1353, %v1725
      %1727 = vmatpush.msra.mxu0 %v1726
      %v1728 = vand.u32 %v1349, 4294901760
      %v1729 = vsub.f32 %v1349, %v1728
      %1730 = vmatpush.msra.mxu0 %v1729
      %v1731 = vand.u32 %v1345, 4294901760
      %v1732 = vsub.f32 %v1345, %v1731
      %1733 = vmatpush.msra.mxu0 %v1732
      %v1734 = vand.u32 %v1341, 4294901760
      %v1735 = vsub.f32 %v1341, %v1734
      %1736 = vmatpush.msra.mxu0 %v1735
      %v1737 = vand.u32 %v1337, 4294901760
      %v1738 = vsub.f32 %v1337, %v1737
      %1739 = vmatpush.msra.mxu0 %v1738
      %v1740 = vand.u32 %v1333, 4294901760
      %v1741 = vsub.f32 %v1333, %v1740
      %1742 = vmatpush.msra.mxu0 %v1741
      %v1743 = vand.u32 %v1060, 4294901760
      %v1744 = vsub.f32 %v1060, %v1743
      %1745 = vmatmul.f32.gmra.mxu0 %v1744
      %v1746 = vpop.f32.mrf.mxu0
      %v1747 = vadd.f32 %v1693, %v1746
      %1748 = vdwg.mxu0
      %v1749 = vand.u32 %v1393, 4294901760
      %1750 = vmatpush.msra.mxu0 %v1749
      %v1751 = vand.u32 %v1389, 4294901760
      %1752 = vmatpush.msra.mxu0 %v1751
      %v1753 = vand.u32 %v1385, 4294901760
      %1754 = vmatpush.msra.mxu0 %v1753
      %v1755 = vand.u32 %v1381, 4294901760
      %1756 = vmatpush.msra.mxu0 %v1755
      %v1757 = vand.u32 %v1377, 4294901760
      %1758 = vmatpush.msra.mxu0 %v1757
      %v1759 = vand.u32 %v1373, 4294901760
      %1760 = vmatpush.msra.mxu0 %v1759
      %v1761 = vand.u32 %v1369, 4294901760
      %1762 = vmatpush.msra.mxu0 %v1761
      %v1763 = vand.u32 %v1365, 4294901760
      %1764 = vmatpush.msra.mxu0 %v1763
      %v1765 = vand.u32 %v1361, 4294901760
      %1766 = vmatpush.msra.mxu0 %v1765
      %v1767 = vand.u32 %v1357, 4294901760
      %1768 = vmatpush.msra.mxu0 %v1767
      %v1769 = vand.u32 %v1353, 4294901760
      %1770 = vmatpush.msra.mxu0 %v1769
      %v1771 = vand.u32 %v1349, 4294901760
      %1772 = vmatpush.msra.mxu0 %v1771
      %v1773 = vand.u32 %v1345, 4294901760
      %1774 = vmatpush.msra.mxu0 %v1773
      %v1775 = vand.u32 %v1341, 4294901760
      %1776 = vmatpush.msra.mxu0 %v1775
      %v1777 = vand.u32 %v1337, 4294901760
      %1778 = vmatpush.msra.mxu0 %v1777
      %v1779 = vand.u32 %v1333, 4294901760
      %1780 = vmatpush.msra.mxu0 %v1779
      %v1781 = vand.u32 %v1060, 4294901760
      %v1782 = vsub.f32 %v1060, %v1781
      %v1783 = vand.u32 %v1782, 4294901760
      %1784 = vmatmul.f32.gmra.mxu0 %v1783
      %v1785 = vpop.f32.mrf.mxu0
      %v1786 = vadd.f32 %v1747, %v1785
      %1787 = vdwg.mxu0
      %v1788 = vand.u32 %v1393, 4294901760
      %v1789 = vsub.f32 %v1393, %v1788
      %v1790 = vand.u32 %v1789, 4294901760
      %1791 = vmatpush.msra.mxu0 %v1790
      %v1792 = vand.u32 %v1389, 4294901760
      %v1793 = vsub.f32 %v1389, %v1792
      %v1794 = vand.u32 %v1793, 4294901760
      %1795 = vmatpush.msra.mxu0 %v1794
      %v1796 = vand.u32 %v1385, 4294901760
      %v1797 = vsub.f32 %v1385, %v1796
      %v1798 = vand.u32 %v1797, 4294901760
      %1799 = vmatpush.msra.mxu0 %v1798
      %v1800 = vand.u32 %v1381, 4294901760
      %v1801 = vsub.f32 %v1381, %v1800
      %v1802 = vand.u32 %v1801, 4294901760
      %1803 = vmatpush.msra.mxu0 %v1802
      %v1804 = vand.u32 %v1377, 4294901760
      %v1805 = vsub.f32 %v1377, %v1804
      %v1806 = vand.u32 %v1805, 4294901760
      %1807 = vmatpush.msra.mxu0 %v1806
      %v1808 = vand.u32 %v1373, 4294901760
      %v1809 = vsub.f32 %v1373, %v1808
      %v1810 = vand.u32 %v1809, 4294901760
      %1811 = vmatpush.msra.mxu0 %v1810
      %v1812 = vand.u32 %v1369, 4294901760
      %v1813 = vsub.f32 %v1369, %v1812
      %v1814 = vand.u32 %v1813, 4294901760
      %1815 = vmatpush.msra.mxu0 %v1814
      %v1816 = vand.u32 %v1365, 4294901760
      %v1817 = vsub.f32 %v1365, %v1816
      %v1818 = vand.u32 %v1817, 4294901760
      %1819 = vmatpush.msra.mxu0 %v1818
      %v1820 = vand.u32 %v1361, 4294901760
      %v1821 = vsub.f32 %v1361, %v1820
      %v1822 = vand.u32 %v1821, 4294901760
      %1823 = vmatpush.msra.mxu0 %v1822
      %v1824 = vand.u32 %v1357, 4294901760
      %v1825 = vsub.f32 %v1357, %v1824
      %v1826 = vand.u32 %v1825, 4294901760
      %1827 = vmatpush.msra.mxu0 %v1826
      %v1828 = vand.u32 %v1353, 4294901760
      %v1829 = vsub.f32 %v1353, %v1828
      %v1830 = vand.u32 %v1829, 4294901760
      %1831 = vmatpush.msra.mxu0 %v1830
      %v1832 = vand.u32 %v1349, 4294901760
      %v1833 = vsub.f32 %v1349, %v1832
      %v1834 = vand.u32 %v1833, 4294901760
      %1835 = vmatpush.msra.mxu0 %v1834
      %v1836 = vand.u32 %v1345, 4294901760
      %v1837 = vsub.f32 %v1345, %v1836
      %v1838 = vand.u32 %v1837, 4294901760
      %1839 = vmatpush.msra.mxu0 %v1838
      %v1840 = vand.u32 %v1341, 4294901760
      %v1841 = vsub.f32 %v1341, %v1840
      %v1842 = vand.u32 %v1841, 4294901760
      %1843 = vmatpush.msra.mxu0 %v1842
      %v1844 = vand.u32 %v1337, 4294901760
      %v1845 = vsub.f32 %v1337, %v1844
      %v1846 = vand.u32 %v1845, 4294901760
      %1847 = vmatpush.msra.mxu0 %v1846
      %v1848 = vand.u32 %v1333, 4294901760
      %v1849 = vsub.f32 %v1333, %v1848
      %v1850 = vand.u32 %v1849, 4294901760
      %1851 = vmatpush.msra.mxu0 %v1850
      %v1852 = vand.u32 %v1060, 4294901760
      %1853 = vmatmul.f32.gmra.mxu0 %v1852
      %v1854 = vpop.f32.mrf.mxu0
      %v1855 = vadd.f32 %v1786, %v1854
      %1856 = vdwg.mxu0
      %v1857 = vand.u32 %v1393, 4294901760
      %1858 = vmatpush.msra.mxu0 %v1857
      %v1859 = vand.u32 %v1389, 4294901760
      %1860 = vmatpush.msra.mxu0 %v1859
      %v1861 = vand.u32 %v1385, 4294901760
      %1862 = vmatpush.msra.mxu0 %v1861
      %v1863 = vand.u32 %v1381, 4294901760
      %1864 = vmatpush.msra.mxu0 %v1863
      %v1865 = vand.u32 %v1377, 4294901760
      %1866 = vmatpush.msra.mxu0 %v1865
      %v1867 = vand.u32 %v1373, 4294901760
      %1868 = vmatpush.msra.mxu0 %v1867
      %v1869 = vand.u32 %v1369, 4294901760
      %1870 = vmatpush.msra.mxu0 %v1869
      %v1871 = vand.u32 %v1365, 4294901760
      %1872 = vmatpush.msra.mxu0 %v1871
      %v1873 = vand.u32 %v1361, 4294901760
      %1874 = vmatpush.msra.mxu0 %v1873
      %v1875 = vand.u32 %v1357, 4294901760
      %1876 = vmatpush.msra.mxu0 %v1875
      %v1877 = vand.u32 %v1353, 4294901760
      %1878 = vmatpush.msra.mxu0 %v1877
      %v1879 = vand.u32 %v1349, 4294901760
      %1880 = vmatpush.msra.mxu0 %v1879
      %v1881 = vand.u32 %v1345, 4294901760
      %1882 = vmatpush.msra.mxu0 %v1881
      %v1883 = vand.u32 %v1341, 4294901760
      %1884 = vmatpush.msra.mxu0 %v1883
      %v1885 = vand.u32 %v1337, 4294901760
      %1886 = vmatpush.msra.mxu0 %v1885
      %v1887 = vand.u32 %v1333, 4294901760
      %1888 = vmatpush.msra.mxu0 %v1887
      %v1889 = vand.u32 %v1060, 4294901760
      %1890 = vmatmul.f32.gmra.mxu0 %v1889
      %v1891 = vpop.f32.mrf.mxu0
      %v1892 = vadd.f32 %v1855, %v1891
      %1893 = vdwg.mxu0
      %1894 = vmatpush.msra.mxu0 0.0
      %1895 = vmatpush.msra.mxu0 0.0
      %1896 = vmatpush.msra.mxu0 0.0
      %1897 = vmatpush.msra.mxu0 0.0
      %1898 = vmatpush.msra.mxu0 0.0
      %v1899 = vand.u32 %v1437, 4294901760
      %1900 = vmatpush.msra.mxu0 %v1899
      %v1901 = vand.u32 %v1433, 4294901760
      %1902 = vmatpush.msra.mxu0 %v1901
      %v1903 = vand.u32 %v1429, 4294901760
      %1904 = vmatpush.msra.mxu0 %v1903
      %v1905 = vand.u32 %v1425, 4294901760
      %1906 = vmatpush.msra.mxu0 %v1905
      %v1907 = vand.u32 %v1421, 4294901760
      %1908 = vmatpush.msra.mxu0 %v1907
      %v1909 = vand.u32 %v1417, 4294901760
      %1910 = vmatpush.msra.mxu0 %v1909
      %v1911 = vand.u32 %v1413, 4294901760
      %1912 = vmatpush.msra.mxu0 %v1911
      %v1913 = vand.u32 %v1409, 4294901760
      %1914 = vmatpush.msra.mxu0 %v1913
      %v1915 = vand.u32 %v1405, 4294901760
      %1916 = vmatpush.msra.mxu0 %v1915
      %v1917 = vand.u32 %v1401, 4294901760
      %1918 = vmatpush.msra.mxu0 %v1917
      %v1919 = vand.u32 %v1397, 4294901760
      %1920 = vmatpush.msra.mxu0 %v1919
      %v1921 = vand.u32 %v1551, 4294901760
      %v1922 = vsub.f32 %v1551, %v1921
      %v1923 = vand.u32 %v1922, 4294901760
      %v1924 = vsub.f32 %v1922, %v1923
      %v1925 = vand.u32 %v1924, 4294901760
      %1926 = vmatmul.f32.gmra.mxu0 %v1925
      %v1927 = vpop.f32.mrf.mxu0
      %v1928 = vadd.f32 %v1892, %v1927
      %1929 = vdwg.mxu0
      %1930 = vmatpush.msra.mxu0 0.0
      %1931 = vmatpush.msra.mxu0 0.0
      %1932 = vmatpush.msra.mxu0 0.0
      %1933 = vmatpush.msra.mxu0 0.0
      %1934 = vmatpush.msra.mxu0 0.0
      %v1935 = vand.u32 %v1437, 4294901760
      %v1936 = vsub.f32 %v1437, %v1935
      %v1937 = vand.u32 %v1936, 4294901760
      %v1938 = vsub.f32 %v1936, %v1937
      %v1939 = vand.u32 %v1938, 4294901760
      %1940 = vmatpush.msra.mxu0 %v1939
      %v1941 = vand.u32 %v1433, 4294901760
      %v1942 = vsub.f32 %v1433, %v1941
      %v1943 = vand.u32 %v1942, 4294901760
      %v1944 = vsub.f32 %v1942, %v1943
      %v1945 = vand.u32 %v1944, 4294901760
      %1946 = vmatpush.msra.mxu0 %v1945
      %v1947 = vand.u32 %v1429, 4294901760
      %v1948 = vsub.f32 %v1429, %v1947
      %v1949 = vand.u32 %v1948, 4294901760
      %v1950 = vsub.f32 %v1948, %v1949
      %v1951 = vand.u32 %v1950, 4294901760
      %1952 = vmatpush.msra.mxu0 %v1951
      %v1953 = vand.u32 %v1425, 4294901760
      %v1954 = vsub.f32 %v1425, %v1953
      %v1955 = vand.u32 %v1954, 4294901760
      %v1956 = vsub.f32 %v1954, %v1955
      %v1957 = vand.u32 %v1956, 4294901760
      %1958 = vmatpush.msra.mxu0 %v1957
      %v1959 = vand.u32 %v1421, 4294901760
      %v1960 = vsub.f32 %v1421, %v1959
      %v1961 = vand.u32 %v1960, 4294901760
      %v1962 = vsub.f32 %v1960, %v1961
      %v1963 = vand.u32 %v1962, 4294901760
      %1964 = vmatpush.msra.mxu0 %v1963
      %v1965 = vand.u32 %v1417, 4294901760
      %v1966 = vsub.f32 %v1417, %v1965
      %v1967 = vand.u32 %v1966, 4294901760
      %v1968 = vsub.f32 %v1966, %v1967
      %v1969 = vand.u32 %v1968, 4294901760
      %1970 = vmatpush.msra.mxu0 %v1969
      %v1971 = vand.u32 %v1413, 4294901760
      %v1972 = vsub.f32 %v1413, %v1971
      %v1973 = vand.u32 %v1972, 4294901760
      %v1974 = vsub.f32 %v1972, %v1973
      %v1975 = vand.u32 %v1974, 4294901760
      %1976 = vmatpush.msra.mxu0 %v1975
      %v1977 = vand.u32 %v1409, 4294901760
      %v1978 = vsub.f32 %v1409, %v1977
      %v1979 = vand.u32 %v1978, 4294901760
      %v1980 = vsub.f32 %v1978, %v1979
      %v1981 = vand.u32 %v1980, 4294901760
      %1982 = vmatpush.msra.mxu0 %v1981
      %v1983 = vand.u32 %v1405, 4294901760
      %v1984 = vsub.f32 %v1405, %v1983
      %v1985 = vand.u32 %v1984, 4294901760
      %v1986 = vsub.f32 %v1984, %v1985
      %v1987 = vand.u32 %v1986, 4294901760
      %1988 = vmatpush.msra.mxu0 %v1987
      %v1989 = vand.u32 %v1401, 4294901760
      %v1990 = vsub.f32 %v1401, %v1989
      %v1991 = vand.u32 %v1990, 4294901760
      %v1992 = vsub.f32 %v1990, %v1991
      %v1993 = vand.u32 %v1992, 4294901760
      %1994 = vmatpush.msra.mxu0 %v1993
      %v1995 = vand.u32 %v1397, 4294901760
      %v1996 = vsub.f32 %v1397, %v1995
      %v1997 = vand.u32 %v1996, 4294901760
      %v1998 = vsub.f32 %v1996, %v1997
      %v1999 = vand.u32 %v1998, 4294901760
      %2000 = vmatpush.msra.mxu0 %v1999
      %v2001 = vand.u32 %v1551, 4294901760
      %2002 = vmatmul.f32.gmra.mxu0 %v2001
      %v2003 = vpop.f32.mrf.mxu0
      %v2004 = vadd.f32 %v1928, %v2003
      %2005 = vdwg.mxu0
      %2006 = vmatpush.msra.mxu0 0.0
      %2007 = vmatpush.msra.mxu0 0.0
      %2008 = vmatpush.msra.mxu0 0.0
      %2009 = vmatpush.msra.mxu0 0.0
      %2010 = vmatpush.msra.mxu0 0.0
      %v2011 = vand.u32 %v1437, 4294901760
      %v2012 = vsub.f32 %v1437, %v2011
      %2013 = vmatpush.msra.mxu0 %v2012
      %v2014 = vand.u32 %v1433, 4294901760
      %v2015 = vsub.f32 %v1433, %v2014
      %2016 = vmatpush.msra.mxu0 %v2015
      %v2017 = vand.u32 %v1429, 4294901760
      %v2018 = vsub.f32 %v1429, %v2017
      %2019 = vmatpush.msra.mxu0 %v2018
      %v2020 = vand.u32 %v1425, 4294901760
      %v2021 = vsub.f32 %v1425, %v2020
      %2022 = vmatpush.msra.mxu0 %v2021
      %v2023 = vand.u32 %v1421, 4294901760
      %v2024 = vsub.f32 %v1421, %v2023
      %2025 = vmatpush.msra.mxu0 %v2024
      %v2026 = vand.u32 %v1417, 4294901760
      %v2027 = vsub.f32 %v1417, %v2026
      %2028 = vmatpush.msra.mxu0 %v2027
      %v2029 = vand.u32 %v1413, 4294901760
      %v2030 = vsub.f32 %v1413, %v2029
      %2031 = vmatpush.msra.mxu0 %v2030
      %v2032 = vand.u32 %v1409, 4294901760
      %v2033 = vsub.f32 %v1409, %v2032
      %2034 = vmatpush.msra.mxu0 %v2033
      %v2035 = vand.u32 %v1405, 4294901760
      %v2036 = vsub.f32 %v1405, %v2035
      %2037 = vmatpush.msra.mxu0 %v2036
      %v2038 = vand.u32 %v1401, 4294901760
      %v2039 = vsub.f32 %v1401, %v2038
      %2040 = vmatpush.msra.mxu0 %v2039
      %v2041 = vand.u32 %v1397, 4294901760
      %v2042 = vsub.f32 %v1397, %v2041
      %2043 = vmatpush.msra.mxu0 %v2042
      %v2044 = vand.u32 %v1551, 4294901760
      %v2045 = vsub.f32 %v1551, %v2044
      %2046 = vmatmul.f32.gmra.mxu0 %v2045
      %v2047 = vpop.f32.mrf.mxu0
      %v2048 = vadd.f32 %v2004, %v2047
      %2049 = vdwg.mxu0
      %2050 = vmatpush.msra.mxu0 0.0
      %2051 = vmatpush.msra.mxu0 0.0
      %2052 = vmatpush.msra.mxu0 0.0
      %2053 = vmatpush.msra.mxu0 0.0
      %2054 = vmatpush.msra.mxu0 0.0
      %v2055 = vand.u32 %v1437, 4294901760
      %2056 = vmatpush.msra.mxu0 %v2055
      %v2057 = vand.u32 %v1433, 4294901760
      %2058 = vmatpush.msra.mxu0 %v2057
      %v2059 = vand.u32 %v1429, 4294901760
      %2060 = vmatpush.msra.mxu0 %v2059
      %v2061 = vand.u32 %v1425, 4294901760
      %2062 = vmatpush.msra.mxu0 %v2061
      %v2063 = vand.u32 %v1421, 4294901760
      %2064 = vmatpush.msra.mxu0 %v2063
      %v2065 = vand.u32 %v1417, 4294901760
      %2066 = vmatpush.msra.mxu0 %v2065
      %v2067 = vand.u32 %v1413, 4294901760
      %2068 = vmatpush.msra.mxu0 %v2067
      %v2069 = vand.u32 %v1409, 4294901760
      %2070 = vmatpush.msra.mxu0 %v2069
      %v2071 = vand.u32 %v1405, 4294901760
      %2072 = vmatpush.msra.mxu0 %v2071
      %v2073 = vand.u32 %v1401, 4294901760
      %2074 = vmatpush.msra.mxu0 %v2073
      %v2075 = vand.u32 %v1397, 4294901760
      %2076 = vmatpush.msra.mxu0 %v2075
      %v2077 = vand.u32 %v1551, 4294901760
      %v2078 = vsub.f32 %v1551, %v2077
      %v2079 = vand.u32 %v2078, 4294901760
      %2080 = vmatmul.f32.gmra.mxu0 %v2079
      %v2081 = vpop.f32.mrf.mxu0
      %v2082 = vadd.f32 %v2048, %v2081
      %2083 = vdwg.mxu0
      %2084 = vmatpush.msra.mxu0 0.0
      %2085 = vmatpush.msra.mxu0 0.0
      %2086 = vmatpush.msra.mxu0 0.0
      %2087 = vmatpush.msra.mxu0 0.0
      %2088 = vmatpush.msra.mxu0 0.0
      %v2089 = vand.u32 %v1437, 4294901760
      %v2090 = vsub.f32 %v1437, %v2089
      %v2091 = vand.u32 %v2090, 4294901760
      %2092 = vmatpush.msra.mxu0 %v2091
      %v2093 = vand.u32 %v1433, 4294901760
      %v2094 = vsub.f32 %v1433, %v2093
      %v2095 = vand.u32 %v2094, 4294901760
      %2096 = vmatpush.msra.mxu0 %v2095
      %v2097 = vand.u32 %v1429, 4294901760
      %v2098 = vsub.f32 %v1429, %v2097
      %v2099 = vand.u32 %v2098, 4294901760
      %2100 = vmatpush.msra.mxu0 %v2099
      %v2101 = vand.u32 %v1425, 4294901760
      %v2102 = vsub.f32 %v1425, %v2101
      %v2103 = vand.u32 %v2102, 4294901760
      %2104 = vmatpush.msra.mxu0 %v2103
      %v2105 = vand.u32 %v1421, 4294901760
      %v2106 = vsub.f32 %v1421, %v2105
      %v2107 = vand.u32 %v2106, 4294901760
      %2108 = vmatpush.msra.mxu0 %v2107
      %v2109 = vand.u32 %v1417, 4294901760
      %v2110 = vsub.f32 %v1417, %v2109
      %v2111 = vand.u32 %v2110, 4294901760
      %2112 = vmatpush.msra.mxu0 %v2111
      %v2113 = vand.u32 %v1413, 4294901760
      %v2114 = vsub.f32 %v1413, %v2113
      %v2115 = vand.u32 %v2114, 4294901760
      %2116 = vmatpush.msra.mxu0 %v2115
      %v2117 = vand.u32 %v1409, 4294901760
      %v2118 = vsub.f32 %v1409, %v2117
      %v2119 = vand.u32 %v2118, 4294901760
      %2120 = vmatpush.msra.mxu0 %v2119
      %v2121 = vand.u32 %v1405, 4294901760
      %v2122 = vsub.f32 %v1405, %v2121
      %v2123 = vand.u32 %v2122, 4294901760
      %2124 = vmatpush.msra.mxu0 %v2123
      %v2125 = vand.u32 %v1401, 4294901760
      %v2126 = vsub.f32 %v1401, %v2125
      %v2127 = vand.u32 %v2126, 4294901760
      %2128 = vmatpush.msra.mxu0 %v2127
      %v2129 = vand.u32 %v1397, 4294901760
      %v2130 = vsub.f32 %v1397, %v2129
      %v2131 = vand.u32 %v2130, 4294901760
      %2132 = vmatpush.msra.mxu0 %v2131
      %v2133 = vand.u32 %v1551, 4294901760
      %2134 = vmatmul.f32.gmra.mxu0 %v2133
      %v2135 = vpop.f32.mrf.mxu0
      %v2136 = vadd.f32 %v2082, %v2135
      %2137 = vdwg.mxu0
      %2138 = vmatpush.msra.mxu0 0.0
      %2139 = vmatpush.msra.mxu0 0.0
      %2140 = vmatpush.msra.mxu0 0.0
      %2141 = vmatpush.msra.mxu0 0.0
      %2142 = vmatpush.msra.mxu0 0.0
      %v2143 = vand.u32 %v1437, 4294901760
      %2144 = vmatpush.msra.mxu0 %v2143
      %v2145 = vand.u32 %v1433, 4294901760
      %2146 = vmatpush.msra.mxu0 %v2145
      %v2147 = vand.u32 %v1429, 4294901760
      %2148 = vmatpush.msra.mxu0 %v2147
      %v2149 = vand.u32 %v1425, 4294901760
      %2150 = vmatpush.msra.mxu0 %v2149
      %v2151 = vand.u32 %v1421, 4294901760
      %2152 = vmatpush.msra.mxu0 %v2151
      %v2153 = vand.u32 %v1417, 4294901760
      %2154 = vmatpush.msra.mxu0 %v2153
      %v2155 = vand.u32 %v1413, 4294901760
      %2156 = vmatpush.msra.mxu0 %v2155
      %v2157 = vand.u32 %v1409, 4294901760
      %2158 = vmatpush.msra.mxu0 %v2157
      %v2159 = vand.u32 %v1405, 4294901760
      %2160 = vmatpush.msra.mxu0 %v2159
      %v2161 = vand.u32 %v1401, 4294901760
      %2162 = vmatpush.msra.mxu0 %v2161
      %v2163 = vand.u32 %v1397, 4294901760
      %2164 = vmatpush.msra.mxu0 %v2163
      %v2165 = vand.u32 %v1551, 4294901760
      %2166 = vmatmul.f32.gmra.mxu0 %v2165
      %v2167 = vpop.f32.mrf.mxu0
      %v2168 = vadd.f32 %v2136, %v2167
      %2169 = vdwg.mxu0
      %v2170 = vand.u32 %v1394, 4294901760
      %2171 = vmatpush.msra.mxu0 %v2170
      %v2172 = vand.u32 %v1390, 4294901760
      %2173 = vmatpush.msra.mxu0 %v2172
      %v2174 = vand.u32 %v1386, 4294901760
      %2175 = vmatpush.msra.mxu0 %v2174
      %v2176 = vand.u32 %v1382, 4294901760
      %2177 = vmatpush.msra.mxu0 %v2176
      %v2178 = vand.u32 %v1378, 4294901760
      %2179 = vmatpush.msra.mxu0 %v2178
      %v2180 = vand.u32 %v1374, 4294901760
      %2181 = vmatpush.msra.mxu0 %v2180
      %v2182 = vand.u32 %v1370, 4294901760
      %2183 = vmatpush.msra.mxu0 %v2182
      %v2184 = vand.u32 %v1366, 4294901760
      %2185 = vmatpush.msra.mxu0 %v2184
      %v2186 = vand.u32 %v1362, 4294901760
      %2187 = vmatpush.msra.mxu0 %v2186
      %v2188 = vand.u32 %v1358, 4294901760
      %2189 = vmatpush.msra.mxu0 %v2188
      %v2190 = vand.u32 %v1354, 4294901760
      %2191 = vmatpush.msra.mxu0 %v2190
      %v2192 = vand.u32 %v1350, 4294901760
      %2193 = vmatpush.msra.mxu0 %v2192
      %v2194 = vand.u32 %v1346, 4294901760
      %2195 = vmatpush.msra.mxu0 %v2194
      %v2196 = vand.u32 %v1342, 4294901760
      %2197 = vmatpush.msra.mxu0 %v2196
      %v2198 = vand.u32 %v1338, 4294901760
      %2199 = vmatpush.msra.mxu0 %v2198
      %v2200 = vand.u32 %v1334, 4294901760
      %2201 = vmatpush.msra.mxu0 %v2200
      %v2202 = vand.u32 %v1060, 4294901760
      %v2203 = vsub.f32 %v1060, %v2202
      %v2204 = vand.u32 %v2203, 4294901760
      %v2205 = vsub.f32 %v2203, %v2204
      %v2206 = vand.u32 %v2205, 4294901760
      %2207 = vmatmul.f32.gmra.mxu0 %v2206
      %v2208 = vpop.f32.mrf.mxu0
      %v2209 = vadd.f32 0.0, %v2208
      %2210 = vdwg.mxu0
      %v2211 = vand.u32 %v1394, 4294901760
      %v2212 = vsub.f32 %v1394, %v2211
      %v2213 = vand.u32 %v2212, 4294901760
      %v2214 = vsub.f32 %v2212, %v2213
      %v2215 = vand.u32 %v2214, 4294901760
      %2216 = vmatpush.msra.mxu0 %v2215
      %v2217 = vand.u32 %v1390, 4294901760
      %v2218 = vsub.f32 %v1390, %v2217
      %v2219 = vand.u32 %v2218, 4294901760
      %v2220 = vsub.f32 %v2218, %v2219
      %v2221 = vand.u32 %v2220, 4294901760
      %2222 = vmatpush.msra.mxu0 %v2221
      %v2223 = vand.u32 %v1386, 4294901760
      %v2224 = vsub.f32 %v1386, %v2223
      %v2225 = vand.u32 %v2224, 4294901760
      %v2226 = vsub.f32 %v2224, %v2225
      %v2227 = vand.u32 %v2226, 4294901760
      %2228 = vmatpush.msra.mxu0 %v2227
      %v2229 = vand.u32 %v1382, 4294901760
      %v2230 = vsub.f32 %v1382, %v2229
      %v2231 = vand.u32 %v2230, 4294901760
      %v2232 = vsub.f32 %v2230, %v2231
      %v2233 = vand.u32 %v2232, 4294901760
      %2234 = vmatpush.msra.mxu0 %v2233
      %v2235 = vand.u32 %v1378, 4294901760
      %v2236 = vsub.f32 %v1378, %v2235
      %v2237 = vand.u32 %v2236, 4294901760
      %v2238 = vsub.f32 %v2236, %v2237
      %v2239 = vand.u32 %v2238, 4294901760
      %2240 = vmatpush.msra.mxu0 %v2239
      %v2241 = vand.u32 %v1374, 4294901760
      %v2242 = vsub.f32 %v1374, %v2241
      %v2243 = vand.u32 %v2242, 4294901760
      %v2244 = vsub.f32 %v2242, %v2243
      %v2245 = vand.u32 %v2244, 4294901760
      %2246 = vmatpush.msra.mxu0 %v2245
      %v2247 = vand.u32 %v1370, 4294901760
      %v2248 = vsub.f32 %v1370, %v2247
      %v2249 = vand.u32 %v2248, 4294901760
      %v2250 = vsub.f32 %v2248, %v2249
      %v2251 = vand.u32 %v2250, 4294901760
      %2252 = vmatpush.msra.mxu0 %v2251
      %v2253 = vand.u32 %v1366, 4294901760
      %v2254 = vsub.f32 %v1366, %v2253
      %v2255 = vand.u32 %v2254, 4294901760
      %v2256 = vsub.f32 %v2254, %v2255
      %v2257 = vand.u32 %v2256, 4294901760
      %2258 = vmatpush.msra.mxu0 %v2257
      %v2259 = vand.u32 %v1362, 4294901760
      %v2260 = vsub.f32 %v1362, %v2259
      %v2261 = vand.u32 %v2260, 4294901760
      %v2262 = vsub.f32 %v2260, %v2261
      %v2263 = vand.u32 %v2262, 4294901760
      %2264 = vmatpush.msra.mxu0 %v2263
      %v2265 = vand.u32 %v1358, 4294901760
      %v2266 = vsub.f32 %v1358, %v2265
      %v2267 = vand.u32 %v2266, 4294901760
      %v2268 = vsub.f32 %v2266, %v2267
      %v2269 = vand.u32 %v2268, 4294901760
      %2270 = vmatpush.msra.mxu0 %v2269
      %v2271 = vand.u32 %v1354, 4294901760
      %v2272 = vsub.f32 %v1354, %v2271
      %v2273 = vand.u32 %v2272, 4294901760
      %v2274 = vsub.f32 %v2272, %v2273
      %v2275 = vand.u32 %v2274, 4294901760
      %2276 = vmatpush.msra.mxu0 %v2275
      %v2277 = vand.u32 %v1350, 4294901760
      %v2278 = vsub.f32 %v1350, %v2277
      %v2279 = vand.u32 %v2278, 4294901760
      %v2280 = vsub.f32 %v2278, %v2279
      %v2281 = vand.u32 %v2280, 4294901760
      %2282 = vmatpush.msra.mxu0 %v2281
      %v2283 = vand.u32 %v1346, 4294901760
      %v2284 = vsub.f32 %v1346, %v2283
      %v2285 = vand.u32 %v2284, 4294901760
      %v2286 = vsub.f32 %v2284, %v2285
      %v2287 = vand.u32 %v2286, 4294901760
      %2288 = vmatpush.msra.mxu0 %v2287
      %v2289 = vand.u32 %v1342, 4294901760
      %v2290 = vsub.f32 %v1342, %v2289
      %v2291 = vand.u32 %v2290, 4294901760
      %v2292 = vsub.f32 %v2290, %v2291
      %v2293 = vand.u32 %v2292, 4294901760
      %2294 = vmatpush.msra.mxu0 %v2293
      %v2295 = vand.u32 %v1338, 4294901760
      %v2296 = vsub.f32 %v1338, %v2295
      %v2297 = vand.u32 %v2296, 4294901760
      %v2298 = vsub.f32 %v2296, %v2297
      %v2299 = vand.u32 %v2298, 4294901760
      %2300 = vmatpush.msra.mxu0 %v2299
      %v2301 = vand.u32 %v1334, 4294901760
      %v2302 = vsub.f32 %v1334, %v2301
      %v2303 = vand.u32 %v2302, 4294901760
      %v2304 = vsub.f32 %v2302, %v2303
      %v2305 = vand.u32 %v2304, 4294901760
      %2306 = vmatpush.msra.mxu0 %v2305
      %v2307 = vand.u32 %v1060, 4294901760
      %2308 = vmatmul.f32.gmra.mxu0 %v2307
      %v2309 = vpop.f32.mrf.mxu0
      %v2310 = vadd.f32 %v2209, %v2309
      %2311 = vdwg.mxu0
      %v2312 = vand.u32 %v1394, 4294901760
      %v2313 = vsub.f32 %v1394, %v2312
      %2314 = vmatpush.msra.mxu0 %v2313
      %v2315 = vand.u32 %v1390, 4294901760
      %v2316 = vsub.f32 %v1390, %v2315
      %2317 = vmatpush.msra.mxu0 %v2316
      %v2318 = vand.u32 %v1386, 4294901760
      %v2319 = vsub.f32 %v1386, %v2318
      %2320 = vmatpush.msra.mxu0 %v2319
      %v2321 = vand.u32 %v1382, 4294901760
      %v2322 = vsub.f32 %v1382, %v2321
      %2323 = vmatpush.msra.mxu0 %v2322
      %v2324 = vand.u32 %v1378, 4294901760
      %v2325 = vsub.f32 %v1378, %v2324
      %2326 = vmatpush.msra.mxu0 %v2325
      %v2327 = vand.u32 %v1374, 4294901760
      %v2328 = vsub.f32 %v1374, %v2327
      %2329 = vmatpush.msra.mxu0 %v2328
      %v2330 = vand.u32 %v1370, 4294901760
      %v2331 = vsub.f32 %v1370, %v2330
      %2332 = vmatpush.msra.mxu0 %v2331
      %v2333 = vand.u32 %v1366, 4294901760
      %v2334 = vsub.f32 %v1366, %v2333
      %2335 = vmatpush.msra.mxu0 %v2334
      %v2336 = vand.u32 %v1362, 4294901760
      %v2337 = vsub.f32 %v1362, %v2336
      %2338 = vmatpush.msra.mxu0 %v2337
      %v2339 = vand.u32 %v1358, 4294901760
      %v2340 = vsub.f32 %v1358, %v2339
      %2341 = vmatpush.msra.mxu0 %v2340
      %v2342 = vand.u32 %v1354, 4294901760
      %v2343 = vsub.f32 %v1354, %v2342
      %2344 = vmatpush.msra.mxu0 %v2343
      %v2345 = vand.u32 %v1350, 4294901760
      %v2346 = vsub.f32 %v1350, %v2345
      %2347 = vmatpush.msra.mxu0 %v2346
      %v2348 = vand.u32 %v1346, 4294901760
      %v2349 = vsub.f32 %v1346, %v2348
      %2350 = vmatpush.msra.mxu0 %v2349
      %v2351 = vand.u32 %v1342, 4294901760
      %v2352 = vsub.f32 %v1342, %v2351
      %2353 = vmatpush.msra.mxu0 %v2352
      %v2354 = vand.u32 %v1338, 4294901760
      %v2355 = vsub.f32 %v1338, %v2354
      %2356 = vmatpush.msra.mxu0 %v2355
      %v2357 = vand.u32 %v1334, 4294901760
      %v2358 = vsub.f32 %v1334, %v2357
      %2359 = vmatpush.msra.mxu0 %v2358
      %v2360 = vand.u32 %v1060, 4294901760
      %v2361 = vsub.f32 %v1060, %v2360
      %2362 = vmatmul.f32.gmra.mxu0 %v2361
      %v2363 = vpop.f32.mrf.mxu0
      %v2364 = vadd.f32 %v2310, %v2363
      %2365 = vdwg.mxu0
      %v2366 = vand.u32 %v1394, 4294901760
      %2367 = vmatpush.msra.mxu0 %v2366
      %v2368 = vand.u32 %v1390, 4294901760
      %2369 = vmatpush.msra.mxu0 %v2368
      %v2370 = vand.u32 %v1386, 4294901760
      %2371 = vmatpush.msra.mxu0 %v2370
      %v2372 = vand.u32 %v1382, 4294901760
      %2373 = vmatpush.msra.mxu0 %v2372
      %v2374 = vand.u32 %v1378, 4294901760
      %2375 = vmatpush.msra.mxu0 %v2374
      %v2376 = vand.u32 %v1374, 4294901760
      %2377 = vmatpush.msra.mxu0 %v2376
      %v2378 = vand.u32 %v1370, 4294901760
      %2379 = vmatpush.msra.mxu0 %v2378
      %v2380 = vand.u32 %v1366, 4294901760
      %2381 = vmatpush.msra.mxu0 %v2380
      %v2382 = vand.u32 %v1362, 4294901760
      %2383 = vmatpush.msra.mxu0 %v2382
      %v2384 = vand.u32 %v1358, 4294901760
      %2385 = vmatpush.msra.mxu0 %v2384
      %v2386 = vand.u32 %v1354, 4294901760
      %2387 = vmatpush.msra.mxu0 %v2386
      %v2388 = vand.u32 %v1350, 4294901760
      %2389 = vmatpush.msra.mxu0 %v2388
      %v2390 = vand.u32 %v1346, 4294901760
      %2391 = vmatpush.msra.mxu0 %v2390
      %v2392 = vand.u32 %v1342, 4294901760
      %2393 = vmatpush.msra.mxu0 %v2392
      %v2394 = vand.u32 %v1338, 4294901760
      %2395 = vmatpush.msra.mxu0 %v2394
      %v2396 = vand.u32 %v1334, 4294901760
      %2397 = vmatpush.msra.mxu0 %v2396
      %v2398 = vand.u32 %v1060, 4294901760
      %v2399 = vsub.f32 %v1060, %v2398
      %v2400 = vand.u32 %v2399, 4294901760
      %2401 = vmatmul.f32.gmra.mxu0 %v2400
      %v2402 = vpop.f32.mrf.mxu0
      %v2403 = vadd.f32 %v2364, %v2402
      %2404 = vdwg.mxu0
      %v2405 = vand.u32 %v1394, 4294901760
      %v2406 = vsub.f32 %v1394, %v2405
      %v2407 = vand.u32 %v2406, 4294901760
      %2408 = vmatpush.msra.mxu0 %v2407
      %v2409 = vand.u32 %v1390, 4294901760
      %v2410 = vsub.f32 %v1390, %v2409
      %v2411 = vand.u32 %v2410, 4294901760
      %2412 = vmatpush.msra.mxu0 %v2411
      %v2413 = vand.u32 %v1386, 4294901760
      %v2414 = vsub.f32 %v1386, %v2413
      %v2415 = vand.u32 %v2414, 4294901760
      %2416 = vmatpush.msra.mxu0 %v2415
      %v2417 = vand.u32 %v1382, 4294901760
      %v2418 = vsub.f32 %v1382, %v2417
      %v2419 = vand.u32 %v2418, 4294901760
      %2420 = vmatpush.msra.mxu0 %v2419
      %v2421 = vand.u32 %v1378, 4294901760
      %v2422 = vsub.f32 %v1378, %v2421
      %v2423 = vand.u32 %v2422, 4294901760
      %2424 = vmatpush.msra.mxu0 %v2423
      %v2425 = vand.u32 %v1374, 4294901760
      %v2426 = vsub.f32 %v1374, %v2425
      %v2427 = vand.u32 %v2426, 4294901760
      %2428 = vmatpush.msra.mxu0 %v2427
      %v2429 = vand.u32 %v1370, 4294901760
      %v2430 = vsub.f32 %v1370, %v2429
      %v2431 = vand.u32 %v2430, 4294901760
      %2432 = vmatpush.msra.mxu0 %v2431
      %v2433 = vand.u32 %v1366, 4294901760
      %v2434 = vsub.f32 %v1366, %v2433
      %v2435 = vand.u32 %v2434, 4294901760
      %2436 = vmatpush.msra.mxu0 %v2435
      %v2437 = vand.u32 %v1362, 4294901760
      %v2438 = vsub.f32 %v1362, %v2437
      %v2439 = vand.u32 %v2438, 4294901760
      %2440 = vmatpush.msra.mxu0 %v2439
      %v2441 = vand.u32 %v1358, 4294901760
      %v2442 = vsub.f32 %v1358, %v2441
      %v2443 = vand.u32 %v2442, 4294901760
      %2444 = vmatpush.msra.mxu0 %v2443
      %v2445 = vand.u32 %v1354, 4294901760
      %v2446 = vsub.f32 %v1354, %v2445
      %v2447 = vand.u32 %v2446, 4294901760
      %2448 = vmatpush.msra.mxu0 %v2447
      %v2449 = vand.u32 %v1350, 4294901760
      %v2450 = vsub.f32 %v1350, %v2449
      %v2451 = vand.u32 %v2450, 4294901760
      %2452 = vmatpush.msra.mxu0 %v2451
      %v2453 = vand.u32 %v1346, 4294901760
      %v2454 = vsub.f32 %v1346, %v2453
      %v2455 = vand.u32 %v2454, 4294901760
      %2456 = vmatpush.msra.mxu0 %v2455
      %v2457 = vand.u32 %v1342, 4294901760
      %v2458 = vsub.f32 %v1342, %v2457
      %v2459 = vand.u32 %v2458, 4294901760
      %2460 = vmatpush.msra.mxu0 %v2459
      %v2461 = vand.u32 %v1338, 4294901760
      %v2462 = vsub.f32 %v1338, %v2461
      %v2463 = vand.u32 %v2462, 4294901760
      %2464 = vmatpush.msra.mxu0 %v2463
      %v2465 = vand.u32 %v1334, 4294901760
      %v2466 = vsub.f32 %v1334, %v2465
      %v2467 = vand.u32 %v2466, 4294901760
      %2468 = vmatpush.msra.mxu0 %v2467
      %v2469 = vand.u32 %v1060, 4294901760
      %2470 = vmatmul.f32.gmra.mxu0 %v2469
      %v2471 = vpop.f32.mrf.mxu0
      %v2472 = vadd.f32 %v2403, %v2471
      %2473 = vdwg.mxu0
      %v2474 = vand.u32 %v1394, 4294901760
      %2475 = vmatpush.msra.mxu0 %v2474
      %v2476 = vand.u32 %v1390, 4294901760
      %2477 = vmatpush.msra.mxu0 %v2476
      %v2478 = vand.u32 %v1386, 4294901760
      %2479 = vmatpush.msra.mxu0 %v2478
      %v2480 = vand.u32 %v1382, 4294901760
      %2481 = vmatpush.msra.mxu0 %v2480
      %v2482 = vand.u32 %v1378, 4294901760
      %2483 = vmatpush.msra.mxu0 %v2482
      %v2484 = vand.u32 %v1374, 4294901760
      %2485 = vmatpush.msra.mxu0 %v2484
      %v2486 = vand.u32 %v1370, 4294901760
      %2487 = vmatpush.msra.mxu0 %v2486
      %v2488 = vand.u32 %v1366, 4294901760
      %2489 = vmatpush.msra.mxu0 %v2488
      %v2490 = vand.u32 %v1362, 4294901760
      %2491 = vmatpush.msra.mxu0 %v2490
      %v2492 = vand.u32 %v1358, 4294901760
      %2493 = vmatpush.msra.mxu0 %v2492
      %v2494 = vand.u32 %v1354, 4294901760
      %2495 = vmatpush.msra.mxu0 %v2494
      %v2496 = vand.u32 %v1350, 4294901760
      %2497 = vmatpush.msra.mxu0 %v2496
      %v2498 = vand.u32 %v1346, 4294901760
      %2499 = vmatpush.msra.mxu0 %v2498
      %v2500 = vand.u32 %v1342, 4294901760
      %2501 = vmatpush.msra.mxu0 %v2500
      %v2502 = vand.u32 %v1338, 4294901760
      %2503 = vmatpush.msra.mxu0 %v2502
      %v2504 = vand.u32 %v1334, 4294901760
      %2505 = vmatpush.msra.mxu0 %v2504
      %v2506 = vand.u32 %v1060, 4294901760
      %2507 = vmatmul.f32.gmra.mxu0 %v2506
      %v2508 = vpop.f32.mrf.mxu0
      %v2509 = vadd.f32 %v2472, %v2508
      %2510 = vdwg.mxu0
      %2511 = vmatpush.msra.mxu0 0.0
      %2512 = vmatpush.msra.mxu0 0.0
      %2513 = vmatpush.msra.mxu0 0.0
      %2514 = vmatpush.msra.mxu0 0.0
      %2515 = vmatpush.msra.mxu0 0.0
      %v2516 = vand.u32 %v1438, 4294901760
      %2517 = vmatpush.msra.mxu0 %v2516
      %v2518 = vand.u32 %v1434, 4294901760
      %2519 = vmatpush.msra.mxu0 %v2518
      %v2520 = vand.u32 %v1430, 4294901760
      %2521 = vmatpush.msra.mxu0 %v2520
      %v2522 = vand.u32 %v1426, 4294901760
      %2523 = vmatpush.msra.mxu0 %v2522
      %v2524 = vand.u32 %v1422, 4294901760
      %2525 = vmatpush.msra.mxu0 %v2524
      %v2526 = vand.u32 %v1418, 4294901760
      %2527 = vmatpush.msra.mxu0 %v2526
      %v2528 = vand.u32 %v1414, 4294901760
      %2529 = vmatpush.msra.mxu0 %v2528
      %v2530 = vand.u32 %v1410, 4294901760
      %2531 = vmatpush.msra.mxu0 %v2530
      %v2532 = vand.u32 %v1406, 4294901760
      %2533 = vmatpush.msra.mxu0 %v2532
      %v2534 = vand.u32 %v1402, 4294901760
      %2535 = vmatpush.msra.mxu0 %v2534
      %v2536 = vand.u32 %v1398, 4294901760
      %2537 = vmatpush.msra.mxu0 %v2536
      %v2538 = vand.u32 %v1551, 4294901760
      %v2539 = vsub.f32 %v1551, %v2538
      %v2540 = vand.u32 %v2539, 4294901760
      %v2541 = vsub.f32 %v2539, %v2540
      %v2542 = vand.u32 %v2541, 4294901760
      %2543 = vmatmul.f32.gmra.mxu0 %v2542
      %v2544 = vpop.f32.mrf.mxu0
      %v2545 = vadd.f32 %v2509, %v2544
      %2546 = vdwg.mxu0
      %2547 = vmatpush.msra.mxu0 0.0
      %2548 = vmatpush.msra.mxu0 0.0
      %2549 = vmatpush.msra.mxu0 0.0
      %2550 = vmatpush.msra.mxu0 0.0
      %2551 = vmatpush.msra.mxu0 0.0
      %v2552 = vand.u32 %v1438, 4294901760
      %v2553 = vsub.f32 %v1438, %v2552
      %v2554 = vand.u32 %v2553, 4294901760
      %v2555 = vsub.f32 %v2553, %v2554
      %v2556 = vand.u32 %v2555, 4294901760
      %2557 = vmatpush.msra.mxu0 %v2556
      %v2558 = vand.u32 %v1434, 4294901760
      %v2559 = vsub.f32 %v1434, %v2558
      %v2560 = vand.u32 %v2559, 4294901760
      %v2561 = vsub.f32 %v2559, %v2560
      %v2562 = vand.u32 %v2561, 4294901760
      %2563 = vmatpush.msra.mxu0 %v2562
      %v2564 = vand.u32 %v1430, 4294901760
      %v2565 = vsub.f32 %v1430, %v2564
      %v2566 = vand.u32 %v2565, 4294901760
      %v2567 = vsub.f32 %v2565, %v2566
      %v2568 = vand.u32 %v2567, 4294901760
      %2569 = vmatpush.msra.mxu0 %v2568
      %v2570 = vand.u32 %v1426, 4294901760
      %v2571 = vsub.f32 %v1426, %v2570
      %v2572 = vand.u32 %v2571, 4294901760
      %v2573 = vsub.f32 %v2571, %v2572
      %v2574 = vand.u32 %v2573, 4294901760
      %2575 = vmatpush.msra.mxu0 %v2574
      %v2576 = vand.u32 %v1422, 4294901760
      %v2577 = vsub.f32 %v1422, %v2576
      %v2578 = vand.u32 %v2577, 4294901760
      %v2579 = vsub.f32 %v2577, %v2578
      %v2580 = vand.u32 %v2579, 4294901760
      %2581 = vmatpush.msra.mxu0 %v2580
      %v2582 = vand.u32 %v1418, 4294901760
      %v2583 = vsub.f32 %v1418, %v2582
      %v2584 = vand.u32 %v2583, 4294901760
      %v2585 = vsub.f32 %v2583, %v2584
      %v2586 = vand.u32 %v2585, 4294901760
      %2587 = vmatpush.msra.mxu0 %v2586
      %v2588 = vand.u32 %v1414, 4294901760
      %v2589 = vsub.f32 %v1414, %v2588
      %v2590 = vand.u32 %v2589, 4294901760
      %v2591 = vsub.f32 %v2589, %v2590
      %v2592 = vand.u32 %v2591, 4294901760
      %2593 = vmatpush.msra.mxu0 %v2592
      %v2594 = vand.u32 %v1410, 4294901760
      %v2595 = vsub.f32 %v1410, %v2594
      %v2596 = vand.u32 %v2595, 4294901760
      %v2597 = vsub.f32 %v2595, %v2596
      %v2598 = vand.u32 %v2597, 4294901760
      %2599 = vmatpush.msra.mxu0 %v2598
      %v2600 = vand.u32 %v1406, 4294901760
      %v2601 = vsub.f32 %v1406, %v2600
      %v2602 = vand.u32 %v2601, 4294901760
      %v2603 = vsub.f32 %v2601, %v2602
      %v2604 = vand.u32 %v2603, 4294901760
      %2605 = vmatpush.msra.mxu0 %v2604
      %v2606 = vand.u32 %v1402, 4294901760
      %v2607 = vsub.f32 %v1402, %v2606
      %v2608 = vand.u32 %v2607, 4294901760
      %v2609 = vsub.f32 %v2607, %v2608
      %v2610 = vand.u32 %v2609, 4294901760
      %2611 = vmatpush.msra.mxu0 %v2610
      %v2612 = vand.u32 %v1398, 4294901760
      %v2613 = vsub.f32 %v1398, %v2612
      %v2614 = vand.u32 %v2613, 4294901760
      %v2615 = vsub.f32 %v2613, %v2614
      %v2616 = vand.u32 %v2615, 4294901760
      %2617 = vmatpush.msra.mxu0 %v2616
      %v2618 = vand.u32 %v1551, 4294901760
      %2619 = vmatmul.f32.gmra.mxu0 %v2618
      %v2620 = vpop.f32.mrf.mxu0
      %v2621 = vadd.f32 %v2545, %v2620
      %2622 = vdwg.mxu0
      %2623 = vmatpush.msra.mxu0 0.0
      %2624 = vmatpush.msra.mxu0 0.0
      %2625 = vmatpush.msra.mxu0 0.0
      %2626 = vmatpush.msra.mxu0 0.0
      %2627 = vmatpush.msra.mxu0 0.0
      %v2628 = vand.u32 %v1438, 4294901760
      %v2629 = vsub.f32 %v1438, %v2628
      %2630 = vmatpush.msra.mxu0 %v2629
      %v2631 = vand.u32 %v1434, 4294901760
      %v2632 = vsub.f32 %v1434, %v2631
      %2633 = vmatpush.msra.mxu0 %v2632
      %v2634 = vand.u32 %v1430, 4294901760
      %v2635 = vsub.f32 %v1430, %v2634
      %2636 = vmatpush.msra.mxu0 %v2635
      %v2637 = vand.u32 %v1426, 4294901760
      %v2638 = vsub.f32 %v1426, %v2637
      %2639 = vmatpush.msra.mxu0 %v2638
      %v2640 = vand.u32 %v1422, 4294901760
      %v2641 = vsub.f32 %v1422, %v2640
      %2642 = vmatpush.msra.mxu0 %v2641
      %v2643 = vand.u32 %v1418, 4294901760
      %v2644 = vsub.f32 %v1418, %v2643
      %2645 = vmatpush.msra.mxu0 %v2644
      %v2646 = vand.u32 %v1414, 4294901760
      %v2647 = vsub.f32 %v1414, %v2646
      %2648 = vmatpush.msra.mxu0 %v2647
      %v2649 = vand.u32 %v1410, 4294901760
      %v2650 = vsub.f32 %v1410, %v2649
      %2651 = vmatpush.msra.mxu0 %v2650
      %v2652 = vand.u32 %v1406, 4294901760
      %v2653 = vsub.f32 %v1406, %v2652
      %2654 = vmatpush.msra.mxu0 %v2653
      %v2655 = vand.u32 %v1402, 4294901760
      %v2656 = vsub.f32 %v1402, %v2655
      %2657 = vmatpush.msra.mxu0 %v2656
      %v2658 = vand.u32 %v1398, 4294901760
      %v2659 = vsub.f32 %v1398, %v2658
      %2660 = vmatpush.msra.mxu0 %v2659
      %v2661 = vand.u32 %v1551, 4294901760
      %v2662 = vsub.f32 %v1551, %v2661
      %2663 = vmatmul.f32.gmra.mxu0 %v2662
      %v2664 = vpop.f32.mrf.mxu0
      %v2665 = vadd.f32 %v2621, %v2664
      %2666 = vdwg.mxu0
      %2667 = vmatpush.msra.mxu0 0.0
      %2668 = vmatpush.msra.mxu0 0.0
      %2669 = vmatpush.msra.mxu0 0.0
      %2670 = vmatpush.msra.mxu0 0.0
      %2671 = vmatpush.msra.mxu0 0.0
      %v2672 = vand.u32 %v1438, 4294901760
      %2673 = vmatpush.msra.mxu0 %v2672
      %v2674 = vand.u32 %v1434, 4294901760
      %2675 = vmatpush.msra.mxu0 %v2674
      %v2676 = vand.u32 %v1430, 4294901760
      %2677 = vmatpush.msra.mxu0 %v2676
      %v2678 = vand.u32 %v1426, 4294901760
      %2679 = vmatpush.msra.mxu0 %v2678
      %v2680 = vand.u32 %v1422, 4294901760
      %2681 = vmatpush.msra.mxu0 %v2680
      %v2682 = vand.u32 %v1418, 4294901760
      %2683 = vmatpush.msra.mxu0 %v2682
      %v2684 = vand.u32 %v1414, 4294901760
      %2685 = vmatpush.msra.mxu0 %v2684
      %v2686 = vand.u32 %v1410, 4294901760
      %2687 = vmatpush.msra.mxu0 %v2686
      %v2688 = vand.u32 %v1406, 4294901760
      %2689 = vmatpush.msra.mxu0 %v2688
      %v2690 = vand.u32 %v1402, 4294901760
      %2691 = vmatpush.msra.mxu0 %v2690
      %v2692 = vand.u32 %v1398, 4294901760
      %2693 = vmatpush.msra.mxu0 %v2692
      %v2694 = vand.u32 %v1551, 4294901760
      %v2695 = vsub.f32 %v1551, %v2694
      %v2696 = vand.u32 %v2695, 4294901760
      %2697 = vmatmul.f32.gmra.mxu0 %v2696
      %v2698 = vpop.f32.mrf.mxu0
      %v2699 = vadd.f32 %v2665, %v2698
      %2700 = vdwg.mxu0
      %2701 = vmatpush.msra.mxu0 0.0
      %2702 = vmatpush.msra.mxu0 0.0
      %2703 = vmatpush.msra.mxu0 0.0
      %2704 = vmatpush.msra.mxu0 0.0
      %2705 = vmatpush.msra.mxu0 0.0
      %v2706 = vand.u32 %v1438, 4294901760
      %v2707 = vsub.f32 %v1438, %v2706
      %v2708 = vand.u32 %v2707, 4294901760
      %2709 = vmatpush.msra.mxu0 %v2708
      %v2710 = vand.u32 %v1434, 4294901760
      %v2711 = vsub.f32 %v1434, %v2710
      %v2712 = vand.u32 %v2711, 4294901760
      %2713 = vmatpush.msra.mxu0 %v2712
      %v2714 = vand.u32 %v1430, 4294901760
      %v2715 = vsub.f32 %v1430, %v2714
      %v2716 = vand.u32 %v2715, 4294901760
      %2717 = vmatpush.msra.mxu0 %v2716
      %v2718 = vand.u32 %v1426, 4294901760
      %v2719 = vsub.f32 %v1426, %v2718
      %v2720 = vand.u32 %v2719, 4294901760
      %2721 = vmatpush.msra.mxu0 %v2720
      %v2722 = vand.u32 %v1422, 4294901760
      %v2723 = vsub.f32 %v1422, %v2722
      %v2724 = vand.u32 %v2723, 4294901760
      %2725 = vmatpush.msra.mxu0 %v2724
      %v2726 = vand.u32 %v1418, 4294901760
      %v2727 = vsub.f32 %v1418, %v2726
      %v2728 = vand.u32 %v2727, 4294901760
      %2729 = vmatpush.msra.mxu0 %v2728
      %v2730 = vand.u32 %v1414, 4294901760
      %v2731 = vsub.f32 %v1414, %v2730
      %v2732 = vand.u32 %v2731, 4294901760
      %2733 = vmatpush.msra.mxu0 %v2732
      %v2734 = vand.u32 %v1410, 4294901760
      %v2735 = vsub.f32 %v1410, %v2734
      %v2736 = vand.u32 %v2735, 4294901760
      %2737 = vmatpush.msra.mxu0 %v2736
      %v2738 = vand.u32 %v1406, 4294901760
      %v2739 = vsub.f32 %v1406, %v2738
      %v2740 = vand.u32 %v2739, 4294901760
      %2741 = vmatpush.msra.mxu0 %v2740
      %v2742 = vand.u32 %v1402, 4294901760
      %v2743 = vsub.f32 %v1402, %v2742
      %v2744 = vand.u32 %v2743, 4294901760
      %2745 = vmatpush.msra.mxu0 %v2744
      %v2746 = vand.u32 %v1398, 4294901760
      %v2747 = vsub.f32 %v1398, %v2746
      %v2748 = vand.u32 %v2747, 4294901760
      %2749 = vmatpush.msra.mxu0 %v2748
      %v2750 = vand.u32 %v1551, 4294901760
      %2751 = vmatmul.f32.gmra.mxu0 %v2750
      %v2752 = vpop.f32.mrf.mxu0
      %v2753 = vadd.f32 %v2699, %v2752
      %2754 = vdwg.mxu0
      %2755 = vmatpush.msra.mxu0 0.0
      %2756 = vmatpush.msra.mxu0 0.0
      %2757 = vmatpush.msra.mxu0 0.0
      %2758 = vmatpush.msra.mxu0 0.0
      %2759 = vmatpush.msra.mxu0 0.0
      %v2760 = vand.u32 %v1438, 4294901760
      %2761 = vmatpush.msra.mxu0 %v2760
      %v2762 = vand.u32 %v1434, 4294901760
      %2763 = vmatpush.msra.mxu0 %v2762
      %v2764 = vand.u32 %v1430, 4294901760
      %2765 = vmatpush.msra.mxu0 %v2764
      %v2766 = vand.u32 %v1426, 4294901760
      %2767 = vmatpush.msra.mxu0 %v2766
      %v2768 = vand.u32 %v1422, 4294901760
      %2769 = vmatpush.msra.mxu0 %v2768
      %v2770 = vand.u32 %v1418, 4294901760
      %2771 = vmatpush.msra.mxu0 %v2770
      %v2772 = vand.u32 %v1414, 4294901760
      %2773 = vmatpush.msra.mxu0 %v2772
      %v2774 = vand.u32 %v1410, 4294901760
      %2775 = vmatpush.msra.mxu0 %v2774
      %v2776 = vand.u32 %v1406, 4294901760
      %2777 = vmatpush.msra.mxu0 %v2776
      %v2778 = vand.u32 %v1402, 4294901760
      %2779 = vmatpush.msra.mxu0 %v2778
      %v2780 = vand.u32 %v1398, 4294901760
      %2781 = vmatpush.msra.mxu0 %v2780
      %v2782 = vand.u32 %v1551, 4294901760
      %2783 = vmatmul.f32.gmra.mxu0 %v2782
      %v2784 = vpop.f32.mrf.mxu0
      %v2785 = vadd.f32 %v2753, %v2784
      %2786 = vdwg.mxu0
      %v2787 = vand.u32 %v1395, 4294901760
      %2788 = vmatpush.msra.mxu0 %v2787
      %v2789 = vand.u32 %v1391, 4294901760
      %2790 = vmatpush.msra.mxu0 %v2789
      %v2791 = vand.u32 %v1387, 4294901760
      %2792 = vmatpush.msra.mxu0 %v2791
      %v2793 = vand.u32 %v1383, 4294901760
      %2794 = vmatpush.msra.mxu0 %v2793
      %v2795 = vand.u32 %v1379, 4294901760
      %2796 = vmatpush.msra.mxu0 %v2795
      %v2797 = vand.u32 %v1375, 4294901760
      %2798 = vmatpush.msra.mxu0 %v2797
      %v2799 = vand.u32 %v1371, 4294901760
      %2800 = vmatpush.msra.mxu0 %v2799
      %v2801 = vand.u32 %v1367, 4294901760
      %2802 = vmatpush.msra.mxu0 %v2801
      %v2803 = vand.u32 %v1363, 4294901760
      %2804 = vmatpush.msra.mxu0 %v2803
      %v2805 = vand.u32 %v1359, 4294901760
      %2806 = vmatpush.msra.mxu0 %v2805
      %v2807 = vand.u32 %v1355, 4294901760
      %2808 = vmatpush.msra.mxu0 %v2807
      %v2809 = vand.u32 %v1351, 4294901760
      %2810 = vmatpush.msra.mxu0 %v2809
      %v2811 = vand.u32 %v1347, 4294901760
      %2812 = vmatpush.msra.mxu0 %v2811
      %v2813 = vand.u32 %v1343, 4294901760
      %2814 = vmatpush.msra.mxu0 %v2813
      %v2815 = vand.u32 %v1339, 4294901760
      %2816 = vmatpush.msra.mxu0 %v2815
      %v2817 = vand.u32 %v1335, 4294901760
      %2818 = vmatpush.msra.mxu0 %v2817
      %v2819 = vand.u32 %v1060, 4294901760
      %v2820 = vsub.f32 %v1060, %v2819
      %v2821 = vand.u32 %v2820, 4294901760
      %v2822 = vsub.f32 %v2820, %v2821
      %v2823 = vand.u32 %v2822, 4294901760
      %2824 = vmatmul.f32.gmra.mxu0 %v2823
      %v2825 = vpop.f32.mrf.mxu0
      %v2826 = vadd.f32 0.0, %v2825
      %2827 = vdwg.mxu0
      %v2828 = vand.u32 %v1395, 4294901760
      %v2829 = vsub.f32 %v1395, %v2828
      %v2830 = vand.u32 %v2829, 4294901760
      %v2831 = vsub.f32 %v2829, %v2830
      %v2832 = vand.u32 %v2831, 4294901760
      %2833 = vmatpush.msra.mxu0 %v2832
      %v2834 = vand.u32 %v1391, 4294901760
      %v2835 = vsub.f32 %v1391, %v2834
      %v2836 = vand.u32 %v2835, 4294901760
      %v2837 = vsub.f32 %v2835, %v2836
      %v2838 = vand.u32 %v2837, 4294901760
      %2839 = vmatpush.msra.mxu0 %v2838
      %v2840 = vand.u32 %v1387, 4294901760
      %v2841 = vsub.f32 %v1387, %v2840
      %v2842 = vand.u32 %v2841, 4294901760
      %v2843 = vsub.f32 %v2841, %v2842
      %v2844 = vand.u32 %v2843, 4294901760
      %2845 = vmatpush.msra.mxu0 %v2844
      %v2846 = vand.u32 %v1383, 4294901760
      %v2847 = vsub.f32 %v1383, %v2846
      %v2848 = vand.u32 %v2847, 4294901760
      %v2849 = vsub.f32 %v2847, %v2848
      %v2850 = vand.u32 %v2849, 4294901760
      %2851 = vmatpush.msra.mxu0 %v2850
      %v2852 = vand.u32 %v1379, 4294901760
      %v2853 = vsub.f32 %v1379, %v2852
      %v2854 = vand.u32 %v2853, 4294901760
      %v2855 = vsub.f32 %v2853, %v2854
      %v2856 = vand.u32 %v2855, 4294901760
      %2857 = vmatpush.msra.mxu0 %v2856
      %v2858 = vand.u32 %v1375, 4294901760
      %v2859 = vsub.f32 %v1375, %v2858
      %v2860 = vand.u32 %v2859, 4294901760
      %v2861 = vsub.f32 %v2859, %v2860
      %v2862 = vand.u32 %v2861, 4294901760
      %2863 = vmatpush.msra.mxu0 %v2862
      %v2864 = vand.u32 %v1371, 4294901760
      %v2865 = vsub.f32 %v1371, %v2864
      %v2866 = vand.u32 %v2865, 4294901760
      %v2867 = vsub.f32 %v2865, %v2866
      %v2868 = vand.u32 %v2867, 4294901760
      %2869 = vmatpush.msra.mxu0 %v2868
      %v2870 = vand.u32 %v1367, 4294901760
      %v2871 = vsub.f32 %v1367, %v2870
      %v2872 = vand.u32 %v2871, 4294901760
      %v2873 = vsub.f32 %v2871, %v2872
      %v2874 = vand.u32 %v2873, 4294901760
      %2875 = vmatpush.msra.mxu0 %v2874
      %v2876 = vand.u32 %v1363, 4294901760
      %v2877 = vsub.f32 %v1363, %v2876
      %v2878 = vand.u32 %v2877, 4294901760
      %v2879 = vsub.f32 %v2877, %v2878
      %v2880 = vand.u32 %v2879, 4294901760
      %2881 = vmatpush.msra.mxu0 %v2880
      %v2882 = vand.u32 %v1359, 4294901760
      %v2883 = vsub.f32 %v1359, %v2882
      %v2884 = vand.u32 %v2883, 4294901760
      %v2885 = vsub.f32 %v2883, %v2884
      %v2886 = vand.u32 %v2885, 4294901760
      %2887 = vmatpush.msra.mxu0 %v2886
      %v2888 = vand.u32 %v1355, 4294901760
      %v2889 = vsub.f32 %v1355, %v2888
      %v2890 = vand.u32 %v2889, 4294901760
      %v2891 = vsub.f32 %v2889, %v2890
      %v2892 = vand.u32 %v2891, 4294901760
      %2893 = vmatpush.msra.mxu0 %v2892
      %v2894 = vand.u32 %v1351, 4294901760
      %v2895 = vsub.f32 %v1351, %v2894
      %v2896 = vand.u32 %v2895, 4294901760
      %v2897 = vsub.f32 %v2895, %v2896
      %v2898 = vand.u32 %v2897, 4294901760
      %2899 = vmatpush.msra.mxu0 %v2898
      %v2900 = vand.u32 %v1347, 4294901760
      %v2901 = vsub.f32 %v1347, %v2900
      %v2902 = vand.u32 %v2901, 4294901760
      %v2903 = vsub.f32 %v2901, %v2902
      %v2904 = vand.u32 %v2903, 4294901760
      %2905 = vmatpush.msra.mxu0 %v2904
      %v2906 = vand.u32 %v1343, 4294901760
      %v2907 = vsub.f32 %v1343, %v2906
      %v2908 = vand.u32 %v2907, 4294901760
      %v2909 = vsub.f32 %v2907, %v2908
      %v2910 = vand.u32 %v2909, 4294901760
      %2911 = vmatpush.msra.mxu0 %v2910
      %v2912 = vand.u32 %v1339, 4294901760
      %v2913 = vsub.f32 %v1339, %v2912
      %v2914 = vand.u32 %v2913, 4294901760
      %v2915 = vsub.f32 %v2913, %v2914
      %v2916 = vand.u32 %v2915, 4294901760
      %2917 = vmatpush.msra.mxu0 %v2916
      %v2918 = vand.u32 %v1335, 4294901760
      %v2919 = vsub.f32 %v1335, %v2918
      %v2920 = vand.u32 %v2919, 4294901760
      %v2921 = vsub.f32 %v2919, %v2920
      %v2922 = vand.u32 %v2921, 4294901760
      %2923 = vmatpush.msra.mxu0 %v2922
      %v2924 = vand.u32 %v1060, 4294901760
      %2925 = vmatmul.f32.gmra.mxu0 %v2924
      %v2926 = vpop.f32.mrf.mxu0
      %v2927 = vadd.f32 %v2826, %v2926
      %2928 = vdwg.mxu0
      %v2929 = vand.u32 %v1395, 4294901760
      %v2930 = vsub.f32 %v1395, %v2929
      %2931 = vmatpush.msra.mxu0 %v2930
      %v2932 = vand.u32 %v1391, 4294901760
      %v2933 = vsub.f32 %v1391, %v2932
      %2934 = vmatpush.msra.mxu0 %v2933
      %v2935 = vand.u32 %v1387, 4294901760
      %v2936 = vsub.f32 %v1387, %v2935
      %2937 = vmatpush.msra.mxu0 %v2936
      %v2938 = vand.u32 %v1383, 4294901760
      %v2939 = vsub.f32 %v1383, %v2938
      %2940 = vmatpush.msra.mxu0 %v2939
      %v2941 = vand.u32 %v1379, 4294901760
      %v2942 = vsub.f32 %v1379, %v2941
      %2943 = vmatpush.msra.mxu0 %v2942
      %v2944 = vand.u32 %v1375, 4294901760
      %v2945 = vsub.f32 %v1375, %v2944
      %2946 = vmatpush.msra.mxu0 %v2945
      %v2947 = vand.u32 %v1371, 4294901760
      %v2948 = vsub.f32 %v1371, %v2947
      %2949 = vmatpush.msra.mxu0 %v2948
      %v2950 = vand.u32 %v1367, 4294901760
      %v2951 = vsub.f32 %v1367, %v2950
      %2952 = vmatpush.msra.mxu0 %v2951
      %v2953 = vand.u32 %v1363, 4294901760
      %v2954 = vsub.f32 %v1363, %v2953
      %2955 = vmatpush.msra.mxu0 %v2954
      %v2956 = vand.u32 %v1359, 4294901760
      %v2957 = vsub.f32 %v1359, %v2956
      %2958 = vmatpush.msra.mxu0 %v2957
      %v2959 = vand.u32 %v1355, 4294901760
      %v2960 = vsub.f32 %v1355, %v2959
      %2961 = vmatpush.msra.mxu0 %v2960
      %v2962 = vand.u32 %v1351, 4294901760
      %v2963 = vsub.f32 %v1351, %v2962
      %2964 = vmatpush.msra.mxu0 %v2963
      %v2965 = vand.u32 %v1347, 4294901760
      %v2966 = vsub.f32 %v1347, %v2965
      %2967 = vmatpush.msra.mxu0 %v2966
      %v2968 = vand.u32 %v1343, 4294901760
      %v2969 = vsub.f32 %v1343, %v2968
      %2970 = vmatpush.msra.mxu0 %v2969
      %v2971 = vand.u32 %v1339, 4294901760
      %v2972 = vsub.f32 %v1339, %v2971
      %2973 = vmatpush.msra.mxu0 %v2972
      %v2974 = vand.u32 %v1335, 4294901760
      %v2975 = vsub.f32 %v1335, %v2974
      %2976 = vmatpush.msra.mxu0 %v2975
      %v2977 = vand.u32 %v1060, 4294901760
      %v2978 = vsub.f32 %v1060, %v2977
      %2979 = vmatmul.f32.gmra.mxu0 %v2978
      %v2980 = vpop.f32.mrf.mxu0
      %v2981 = vadd.f32 %v2927, %v2980
      %2982 = vdwg.mxu0
      %v2983 = vand.u32 %v1395, 4294901760
      %2984 = vmatpush.msra.mxu0 %v2983
      %v2985 = vand.u32 %v1391, 4294901760
      %2986 = vmatpush.msra.mxu0 %v2985
      %v2987 = vand.u32 %v1387, 4294901760
      %2988 = vmatpush.msra.mxu0 %v2987
      %v2989 = vand.u32 %v1383, 4294901760
      %2990 = vmatpush.msra.mxu0 %v2989
      %v2991 = vand.u32 %v1379, 4294901760
      %2992 = vmatpush.msra.mxu0 %v2991
      %v2993 = vand.u32 %v1375, 4294901760
      %2994 = vmatpush.msra.mxu0 %v2993
      %v2995 = vand.u32 %v1371, 4294901760
      %2996 = vmatpush.msra.mxu0 %v2995
      %v2997 = vand.u32 %v1367, 4294901760
      %2998 = vmatpush.msra.mxu0 %v2997
      %v2999 = vand.u32 %v1363, 4294901760
      %3000 = vmatpush.msra.mxu0 %v2999
      %v3001 = vand.u32 %v1359, 4294901760
      %3002 = vmatpush.msra.mxu0 %v3001
      %v3003 = vand.u32 %v1355, 4294901760
      %3004 = vmatpush.msra.mxu0 %v3003
      %v3005 = vand.u32 %v1351, 4294901760
      %3006 = vmatpush.msra.mxu0 %v3005
      %v3007 = vand.u32 %v1347, 4294901760
      %3008 = vmatpush.msra.mxu0 %v3007
      %v3009 = vand.u32 %v1343, 4294901760
      %3010 = vmatpush.msra.mxu0 %v3009
      %v3011 = vand.u32 %v1339, 4294901760
      %3012 = vmatpush.msra.mxu0 %v3011
      %v3013 = vand.u32 %v1335, 4294901760
      %3014 = vmatpush.msra.mxu0 %v3013
      %v3015 = vand.u32 %v1060, 4294901760
      %v3016 = vsub.f32 %v1060, %v3015
      %v3017 = vand.u32 %v3016, 4294901760
      %3018 = vmatmul.f32.gmra.mxu0 %v3017
      %v3019 = vpop.f32.mrf.mxu0
      %v3020 = vadd.f32 %v2981, %v3019
      %3021 = vdwg.mxu0
      %v3022 = vand.u32 %v1395, 4294901760
      %v3023 = vsub.f32 %v1395, %v3022
      %v3024 = vand.u32 %v3023, 4294901760
      %3025 = vmatpush.msra.mxu0 %v3024
      %v3026 = vand.u32 %v1391, 4294901760
      %v3027 = vsub.f32 %v1391, %v3026
      %v3028 = vand.u32 %v3027, 4294901760
      %3029 = vmatpush.msra.mxu0 %v3028
      %v3030 = vand.u32 %v1387, 4294901760
      %v3031 = vsub.f32 %v1387, %v3030
      %v3032 = vand.u32 %v3031, 4294901760
      %3033 = vmatpush.msra.mxu0 %v3032
      %v3034 = vand.u32 %v1383, 4294901760
      %v3035 = vsub.f32 %v1383, %v3034
      %v3036 = vand.u32 %v3035, 4294901760
      %3037 = vmatpush.msra.mxu0 %v3036
      %v3038 = vand.u32 %v1379, 4294901760
      %v3039 = vsub.f32 %v1379, %v3038
      %v3040 = vand.u32 %v3039, 4294901760
      %3041 = vmatpush.msra.mxu0 %v3040
      %v3042 = vand.u32 %v1375, 4294901760
      %v3043 = vsub.f32 %v1375, %v3042
      %v3044 = vand.u32 %v3043, 4294901760
      %3045 = vmatpush.msra.mxu0 %v3044
      %v3046 = vand.u32 %v1371, 4294901760
      %v3047 = vsub.f32 %v1371, %v3046
      %v3048 = vand.u32 %v3047, 4294901760
      %3049 = vmatpush.msra.mxu0 %v3048
      %v3050 = vand.u32 %v1367, 4294901760
      %v3051 = vsub.f32 %v1367, %v3050
      %v3052 = vand.u32 %v3051, 4294901760
      %3053 = vmatpush.msra.mxu0 %v3052
      %v3054 = vand.u32 %v1363, 4294901760
      %v3055 = vsub.f32 %v1363, %v3054
      %v3056 = vand.u32 %v3055, 4294901760
      %3057 = vmatpush.msra.mxu0 %v3056
      %v3058 = vand.u32 %v1359, 4294901760
      %v3059 = vsub.f32 %v1359, %v3058
      %v3060 = vand.u32 %v3059, 4294901760
      %3061 = vmatpush.msra.mxu0 %v3060
      %v3062 = vand.u32 %v1355, 4294901760
      %v3063 = vsub.f32 %v1355, %v3062
      %v3064 = vand.u32 %v3063, 4294901760
      %3065 = vmatpush.msra.mxu0 %v3064
      %v3066 = vand.u32 %v1351, 4294901760
      %v3067 = vsub.f32 %v1351, %v3066
      %v3068 = vand.u32 %v3067, 4294901760
      %3069 = vmatpush.msra.mxu0 %v3068
      %v3070 = vand.u32 %v1347, 4294901760
      %v3071 = vsub.f32 %v1347, %v3070
      %v3072 = vand.u32 %v3071, 4294901760
      %3073 = vmatpush.msra.mxu0 %v3072
      %v3074 = vand.u32 %v1343, 4294901760
      %v3075 = vsub.f32 %v1343, %v3074
      %v3076 = vand.u32 %v3075, 4294901760
      %3077 = vmatpush.msra.mxu0 %v3076
      %v3078 = vand.u32 %v1339, 4294901760
      %v3079 = vsub.f32 %v1339, %v3078
      %v3080 = vand.u32 %v3079, 4294901760
      %3081 = vmatpush.msra.mxu0 %v3080
      %v3082 = vand.u32 %v1335, 4294901760
      %v3083 = vsub.f32 %v1335, %v3082
      %v3084 = vand.u32 %v3083, 4294901760
      %3085 = vmatpush.msra.mxu0 %v3084
      %v3086 = vand.u32 %v1060, 4294901760
      %3087 = vmatmul.f32.gmra.mxu0 %v3086
      %v3088 = vpop.f32.mrf.mxu0
      %v3089 = vadd.f32 %v3020, %v3088
      %3090 = vdwg.mxu0
      %v3091 = vand.u32 %v1395, 4294901760
      %3092 = vmatpush.msra.mxu0 %v3091
      %v3093 = vand.u32 %v1391, 4294901760
      %3094 = vmatpush.msra.mxu0 %v3093
      %v3095 = vand.u32 %v1387, 4294901760
      %3096 = vmatpush.msra.mxu0 %v3095
      %v3097 = vand.u32 %v1383, 4294901760
      %3098 = vmatpush.msra.mxu0 %v3097
      %v3099 = vand.u32 %v1379, 4294901760
      %3100 = vmatpush.msra.mxu0 %v3099
      %v3101 = vand.u32 %v1375, 4294901760
      %3102 = vmatpush.msra.mxu0 %v3101
      %v3103 = vand.u32 %v1371, 4294901760
      %3104 = vmatpush.msra.mxu0 %v3103
      %v3105 = vand.u32 %v1367, 4294901760
      %3106 = vmatpush.msra.mxu0 %v3105
      %v3107 = vand.u32 %v1363, 4294901760
      %3108 = vmatpush.msra.mxu0 %v3107
      %v3109 = vand.u32 %v1359, 4294901760
      %3110 = vmatpush.msra.mxu0 %v3109
      %v3111 = vand.u32 %v1355, 4294901760
      %3112 = vmatpush.msra.mxu0 %v3111
      %v3113 = vand.u32 %v1351, 4294901760
      %3114 = vmatpush.msra.mxu0 %v3113
      %v3115 = vand.u32 %v1347, 4294901760
      %3116 = vmatpush.msra.mxu0 %v3115
      %v3117 = vand.u32 %v1343, 4294901760
      %3118 = vmatpush.msra.mxu0 %v3117
      %v3119 = vand.u32 %v1339, 4294901760
      %3120 = vmatpush.msra.mxu0 %v3119
      %v3121 = vand.u32 %v1335, 4294901760
      %3122 = vmatpush.msra.mxu0 %v3121
      %v3123 = vand.u32 %v1060, 4294901760
      %3124 = vmatmul.f32.gmra.mxu0 %v3123
      %v3125 = vpop.f32.mrf.mxu0
      %v3126 = vadd.f32 %v3089, %v3125
      %3127 = vdwg.mxu0
      %3128 = vmatpush.msra.mxu0 0.0
      %3129 = vmatpush.msra.mxu0 0.0
      %3130 = vmatpush.msra.mxu0 0.0
      %3131 = vmatpush.msra.mxu0 0.0
      %3132 = vmatpush.msra.mxu0 0.0
      %v3133 = vand.u32 %v1439, 4294901760
      %3134 = vmatpush.msra.mxu0 %v3133
      %v3135 = vand.u32 %v1435, 4294901760
      %3136 = vmatpush.msra.mxu0 %v3135
      %v3137 = vand.u32 %v1431, 4294901760
      %3138 = vmatpush.msra.mxu0 %v3137
      %v3139 = vand.u32 %v1427, 4294901760
      %3140 = vmatpush.msra.mxu0 %v3139
      %v3141 = vand.u32 %v1423, 4294901760
      %3142 = vmatpush.msra.mxu0 %v3141
      %v3143 = vand.u32 %v1419, 4294901760
      %3144 = vmatpush.msra.mxu0 %v3143
      %v3145 = vand.u32 %v1415, 4294901760
      %3146 = vmatpush.msra.mxu0 %v3145
      %v3147 = vand.u32 %v1411, 4294901760
      %3148 = vmatpush.msra.mxu0 %v3147
      %v3149 = vand.u32 %v1407, 4294901760
      %3150 = vmatpush.msra.mxu0 %v3149
      %v3151 = vand.u32 %v1403, 4294901760
      %3152 = vmatpush.msra.mxu0 %v3151
      %v3153 = vand.u32 %v1399, 4294901760
      %3154 = vmatpush.msra.mxu0 %v3153
      %v3155 = vand.u32 %v1551, 4294901760
      %v3156 = vsub.f32 %v1551, %v3155
      %v3157 = vand.u32 %v3156, 4294901760
      %v3158 = vsub.f32 %v3156, %v3157
      %v3159 = vand.u32 %v3158, 4294901760
      %3160 = vmatmul.f32.gmra.mxu0 %v3159
      %v3161 = vpop.f32.mrf.mxu0
      %v3162 = vadd.f32 %v3126, %v3161
      %3163 = vdwg.mxu0
      %3164 = vmatpush.msra.mxu0 0.0
      %3165 = vmatpush.msra.mxu0 0.0
      %3166 = vmatpush.msra.mxu0 0.0
      %3167 = vmatpush.msra.mxu0 0.0
      %3168 = vmatpush.msra.mxu0 0.0
      %v3169 = vand.u32 %v1439, 4294901760
      %v3170 = vsub.f32 %v1439, %v3169
      %v3171 = vand.u32 %v3170, 4294901760
      %v3172 = vsub.f32 %v3170, %v3171
      %v3173 = vand.u32 %v3172, 4294901760
      %3174 = vmatpush.msra.mxu0 %v3173
      %v3175 = vand.u32 %v1435, 4294901760
      %v3176 = vsub.f32 %v1435, %v3175
      %v3177 = vand.u32 %v3176, 4294901760
      %v3178 = vsub.f32 %v3176, %v3177
      %v3179 = vand.u32 %v3178, 4294901760
      %3180 = vmatpush.msra.mxu0 %v3179
      %v3181 = vand.u32 %v1431, 4294901760
      %v3182 = vsub.f32 %v1431, %v3181
      %v3183 = vand.u32 %v3182, 4294901760
      %v3184 = vsub.f32 %v3182, %v3183
      %v3185 = vand.u32 %v3184, 4294901760
      %3186 = vmatpush.msra.mxu0 %v3185
      %v3187 = vand.u32 %v1427, 4294901760
      %v3188 = vsub.f32 %v1427, %v3187
      %v3189 = vand.u32 %v3188, 4294901760
      %v3190 = vsub.f32 %v3188, %v3189
      %v3191 = vand.u32 %v3190, 4294901760
      %3192 = vmatpush.msra.mxu0 %v3191
      %v3193 = vand.u32 %v1423, 4294901760
      %v3194 = vsub.f32 %v1423, %v3193
      %v3195 = vand.u32 %v3194, 4294901760
      %v3196 = vsub.f32 %v3194, %v3195
      %v3197 = vand.u32 %v3196, 4294901760
      %3198 = vmatpush.msra.mxu0 %v3197
      %v3199 = vand.u32 %v1419, 4294901760
      %v3200 = vsub.f32 %v1419, %v3199
      %v3201 = vand.u32 %v3200, 4294901760
      %v3202 = vsub.f32 %v3200, %v3201
      %v3203 = vand.u32 %v3202, 4294901760
      %3204 = vmatpush.msra.mxu0 %v3203
      %v3205 = vand.u32 %v1415, 4294901760
      %v3206 = vsub.f32 %v1415, %v3205
      %v3207 = vand.u32 %v3206, 4294901760
      %v3208 = vsub.f32 %v3206, %v3207
      %v3209 = vand.u32 %v3208, 4294901760
      %3210 = vmatpush.msra.mxu0 %v3209
      %v3211 = vand.u32 %v1411, 4294901760
      %v3212 = vsub.f32 %v1411, %v3211
      %v3213 = vand.u32 %v3212, 4294901760
      %v3214 = vsub.f32 %v3212, %v3213
      %v3215 = vand.u32 %v3214, 4294901760
      %3216 = vmatpush.msra.mxu0 %v3215
      %v3217 = vand.u32 %v1407, 4294901760
      %v3218 = vsub.f32 %v1407, %v3217
      %v3219 = vand.u32 %v3218, 4294901760
      %v3220 = vsub.f32 %v3218, %v3219
      %v3221 = vand.u32 %v3220, 4294901760
      %3222 = vmatpush.msra.mxu0 %v3221
      %v3223 = vand.u32 %v1403, 4294901760
      %v3224 = vsub.f32 %v1403, %v3223
      %v3225 = vand.u32 %v3224, 4294901760
      %v3226 = vsub.f32 %v3224, %v3225
      %v3227 = vand.u32 %v3226, 4294901760
      %3228 = vmatpush.msra.mxu0 %v3227
      %v3229 = vand.u32 %v1399, 4294901760
      %v3230 = vsub.f32 %v1399, %v3229
      %v3231 = vand.u32 %v3230, 4294901760
      %v3232 = vsub.f32 %v3230, %v3231
      %v3233 = vand.u32 %v3232, 4294901760
      %3234 = vmatpush.msra.mxu0 %v3233
      %v3235 = vand.u32 %v1551, 4294901760
      %3236 = vmatmul.f32.gmra.mxu0 %v3235
      %v3237 = vpop.f32.mrf.mxu0
      %v3238 = vadd.f32 %v3162, %v3237
      %3239 = vdwg.mxu0
      %3240 = vmatpush.msra.mxu0 0.0
      %3241 = vmatpush.msra.mxu0 0.0
      %3242 = vmatpush.msra.mxu0 0.0
      %3243 = vmatpush.msra.mxu0 0.0
      %3244 = vmatpush.msra.mxu0 0.0
      %v3245 = vand.u32 %v1439, 4294901760
      %v3246 = vsub.f32 %v1439, %v3245
      %3247 = vmatpush.msra.mxu0 %v3246
      %v3248 = vand.u32 %v1435, 4294901760
      %v3249 = vsub.f32 %v1435, %v3248
      %3250 = vmatpush.msra.mxu0 %v3249
      %v3251 = vand.u32 %v1431, 4294901760
      %v3252 = vsub.f32 %v1431, %v3251
      %3253 = vmatpush.msra.mxu0 %v3252
      %v3254 = vand.u32 %v1427, 4294901760
      %v3255 = vsub.f32 %v1427, %v3254
      %3256 = vmatpush.msra.mxu0 %v3255
      %v3257 = vand.u32 %v1423, 4294901760
      %v3258 = vsub.f32 %v1423, %v3257
      %3259 = vmatpush.msra.mxu0 %v3258
      %v3260 = vand.u32 %v1419, 4294901760
      %v3261 = vsub.f32 %v1419, %v3260
      %3262 = vmatpush.msra.mxu0 %v3261
      %v3263 = vand.u32 %v1415, 4294901760
      %v3264 = vsub.f32 %v1415, %v3263
      %3265 = vmatpush.msra.mxu0 %v3264
      %v3266 = vand.u32 %v1411, 4294901760
      %v3267 = vsub.f32 %v1411, %v3266
      %3268 = vmatpush.msra.mxu0 %v3267
      %v3269 = vand.u32 %v1407, 4294901760
      %v3270 = vsub.f32 %v1407, %v3269
      %3271 = vmatpush.msra.mxu0 %v3270
      %v3272 = vand.u32 %v1403, 4294901760
      %v3273 = vsub.f32 %v1403, %v3272
      %3274 = vmatpush.msra.mxu0 %v3273
      %v3275 = vand.u32 %v1399, 4294901760
      %v3276 = vsub.f32 %v1399, %v3275
      %3277 = vmatpush.msra.mxu0 %v3276
      %v3278 = vand.u32 %v1551, 4294901760
      %v3279 = vsub.f32 %v1551, %v3278
      %3280 = vmatmul.f32.gmra.mxu0 %v3279
      %v3281 = vpop.f32.mrf.mxu0
      %v3282 = vadd.f32 %v3238, %v3281
      %3283 = vdwg.mxu0
      %3284 = vmatpush.msra.mxu0 0.0
      %3285 = vmatpush.msra.mxu0 0.0
      %3286 = vmatpush.msra.mxu0 0.0
      %3287 = vmatpush.msra.mxu0 0.0
      %3288 = vmatpush.msra.mxu0 0.0
      %v3289 = vand.u32 %v1439, 4294901760
      %3290 = vmatpush.msra.mxu0 %v3289
      %v3291 = vand.u32 %v1435, 4294901760
      %3292 = vmatpush.msra.mxu0 %v3291
      %v3293 = vand.u32 %v1431, 4294901760
      %3294 = vmatpush.msra.mxu0 %v3293
      %v3295 = vand.u32 %v1427, 4294901760
      %3296 = vmatpush.msra.mxu0 %v3295
      %v3297 = vand.u32 %v1423, 4294901760
      %3298 = vmatpush.msra.mxu0 %v3297
      %v3299 = vand.u32 %v1419, 4294901760
      %3300 = vmatpush.msra.mxu0 %v3299
      %v3301 = vand.u32 %v1415, 4294901760
      %3302 = vmatpush.msra.mxu0 %v3301
      %v3303 = vand.u32 %v1411, 4294901760
      %3304 = vmatpush.msra.mxu0 %v3303
      %v3305 = vand.u32 %v1407, 4294901760
      %3306 = vmatpush.msra.mxu0 %v3305
      %v3307 = vand.u32 %v1403, 4294901760
      %3308 = vmatpush.msra.mxu0 %v3307
      %v3309 = vand.u32 %v1399, 4294901760
      %3310 = vmatpush.msra.mxu0 %v3309
      %v3311 = vand.u32 %v1551, 4294901760
      %v3312 = vsub.f32 %v1551, %v3311
      %v3313 = vand.u32 %v3312, 4294901760
      %3314 = vmatmul.f32.gmra.mxu0 %v3313
      %v3315 = vpop.f32.mrf.mxu0
      %v3316 = vadd.f32 %v3282, %v3315
      %3317 = vdwg.mxu0
      %3318 = vmatpush.msra.mxu0 0.0
      %3319 = vmatpush.msra.mxu0 0.0
      %3320 = vmatpush.msra.mxu0 0.0
      %3321 = vmatpush.msra.mxu0 0.0
      %3322 = vmatpush.msra.mxu0 0.0
      %v3323 = vand.u32 %v1439, 4294901760
      %v3324 = vsub.f32 %v1439, %v3323
      %v3325 = vand.u32 %v3324, 4294901760
      %3326 = vmatpush.msra.mxu0 %v3325
      %v3327 = vand.u32 %v1435, 4294901760
      %v3328 = vsub.f32 %v1435, %v3327
      %v3329 = vand.u32 %v3328, 4294901760
      %3330 = vmatpush.msra.mxu0 %v3329
      %v3331 = vand.u32 %v1431, 4294901760
      %v3332 = vsub.f32 %v1431, %v3331
      %v3333 = vand.u32 %v3332, 4294901760
      %3334 = vmatpush.msra.mxu0 %v3333
      %v3335 = vand.u32 %v1427, 4294901760
      %v3336 = vsub.f32 %v1427, %v3335
      %v3337 = vand.u32 %v3336, 4294901760
      %3338 = vmatpush.msra.mxu0 %v3337
      %v3339 = vand.u32 %v1423, 4294901760
      %v3340 = vsub.f32 %v1423, %v3339
      %v3341 = vand.u32 %v3340, 4294901760
      %3342 = vmatpush.msra.mxu0 %v3341
      %v3343 = vand.u32 %v1419, 4294901760
      %v3344 = vsub.f32 %v1419, %v3343
      %v3345 = vand.u32 %v3344, 4294901760
      %3346 = vmatpush.msra.mxu0 %v3345
      %v3347 = vand.u32 %v1415, 4294901760
      %v3348 = vsub.f32 %v1415, %v3347
      %v3349 = vand.u32 %v3348, 4294901760
      %3350 = vmatpush.msra.mxu0 %v3349
      %v3351 = vand.u32 %v1411, 4294901760
      %v3352 = vsub.f32 %v1411, %v3351
      %v3353 = vand.u32 %v3352, 4294901760
      %3354 = vmatpush.msra.mxu0 %v3353
      %v3355 = vand.u32 %v1407, 4294901760
      %v3356 = vsub.f32 %v1407, %v3355
      %v3357 = vand.u32 %v3356, 4294901760
      %3358 = vmatpush.msra.mxu0 %v3357
      %v3359 = vand.u32 %v1403, 4294901760
      %v3360 = vsub.f32 %v1403, %v3359
      %v3361 = vand.u32 %v3360, 4294901760
      %3362 = vmatpush.msra.mxu0 %v3361
      %v3363 = vand.u32 %v1399, 4294901760
      %v3364 = vsub.f32 %v1399, %v3363
      %v3365 = vand.u32 %v3364, 4294901760
      %3366 = vmatpush.msra.mxu0 %v3365
      %v3367 = vand.u32 %v1551, 4294901760
      %3368 = vmatmul.f32.gmra.mxu0 %v3367
      %v3369 = vpop.f32.mrf.mxu0
      %v3370 = vadd.f32 %v3316, %v3369
      %3371 = vdwg.mxu0
      %3372 = vmatpush.msra.mxu0 0.0
      %3373 = vmatpush.msra.mxu0 0.0
      %3374 = vmatpush.msra.mxu0 0.0
      %3375 = vmatpush.msra.mxu0 0.0
      %3376 = vmatpush.msra.mxu0 0.0
      %v3377 = vand.u32 %v1439, 4294901760
      %3378 = vmatpush.msra.mxu0 %v3377
      %v3379 = vand.u32 %v1435, 4294901760
      %3380 = vmatpush.msra.mxu0 %v3379
      %v3381 = vand.u32 %v1431, 4294901760
      %3382 = vmatpush.msra.mxu0 %v3381
      %v3383 = vand.u32 %v1427, 4294901760
      %3384 = vmatpush.msra.mxu0 %v3383
      %v3385 = vand.u32 %v1423, 4294901760
      %3386 = vmatpush.msra.mxu0 %v3385
      %v3387 = vand.u32 %v1419, 4294901760
      %3388 = vmatpush.msra.mxu0 %v3387
      %v3389 = vand.u32 %v1415, 4294901760
      %3390 = vmatpush.msra.mxu0 %v3389
      %v3391 = vand.u32 %v1411, 4294901760
      %3392 = vmatpush.msra.mxu0 %v3391
      %v3393 = vand.u32 %v1407, 4294901760
      %3394 = vmatpush.msra.mxu0 %v3393
      %v3395 = vand.u32 %v1403, 4294901760
      %3396 = vmatpush.msra.mxu0 %v3395
      %v3397 = vand.u32 %v1399, 4294901760
      %3398 = vmatpush.msra.mxu0 %v3397
      %v3399 = vand.u32 %v1551, 4294901760
      %3400 = vmatmul.f32.gmra.mxu0 %v3399
      %v3401 = vpop.f32.mrf.mxu0
      %v3402 = vadd.f32 %v3370, %v3401
      %3403 = vdwg.mxu0
      %v3404 = vand.u32 %v1396, 4294901760
      %3405 = vmatpush.msra.mxu0 %v3404
      %v3406 = vand.u32 %v1392, 4294901760
      %3407 = vmatpush.msra.mxu0 %v3406
      %v3408 = vand.u32 %v1388, 4294901760
      %3409 = vmatpush.msra.mxu0 %v3408
      %v3410 = vand.u32 %v1384, 4294901760
      %3411 = vmatpush.msra.mxu0 %v3410
      %v3412 = vand.u32 %v1380, 4294901760
      %3413 = vmatpush.msra.mxu0 %v3412
      %v3414 = vand.u32 %v1376, 4294901760
      %3415 = vmatpush.msra.mxu0 %v3414
      %v3416 = vand.u32 %v1372, 4294901760
      %3417 = vmatpush.msra.mxu0 %v3416
      %v3418 = vand.u32 %v1368, 4294901760
      %3419 = vmatpush.msra.mxu0 %v3418
      %v3420 = vand.u32 %v1364, 4294901760
      %3421 = vmatpush.msra.mxu0 %v3420
      %v3422 = vand.u32 %v1360, 4294901760
      %3423 = vmatpush.msra.mxu0 %v3422
      %v3424 = vand.u32 %v1356, 4294901760
      %3425 = vmatpush.msra.mxu0 %v3424
      %v3426 = vand.u32 %v1352, 4294901760
      %3427 = vmatpush.msra.mxu0 %v3426
      %v3428 = vand.u32 %v1348, 4294901760
      %3429 = vmatpush.msra.mxu0 %v3428
      %v3430 = vand.u32 %v1344, 4294901760
      %3431 = vmatpush.msra.mxu0 %v3430
      %v3432 = vand.u32 %v1340, 4294901760
      %3433 = vmatpush.msra.mxu0 %v3432
      %v3434 = vand.u32 %v1336, 4294901760
      %3435 = vmatpush.msra.mxu0 %v3434
      %v3436 = vand.u32 %v1060, 4294901760
      %v3437 = vsub.f32 %v1060, %v3436
      %v3438 = vand.u32 %v3437, 4294901760
      %v3439 = vsub.f32 %v3437, %v3438
      %v3440 = vand.u32 %v3439, 4294901760
      %3441 = vmatmul.f32.gmra.mxu0 %v3440
      %v3442 = vpop.f32.mrf.mxu0
      %v3443 = vadd.f32 0.0, %v3442
      %3444 = vdwg.mxu0
      %v3445 = vand.u32 %v1396, 4294901760
      %v3446 = vsub.f32 %v1396, %v3445
      %v3447 = vand.u32 %v3446, 4294901760
      %v3448 = vsub.f32 %v3446, %v3447
      %v3449 = vand.u32 %v3448, 4294901760
      %3450 = vmatpush.msra.mxu0 %v3449
      %v3451 = vand.u32 %v1392, 4294901760
      %v3452 = vsub.f32 %v1392, %v3451
      %v3453 = vand.u32 %v3452, 4294901760
      %v3454 = vsub.f32 %v3452, %v3453
      %v3455 = vand.u32 %v3454, 4294901760
      %3456 = vmatpush.msra.mxu0 %v3455
      %v3457 = vand.u32 %v1388, 4294901760
      %v3458 = vsub.f32 %v1388, %v3457
      %v3459 = vand.u32 %v3458, 4294901760
      %v3460 = vsub.f32 %v3458, %v3459
      %v3461 = vand.u32 %v3460, 4294901760
      %3462 = vmatpush.msra.mxu0 %v3461
      %v3463 = vand.u32 %v1384, 4294901760
      %v3464 = vsub.f32 %v1384, %v3463
      %v3465 = vand.u32 %v3464, 4294901760
      %v3466 = vsub.f32 %v3464, %v3465
      %v3467 = vand.u32 %v3466, 4294901760
      %3468 = vmatpush.msra.mxu0 %v3467
      %v3469 = vand.u32 %v1380, 4294901760
      %v3470 = vsub.f32 %v1380, %v3469
      %v3471 = vand.u32 %v3470, 4294901760
      %v3472 = vsub.f32 %v3470, %v3471
      %v3473 = vand.u32 %v3472, 4294901760
      %3474 = vmatpush.msra.mxu0 %v3473
      %v3475 = vand.u32 %v1376, 4294901760
      %v3476 = vsub.f32 %v1376, %v3475
      %v3477 = vand.u32 %v3476, 4294901760
      %v3478 = vsub.f32 %v3476, %v3477
      %v3479 = vand.u32 %v3478, 4294901760
      %3480 = vmatpush.msra.mxu0 %v3479
      %v3481 = vand.u32 %v1372, 4294901760
      %v3482 = vsub.f32 %v1372, %v3481
      %v3483 = vand.u32 %v3482, 4294901760
      %v3484 = vsub.f32 %v3482, %v3483
      %v3485 = vand.u32 %v3484, 4294901760
      %3486 = vmatpush.msra.mxu0 %v3485
      %v3487 = vand.u32 %v1368, 4294901760
      %v3488 = vsub.f32 %v1368, %v3487
      %v3489 = vand.u32 %v3488, 4294901760
      %v3490 = vsub.f32 %v3488, %v3489
      %v3491 = vand.u32 %v3490, 4294901760
      %3492 = vmatpush.msra.mxu0 %v3491
      %v3493 = vand.u32 %v1364, 4294901760
      %v3494 = vsub.f32 %v1364, %v3493
      %v3495 = vand.u32 %v3494, 4294901760
      %v3496 = vsub.f32 %v3494, %v3495
      %v3497 = vand.u32 %v3496, 4294901760
      %3498 = vmatpush.msra.mxu0 %v3497
      %v3499 = vand.u32 %v1360, 4294901760
      %v3500 = vsub.f32 %v1360, %v3499
      %v3501 = vand.u32 %v3500, 4294901760
      %v3502 = vsub.f32 %v3500, %v3501
      %v3503 = vand.u32 %v3502, 4294901760
      %3504 = vmatpush.msra.mxu0 %v3503
      %v3505 = vand.u32 %v1356, 4294901760
      %v3506 = vsub.f32 %v1356, %v3505
      %v3507 = vand.u32 %v3506, 4294901760
      %v3508 = vsub.f32 %v3506, %v3507
      %v3509 = vand.u32 %v3508, 4294901760
      %3510 = vmatpush.msra.mxu0 %v3509
      %v3511 = vand.u32 %v1352, 4294901760
      %v3512 = vsub.f32 %v1352, %v3511
      %v3513 = vand.u32 %v3512, 4294901760
      %v3514 = vsub.f32 %v3512, %v3513
      %v3515 = vand.u32 %v3514, 4294901760
      %3516 = vmatpush.msra.mxu0 %v3515
      %v3517 = vand.u32 %v1348, 4294901760
      %v3518 = vsub.f32 %v1348, %v3517
      %v3519 = vand.u32 %v3518, 4294901760
      %v3520 = vsub.f32 %v3518, %v3519
      %v3521 = vand.u32 %v3520, 4294901760
      %3522 = vmatpush.msra.mxu0 %v3521
      %v3523 = vand.u32 %v1344, 4294901760
      %v3524 = vsub.f32 %v1344, %v3523
      %v3525 = vand.u32 %v3524, 4294901760
      %v3526 = vsub.f32 %v3524, %v3525
      %v3527 = vand.u32 %v3526, 4294901760
      %3528 = vmatpush.msra.mxu0 %v3527
      %v3529 = vand.u32 %v1340, 4294901760
      %v3530 = vsub.f32 %v1340, %v3529
      %v3531 = vand.u32 %v3530, 4294901760
      %v3532 = vsub.f32 %v3530, %v3531
      %v3533 = vand.u32 %v3532, 4294901760
      %3534 = vmatpush.msra.mxu0 %v3533
      %v3535 = vand.u32 %v1336, 4294901760
      %v3536 = vsub.f32 %v1336, %v3535
      %v3537 = vand.u32 %v3536, 4294901760
      %v3538 = vsub.f32 %v3536, %v3537
      %v3539 = vand.u32 %v3538, 4294901760
      %3540 = vmatpush.msra.mxu0 %v3539
      %v3541 = vand.u32 %v1060, 4294901760
      %3542 = vmatmul.f32.gmra.mxu0 %v3541
      %v3543 = vpop.f32.mrf.mxu0
      %v3544 = vadd.f32 %v3443, %v3543
      %3545 = vdwg.mxu0
      %v3546 = vand.u32 %v1396, 4294901760
      %v3547 = vsub.f32 %v1396, %v3546
      %3548 = vmatpush.msra.mxu0 %v3547
      %v3549 = vand.u32 %v1392, 4294901760
      %v3550 = vsub.f32 %v1392, %v3549
      %3551 = vmatpush.msra.mxu0 %v3550
      %v3552 = vand.u32 %v1388, 4294901760
      %v3553 = vsub.f32 %v1388, %v3552
      %3554 = vmatpush.msra.mxu0 %v3553
      %v3555 = vand.u32 %v1384, 4294901760
      %v3556 = vsub.f32 %v1384, %v3555
      %3557 = vmatpush.msra.mxu0 %v3556
      %v3558 = vand.u32 %v1380, 4294901760
      %v3559 = vsub.f32 %v1380, %v3558
      %3560 = vmatpush.msra.mxu0 %v3559
      %v3561 = vand.u32 %v1376, 4294901760
      %v3562 = vsub.f32 %v1376, %v3561
      %3563 = vmatpush.msra.mxu0 %v3562
      %v3564 = vand.u32 %v1372, 4294901760
      %v3565 = vsub.f32 %v1372, %v3564
      %3566 = vmatpush.msra.mxu0 %v3565
      %v3567 = vand.u32 %v1368, 4294901760
      %v3568 = vsub.f32 %v1368, %v3567
      %3569 = vmatpush.msra.mxu0 %v3568
      %v3570 = vand.u32 %v1364, 4294901760
      %v3571 = vsub.f32 %v1364, %v3570
      %3572 = vmatpush.msra.mxu0 %v3571
      %v3573 = vand.u32 %v1360, 4294901760
      %v3574 = vsub.f32 %v1360, %v3573
      %3575 = vmatpush.msra.mxu0 %v3574
      %v3576 = vand.u32 %v1356, 4294901760
      %v3577 = vsub.f32 %v1356, %v3576
      %3578 = vmatpush.msra.mxu0 %v3577
      %v3579 = vand.u32 %v1352, 4294901760
      %v3580 = vsub.f32 %v1352, %v3579
      %3581 = vmatpush.msra.mxu0 %v3580
      %v3582 = vand.u32 %v1348, 4294901760
      %v3583 = vsub.f32 %v1348, %v3582
      %3584 = vmatpush.msra.mxu0 %v3583
      %v3585 = vand.u32 %v1344, 4294901760
      %v3586 = vsub.f32 %v1344, %v3585
      %3587 = vmatpush.msra.mxu0 %v3586
      %v3588 = vand.u32 %v1340, 4294901760
      %v3589 = vsub.f32 %v1340, %v3588
      %3590 = vmatpush.msra.mxu0 %v3589
      %v3591 = vand.u32 %v1336, 4294901760
      %v3592 = vsub.f32 %v1336, %v3591
      %3593 = vmatpush.msra.mxu0 %v3592
      %v3594 = vand.u32 %v1060, 4294901760
      %v3595 = vsub.f32 %v1060, %v3594
      %3596 = vmatmul.f32.gmra.mxu0 %v3595
      %v3597 = vpop.f32.mrf.mxu0
      %v3598 = vadd.f32 %v3544, %v3597
      %3599 = vdwg.mxu0
      %v3600 = vand.u32 %v1396, 4294901760
      %3601 = vmatpush.msra.mxu0 %v3600
      %v3602 = vand.u32 %v1392, 4294901760
      %3603 = vmatpush.msra.mxu0 %v3602
      %v3604 = vand.u32 %v1388, 4294901760
      %3605 = vmatpush.msra.mxu0 %v3604
      %v3606 = vand.u32 %v1384, 4294901760
      %3607 = vmatpush.msra.mxu0 %v3606
      %v3608 = vand.u32 %v1380, 4294901760
      %3609 = vmatpush.msra.mxu0 %v3608
      %v3610 = vand.u32 %v1376, 4294901760
      %3611 = vmatpush.msra.mxu0 %v3610
      %v3612 = vand.u32 %v1372, 4294901760
      %3613 = vmatpush.msra.mxu0 %v3612
      %v3614 = vand.u32 %v1368, 4294901760
      %3615 = vmatpush.msra.mxu0 %v3614
      %v3616 = vand.u32 %v1364, 4294901760
      %3617 = vmatpush.msra.mxu0 %v3616
      %v3618 = vand.u32 %v1360, 4294901760
      %3619 = vmatpush.msra.mxu0 %v3618
      %v3620 = vand.u32 %v1356, 4294901760
      %3621 = vmatpush.msra.mxu0 %v3620
      %v3622 = vand.u32 %v1352, 4294901760
      %3623 = vmatpush.msra.mxu0 %v3622
      %v3624 = vand.u32 %v1348, 4294901760
      %3625 = vmatpush.msra.mxu0 %v3624
      %v3626 = vand.u32 %v1344, 4294901760
      %3627 = vmatpush.msra.mxu0 %v3626
      %v3628 = vand.u32 %v1340, 4294901760
      %3629 = vmatpush.msra.mxu0 %v3628
      %v3630 = vand.u32 %v1336, 4294901760
      %3631 = vmatpush.msra.mxu0 %v3630
      %v3632 = vand.u32 %v1060, 4294901760
      %v3633 = vsub.f32 %v1060, %v3632
      %v3634 = vand.u32 %v3633, 4294901760
      %3635 = vmatmul.f32.gmra.mxu0 %v3634
      %v3636 = vpop.f32.mrf.mxu0
      %v3637 = vadd.f32 %v3598, %v3636
      %3638 = vdwg.mxu0
      %v3639 = vand.u32 %v1396, 4294901760
      %v3640 = vsub.f32 %v1396, %v3639
      %v3641 = vand.u32 %v3640, 4294901760
      %3642 = vmatpush.msra.mxu0 %v3641
      %v3643 = vand.u32 %v1392, 4294901760
      %v3644 = vsub.f32 %v1392, %v3643
      %v3645 = vand.u32 %v3644, 4294901760
      %3646 = vmatpush.msra.mxu0 %v3645
      %v3647 = vand.u32 %v1388, 4294901760
      %v3648 = vsub.f32 %v1388, %v3647
      %v3649 = vand.u32 %v3648, 4294901760
      %3650 = vmatpush.msra.mxu0 %v3649
      %v3651 = vand.u32 %v1384, 4294901760
      %v3652 = vsub.f32 %v1384, %v3651
      %v3653 = vand.u32 %v3652, 4294901760
      %3654 = vmatpush.msra.mxu0 %v3653
      %v3655 = vand.u32 %v1380, 4294901760
      %v3656 = vsub.f32 %v1380, %v3655
      %v3657 = vand.u32 %v3656, 4294901760
      %3658 = vmatpush.msra.mxu0 %v3657
      %v3659 = vand.u32 %v1376, 4294901760
      %v3660 = vsub.f32 %v1376, %v3659
      %v3661 = vand.u32 %v3660, 4294901760
      %3662 = vmatpush.msra.mxu0 %v3661
      %v3663 = vand.u32 %v1372, 4294901760
      %v3664 = vsub.f32 %v1372, %v3663
      %v3665 = vand.u32 %v3664, 4294901760
      %3666 = vmatpush.msra.mxu0 %v3665
      %v3667 = vand.u32 %v1368, 4294901760
      %v3668 = vsub.f32 %v1368, %v3667
      %v3669 = vand.u32 %v3668, 4294901760
      %3670 = vmatpush.msra.mxu0 %v3669
      %v3671 = vand.u32 %v1364, 4294901760
      %v3672 = vsub.f32 %v1364, %v3671
      %v3673 = vand.u32 %v3672, 4294901760
      %3674 = vmatpush.msra.mxu0 %v3673
      %v3675 = vand.u32 %v1360, 4294901760
      %v3676 = vsub.f32 %v1360, %v3675
      %v3677 = vand.u32 %v3676, 4294901760
      %3678 = vmatpush.msra.mxu0 %v3677
      %v3679 = vand.u32 %v1356, 4294901760
      %v3680 = vsub.f32 %v1356, %v3679
      %v3681 = vand.u32 %v3680, 4294901760
      %3682 = vmatpush.msra.mxu0 %v3681
      %v3683 = vand.u32 %v1352, 4294901760
      %v3684 = vsub.f32 %v1352, %v3683
      %v3685 = vand.u32 %v3684, 4294901760
      %3686 = vmatpush.msra.mxu0 %v3685
      %v3687 = vand.u32 %v1348, 4294901760
      %v3688 = vsub.f32 %v1348, %v3687
      %v3689 = vand.u32 %v3688, 4294901760
      %3690 = vmatpush.msra.mxu0 %v3689
      %v3691 = vand.u32 %v1344, 4294901760
      %v3692 = vsub.f32 %v1344, %v3691
      %v3693 = vand.u32 %v3692, 4294901760
      %3694 = vmatpush.msra.mxu0 %v3693
      %v3695 = vand.u32 %v1340, 4294901760
      %v3696 = vsub.f32 %v1340, %v3695
      %v3697 = vand.u32 %v3696, 4294901760
      %3698 = vmatpush.msra.mxu0 %v3697
      %v3699 = vand.u32 %v1336, 4294901760
      %v3700 = vsub.f32 %v1336, %v3699
      %v3701 = vand.u32 %v3700, 4294901760
      %3702 = vmatpush.msra.mxu0 %v3701
      %v3703 = vand.u32 %v1060, 4294901760
      %3704 = vmatmul.f32.gmra.mxu0 %v3703
      %v3705 = vpop.f32.mrf.mxu0
      %v3706 = vadd.f32 %v3637, %v3705
      %3707 = vdwg.mxu0
      %v3708 = vand.u32 %v1396, 4294901760
      %3709 = vmatpush.msra.mxu0 %v3708
      %v3710 = vand.u32 %v1392, 4294901760
      %3711 = vmatpush.msra.mxu0 %v3710
      %v3712 = vand.u32 %v1388, 4294901760
      %3713 = vmatpush.msra.mxu0 %v3712
      %v3714 = vand.u32 %v1384, 4294901760
      %3715 = vmatpush.msra.mxu0 %v3714
      %v3716 = vand.u32 %v1380, 4294901760
      %3717 = vmatpush.msra.mxu0 %v3716
      %v3718 = vand.u32 %v1376, 4294901760
      %3719 = vmatpush.msra.mxu0 %v3718
      %v3720 = vand.u32 %v1372, 4294901760
      %3721 = vmatpush.msra.mxu0 %v3720
      %v3722 = vand.u32 %v1368, 4294901760
      %3723 = vmatpush.msra.mxu0 %v3722
      %v3724 = vand.u32 %v1364, 4294901760
      %3725 = vmatpush.msra.mxu0 %v3724
      %v3726 = vand.u32 %v1360, 4294901760
      %3727 = vmatpush.msra.mxu0 %v3726
      %v3728 = vand.u32 %v1356, 4294901760
      %3729 = vmatpush.msra.mxu0 %v3728
      %v3730 = vand.u32 %v1352, 4294901760
      %3731 = vmatpush.msra.mxu0 %v3730
      %v3732 = vand.u32 %v1348, 4294901760
      %3733 = vmatpush.msra.mxu0 %v3732
      %v3734 = vand.u32 %v1344, 4294901760
      %3735 = vmatpush.msra.mxu0 %v3734
      %v3736 = vand.u32 %v1340, 4294901760
      %3737 = vmatpush.msra.mxu0 %v3736
      %v3738 = vand.u32 %v1336, 4294901760
      %3739 = vmatpush.msra.mxu0 %v3738
      %v3740 = vand.u32 %v1060, 4294901760
      %3741 = vmatmul.f32.gmra.mxu0 %v3740
      %v3742 = vpop.f32.mrf.mxu0
      %v3743 = vadd.f32 %v3706, %v3742
      %3744 = vdwg.mxu0
      %3745 = vmatpush.msra.mxu0 0.0
      %3746 = vmatpush.msra.mxu0 0.0
      %3747 = vmatpush.msra.mxu0 0.0
      %3748 = vmatpush.msra.mxu0 0.0
      %3749 = vmatpush.msra.mxu0 0.0
      %v3750 = vand.u32 %v1440, 4294901760
      %3751 = vmatpush.msra.mxu0 %v3750
      %v3752 = vand.u32 %v1436, 4294901760
      %3753 = vmatpush.msra.mxu0 %v3752
      %v3754 = vand.u32 %v1432, 4294901760
      %3755 = vmatpush.msra.mxu0 %v3754
      %v3756 = vand.u32 %v1428, 4294901760
      %3757 = vmatpush.msra.mxu0 %v3756
      %v3758 = vand.u32 %v1424, 4294901760
      %3759 = vmatpush.msra.mxu0 %v3758
      %v3760 = vand.u32 %v1420, 4294901760
      %3761 = vmatpush.msra.mxu0 %v3760
      %v3762 = vand.u32 %v1416, 4294901760
      %3763 = vmatpush.msra.mxu0 %v3762
      %v3764 = vand.u32 %v1412, 4294901760
      %3765 = vmatpush.msra.mxu0 %v3764
      %v3766 = vand.u32 %v1408, 4294901760
      %3767 = vmatpush.msra.mxu0 %v3766
      %v3768 = vand.u32 %v1404, 4294901760
      %3769 = vmatpush.msra.mxu0 %v3768
      %v3770 = vand.u32 %v1400, 4294901760
      %3771 = vmatpush.msra.mxu0 %v3770
      %v3772 = vand.u32 %v1551, 4294901760
      %v3773 = vsub.f32 %v1551, %v3772
      %v3774 = vand.u32 %v3773, 4294901760
      %v3775 = vsub.f32 %v3773, %v3774
      %v3776 = vand.u32 %v3775, 4294901760
      %3777 = vmatmul.f32.gmra.mxu0 %v3776
      %v3778 = vpop.f32.mrf.mxu0
      %v3779 = vadd.f32 %v3743, %v3778
      %3780 = vdwg.mxu0
      %3781 = vmatpush.msra.mxu0 0.0
      %3782 = vmatpush.msra.mxu0 0.0
      %3783 = vmatpush.msra.mxu0 0.0
      %3784 = vmatpush.msra.mxu0 0.0
      %3785 = vmatpush.msra.mxu0 0.0
      %v3786 = vand.u32 %v1440, 4294901760
      %v3787 = vsub.f32 %v1440, %v3786
      %v3788 = vand.u32 %v3787, 4294901760
      %v3789 = vsub.f32 %v3787, %v3788
      %v3790 = vand.u32 %v3789, 4294901760
      %3791 = vmatpush.msra.mxu0 %v3790
      %v3792 = vand.u32 %v1436, 4294901760
      %v3793 = vsub.f32 %v1436, %v3792
      %v3794 = vand.u32 %v3793, 4294901760
      %v3795 = vsub.f32 %v3793, %v3794
      %v3796 = vand.u32 %v3795, 4294901760
      %3797 = vmatpush.msra.mxu0 %v3796
      %v3798 = vand.u32 %v1432, 4294901760
      %v3799 = vsub.f32 %v1432, %v3798
      %v3800 = vand.u32 %v3799, 4294901760
      %v3801 = vsub.f32 %v3799, %v3800
      %v3802 = vand.u32 %v3801, 4294901760
      %3803 = vmatpush.msra.mxu0 %v3802
      %v3804 = vand.u32 %v1428, 4294901760
      %v3805 = vsub.f32 %v1428, %v3804
      %v3806 = vand.u32 %v3805, 4294901760
      %v3807 = vsub.f32 %v3805, %v3806
      %v3808 = vand.u32 %v3807, 4294901760
      %3809 = vmatpush.msra.mxu0 %v3808
      %v3810 = vand.u32 %v1424, 4294901760
      %v3811 = vsub.f32 %v1424, %v3810
      %v3812 = vand.u32 %v3811, 4294901760
      %v3813 = vsub.f32 %v3811, %v3812
      %v3814 = vand.u32 %v3813, 4294901760
      %3815 = vmatpush.msra.mxu0 %v3814
      %v3816 = vand.u32 %v1420, 4294901760
      %v3817 = vsub.f32 %v1420, %v3816
      %v3818 = vand.u32 %v3817, 4294901760
      %v3819 = vsub.f32 %v3817, %v3818
      %v3820 = vand.u32 %v3819, 4294901760
      %3821 = vmatpush.msra.mxu0 %v3820
      %v3822 = vand.u32 %v1416, 4294901760
      %v3823 = vsub.f32 %v1416, %v3822
      %v3824 = vand.u32 %v3823, 4294901760
      %v3825 = vsub.f32 %v3823, %v3824
      %v3826 = vand.u32 %v3825, 4294901760
      %3827 = vmatpush.msra.mxu0 %v3826
      %v3828 = vand.u32 %v1412, 4294901760
      %v3829 = vsub.f32 %v1412, %v3828
      %v3830 = vand.u32 %v3829, 4294901760
      %v3831 = vsub.f32 %v3829, %v3830
      %v3832 = vand.u32 %v3831, 4294901760
      %3833 = vmatpush.msra.mxu0 %v3832
      %v3834 = vand.u32 %v1408, 4294901760
      %v3835 = vsub.f32 %v1408, %v3834
      %v3836 = vand.u32 %v3835, 4294901760
      %v3837 = vsub.f32 %v3835, %v3836
      %v3838 = vand.u32 %v3837, 4294901760
      %3839 = vmatpush.msra.mxu0 %v3838
      %v3840 = vand.u32 %v1404, 4294901760
      %v3841 = vsub.f32 %v1404, %v3840
      %v3842 = vand.u32 %v3841, 4294901760
      %v3843 = vsub.f32 %v3841, %v3842
      %v3844 = vand.u32 %v3843, 4294901760
      %3845 = vmatpush.msra.mxu0 %v3844
      %v3846 = vand.u32 %v1400, 4294901760
      %v3847 = vsub.f32 %v1400, %v3846
      %v3848 = vand.u32 %v3847, 4294901760
      %v3849 = vsub.f32 %v3847, %v3848
      %v3850 = vand.u32 %v3849, 4294901760
      %3851 = vmatpush.msra.mxu0 %v3850
      %v3852 = vand.u32 %v1551, 4294901760
      %3853 = vmatmul.f32.gmra.mxu0 %v3852
      %v3854 = vpop.f32.mrf.mxu0
      %v3855 = vadd.f32 %v3779, %v3854
      %3856 = vdwg.mxu0
      %3857 = vmatpush.msra.mxu0 0.0
      %3858 = vmatpush.msra.mxu0 0.0
      %3859 = vmatpush.msra.mxu0 0.0
      %3860 = vmatpush.msra.mxu0 0.0
      %3861 = vmatpush.msra.mxu0 0.0
      %v3862 = vand.u32 %v1440, 4294901760
      %v3863 = vsub.f32 %v1440, %v3862
      %3864 = vmatpush.msra.mxu0 %v3863
      %v3865 = vand.u32 %v1436, 4294901760
      %v3866 = vsub.f32 %v1436, %v3865
      %3867 = vmatpush.msra.mxu0 %v3866
      %v3868 = vand.u32 %v1432, 4294901760
      %v3869 = vsub.f32 %v1432, %v3868
      %3870 = vmatpush.msra.mxu0 %v3869
      %v3871 = vand.u32 %v1428, 4294901760
      %v3872 = vsub.f32 %v1428, %v3871
      %3873 = vmatpush.msra.mxu0 %v3872
      %v3874 = vand.u32 %v1424, 4294901760
      %v3875 = vsub.f32 %v1424, %v3874
      %3876 = vmatpush.msra.mxu0 %v3875
      %v3877 = vand.u32 %v1420, 4294901760
      %v3878 = vsub.f32 %v1420, %v3877
      %3879 = vmatpush.msra.mxu0 %v3878
      %v3880 = vand.u32 %v1416, 4294901760
      %v3881 = vsub.f32 %v1416, %v3880
      %3882 = vmatpush.msra.mxu0 %v3881
      %v3883 = vand.u32 %v1412, 4294901760
      %v3884 = vsub.f32 %v1412, %v3883
      %3885 = vmatpush.msra.mxu0 %v3884
      %v3886 = vand.u32 %v1408, 4294901760
      %v3887 = vsub.f32 %v1408, %v3886
      %3888 = vmatpush.msra.mxu0 %v3887
      %v3889 = vand.u32 %v1404, 4294901760
      %v3890 = vsub.f32 %v1404, %v3889
      %3891 = vmatpush.msra.mxu0 %v3890
      %v3892 = vand.u32 %v1400, 4294901760
      %v3893 = vsub.f32 %v1400, %v3892
      %3894 = vmatpush.msra.mxu0 %v3893
      %v3895 = vand.u32 %v1551, 4294901760
      %v3896 = vsub.f32 %v1551, %v3895
      %3897 = vmatmul.f32.gmra.mxu0 %v3896
      %v3898 = vpop.f32.mrf.mxu0
      %v3899 = vadd.f32 %v3855, %v3898
      %3900 = vdwg.mxu0
      %3901 = vmatpush.msra.mxu0 0.0
      %3902 = vmatpush.msra.mxu0 0.0
      %3903 = vmatpush.msra.mxu0 0.0
      %3904 = vmatpush.msra.mxu0 0.0
      %3905 = vmatpush.msra.mxu0 0.0
      %v3906 = vand.u32 %v1440, 4294901760
      %3907 = vmatpush.msra.mxu0 %v3906
      %v3908 = vand.u32 %v1436, 4294901760
      %3909 = vmatpush.msra.mxu0 %v3908
      %v3910 = vand.u32 %v1432, 4294901760
      %3911 = vmatpush.msra.mxu0 %v3910
      %v3912 = vand.u32 %v1428, 4294901760
      %3913 = vmatpush.msra.mxu0 %v3912
      %v3914 = vand.u32 %v1424, 4294901760
      %3915 = vmatpush.msra.mxu0 %v3914
      %v3916 = vand.u32 %v1420, 4294901760
      %3917 = vmatpush.msra.mxu0 %v3916
      %v3918 = vand.u32 %v1416, 4294901760
      %3919 = vmatpush.msra.mxu0 %v3918
      %v3920 = vand.u32 %v1412, 4294901760
      %3921 = vmatpush.msra.mxu0 %v3920
      %v3922 = vand.u32 %v1408, 4294901760
      %3923 = vmatpush.msra.mxu0 %v3922
      %v3924 = vand.u32 %v1404, 4294901760
      %3925 = vmatpush.msra.mxu0 %v3924
      %v3926 = vand.u32 %v1400, 4294901760
      %3927 = vmatpush.msra.mxu0 %v3926
      %v3928 = vand.u32 %v1551, 4294901760
      %v3929 = vsub.f32 %v1551, %v3928
      %v3930 = vand.u32 %v3929, 4294901760
      %3931 = vmatmul.f32.gmra.mxu0 %v3930
      %v3932 = vpop.f32.mrf.mxu0
      %v3933 = vadd.f32 %v3899, %v3932
      %3934 = vdwg.mxu0
      %3935 = vmatpush.msra.mxu0 0.0
      %3936 = vmatpush.msra.mxu0 0.0
      %3937 = vmatpush.msra.mxu0 0.0
      %3938 = vmatpush.msra.mxu0 0.0
      %3939 = vmatpush.msra.mxu0 0.0
      %v3940 = vand.u32 %v1440, 4294901760
      %v3941 = vsub.f32 %v1440, %v3940
      %v3942 = vand.u32 %v3941, 4294901760
      %3943 = vmatpush.msra.mxu0 %v3942
      %v3944 = vand.u32 %v1436, 4294901760
      %v3945 = vsub.f32 %v1436, %v3944
      %v3946 = vand.u32 %v3945, 4294901760
      %3947 = vmatpush.msra.mxu0 %v3946
      %v3948 = vand.u32 %v1432, 4294901760
      %v3949 = vsub.f32 %v1432, %v3948
      %v3950 = vand.u32 %v3949, 4294901760
      %3951 = vmatpush.msra.mxu0 %v3950
      %v3952 = vand.u32 %v1428, 4294901760
      %v3953 = vsub.f32 %v1428, %v3952
      %v3954 = vand.u32 %v3953, 4294901760
      %3955 = vmatpush.msra.mxu0 %v3954
      %v3956 = vand.u32 %v1424, 4294901760
      %v3957 = vsub.f32 %v1424, %v3956
      %v3958 = vand.u32 %v3957, 4294901760
      %3959 = vmatpush.msra.mxu0 %v3958
      %v3960 = vand.u32 %v1420, 4294901760
      %v3961 = vsub.f32 %v1420, %v3960
      %v3962 = vand.u32 %v3961, 4294901760
      %3963 = vmatpush.msra.mxu0 %v3962
      %v3964 = vand.u32 %v1416, 4294901760
      %v3965 = vsub.f32 %v1416, %v3964
      %v3966 = vand.u32 %v3965, 4294901760
      %3967 = vmatpush.msra.mxu0 %v3966
      %v3968 = vand.u32 %v1412, 4294901760
      %v3969 = vsub.f32 %v1412, %v3968
      %v3970 = vand.u32 %v3969, 4294901760
      %3971 = vmatpush.msra.mxu0 %v3970
      %v3972 = vand.u32 %v1408, 4294901760
      %v3973 = vsub.f32 %v1408, %v3972
      %v3974 = vand.u32 %v3973, 4294901760
      %3975 = vmatpush.msra.mxu0 %v3974
      %v3976 = vand.u32 %v1404, 4294901760
      %v3977 = vsub.f32 %v1404, %v3976
      %v3978 = vand.u32 %v3977, 4294901760
      %3979 = vmatpush.msra.mxu0 %v3978
      %v3980 = vand.u32 %v1400, 4294901760
      %v3981 = vsub.f32 %v1400, %v3980
      %v3982 = vand.u32 %v3981, 4294901760
      %3983 = vmatpush.msra.mxu0 %v3982
      %v3984 = vand.u32 %v1551, 4294901760
      %3985 = vmatmul.f32.gmra.mxu0 %v3984
      %v3986 = vpop.f32.mrf.mxu0
      %v3987 = vadd.f32 %v3933, %v3986
      %3988 = vdwg.mxu0
      %3989 = vmatpush.msra.mxu0 0.0
      %3990 = vmatpush.msra.mxu0 0.0
      %3991 = vmatpush.msra.mxu0 0.0
      %3992 = vmatpush.msra.mxu0 0.0
      %3993 = vmatpush.msra.mxu0 0.0
      %v3994 = vand.u32 %v1440, 4294901760
      %3995 = vmatpush.msra.mxu0 %v3994
      %v3996 = vand.u32 %v1436, 4294901760
      %3997 = vmatpush.msra.mxu0 %v3996
      %v3998 = vand.u32 %v1432, 4294901760
      %3999 = vmatpush.msra.mxu0 %v3998
      %v4000 = vand.u32 %v1428, 4294901760
      %4001 = vmatpush.msra.mxu0 %v4000
      %v4002 = vand.u32 %v1424, 4294901760
      %4003 = vmatpush.msra.mxu0 %v4002
      %v4004 = vand.u32 %v1420, 4294901760
      %4005 = vmatpush.msra.mxu0 %v4004
      %v4006 = vand.u32 %v1416, 4294901760
      %4007 = vmatpush.msra.mxu0 %v4006
      %v4008 = vand.u32 %v1412, 4294901760
      %4009 = vmatpush.msra.mxu0 %v4008
      %v4010 = vand.u32 %v1408, 4294901760
      %4011 = vmatpush.msra.mxu0 %v4010
      %v4012 = vand.u32 %v1404, 4294901760
      %4013 = vmatpush.msra.mxu0 %v4012
      %v4014 = vand.u32 %v1400, 4294901760
      %4015 = vmatpush.msra.mxu0 %v4014
      %v4016 = vand.u32 %v1551, 4294901760
      %4017 = vmatmul.f32.gmra.mxu0 %v4016
      %v4018 = vpop.f32.mrf.mxu0
      %v4019 = vadd.f32 %v3987, %v4018
      %4020 = vdwg.mxu0
      %4021 = vst [vmem:[%s497] sm:$0xff] %v2168
      %4022 = vst [vmem:[%s497 + $0x8] sm:$0xff] %v2785
      %4023 = vst [vmem:[%s497 + $0x10] sm:$0xff] %v3402
      %4024 = vst [vmem:[%s497 + $0x18] sm:$0xff] %v4019
      %v4025 = vld [vmem:[%s483] sm:$0xf]
      %v4027 = vperm.slane %v4025, 0
      %v4028 = vperm.slane %v4025, 1
      %v4029 = vperm.slane %v4025, 2
      %v4030 = vperm.slane %v4025, 3
      %v4035 = vmul.f32 %v2168, %v4027
      %v4036 = vmul.f32 %v2785, %v4028
      %v4037 = vmul.f32 %v3402, %v4029
      %v4038 = vmul.f32 %v4019, %v4030
      %v4039 = vadd.f32 %v4035, %v4036
      %v4040 = vadd.f32 %v4039, %v4037
      %v4041 = vadd.f32 %v4040, %v4038
      %4042 = vadd.xlane.f32.xlu0 %v4041
      %v4043 = vpop.xlane.xlu0 %4042
      %v4044 = vmul.f32 %v2168, %v2168
      %v4045 = vmul.f32 %v2785, %v2785
      %v4046 = vmul.f32 %v3402, %v3402
      %v4047 = vmul.f32 %v4019, %v4019
      %v4048 = vmul.f32 %v4044, %v4027
      %v4049 = vmul.f32 %v4045, %v4028
      %v4050 = vmul.f32 %v4046, %v4029
      %v4051 = vmul.f32 %v4047, %v4030
      %v4052 = vadd.f32 %v4048, %v4049
      %v4053 = vadd.f32 %v4052, %v4050
      %v4054 = vadd.f32 %v4053, %v4051
      %4055 = vadd.xlane.f32.xlu0 %v4054
      %v4056 = vpop.xlane.xlu0 %4055
      %vm4057 = vcmask 7168
      %v4058 = vsel %vm4057, %v4043, %v4056
      %vm4059 = vcmask 15360
      %4060 = vst.msk [vmem:[%s502] sm:$0xff] %vm4059, %v4058
      %s4061 = smul.u32 4, %s22
      %p4062 = scmp.lt.s32.totalorder %s4061, 15
      %s4063 = scalar_select %p4062, %s4061, 15
      %s4064 = smul.addr %s4063, 8
      %s4065 = scalar_lea.vmem %s9, %s4064
      %p4066 = scmp.lt.s32.totalorder %s22, 3
      %s4067 = scalar_select %p4066, %s22, 3
      %s4068 = smul.addr %s4067, 8
      %s4069 = scalar_lea.vmem %s10, %s4068
      // Predicated region
      $region57: #{simple_rb_forward.4} parent=55 // pred_check
        %p4070 = pneg %p267
      $region58: #{simple_rb_forward.4} parent=55 // pred_check_branch
        %4072 = sbr.rel (%p4070) target = $region60
      $region59: #{simple_rb_forward.4} parent=55 // pred_region
        %s4073 = smul.u32 4, %s22
      $region60: #{simple_rb_forward.4} parent=55 // pred_fallthru
        _
      // Predicated region
      $region61: #{simple_rb_forward.4} parent=55 // pred_check
        %p4074 = pneg %p293
      $region62: #{simple_rb_forward.4} parent=55 // pred_check_branch
        %4076 = sbr.rel (%p4074) target = $region64
      $region63: #{simple_rb_forward.4} parent=55 // pred_region
        _
      $region64: #{simple_rb_forward.4} parent=55 // pred_fallthru
        _
    $region56: #{simple_rb_forward.4} parent=5 // pred_fallthru
      _
    %p4077 = scmp.le.s32.totalorder 2, %s17
    // Predicated region
    $region65: #{simple_rb_forward.4} parent=5 // pred_check
      %p4078 = pneg %p4077
    $region66: #{simple_rb_forward.4} parent=5 // pred_check_branch
      %4080 = sbr.rel (%p4078) target = $region68
    $region67: #{simple_rb_forward.4} parent=5 // pred_region
      %s4081 = ssub.s32 %s17, 2
      // Predicated region
      $region69: #{simple_rb_forward.4} parent=67 // pred_check
        %p4082 = pneg %p273
      $region70: #{simple_rb_forward.4} parent=67 // pred_check_branch
        %4084 = sbr.rel (%p4082) target = $region72
      $region71: #{simple_rb_forward.4} parent=67 // pred_region
        %s4085 = smul.u32 4, %s23
        %p4086 = scmp.lt.s32.totalorder %s4085, 15
        %s4087 = scalar_select %p4086, %s4085, 15
        %s4088 = smul.addr %s4087, 8
        %s4089 = scalar_lea.vmem %s9, %s4088
      $region72: #{simple_rb_forward.4} parent=67 // pred_fallthru
        _
      // Predicated region
      $region73: #{simple_rb_forward.4} parent=67 // pred_check
        %p4090 = pneg %p299
      $region74: #{simple_rb_forward.4} parent=67 // pred_check_branch
        %4092 = sbr.rel (%p4090) target = $region76
      $region75: #{simple_rb_forward.4} parent=67 // pred_region
        %p4093 = scmp.lt.s32.totalorder %s23, 3
        %s4094 = scalar_select %p4093, %s23, 3
        %s4095 = smul.addr %s4094, 8
        %s4096 = scalar_lea.vmem %s10, %s4095
      $region76: #{simple_rb_forward.4} parent=67 // pred_fallthru
        _
    $region68: #{simple_rb_forward.4} parent=5 // pred_fallthru
      _
  $region6: #{simple_rb_forward.4} parent=0 // loop_footer
    %s21 = sadd.s32 1, %s17
  $region7: #{simple_rb_forward.4} parent=0 // loop_footer_branch
    %16 = sbr.rel target = $region3
  $region8: #{simple_rb_forward.4} parent=0 // loop_exit
    _

</llo_original>
